<compile_context>
chip_gen: v6e
topology: v6e:2x2x1
jax: 0.10.0
libtpu: 0.0.40
codegen_flags: <defaults>
</compile_context>

<pallas_src>
import jax
import jax.numpy as jnp
from jax import lax
from jax.experimental import pallas as pl
from jax.experimental.pallas import tpu as pltpu


def _pick_batch_tile(B, batch_block):
    """Batch tile: big enough to fill MXU rows, 16-aligned (bf16 sublane
    packing) or equal to the full batch; B/2 when possible so the two v7x
    TensorCores each take one tile (harmless on single-core chips)."""
    if batch_block is not None:
        assert B % batch_block == 0, "batch_block must divide B"
        return batch_block
    half = B // 2
    if B % 2 == 0 and half % 16 == 0 and half <= 256:
        return half
    if B <= 256:
        return B
    for tb in range(256, 15, -16):
        if B % tb == 0:
            return tb
    return B


def _lstm_recurrent_kernel(hidden: int, tt: int, t_valid: int, needs_mask: bool):
    """Recurrent-only LSTM kernel: gates_t = x_proj[t] + h @ W_hh^T."""
    H = hidden

    def kernel(xp_ref, h0_ref, c0_ref, whh_hbm,
               y_ref, hT_ref, cT_ref,
               whh_vmem, h_scr, c_scr, dma_sem):
        t_blk = pl.program_id(1)

        # First time block of each batch tile: init state and pull the
        # recurrent weights HBM -> VMEM once (single resident copy, no
        # pipeline double-buffer).  Guarded on t_blk (not the batch index) so
        # it stays correct when the parallel batch axis is sharded across
        # TensorCores (per-core scratch).
        @pl.when(t_blk == 0)
        def _():
            cp = pltpu.make_async_copy(whh_hbm, whh_vmem, dma_sem)
            cp.start()
            h_scr[...] = h0_ref[...].astype(jnp.bfloat16)
            c_scr[...] = c0_ref[...].astype(jnp.float32)
            cp.wait()

        def step(i, carry):
            xp = xp_ref[i]                       # (TB, 4H) bf16
            h_bf = h_scr[...]                    # (TB, H)  bf16 recurrent carry
            c = c_scr[...]                       # (TB, H)  f32

            def gate_pre(k):
                # (TB, H) f32: bf16 x-projection slice + bf16 h @ bf16 W_hh slice
                # (lane-aligned column slices; f32 MXU accumulation).
                return xp[:, k * H:(k + 1) * H] + jnp.dot(
                    h_bf, whh_vmem[:, k * H:(k + 1) * H],
                    preferred_element_type=jnp.float32)

            # Per-gate matmul + activation, consumed immediately, so the live
            # set stays ~(TB, H) instead of a (TB, 4H) f32 gates tensor.
            f_g = jax.nn.sigmoid(gate_pre(1))
            c_new = f_g * c
            i_g = jax.nn.sigmoid(gate_pre(0))
            g_g = jnp.tanh(gate_pre(2))
            c_new = c_new + i_g * g_g
            o_g = jax.nn.sigmoid(gate_pre(3))
            h_new = o_g * jnp.tanh(c_new)

            h_new_bf = h_new.astype(jnp.bfloat16)
            if needs_mask:
                # Padded tail timesteps must not advance the recurrent state.
                valid = (t_blk * tt + i) < t_valid
                c_new = jnp.where(valid, c_new, c)
                h_new_bf = jnp.where(valid, h_new_bf, h_bf)

            h_scr[...] = h_new_bf
            c_scr[...] = c_new
            y_ref[i] = h_new.astype(y_ref.dtype)   # lane-dense (TB, H) store
            return carry

        # Fully unrolled inner time loop: long straight-line region for the
        # LLO scheduler; one grid step per TT timesteps.
        lax.fori_loop(0, tt, step, 0, unroll=True)

        @pl.when(t_blk == pl.num_programs(1) - 1)
        def _():
            hT_ref[...] = h_scr[...].astype(hT_ref.dtype)
            cT_ref[...] = c_scr[...].astype(cT_ref.dtype)

    return kernel


def _input_projection(x, w_ih, b_ih, b_hh):
    """x_proj = x @ W_ih^T + (b_ih + b_hh): one big parallel matmul (XLA).
    Emitted in bf16 (bias added in f32 first) to halve the streamed bytes."""
    T, B, I = x.shape
    four_h = w_ih.shape[0]
    x_bf = x.astype(jnp.bfloat16).reshape(T * B, I)
    wih_t_bf = jnp.transpose(w_ih).astype(jnp.bfloat16)        # (I, 4H)
    bias = (b_ih + b_hh).astype(jnp.float32)                   # (4H,)
    xp = jnp.dot(x_bf, wih_t_bf, preferred_element_type=jnp.float32) + bias
    return xp.reshape(T, B, four_h).astype(jnp.bfloat16)       # (T, B, 4H) bf16


def lstm_layer(x, h0, c0, w_ih, w_hh, b_ih, b_hh, *,
               time_block=32, batch_block=None):
    """x: (T, B, I); h0, c0: (B, H); w_ih: (4H, I); w_hh: (4H, H); biases (4H,).

    Returns (y, (hT, cT)) with y: (T, B, H)."""
    T, B, I = x.shape
    H = h0.shape[1]
    assert w_ih.shape == (4 * H, I) and w_hh.shape == (4 * H, H)

    TB = _pick_batch_tile(B, batch_block)
    nb = B // TB

    TT = max(1, min(time_block, T))
    nt = -(-T // TT)
    T_pad = nt * TT
    needs_mask = (T_pad != T)

    x_proj = _input_projection(x, w_ih, b_ih, b_hh)            # (T, B, 4H) bf16
    if needs_mask:
        x_proj = jnp.pad(x_proj, ((0, T_pad - T), (0, 0), (0, 0)))
    whh_t = jnp.transpose(w_hh).astype(jnp.bfloat16)           # (H, 4H) bf16

    out_dtype = x.dtype

    # Explicit VMEM budget: double-buffered streamed blocks + resident scratch.
    # Sized per call so a tiling that fits v6e also respects v7x's 64 MiB.
    st_bytes = x.dtype.itemsize
    y_bytes = jnp.zeros((), out_dtype).dtype.itemsize
    est = (2 * TT * TB * 4 * H * 2          # x_proj blocks (bf16, 2 buffers)
           + 2 * TT * TB * H * y_bytes      # y blocks
           + 4 * 2 * TB * H * st_bytes      # h0/c0 in + hT/cT out blocks
           + H * 4 * H * 2                  # resident W_hh^T (bf16, single copy)
           + TB * H * (2 + 4))              # h (bf16) + c (f32) state scratch
    vmem_limit = int(min(max(2 * est, 32 * 2 ** 20), 64 * 2 ** 20))

    grid_spec = pltpu.PrefetchScalarGridSpec(
        num_scalar_prefetch=0,
        grid=(nb, nt),
        in_specs=[
            pl.BlockSpec((TT, TB, 4 * H), lambda b, t: (t, b, 0)),  # x_proj bf16
            pl.BlockSpec((TB, H), lambda b, t: (b, 0)),             # h0
            pl.BlockSpec((TB, H), lambda b, t: (b, 0)),             # c0
            pl.BlockSpec(memory_space=pl.ANY),                      # W_hh^T (HBM)
        ],
        out_specs=[
            pl.BlockSpec((TT, TB, H), lambda b, t: (t, b, 0)),      # y block
            pl.BlockSpec((TB, H), lambda b, t: (b, 0)),             # hT
            pl.BlockSpec((TB, H), lambda b, t: (b, 0)),             # cT
        ],
        scratch_shapes=[
            pltpu.VMEM((H, 4 * H), jnp.bfloat16),                   # resident W_hh^T
            pltpu.VMEM((TB, H), jnp.bfloat16),                      # h state
            pltpu.VMEM((TB, H), jnp.float32),                       # c state
            pltpu.SemaphoreType.DMA,                                # weight-copy sem
        ],
    )

    y_pad, hT, cT = pl.pallas_call(
        _lstm_recurrent_kernel(H, TT, T, needs_mask),
        out_shape=(
            jax.ShapeDtypeStruct((T_pad, B, H), out_dtype),
            jax.ShapeDtypeStruct((B, H), out_dtype),
            jax.ShapeDtypeStruct((B, H), out_dtype),
        ),
        grid_spec=grid_spec,
        compiler_params=pltpu.CompilerParams(
            # Batch tiles are independent (megacore-parallel on v7x);
            # the trailing time axis carries the recurrence and must stay
            # "arbitrary" / sequential.
            dimension_semantics=("parallel", "arbitrary"),
            vmem_limit_bytes=vmem_limit),
    )(x_proj, h0, c0, whh_t)

    y = y_pad[:T] if needs_mask else y_pad
    return y, (hT, cT)


# ---------------------------------------------------------------------------
# References
# ---------------------------------------------------------------------------

def _lstm_ref_policy(x_proj, h0, c0, w_hh):
    """Pure-JAX reference mirroring the kernel's numeric policy exactly
    (precomputed bf16 x projection, bf16 recurrent weights and h carry,
    f32 accumulation / cell state)."""
    H = h0.shape[1]
    whh_t_bf = jnp.transpose(w_hh).astype(jnp.bfloat16)

    def step(carry, xp_t):
        h_bf, c = carry
        gates = xp_t.astype(jnp.float32) + jnp.dot(
            h_bf, whh_t_bf, preferred_element_type=jnp.float32)
        i_g = jax.nn.sigmoid(gates[:, 0 * H:1 * H])
        f_g = jax.nn.sigmoid(gates[:, 1 * H:2 * H])
        g_g = jnp.tanh(gates[:, 2 * H:3 * H])
        o_g = jax.nn.sigmoid(gates[:, 3 * H:4 * H])
        c_new = f_g * c + i_g * g_g
        h_new = o_g * jnp.tanh(c_new)
        return (h_new.astype(jnp.bfloat16), c_new), h_new

    (hT_bf, cT), y = lax.scan(
        step, (h0.astype(jnp.bfloat16), c0.astype(jnp.float32)), x_proj)
    return y, (hT_bf.astype(jnp.float32), cT)


def _lstm_ref_f32(x, h0, c0, w_ih, w_hh, b_ih, b_hh):
    """Full-precision reference matching torch.nn.LSTMCell unrolled over time."""
    H = h0.shape[1]

    def step(carry, x_t):
        h, c = carry
        gates = x_t @ w_ih.T + b_ih + h @ w_hh.T + b_hh
        i_g = jax.nn.sigmoid(gates[:, 0 * H:1 * H])
        f_g = jax.nn.sigmoid(gates[:, 1 * H:2 * H])
        g_g = jnp.tanh(gates[:, 2 * H:3 * H])
        o_g = jax.nn.sigmoid(gates[:, 3 * H:4 * H])
        c_new = f_g * c + i_g * g_g
        h_new = o_g * jnp.tanh(c_new)
        return (h_new, c_new), h_new

    (hT, cT), y = lax.scan(step, (h0, c0), x)
    return y, (hT, cT)


if __name__ == "__main__":
    def _make_inputs(key, T, B, I, H):
        kx, kh, kc, k1, k2, k3, k4 = jax.random.split(key, 7)
        x = jax.random.normal(kx, (T, B, I), dtype=jnp.float32)
        h0 = jax.random.normal(kh, (B, H), dtype=jnp.float32)
        c0 = jax.random.normal(kc, (B, H), dtype=jnp.float32)
        bound = 1.0 / (H ** 0.5)
        w_ih = jax.random.uniform(k1, (4 * H, I), minval=-bound, maxval=bound)
        w_hh = jax.random.uniform(k2, (4 * H, H), minval=-bound, maxval=bound)
        b_ih = jax.random.uniform(k3, (4 * H,), minval=-bound, maxval=bound)
        b_hh = jax.random.uniform(k4, (4 * H,), minval=-bound, maxval=bound)
        return x, h0, c0, w_ih, w_hh, b_ih, b_hh

    key = jax.random.PRNGKey(0)
    k_a, k_b = jax.random.split(key)

    # Case 1: aligned shapes (T divides the time block, lane/sublane friendly).
    x, h0, c0, w_ih, w_hh, b_ih, b_hh = _make_inputs(k_a, 16, 16, 64, 128)
    y, (hT, cT) = lstm_layer(x, h0, c0, w_ih, w_hh, b_ih, b_hh)
    jax.block_until_ready((y, hT, cT))

    # Tight check against a reference using the identical numeric policy.
    x_proj = _input_projection(x, w_ih, b_ih, b_hh)
    y_p, (hT_p, cT_p) = _lstm_ref_policy(x_proj, h0, c0, w_hh)
    assert jnp.allclose(y, y_p, atol=2e-3, rtol=2e-3)
    assert jnp.allclose(hT, hT_p, atol=2e-3, rtol=2e-3)
    assert jnp.allclose(cT, cT_p, atol=2e-3, rtol=2e-3)

    # Loose check against full-f32 LSTMCell semantics (bf16 policy drift is
    # small and bounded at this T).
    y_f, (hT_f, cT_f) = _lstm_ref_f32(x, h0, c0, w_ih, w_hh, b_ih, b_hh)
    assert jnp.allclose(y, y_f, atol=5e-2, rtol=5e-2)
    assert jnp.allclose(hT, hT_f, atol=5e-2, rtol=5e-2)
    assert jnp.allclose(cT, cT_f, atol=5e-2, rtol=5e-2)

    # Case 2: awkward T (not a multiple of the time block) -> padded + masked
    # tail path inside the kernel.
    x, h0, c0, w_ih, w_hh, b_ih, b_hh = _make_inputs(k_b, 13, 8, 32, 128)
    y, (hT, cT) = lstm_layer(x, h0, c0, w_ih, w_hh, b_ih, b_hh, time_block=8)
    jax.block_until_ready((y, hT, cT))

    x_proj = _input_projection(x, w_ih, b_ih, b_hh)
    y_p, (hT_p, cT_p) = _lstm_ref_policy(x_proj, h0, c0, w_hh)
    assert y.shape == (13, 8, 128)
    assert jnp.allclose(y, y_p, atol=2e-3, rtol=2e-3)
    assert jnp.allclose(hT, hT_p, atol=2e-3, rtol=2e-3)
    assert jnp.allclose(cT, cT_p, atol=2e-3, rtol=2e-3)

    print("KERNEL_OK")
</pallas_src>

<mosaic_0001>
module attributes {stable_mosaic.version = 11 : i64} {
  func.func @kernel(%arg0: i32, %arg1: i32, %arg2: memref<16x16x512xbf16, #tpu.memory_space<vmem>>, %arg3: memref<16x128xf32, #tpu.memory_space<vmem>>, %arg4: memref<16x128xf32, #tpu.memory_space<vmem>>, %arg5: memref<128x512xbf16, #tpu.memory_space<any>>, %arg6: memref<16x16x128xf32, #tpu.memory_space<vmem>>, %arg7: memref<16x128xf32, #tpu.memory_space<vmem>>, %arg8: memref<16x128xf32, #tpu.memory_space<vmem>>, %arg9: memref<128x512xbf16, #tpu.memory_space<vmem>>, %arg10: memref<16x128xbf16, #tpu.memory_space<vmem>>, %arg11: memref<16x128xf32, #tpu.memory_space<vmem>>, %arg12: memref<!tpu.dma_semaphore, #tpu.memory_space<semaphore_mem>>) attributes {dimension_semantics = [#tpu.dimension_semantics<parallel>, #tpu.dimension_semantics<arbitrary>], iteration_bounds = array<i64: 1, 1>, scalar_prefetch = 0 : i64, scratch_operands = 4 : i64, tpu.core_type = #tpu.core_type<tc>, window_params = [{transform_indices = @transform_0, window_bounds = array<i64: 16, 16, 512>}, {transform_indices = @transform_1, window_bounds = array<i64: 16, 128>}, {transform_indices = @transform_2, window_bounds = array<i64: 16, 128>}, {}, {transform_indices = @transform_4, window_bounds = array<i64: 16, 16, 128>}, {transform_indices = @transform_5, window_bounds = array<i64: 16, 128>}, {transform_indices = @transform_6, window_bounds = array<i64: 16, 128>}]} {
    %c0_i32 = arith.constant 0 : i32
    %0 = arith.cmpi eq, %arg1, %c0_i32 : i32
    %1 = arith.extui %0 : i1 to i32
    %c0_i32_0 = arith.constant 0 : i32
    %2 = arith.cmpi ne, %1, %c0_i32_0 : i32
    scf.if %2 {
      tpu.enqueue_dma source(%arg5 : memref<128x512xbf16, #tpu.memory_space<any>>) target(%arg9 : memref<128x512xbf16, #tpu.memory_space<vmem>>) target_semaphore(%arg12 : memref<!tpu.dma_semaphore, #tpu.memory_space<semaphore_mem>>)
      %c0_431 = arith.constant 0 : index
      %c0_432 = arith.constant 0 : index
      %854 = vector.load %arg3[%c0_431, %c0_432] : memref<16x128xf32, #tpu.memory_space<vmem>>, vector<16x128xf32>
      %855 = arith.truncf %854 : vector<16x128xf32> to vector<16x128xbf16>
      %c0_433 = arith.constant 0 : index
      %c0_434 = arith.constant 0 : index
      %856 = vector.load %arg10[%c0_433, %c0_434] : memref<16x128xbf16, #tpu.memory_space<vmem>>, vector<16x128xbf16>
      tpu.vector_store %arg10[%c0_433, %c0_434], %855 {strides = array<i32>} : memref<16x128xbf16, #tpu.memory_space<vmem>>, vector<16x128xbf16>,
      %c0_435 = arith.constant 0 : index
      %c0_436 = arith.constant 0 : index
      %857 = vector.load %arg4[%c0_435, %c0_436] : memref<16x128xf32, #tpu.memory_space<vmem>>, vector<16x128xf32>
      %c0_437 = arith.constant 0 : index
      %c0_438 = arith.constant 0 : index
      %858 = vector.load %arg11[%c0_437, %c0_438] : memref<16x128xf32, #tpu.memory_space<vmem>>, vector<16x128xf32>
      tpu.vector_store %arg11[%c0_437, %c0_438], %857 {strides = array<i32>} : memref<16x128xf32, #tpu.memory_space<vmem>>, vector<16x128xf32>,
      tpu.wait_dma2 semaphore(%arg12 : memref<!tpu.dma_semaphore, #tpu.memory_space<semaphore_mem>>) src(%arg5 : memref<128x512xbf16, #tpu.memory_space<any>>) dst(%arg9 : memref<128x512xbf16, #tpu.memory_space<vmem>>)
    } else {
    }
    %c0_i32_1 = arith.constant 0 : i32
    %3 = arith.index_cast %c0_i32_1 : i32 to index
    %c0 = arith.constant 0 : index
    %c0_2 = arith.constant 0 : index
    %4 = vector.load %arg2[%3, %c0, %c0_2] : memref<16x16x512xbf16, #tpu.memory_space<vmem>>, vector<1x16x512xbf16>
    %5 = vector.shape_cast %4 : vector<1x16x512xbf16> to vector<16x512xbf16>
    %c0_3 = arith.constant 0 : index
    %c0_4 = arith.constant 0 : index
    %6 = vector.load %arg10[%c0_3, %c0_4] : memref<16x128xbf16, #tpu.memory_space<vmem>>, vector<16x128xbf16>
    %c0_5 = arith.constant 0 : index
    %c0_6 = arith.constant 0 : index
    %7 = vector.load %arg11[%c0_5, %c0_6] : memref<16x128xf32, #tpu.memory_space<vmem>>, vector<16x128xf32>
    %8 = vector.extract_strided_slice %5 {offsets = [0, 128], sizes = [16, 128], strides = [1, 1]} : vector<16x512xbf16> to vector<16x128xbf16>
    %c0_7 = arith.constant 0 : index
    %c128 = arith.constant 128 : index
    %9 = vector.load %arg9[%c0_7, %c128] : memref<128x512xbf16, #tpu.memory_space<vmem>>, vector<128x128xbf16>
    %cst = arith.constant dense<0.000000e+00> : vector<16x128xf32>
    %10 = tpu.matmul %6, %9, %cst {dimension_numbers = #tpu.dot_dimension_numbers<[1], [0], [0], [1], [0, 0, 1, 1], [], []>} : vector<16x128xbf16>, vector<128x128xbf16>, vector<16x128xf32> -> vector<16x128xf32>
    %11 = arith.extf %8 : vector<16x128xbf16> to vector<16x128xf32>
    %12 = arith.addf %11, %10 : vector<16x128xf32>
    %13 = arith.negf %12 : vector<16x128xf32>
    %14 = math.exp %13 : vector<16x128xf32>
    %cst_8 = arith.constant 1.000000e+00 : f32
    %15 = vector.broadcast %cst_8 : f32 to vector<16x128xf32>
    %16 = arith.addf %15, %14 : vector<16x128xf32>
    %17 = arith.divf %15, %16 : vector<16x128xf32>
    %18 = arith.mulf %17, %7 : vector<16x128xf32>
    %19 = vector.extract_strided_slice %5 {offsets = [0, 0], sizes = [16, 128], strides = [1, 1]} : vector<16x512xbf16> to vector<16x128xbf16>
    %c0_9 = arith.constant 0 : index
    %c0_10 = arith.constant 0 : index
    %20 = vector.load %arg9[%c0_9, %c0_10] : memref<128x512xbf16, #tpu.memory_space<vmem>>, vector<128x128xbf16>
    %cst_11 = arith.constant dense<0.000000e+00> : vector<16x128xf32>
    %21 = tpu.matmul %6, %20, %cst_11 {dimension_numbers = #tpu.dot_dimension_numbers<[1], [0], [0], [1], [0, 0, 1, 1], [], []>} : vector<16x128xbf16>, vector<128x128xbf16>, vector<16x128xf32> -> vector<16x128xf32>
    %22 = arith.extf %19 : vector<16x128xbf16> to vector<16x128xf32>
    %23 = arith.addf %22, %21 : vector<16x128xf32>
    %24 = arith.negf %23 : vector<16x128xf32>
    %25 = math.exp %24 : vector<16x128xf32>
    %cst_12 = arith.constant 1.000000e+00 : f32
    %26 = vector.broadcast %cst_12 : f32 to vector<16x128xf32>
    %27 = arith.addf %26, %25 : vector<16x128xf32>
    %28 = arith.divf %26, %27 : vector<16x128xf32>
    %29 = vector.extract_strided_slice %5 {offsets = [0, 256], sizes = [16, 128], strides = [1, 1]} : vector<16x512xbf16> to vector<16x128xbf16>
    %c0_13 = arith.constant 0 : index
    %c256 = arith.constant 256 : index
    %30 = vector.load %arg9[%c0_13, %c256] : memref<128x512xbf16, #tpu.memory_space<vmem>>, vector<128x128xbf16>
    %cst_14 = arith.constant dense<0.000000e+00> : vector<16x128xf32>
    %31 = tpu.matmul %6, %30, %cst_14 {dimension_numbers = #tpu.dot_dimension_numbers<[1], [0], [0], [1], [0, 0, 1, 1], [], []>} : vector<16x128xbf16>, vector<128x128xbf16>, vector<16x128xf32> -> vector<16x128xf32>
    %32 = arith.extf %29 : vector<16x128xbf16> to vector<16x128xf32>
    %33 = arith.addf %32, %31 : vector<16x128xf32>
    %34 = math.tanh %33 : vector<16x128xf32>
    %35 = arith.mulf %28, %34 : vector<16x128xf32>
    %36 = arith.addf %18, %35 : vector<16x128xf32>
    %37 = vector.extract_strided_slice %5 {offsets = [0, 384], sizes = [16, 128], strides = [1, 1]} : vector<16x512xbf16> to vector<16x128xbf16>
    %c0_15 = arith.constant 0 : index
    %c384 = arith.constant 384 : index
    %38 = vector.load %arg9[%c0_15, %c384] : memref<128x512xbf16, #tpu.memory_space<vmem>>, vector<128x128xbf16>
    %cst_16 = arith.constant dense<0.000000e+00> : vector<16x128xf32>
    %39 = tpu.matmul %6, %38, %cst_16 {dimension_numbers = #tpu.dot_dimension_numbers<[1], [0], [0], [1], [0, 0, 1, 1], [], []>} : vector<16x128xbf16>, vector<128x128xbf16>, vector<16x128xf32> -> vector<16x128xf32>
    %40 = arith.extf %37 : vector<16x128xbf16> to vector<16x128xf32>
    %41 = arith.addf %40, %39 : vector<16x128xf32>
    %42 = arith.negf %41 : vector<16x128xf32>
    %43 = math.exp %42 : vector<16x128xf32>
    %cst_17 = arith.constant 1.000000e+00 : f32
    %44 = vector.broadcast %cst_17 : f32 to vector<16x128xf32>
    %45 = arith.addf %44, %43 : vector<16x128xf32>
    %46 = arith.divf %44, %45 : vector<16x128xf32>
    %47 = math.tanh %36 : vector<16x128xf32>
    %48 = arith.mulf %46, %47 : vector<16x128xf32>
    %49 = arith.truncf %48 : vector<16x128xf32> to vector<16x128xbf16>
    %c0_18 = arith.constant 0 : index
    %c0_19 = arith.constant 0 : index
    %50 = vector.load %arg10[%c0_18, %c0_19] : memref<16x128xbf16, #tpu.memory_space<vmem>>, vector<16x128xbf16>
    tpu.vector_store %arg10[%c0_18, %c0_19], %49 {strides = array<i32>} : memref<16x128xbf16, #tpu.memory_space<vmem>>, vector<16x128xbf16>,
    %c0_20 = arith.constant 0 : index
    %c0_21 = arith.constant 0 : index
    %51 = vector.load %arg11[%c0_20, %c0_21] : memref<16x128xf32, #tpu.memory_space<vmem>>, vector<16x128xf32>
    tpu.vector_store %arg11[%c0_20, %c0_21], %36 {strides = array<i32>} : memref<16x128xf32, #tpu.memory_space<vmem>>, vector<16x128xf32>,
    %52 = arith.index_cast %c0_i32_1 : i32 to index
    %c0_22 = arith.constant 0 : index
    %c0_23 = arith.constant 0 : index
    %53 = vector.load %arg6[%52, %c0_22, %c0_23] : memref<16x16x128xf32, #tpu.memory_space<vmem>>, vector<1x16x128xf32>
    %54 = vector.shape_cast %53 : vector<1x16x128xf32> to vector<16x128xf32>
    %55 = vector.shape_cast %48 : vector<16x128xf32> to vector<1x16x128xf32>
    tpu.vector_store %arg6[%52, %c0_22, %c0_23], %55 {strides = array<i32>} : memref<16x16x128xf32, #tpu.memory_space<vmem>>, vector<1x16x128xf32>,
    %c1_i32 = arith.constant 1 : i32
    %56 = arith.index_cast %c1_i32 : i32 to index
    %c0_24 = arith.constant 0 : index
    %c0_25 = arith.constant 0 : index
    %57 = vector.load %arg2[%56, %c0_24, %c0_25] : memref<16x16x512xbf16, #tpu.memory_space<vmem>>, vector<1x16x512xbf16>
    %58 = vector.shape_cast %57 : vector<1x16x512xbf16> to vector<16x512xbf16>
    %c0_26 = arith.constant 0 : index
    %c0_27 = arith.constant 0 : index
    %59 = vector.load %arg10[%c0_26, %c0_27] : memref<16x128xbf16, #tpu.memory_space<vmem>>, vector<16x128xbf16>
    %c0_28 = arith.constant 0 : index
    %c0_29 = arith.constant 0 : index
    %60 = vector.load %arg11[%c0_28, %c0_29] : memref<16x128xf32, #tpu.memory_space<vmem>>, vector<16x128xf32>
    %61 = vector.extract_strided_slice %58 {offsets = [0, 128], sizes = [16, 128], strides = [1, 1]} : vector<16x512xbf16> to vector<16x128xbf16>
    %c0_30 = arith.constant 0 : index
    %c128_31 = arith.constant 128 : index
    %62 = vector.load %arg9[%c0_30, %c128_31] : memref<128x512xbf16, #tpu.memory_space<vmem>>, vector<128x128xbf16>
    %cst_32 = arith.constant dense<0.000000e+00> : vector<16x128xf32>
    %63 = tpu.matmul %59, %62, %cst_32 {dimension_numbers = #tpu.dot_dimension_numbers<[1], [0], [0], [1], [0, 0, 1, 1], [], []>} : vector<16x128xbf16>, vector<128x128xbf16>, vector<16x128xf32> -> vector<16x128xf32>
    %64 = arith.extf %61 : vector<16x128xbf16> to vector<16x128xf32>
    %65 = arith.addf %64, %63 : vector<16x128xf32>
    %66 = arith.negf %65 : vector<16x128xf32>
    %67 = math.exp %66 : vector<16x128xf32>
    %cst_33 = arith.constant 1.000000e+00 : f32
    %68 = vector.broadcast %cst_33 : f32 to vector<16x128xf32>
    %69 = arith.addf %68, %67 : vector<16x128xf32>
    %70 = arith.divf %68, %69 : vector<16x128xf32>
    %71 = arith.mulf %70, %60 : vector<16x128xf32>
    %72 = vector.extract_strided_slice %58 {offsets = [0, 0], sizes = [16, 128], strides = [1, 1]} : vector<16x512xbf16> to vector<16x128xbf16>
    %c0_34 = arith.constant 0 : index
    %c0_35 = arith.constant 0 : index
    %73 = vector.load %arg9[%c0_34, %c0_35] : memref<128x512xbf16, #tpu.memory_space<vmem>>, vector<128x128xbf16>
    %cst_36 = arith.constant dense<0.000000e+00> : vector<16x128xf32>
    %74 = tpu.matmul %59, %73, %cst_36 {dimension_numbers = #tpu.dot_dimension_numbers<[1], [0], [0], [1], [0, 0, 1, 1], [], []>} : vector<16x128xbf16>, vector<128x128xbf16>, vector<16x128xf32> -> vector<16x128xf32>
    %75 = arith.extf %72 : vector<16x128xbf16> to vector<16x128xf32>
    %76 = arith.addf %75, %74 : vector<16x128xf32>
    %77 = arith.negf %76 : vector<16x128xf32>
    %78 = math.exp %77 : vector<16x128xf32>
    %cst_37 = arith.constant 1.000000e+00 : f32
    %79 = vector.broadcast %cst_37 : f32 to vector<16x128xf32>
    %80 = arith.addf %79, %78 : vector<16x128xf32>
    %81 = arith.divf %79, %80 : vector<16x128xf32>
    %82 = vector.extract_strided_slice %58 {offsets = [0, 256], sizes = [16, 128], strides = [1, 1]} : vector<16x512xbf16> to vector<16x128xbf16>
    %c0_38 = arith.constant 0 : index
    %c256_39 = arith.constant 256 : index
    %83 = vector.load %arg9[%c0_38, %c256_39] : memref<128x512xbf16, #tpu.memory_space<vmem>>, vector<128x128xbf16>
    %cst_40 = arith.constant dense<0.000000e+00> : vector<16x128xf32>
    %84 = tpu.matmul %59, %83, %cst_40 {dimension_numbers = #tpu.dot_dimension_numbers<[1], [0], [0], [1], [0, 0, 1, 1], [], []>} : vector<16x128xbf16>, vector<128x128xbf16>, vector<16x128xf32> -> vector<16x128xf32>
    %85 = arith.extf %82 : vector<16x128xbf16> to vector<16x128xf32>
    %86 = arith.addf %85, %84 : vector<16x128xf32>
    %87 = math.tanh %86 : vector<16x128xf32>
    %88 = arith.mulf %81, %87 : vector<16x128xf32>
    %89 = arith.addf %71, %88 : vector<16x128xf32>
    %90 = vector.extract_strided_slice %58 {offsets = [0, 384], sizes = [16, 128], strides = [1, 1]} : vector<16x512xbf16> to vector<16x128xbf16>
    %c0_41 = arith.constant 0 : index
    %c384_42 = arith.constant 384 : index
    %91 = vector.load %arg9[%c0_41, %c384_42] : memref<128x512xbf16, #tpu.memory_space<vmem>>, vector<128x128xbf16>
    %cst_43 = arith.constant dense<0.000000e+00> : vector<16x128xf32>
    %92 = tpu.matmul %59, %91, %cst_43 {dimension_numbers = #tpu.dot_dimension_numbers<[1], [0], [0], [1], [0, 0, 1, 1], [], []>} : vector<16x128xbf16>, vector<128x128xbf16>, vector<16x128xf32> -> vector<16x128xf32>
    %93 = arith.extf %90 : vector<16x128xbf16> to vector<16x128xf32>
    %94 = arith.addf %93, %92 : vector<16x128xf32>
    %95 = arith.negf %94 : vector<16x128xf32>
    %96 = math.exp %95 : vector<16x128xf32>
    %cst_44 = arith.constant 1.000000e+00 : f32
    %97 = vector.broadcast %cst_44 : f32 to vector<16x128xf32>
    %98 = arith.addf %97, %96 : vector<16x128xf32>
    %99 = arith.divf %97, %98 : vector<16x128xf32>
    %100 = math.tanh %89 : vector<16x128xf32>
    %101 = arith.mulf %99, %100 : vector<16x128xf32>
    %102 = arith.truncf %101 : vector<16x128xf32> to vector<16x128xbf16>
    %c0_45 = arith.constant 0 : index
    %c0_46 = arith.constant 0 : index
    %103 = vector.load %arg10[%c0_45, %c0_46] : memref<16x128xbf16, #tpu.memory_space<vmem>>, vector<16x128xbf16>
    tpu.vector_store %arg10[%c0_45, %c0_46], %102 {strides = array<i32>} : memref<16x128xbf16, #tpu.memory_space<vmem>>, vector<16x128xbf16>,
    %c0_47 = arith.constant 0 : index
    %c0_48 = arith.constant 0 : index
    %104 = vector.load %arg11[%c0_47, %c0_48] : memref<16x128xf32, #tpu.memory_space<vmem>>, vector<16x128xf32>
    tpu.vector_store %arg11[%c0_47, %c0_48], %89 {strides = array<i32>} : memref<16x128xf32, #tpu.memory_space<vmem>>, vector<16x128xf32>,
    %105 = arith.index_cast %c1_i32 : i32 to index
    %c0_49 = arith.constant 0 : index
    %c0_50 = arith.constant 0 : index
    %106 = vector.load %arg6[%105, %c0_49, %c0_50] : memref<16x16x128xf32, #tpu.memory_space<vmem>>, vector<1x16x128xf32>
    %107 = vector.shape_cast %106 : vector<1x16x128xf32> to vector<16x128xf32>
    %108 = vector.shape_cast %101 : vector<16x128xf32> to vector<1x16x128xf32>
    tpu.vector_store %arg6[%105, %c0_49, %c0_50], %108 {strides = array<i32>} : memref<16x16x128xf32, #tpu.memory_space<vmem>>, vector<1x16x128xf32>,
    %c2_i32 = arith.constant 2 : i32
    %109 = arith.index_cast %c2_i32 : i32 to index
    %c0_51 = arith.constant 0 : index
    %c0_52 = arith.constant 0 : index
    %110 = vector.load %arg2[%109, %c0_51, %c0_52] : memref<16x16x512xbf16, #tpu.memory_space<vmem>>, vector<1x16x512xbf16>
    %111 = vector.shape_cast %110 : vector<1x16x512xbf16> to vector<16x512xbf16>
    %c0_53 = arith.constant 0 : index
    %c0_54 = arith.constant 0 : index
    %112 = vector.load %arg10[%c0_53, %c0_54] : memref<16x128xbf16, #tpu.memory_space<vmem>>, vector<16x128xbf16>
    %c0_55 = arith.constant 0 : index
    %c0_56 = arith.constant 0 : index
    %113 = vector.load %arg11[%c0_55, %c0_56] : memref<16x128xf32, #tpu.memory_space<vmem>>, vector<16x128xf32>
    %114 = vector.extract_strided_slice %111 {offsets = [0, 128], sizes = [16, 128], strides = [1, 1]} : vector<16x512xbf16> to vector<16x128xbf16>
    %c0_57 = arith.constant 0 : index
    %c128_58 = arith.constant 128 : index
    %115 = vector.load %arg9[%c0_57, %c128_58] : memref<128x512xbf16, #tpu.memory_space<vmem>>, vector<128x128xbf16>
    %cst_59 = arith.constant dense<0.000000e+00> : vector<16x128xf32>
    %116 = tpu.matmul %112, %115, %cst_59 {dimension_numbers = #tpu.dot_dimension_numbers<[1], [0], [0], [1], [0, 0, 1, 1], [], []>} : vector<16x128xbf16>, vector<128x128xbf16>, vector<16x128xf32> -> vector<16x128xf32>
    %117 = arith.extf %114 : vector<16x128xbf16> to vector<16x128xf32>
    %118 = arith.addf %117, %116 : vector<16x128xf32>
    %119 = arith.negf %118 : vector<16x128xf32>
    %120 = math.exp %119 : vector<16x128xf32>
    %cst_60 = arith.constant 1.000000e+00 : f32
    %121 = vector.broadcast %cst_60 : f32 to vector<16x128xf32>
    %122 = arith.addf %121, %120 : vector<16x128xf32>
    %123 = arith.divf %121, %122 : vector<16x128xf32>
    %124 = arith.mulf %123, %113 : vector<16x128xf32>
    %125 = vector.extract_strided_slice %111 {offsets = [0, 0], sizes = [16, 128], strides = [1, 1]} : vector<16x512xbf16> to vector<16x128xbf16>
    %c0_61 = arith.constant 0 : index
    %c0_62 = arith.constant 0 : index
    %126 = vector.load %arg9[%c0_61, %c0_62] : memref<128x512xbf16, #tpu.memory_space<vmem>>, vector<128x128xbf16>
    %cst_63 = arith.constant dense<0.000000e+00> : vector<16x128xf32>
    %127 = tpu.matmul %112, %126, %cst_63 {dimension_numbers = #tpu.dot_dimension_numbers<[1], [0], [0], [1], [0, 0, 1, 1], [], []>} : vector<16x128xbf16>, vector<128x128xbf16>, vector<16x128xf32> -> vector<16x128xf32>
    %128 = arith.extf %125 : vector<16x128xbf16> to vector<16x128xf32>
    %129 = arith.addf %128, %127 : vector<16x128xf32>
    %130 = arith.negf %129 : vector<16x128xf32>
    %131 = math.exp %130 : vector<16x128xf32>
    %cst_64 = arith.constant 1.000000e+00 : f32
    %132 = vector.broadcast %cst_64 : f32 to vector<16x128xf32>
    %133 = arith.addf %132, %131 : vector<16x128xf32>
    %134 = arith.divf %132, %133 : vector<16x128xf32>
    %135 = vector.extract_strided_slice %111 {offsets = [0, 256], sizes = [16, 128], strides = [1, 1]} : vector<16x512xbf16> to vector<16x128xbf16>
    %c0_65 = arith.constant 0 : index
    %c256_66 = arith.constant 256 : index
    %136 = vector.load %arg9[%c0_65, %c256_66] : memref<128x512xbf16, #tpu.memory_space<vmem>>, vector<128x128xbf16>
    %cst_67 = arith.constant dense<0.000000e+00> : vector<16x128xf32>
    %137 = tpu.matmul %112, %136, %cst_67 {dimension_numbers = #tpu.dot_dimension_numbers<[1], [0], [0], [1], [0, 0, 1, 1], [], []>} : vector<16x128xbf16>, vector<128x128xbf16>, vector<16x128xf32> -> vector<16x128xf32>
    %138 = arith.extf %135 : vector<16x128xbf16> to vector<16x128xf32>
    %139 = arith.addf %138, %137 : vector<16x128xf32>
    %140 = math.tanh %139 : vector<16x128xf32>
    %141 = arith.mulf %134, %140 : vector<16x128xf32>
    %142 = arith.addf %124, %141 : vector<16x128xf32>
    %143 = vector.extract_strided_slice %111 {offsets = [0, 384], sizes = [16, 128], strides = [1, 1]} : vector<16x512xbf16> to vector<16x128xbf16>
    %c0_68 = arith.constant 0 : index
    %c384_69 = arith.constant 384 : index
    %144 = vector.load %arg9[%c0_68, %c384_69] : memref<128x512xbf16, #tpu.memory_space<vmem>>, vector<128x128xbf16>
    %cst_70 = arith.constant dense<0.000000e+00> : vector<16x128xf32>
    %145 = tpu.matmul %112, %144, %cst_70 {dimension_numbers = #tpu.dot_dimension_numbers<[1], [0], [0], [1], [0, 0, 1, 1], [], []>} : vector<16x128xbf16>, vector<128x128xbf16>, vector<16x128xf32> -> vector<16x128xf32>
    %146 = arith.extf %143 : vector<16x128xbf16> to vector<16x128xf32>
    %147 = arith.addf %146, %145 : vector<16x128xf32>
    %148 = arith.negf %147 : vector<16x128xf32>
    %149 = math.exp %148 : vector<16x128xf32>
    %cst_71 = arith.constant 1.000000e+00 : f32
    %150 = vector.broadcast %cst_71 : f32 to vector<16x128xf32>
    %151 = arith.addf %150, %149 : vector<16x128xf32>
    %152 = arith.divf %150, %151 : vector<16x128xf32>
    %153 = math.tanh %142 : vector<16x128xf32>
    %154 = arith.mulf %152, %153 : vector<16x128xf32>
    %155 = arith.truncf %154 : vector<16x128xf32> to vector<16x128xbf16>
    %c0_72 = arith.constant 0 : index
    %c0_73 = arith.constant 0 : index
    %156 = vector.load %arg10[%c0_72, %c0_73] : memref<16x128xbf16, #tpu.memory_space<vmem>>, vector<16x128xbf16>
    tpu.vector_store %arg10[%c0_72, %c0_73], %155 {strides = array<i32>} : memref<16x128xbf16, #tpu.memory_space<vmem>>, vector<16x128xbf16>,
    %c0_74 = arith.constant 0 : index
    %c0_75 = arith.constant 0 : index
    %157 = vector.load %arg11[%c0_74, %c0_75] : memref<16x128xf32, #tpu.memory_space<vmem>>, vector<16x128xf32>
    tpu.vector_store %arg11[%c0_74, %c0_75], %142 {strides = array<i32>} : memref<16x128xf32, #tpu.memory_space<vmem>>, vector<16x128xf32>,
    %158 = arith.index_cast %c2_i32 : i32 to index
    %c0_76 = arith.constant 0 : index
    %c0_77 = arith.constant 0 : index
    %159 = vector.load %arg6[%158, %c0_76, %c0_77] : memref<16x16x128xf32, #tpu.memory_space<vmem>>, vector<1x16x128xf32>
    %160 = vector.shape_cast %159 : vector<1x16x128xf32> to vector<16x128xf32>
    %161 = vector.shape_cast %154 : vector<16x128xf32> to vector<1x16x128xf32>
    tpu.vector_store %arg6[%158, %c0_76, %c0_77], %161 {strides = array<i32>} : memref<16x16x128xf32, #tpu.memory_space<vmem>>, vector<1x16x128xf32>,
    %c3_i32 = arith.constant 3 : i32
    %162 = arith.index_cast %c3_i32 : i32 to index
    %c0_78 = arith.constant 0 : index
    %c0_79 = arith.constant 0 : index
    %163 = vector.load %arg2[%162, %c0_78, %c0_79] : memref<16x16x512xbf16, #tpu.memory_space<vmem>>, vector<1x16x512xbf16>
    %164 = vector.shape_cast %163 : vector<1x16x512xbf16> to vector<16x512xbf16>
    %c0_80 = arith.constant 0 : index
    %c0_81 = arith.constant 0 : index
    %165 = vector.load %arg10[%c0_80, %c0_81] : memref<16x128xbf16, #tpu.memory_space<vmem>>, vector<16x128xbf16>
    %c0_82 = arith.constant 0 : index
    %c0_83 = arith.constant 0 : index
    %166 = vector.load %arg11[%c0_82, %c0_83] : memref<16x128xf32, #tpu.memory_space<vmem>>, vector<16x128xf32>
    %167 = vector.extract_strided_slice %164 {offsets = [0, 128], sizes = [16, 128], strides = [1, 1]} : vector<16x512xbf16> to vector<16x128xbf16>
    %c0_84 = arith.constant 0 : index
    %c128_85 = arith.constant 128 : index
    %168 = vector.load %arg9[%c0_84, %c128_85] : memref<128x512xbf16, #tpu.memory_space<vmem>>, vector<128x128xbf16>
    %cst_86 = arith.constant dense<0.000000e+00> : vector<16x128xf32>
    %169 = tpu.matmul %165, %168, %cst_86 {dimension_numbers = #tpu.dot_dimension_numbers<[1], [0], [0], [1], [0, 0, 1, 1], [], []>} : vector<16x128xbf16>, vector<128x128xbf16>, vector<16x128xf32> -> vector<16x128xf32>
    %170 = arith.extf %167 : vector<16x128xbf16> to vector<16x128xf32>
    %171 = arith.addf %170, %169 : vector<16x128xf32>
    %172 = arith.negf %171 : vector<16x128xf32>
    %173 = math.exp %172 : vector<16x128xf32>
    %cst_87 = arith.constant 1.000000e+00 : f32
    %174 = vector.broadcast %cst_87 : f32 to vector<16x128xf32>
    %175 = arith.addf %174, %173 : vector<16x128xf32>
    %176 = arith.divf %174, %175 : vector<16x128xf32>
    %177 = arith.mulf %176, %166 : vector<16x128xf32>
    %178 = vector.extract_strided_slice %164 {offsets = [0, 0], sizes = [16, 128], strides = [1, 1]} : vector<16x512xbf16> to vector<16x128xbf16>
    %c0_88 = arith.constant 0 : index
    %c0_89 = arith.constant 0 : index
    %179 = vector.load %arg9[%c0_88, %c0_89] : memref<128x512xbf16, #tpu.memory_space<vmem>>, vector<128x128xbf16>
    %cst_90 = arith.constant dense<0.000000e+00> : vector<16x128xf32>
    %180 = tpu.matmul %165, %179, %cst_90 {dimension_numbers = #tpu.dot_dimension_numbers<[1], [0], [0], [1], [0, 0, 1, 1], [], []>} : vector<16x128xbf16>, vector<128x128xbf16>, vector<16x128xf32> -> vector<16x128xf32>
    %181 = arith.extf %178 : vector<16x128xbf16> to vector<16x128xf32>
    %182 = arith.addf %181, %180 : vector<16x128xf32>
    %183 = arith.negf %182 : vector<16x128xf32>
    %184 = math.exp %183 : vector<16x128xf32>
    %cst_91 = arith.constant 1.000000e+00 : f32
    %185 = vector.broadcast %cst_91 : f32 to vector<16x128xf32>
    %186 = arith.addf %185, %184 : vector<16x128xf32>
    %187 = arith.divf %185, %186 : vector<16x128xf32>
    %188 = vector.extract_strided_slice %164 {offsets = [0, 256], sizes = [16, 128], strides = [1, 1]} : vector<16x512xbf16> to vector<16x128xbf16>
    %c0_92 = arith.constant 0 : index
    %c256_93 = arith.constant 256 : index
    %189 = vector.load %arg9[%c0_92, %c256_93] : memref<128x512xbf16, #tpu.memory_space<vmem>>, vector<128x128xbf16>
    %cst_94 = arith.constant dense<0.000000e+00> : vector<16x128xf32>
    %190 = tpu.matmul %165, %189, %cst_94 {dimension_numbers = #tpu.dot_dimension_numbers<[1], [0], [0], [1], [0, 0, 1, 1], [], []>} : vector<16x128xbf16>, vector<128x128xbf16>, vector<16x128xf32> -> vector<16x128xf32>
    %191 = arith.extf %188 : vector<16x128xbf16> to vector<16x128xf32>
    %192 = arith.addf %191, %190 : vector<16x128xf32>
    %193 = math.tanh %192 : vector<16x128xf32>
    %194 = arith.mulf %187, %193 : vector<16x128xf32>
    %195 = arith.addf %177, %194 : vector<16x128xf32>
    %196 = vector.extract_strided_slice %164 {offsets = [0, 384], sizes = [16, 128], strides = [1, 1]} : vector<16x512xbf16> to vector<16x128xbf16>
    %c0_95 = arith.constant 0 : index
    %c384_96 = arith.constant 384 : index
    %197 = vector.load %arg9[%c0_95, %c384_96] : memref<128x512xbf16, #tpu.memory_space<vmem>>, vector<128x128xbf16>
    %cst_97 = arith.constant dense<0.000000e+00> : vector<16x128xf32>
    %198 = tpu.matmul %165, %197, %cst_97 {dimension_numbers = #tpu.dot_dimension_numbers<[1], [0], [0], [1], [0, 0, 1, 1], [], []>} : vector<16x128xbf16>, vector<128x128xbf16>, vector<16x128xf32> -> vector<16x128xf32>
    %199 = arith.extf %196 : vector<16x128xbf16> to vector<16x128xf32>
    %200 = arith.addf %199, %198 : vector<16x128xf32>
    %201 = arith.negf %200 : vector<16x128xf32>
    %202 = math.exp %201 : vector<16x128xf32>
    %cst_98 = arith.constant 1.000000e+00 : f32
    %203 = vector.broadcast %cst_98 : f32 to vector<16x128xf32>
    %204 = arith.addf %203, %202 : vector<16x128xf32>
    %205 = arith.divf %203, %204 : vector<16x128xf32>
    %206 = math.tanh %195 : vector<16x128xf32>
    %207 = arith.mulf %205, %206 : vector<16x128xf32>
    %208 = arith.truncf %207 : vector<16x128xf32> to vector<16x128xbf16>
    %c0_99 = arith.constant 0 : index
    %c0_100 = arith.constant 0 : index
    %209 = vector.load %arg10[%c0_99, %c0_100] : memref<16x128xbf16, #tpu.memory_space<vmem>>, vector<16x128xbf16>
    tpu.vector_store %arg10[%c0_99, %c0_100], %208 {strides = array<i32>} : memref<16x128xbf16, #tpu.memory_space<vmem>>, vector<16x128xbf16>,
    %c0_101 = arith.constant 0 : index
    %c0_102 = arith.constant 0 : index
    %210 = vector.load %arg11[%c0_101, %c0_102] : memref<16x128xf32, #tpu.memory_space<vmem>>, vector<16x128xf32>
    tpu.vector_store %arg11[%c0_101, %c0_102], %195 {strides = array<i32>} : memref<16x128xf32, #tpu.memory_space<vmem>>, vector<16x128xf32>,
    %211 = arith.index_cast %c3_i32 : i32 to index
    %c0_103 = arith.constant 0 : index
    %c0_104 = arith.constant 0 : index
    %212 = vector.load %arg6[%211, %c0_103, %c0_104] : memref<16x16x128xf32, #tpu.memory_space<vmem>>, vector<1x16x128xf32>
    %213 = vector.shape_cast %212 : vector<1x16x128xf32> to vector<16x128xf32>
    %214 = vector.shape_cast %207 : vector<16x128xf32> to vector<1x16x128xf32>
    tpu.vector_store %arg6[%211, %c0_103, %c0_104], %214 {strides = array<i32>} : memref<16x16x128xf32, #tpu.memory_space<vmem>>, vector<1x16x128xf32>,
    %c4_i32 = arith.constant 4 : i32
    %215 = arith.index_cast %c4_i32 : i32 to index
    %c0_105 = arith.constant 0 : index
    %c0_106 = arith.constant 0 : index
    %216 = vector.load %arg2[%215, %c0_105, %c0_106] : memref<16x16x512xbf16, #tpu.memory_space<vmem>>, vector<1x16x512xbf16>
    %217 = vector.shape_cast %216 : vector<1x16x512xbf16> to vector<16x512xbf16>
    %c0_107 = arith.constant 0 : index
    %c0_108 = arith.constant 0 : index
    %218 = vector.load %arg10[%c0_107, %c0_108] : memref<16x128xbf16, #tpu.memory_space<vmem>>, vector<16x128xbf16>
    %c0_109 = arith.constant 0 : index
    %c0_110 = arith.constant 0 : index
    %219 = vector.load %arg11[%c0_109, %c0_110] : memref<16x128xf32, #tpu.memory_space<vmem>>, vector<16x128xf32>
    %220 = vector.extract_strided_slice %217 {offsets = [0, 128], sizes = [16, 128], strides = [1, 1]} : vector<16x512xbf16> to vector<16x128xbf16>
    %c0_111 = arith.constant 0 : index
    %c128_112 = arith.constant 128 : index
    %221 = vector.load %arg9[%c0_111, %c128_112] : memref<128x512xbf16, #tpu.memory_space<vmem>>, vector<128x128xbf16>
    %cst_113 = arith.constant dense<0.000000e+00> : vector<16x128xf32>
    %222 = tpu.matmul %218, %221, %cst_113 {dimension_numbers = #tpu.dot_dimension_numbers<[1], [0], [0], [1], [0, 0, 1, 1], [], []>} : vector<16x128xbf16>, vector<128x128xbf16>, vector<16x128xf32> -> vector<16x128xf32>
    %223 = arith.extf %220 : vector<16x128xbf16> to vector<16x128xf32>
    %224 = arith.addf %223, %222 : vector<16x128xf32>
    %225 = arith.negf %224 : vector<16x128xf32>
    %226 = math.exp %225 : vector<16x128xf32>
    %cst_114 = arith.constant 1.000000e+00 : f32
    %227 = vector.broadcast %cst_114 : f32 to vector<16x128xf32>
    %228 = arith.addf %227, %226 : vector<16x128xf32>
    %229 = arith.divf %227, %228 : vector<16x128xf32>
    %230 = arith.mulf %229, %219 : vector<16x128xf32>
    %231 = vector.extract_strided_slice %217 {offsets = [0, 0], sizes = [16, 128], strides = [1, 1]} : vector<16x512xbf16> to vector<16x128xbf16>
    %c0_115 = arith.constant 0 : index
    %c0_116 = arith.constant 0 : index
    %232 = vector.load %arg9[%c0_115, %c0_116] : memref<128x512xbf16, #tpu.memory_space<vmem>>, vector<128x128xbf16>
    %cst_117 = arith.constant dense<0.000000e+00> : vector<16x128xf32>
    %233 = tpu.matmul %218, %232, %cst_117 {dimension_numbers = #tpu.dot_dimension_numbers<[1], [0], [0], [1], [0, 0, 1, 1], [], []>} : vector<16x128xbf16>, vector<128x128xbf16>, vector<16x128xf32> -> vector<16x128xf32>
    %234 = arith.extf %231 : vector<16x128xbf16> to vector<16x128xf32>
    %235 = arith.addf %234, %233 : vector<16x128xf32>
    %236 = arith.negf %235 : vector<16x128xf32>
    %237 = math.exp %236 : vector<16x128xf32>
    %cst_118 = arith.constant 1.000000e+00 : f32
    %238 = vector.broadcast %cst_118 : f32 to vector<16x128xf32>
    %239 = arith.addf %238, %237 : vector<16x128xf32>
    %240 = arith.divf %238, %239 : vector<16x128xf32>
    %241 = vector.extract_strided_slice %217 {offsets = [0, 256], sizes = [16, 128], strides = [1, 1]} : vector<16x512xbf16> to vector<16x128xbf16>
    %c0_119 = arith.constant 0 : index
    %c256_120 = arith.constant 256 : index
    %242 = vector.load %arg9[%c0_119, %c256_120] : memref<128x512xbf16, #tpu.memory_space<vmem>>, vector<128x128xbf16>
    %cst_121 = arith.constant dense<0.000000e+00> : vector<16x128xf32>
    %243 = tpu.matmul %218, %242, %cst_121 {dimension_numbers = #tpu.dot_dimension_numbers<[1], [0], [0], [1], [0, 0, 1, 1], [], []>} : vector<16x128xbf16>, vector<128x128xbf16>, vector<16x128xf32> -> vector<16x128xf32>
    %244 = arith.extf %241 : vector<16x128xbf16> to vector<16x128xf32>
    %245 = arith.addf %244, %243 : vector<16x128xf32>
    %246 = math.tanh %245 : vector<16x128xf32>
    %247 = arith.mulf %240, %246 : vector<16x128xf32>
    %248 = arith.addf %230, %247 : vector<16x128xf32>
    %249 = vector.extract_strided_slice %217 {offsets = [0, 384], sizes = [16, 128], strides = [1, 1]} : vector<16x512xbf16> to vector<16x128xbf16>
    %c0_122 = arith.constant 0 : index
    %c384_123 = arith.constant 384 : index
    %250 = vector.load %arg9[%c0_122, %c384_123] : memref<128x512xbf16, #tpu.memory_space<vmem>>, vector<128x128xbf16>
    %cst_124 = arith.constant dense<0.000000e+00> : vector<16x128xf32>
    %251 = tpu.matmul %218, %250, %cst_124 {dimension_numbers = #tpu.dot_dimension_numbers<[1], [0], [0], [1], [0, 0, 1, 1], [], []>} : vector<16x128xbf16>, vector<128x128xbf16>, vector<16x128xf32> -> vector<16x128xf32>
    %252 = arith.extf %249 : vector<16x128xbf16> to vector<16x128xf32>
    %253 = arith.addf %252, %251 : vector<16x128xf32>
    %254 = arith.negf %253 : vector<16x128xf32>
    %255 = math.exp %254 : vector<16x128xf32>
    %cst_125 = arith.constant 1.000000e+00 : f32
    %256 = vector.broadcast %cst_125 : f32 to vector<16x128xf32>
    %257 = arith.addf %256, %255 : vector<16x128xf32>
    %258 = arith.divf %256, %257 : vector<16x128xf32>
    %259 = math.tanh %248 : vector<16x128xf32>
    %260 = arith.mulf %258, %259 : vector<16x128xf32>
    %261 = arith.truncf %260 : vector<16x128xf32> to vector<16x128xbf16>
    %c0_126 = arith.constant 0 : index
    %c0_127 = arith.constant 0 : index
    %262 = vector.load %arg10[%c0_126, %c0_127] : memref<16x128xbf16, #tpu.memory_space<vmem>>, vector<16x128xbf16>
    tpu.vector_store %arg10[%c0_126, %c0_127], %261 {strides = array<i32>} : memref<16x128xbf16, #tpu.memory_space<vmem>>, vector<16x128xbf16>,
    %c0_128 = arith.constant 0 : index
    %c0_129 = arith.constant 0 : index
    %263 = vector.load %arg11[%c0_128, %c0_129] : memref<16x128xf32, #tpu.memory_space<vmem>>, vector<16x128xf32>
    tpu.vector_store %arg11[%c0_128, %c0_129], %248 {strides = array<i32>} : memref<16x128xf32, #tpu.memory_space<vmem>>, vector<16x128xf32>,
    %264 = arith.index_cast %c4_i32 : i32 to index
    %c0_130 = arith.constant 0 : index
    %c0_131 = arith.constant 0 : index
    %265 = vector.load %arg6[%264, %c0_130, %c0_131] : memref<16x16x128xf32, #tpu.memory_space<vmem>>, vector<1x16x128xf32>
    %266 = vector.shape_cast %265 : vector<1x16x128xf32> to vector<16x128xf32>
    %267 = vector.shape_cast %260 : vector<16x128xf32> to vector<1x16x128xf32>
    tpu.vector_store %arg6[%264, %c0_130, %c0_131], %267 {strides = array<i32>} : memref<16x16x128xf32, #tpu.memory_space<vmem>>, vector<1x16x128xf32>,
    %c5_i32 = arith.constant 5 : i32
    %268 = arith.index_cast %c5_i32 : i32 to index
    %c0_132 = arith.constant 0 : index
    %c0_133 = arith.constant 0 : index
    %269 = vector.load %arg2[%268, %c0_132, %c0_133] : memref<16x16x512xbf16, #tpu.memory_space<vmem>>, vector<1x16x512xbf16>
    %270 = vector.shape_cast %269 : vector<1x16x512xbf16> to vector<16x512xbf16>
    %c0_134 = arith.constant 0 : index
    %c0_135 = arith.constant 0 : index
    %271 = vector.load %arg10[%c0_134, %c0_135] : memref<16x128xbf16, #tpu.memory_space<vmem>>, vector<16x128xbf16>
    %c0_136 = arith.constant 0 : index
    %c0_137 = arith.constant 0 : index
    %272 = vector.load %arg11[%c0_136, %c0_137] : memref<16x128xf32, #tpu.memory_space<vmem>>, vector<16x128xf32>
    %273 = vector.extract_strided_slice %270 {offsets = [0, 128], sizes = [16, 128], strides = [1, 1]} : vector<16x512xbf16> to vector<16x128xbf16>
    %c0_138 = arith.constant 0 : index
    %c128_139 = arith.constant 128 : index
    %274 = vector.load %arg9[%c0_138, %c128_139] : memref<128x512xbf16, #tpu.memory_space<vmem>>, vector<128x128xbf16>
    %cst_140 = arith.constant dense<0.000000e+00> : vector<16x128xf32>
    %275 = tpu.matmul %271, %274, %cst_140 {dimension_numbers = #tpu.dot_dimension_numbers<[1], [0], [0], [1], [0, 0, 1, 1], [], []>} : vector<16x128xbf16>, vector<128x128xbf16>, vector<16x128xf32> -> vector<16x128xf32>
    %276 = arith.extf %273 : vector<16x128xbf16> to vector<16x128xf32>
    %277 = arith.addf %276, %275 : vector<16x128xf32>
    %278 = arith.negf %277 : vector<16x128xf32>
    %279 = math.exp %278 : vector<16x128xf32>
    %cst_141 = arith.constant 1.000000e+00 : f32
    %280 = vector.broadcast %cst_141 : f32 to vector<16x128xf32>
    %281 = arith.addf %280, %279 : vector<16x128xf32>
    %282 = arith.divf %280, %281 : vector<16x128xf32>
    %283 = arith.mulf %282, %272 : vector<16x128xf32>
    %284 = vector.extract_strided_slice %270 {offsets = [0, 0], sizes = [16, 128], strides = [1, 1]} : vector<16x512xbf16> to vector<16x128xbf16>
    %c0_142 = arith.constant 0 : index
    %c0_143 = arith.constant 0 : index
    %285 = vector.load %arg9[%c0_142, %c0_143] : memref<128x512xbf16, #tpu.memory_space<vmem>>, vector<128x128xbf16>
    %cst_144 = arith.constant dense<0.000000e+00> : vector<16x128xf32>
    %286 = tpu.matmul %271, %285, %cst_144 {dimension_numbers = #tpu.dot_dimension_numbers<[1], [0], [0], [1], [0, 0, 1, 1], [], []>} : vector<16x128xbf16>, vector<128x128xbf16>, vector<16x128xf32> -> vector<16x128xf32>
    %287 = arith.extf %284 : vector<16x128xbf16> to vector<16x128xf32>
    %288 = arith.addf %287, %286 : vector<16x128xf32>
    %289 = arith.negf %288 : vector<16x128xf32>
    %290 = math.exp %289 : vector<16x128xf32>
    %cst_145 = arith.constant 1.000000e+00 : f32
    %291 = vector.broadcast %cst_145 : f32 to vector<16x128xf32>
    %292 = arith.addf %291, %290 : vector<16x128xf32>
    %293 = arith.divf %291, %292 : vector<16x128xf32>
    %294 = vector.extract_strided_slice %270 {offsets = [0, 256], sizes = [16, 128], strides = [1, 1]} : vector<16x512xbf16> to vector<16x128xbf16>
    %c0_146 = arith.constant 0 : index
    %c256_147 = arith.constant 256 : index
    %295 = vector.load %arg9[%c0_146, %c256_147] : memref<128x512xbf16, #tpu.memory_space<vmem>>, vector<128x128xbf16>
    %cst_148 = arith.constant dense<0.000000e+00> : vector<16x128xf32>
    %296 = tpu.matmul %271, %295, %cst_148 {dimension_numbers = #tpu.dot_dimension_numbers<[1], [0], [0], [1], [0, 0, 1, 1], [], []>} : vector<16x128xbf16>, vector<128x128xbf16>, vector<16x128xf32> -> vector<16x128xf32>
    %297 = arith.extf %294 : vector<16x128xbf16> to vector<16x128xf32>
    %298 = arith.addf %297, %296 : vector<16x128xf32>
    %299 = math.tanh %298 : vector<16x128xf32>
    %300 = arith.mulf %293, %299 : vector<16x128xf32>
    %301 = arith.addf %283, %300 : vector<16x128xf32>
    %302 = vector.extract_strided_slice %270 {offsets = [0, 384], sizes = [16, 128], strides = [1, 1]} : vector<16x512xbf16> to vector<16x128xbf16>
    %c0_149 = arith.constant 0 : index
    %c384_150 = arith.constant 384 : index
    %303 = vector.load %arg9[%c0_149, %c384_150] : memref<128x512xbf16, #tpu.memory_space<vmem>>, vector<128x128xbf16>
    %cst_151 = arith.constant dense<0.000000e+00> : vector<16x128xf32>
    %304 = tpu.matmul %271, %303, %cst_151 {dimension_numbers = #tpu.dot_dimension_numbers<[1], [0], [0], [1], [0, 0, 1, 1], [], []>} : vector<16x128xbf16>, vector<128x128xbf16>, vector<16x128xf32> -> vector<16x128xf32>
    %305 = arith.extf %302 : vector<16x128xbf16> to vector<16x128xf32>
    %306 = arith.addf %305, %304 : vector<16x128xf32>
    %307 = arith.negf %306 : vector<16x128xf32>
    %308 = math.exp %307 : vector<16x128xf32>
    %cst_152 = arith.constant 1.000000e+00 : f32
    %309 = vector.broadcast %cst_152 : f32 to vector<16x128xf32>
    %310 = arith.addf %309, %308 : vector<16x128xf32>
    %311 = arith.divf %309, %310 : vector<16x128xf32>
    %312 = math.tanh %301 : vector<16x128xf32>
    %313 = arith.mulf %311, %312 : vector<16x128xf32>
    %314 = arith.truncf %313 : vector<16x128xf32> to vector<16x128xbf16>
    %c0_153 = arith.constant 0 : index
    %c0_154 = arith.constant 0 : index
    %315 = vector.load %arg10[%c0_153, %c0_154] : memref<16x128xbf16, #tpu.memory_space<vmem>>, vector<16x128xbf16>
    tpu.vector_store %arg10[%c0_153, %c0_154], %314 {strides = array<i32>} : memref<16x128xbf16, #tpu.memory_space<vmem>>, vector<16x128xbf16>,
    %c0_155 = arith.constant 0 : index
    %c0_156 = arith.constant 0 : index
    %316 = vector.load %arg11[%c0_155, %c0_156] : memref<16x128xf32, #tpu.memory_space<vmem>>, vector<16x128xf32>
    tpu.vector_store %arg11[%c0_155, %c0_156], %301 {strides = array<i32>} : memref<16x128xf32, #tpu.memory_space<vmem>>, vector<16x128xf32>,
    %317 = arith.index_cast %c5_i32 : i32 to index
    %c0_157 = arith.constant 0 : index
    %c0_158 = arith.constant 0 : index
    %318 = vector.load %arg6[%317, %c0_157, %c0_158] : memref<16x16x128xf32, #tpu.memory_space<vmem>>, vector<1x16x128xf32>
    %319 = vector.shape_cast %318 : vector<1x16x128xf32> to vector<16x128xf32>
    %320 = vector.shape_cast %313 : vector<16x128xf32> to vector<1x16x128xf32>
    tpu.vector_store %arg6[%317, %c0_157, %c0_158], %320 {strides = array<i32>} : memref<16x16x128xf32, #tpu.memory_space<vmem>>, vector<1x16x128xf32>,
    %c6_i32 = arith.constant 6 : i32
    %321 = arith.index_cast %c6_i32 : i32 to index
    %c0_159 = arith.constant 0 : index
    %c0_160 = arith.constant 0 : index
    %322 = vector.load %arg2[%321, %c0_159, %c0_160] : memref<16x16x512xbf16, #tpu.memory_space<vmem>>, vector<1x16x512xbf16>
    %323 = vector.shape_cast %322 : vector<1x16x512xbf16> to vector<16x512xbf16>
    %c0_161 = arith.constant 0 : index
    %c0_162 = arith.constant 0 : index
    %324 = vector.load %arg10[%c0_161, %c0_162] : memref<16x128xbf16, #tpu.memory_space<vmem>>, vector<16x128xbf16>
    %c0_163 = arith.constant 0 : index
    %c0_164 = arith.constant 0 : index
    %325 = vector.load %arg11[%c0_163, %c0_164] : memref<16x128xf32, #tpu.memory_space<vmem>>, vector<16x128xf32>
    %326 = vector.extract_strided_slice %323 {offsets = [0, 128], sizes = [16, 128], strides = [1, 1]} : vector<16x512xbf16> to vector<16x128xbf16>
    %c0_165 = arith.constant 0 : index
    %c128_166 = arith.constant 128 : index
    %327 = vector.load %arg9[%c0_165, %c128_166] : memref<128x512xbf16, #tpu.memory_space<vmem>>, vector<128x128xbf16>
    %cst_167 = arith.constant dense<0.000000e+00> : vector<16x128xf32>
    %328 = tpu.matmul %324, %327, %cst_167 {dimension_numbers = #tpu.dot_dimension_numbers<[1], [0], [0], [1], [0, 0, 1, 1], [], []>} : vector<16x128xbf16>, vector<128x128xbf16>, vector<16x128xf32> -> vector<16x128xf32>
    %329 = arith.extf %326 : vector<16x128xbf16> to vector<16x128xf32>
    %330 = arith.addf %329, %328 : vector<16x128xf32>
    %331 = arith.negf %330 : vector<16x128xf32>
    %332 = math.exp %331 : vector<16x128xf32>
    %cst_168 = arith.constant 1.000000e+00 : f32
    %333 = vector.broadcast %cst_168 : f32 to vector<16x128xf32>
    %334 = arith.addf %333, %332 : vector<16x128xf32>
    %335 = arith.divf %333, %334 : vector<16x128xf32>
    %336 = arith.mulf %335, %325 : vector<16x128xf32>
    %337 = vector.extract_strided_slice %323 {offsets = [0, 0], sizes = [16, 128], strides = [1, 1]} : vector<16x512xbf16> to vector<16x128xbf16>
    %c0_169 = arith.constant 0 : index
    %c0_170 = arith.constant 0 : index
    %338 = vector.load %arg9[%c0_169, %c0_170] : memref<128x512xbf16, #tpu.memory_space<vmem>>, vector<128x128xbf16>
    %cst_171 = arith.constant dense<0.000000e+00> : vector<16x128xf32>
    %339 = tpu.matmul %324, %338, %cst_171 {dimension_numbers = #tpu.dot_dimension_numbers<[1], [0], [0], [1], [0, 0, 1, 1], [], []>} : vector<16x128xbf16>, vector<128x128xbf16>, vector<16x128xf32> -> vector<16x128xf32>
    %340 = arith.extf %337 : vector<16x128xbf16> to vector<16x128xf32>
    %341 = arith.addf %340, %339 : vector<16x128xf32>
    %342 = arith.negf %341 : vector<16x128xf32>
    %343 = math.exp %342 : vector<16x128xf32>
    %cst_172 = arith.constant 1.000000e+00 : f32
    %344 = vector.broadcast %cst_172 : f32 to vector<16x128xf32>
    %345 = arith.addf %344, %343 : vector<16x128xf32>
    %346 = arith.divf %344, %345 : vector<16x128xf32>
    %347 = vector.extract_strided_slice %323 {offsets = [0, 256], sizes = [16, 128], strides = [1, 1]} : vector<16x512xbf16> to vector<16x128xbf16>
    %c0_173 = arith.constant 0 : index
    %c256_174 = arith.constant 256 : index
    %348 = vector.load %arg9[%c0_173, %c256_174] : memref<128x512xbf16, #tpu.memory_space<vmem>>, vector<128x128xbf16>
    %cst_175 = arith.constant dense<0.000000e+00> : vector<16x128xf32>
    %349 = tpu.matmul %324, %348, %cst_175 {dimension_numbers = #tpu.dot_dimension_numbers<[1], [0], [0], [1], [0, 0, 1, 1], [], []>} : vector<16x128xbf16>, vector<128x128xbf16>, vector<16x128xf32> -> vector<16x128xf32>
    %350 = arith.extf %347 : vector<16x128xbf16> to vector<16x128xf32>
    %351 = arith.addf %350, %349 : vector<16x128xf32>
    %352 = math.tanh %351 : vector<16x128xf32>
    %353 = arith.mulf %346, %352 : vector<16x128xf32>
    %354 = arith.addf %336, %353 : vector<16x128xf32>
    %355 = vector.extract_strided_slice %323 {offsets = [0, 384], sizes = [16, 128], strides = [1, 1]} : vector<16x512xbf16> to vector<16x128xbf16>
    %c0_176 = arith.constant 0 : index
    %c384_177 = arith.constant 384 : index
    %356 = vector.load %arg9[%c0_176, %c384_177] : memref<128x512xbf16, #tpu.memory_space<vmem>>, vector<128x128xbf16>
    %cst_178 = arith.constant dense<0.000000e+00> : vector<16x128xf32>
    %357 = tpu.matmul %324, %356, %cst_178 {dimension_numbers = #tpu.dot_dimension_numbers<[1], [0], [0], [1], [0, 0, 1, 1], [], []>} : vector<16x128xbf16>, vector<128x128xbf16>, vector<16x128xf32> -> vector<16x128xf32>
    %358 = arith.extf %355 : vector<16x128xbf16> to vector<16x128xf32>
    %359 = arith.addf %358, %357 : vector<16x128xf32>
    %360 = arith.negf %359 : vector<16x128xf32>
    %361 = math.exp %360 : vector<16x128xf32>
    %cst_179 = arith.constant 1.000000e+00 : f32
    %362 = vector.broadcast %cst_179 : f32 to vector<16x128xf32>
    %363 = arith.addf %362, %361 : vector<16x128xf32>
    %364 = arith.divf %362, %363 : vector<16x128xf32>
    %365 = math.tanh %354 : vector<16x128xf32>
    %366 = arith.mulf %364, %365 : vector<16x128xf32>
    %367 = arith.truncf %366 : vector<16x128xf32> to vector<16x128xbf16>
    %c0_180 = arith.constant 0 : index
    %c0_181 = arith.constant 0 : index
    %368 = vector.load %arg10[%c0_180, %c0_181] : memref<16x128xbf16, #tpu.memory_space<vmem>>, vector<16x128xbf16>
    tpu.vector_store %arg10[%c0_180, %c0_181], %367 {strides = array<i32>} : memref<16x128xbf16, #tpu.memory_space<vmem>>, vector<16x128xbf16>,
    %c0_182 = arith.constant 0 : index
    %c0_183 = arith.constant 0 : index
    %369 = vector.load %arg11[%c0_182, %c0_183] : memref<16x128xf32, #tpu.memory_space<vmem>>, vector<16x128xf32>
    tpu.vector_store %arg11[%c0_182, %c0_183], %354 {strides = array<i32>} : memref<16x128xf32, #tpu.memory_space<vmem>>, vector<16x128xf32>,
    %370 = arith.index_cast %c6_i32 : i32 to index
    %c0_184 = arith.constant 0 : index
    %c0_185 = arith.constant 0 : index
    %371 = vector.load %arg6[%370, %c0_184, %c0_185] : memref<16x16x128xf32, #tpu.memory_space<vmem>>, vector<1x16x128xf32>
    %372 = vector.shape_cast %371 : vector<1x16x128xf32> to vector<16x128xf32>
    %373 = vector.shape_cast %366 : vector<16x128xf32> to vector<1x16x128xf32>
    tpu.vector_store %arg6[%370, %c0_184, %c0_185], %373 {strides = array<i32>} : memref<16x16x128xf32, #tpu.memory_space<vmem>>, vector<1x16x128xf32>,
    %c7_i32 = arith.constant 7 : i32
    %374 = arith.index_cast %c7_i32 : i32 to index
    %c0_186 = arith.constant 0 : index
    %c0_187 = arith.constant 0 : index
    %375 = vector.load %arg2[%374, %c0_186, %c0_187] : memref<16x16x512xbf16, #tpu.memory_space<vmem>>, vector<1x16x512xbf16>
    %376 = vector.shape_cast %375 : vector<1x16x512xbf16> to vector<16x512xbf16>
    %c0_188 = arith.constant 0 : index
    %c0_189 = arith.constant 0 : index
    %377 = vector.load %arg10[%c0_188, %c0_189] : memref<16x128xbf16, #tpu.memory_space<vmem>>, vector<16x128xbf16>
    %c0_190 = arith.constant 0 : index
    %c0_191 = arith.constant 0 : index
    %378 = vector.load %arg11[%c0_190, %c0_191] : memref<16x128xf32, #tpu.memory_space<vmem>>, vector<16x128xf32>
    %379 = vector.extract_strided_slice %376 {offsets = [0, 128], sizes = [16, 128], strides = [1, 1]} : vector<16x512xbf16> to vector<16x128xbf16>
    %c0_192 = arith.constant 0 : index
    %c128_193 = arith.constant 128 : index
    %380 = vector.load %arg9[%c0_192, %c128_193] : memref<128x512xbf16, #tpu.memory_space<vmem>>, vector<128x128xbf16>
    %cst_194 = arith.constant dense<0.000000e+00> : vector<16x128xf32>
    %381 = tpu.matmul %377, %380, %cst_194 {dimension_numbers = #tpu.dot_dimension_numbers<[1], [0], [0], [1], [0, 0, 1, 1], [], []>} : vector<16x128xbf16>, vector<128x128xbf16>, vector<16x128xf32> -> vector<16x128xf32>
    %382 = arith.extf %379 : vector<16x128xbf16> to vector<16x128xf32>
    %383 = arith.addf %382, %381 : vector<16x128xf32>
    %384 = arith.negf %383 : vector<16x128xf32>
    %385 = math.exp %384 : vector<16x128xf32>
    %cst_195 = arith.constant 1.000000e+00 : f32
    %386 = vector.broadcast %cst_195 : f32 to vector<16x128xf32>
    %387 = arith.addf %386, %385 : vector<16x128xf32>
    %388 = arith.divf %386, %387 : vector<16x128xf32>
    %389 = arith.mulf %388, %378 : vector<16x128xf32>
    %390 = vector.extract_strided_slice %376 {offsets = [0, 0], sizes = [16, 128], strides = [1, 1]} : vector<16x512xbf16> to vector<16x128xbf16>
    %c0_196 = arith.constant 0 : index
    %c0_197 = arith.constant 0 : index
    %391 = vector.load %arg9[%c0_196, %c0_197] : memref<128x512xbf16, #tpu.memory_space<vmem>>, vector<128x128xbf16>
    %cst_198 = arith.constant dense<0.000000e+00> : vector<16x128xf32>
    %392 = tpu.matmul %377, %391, %cst_198 {dimension_numbers = #tpu.dot_dimension_numbers<[1], [0], [0], [1], [0, 0, 1, 1], [], []>} : vector<16x128xbf16>, vector<128x128xbf16>, vector<16x128xf32> -> vector<16x128xf32>
    %393 = arith.extf %390 : vector<16x128xbf16> to vector<16x128xf32>
    %394 = arith.addf %393, %392 : vector<16x128xf32>
    %395 = arith.negf %394 : vector<16x128xf32>
    %396 = math.exp %395 : vector<16x128xf32>
    %cst_199 = arith.constant 1.000000e+00 : f32
    %397 = vector.broadcast %cst_199 : f32 to vector<16x128xf32>
    %398 = arith.addf %397, %396 : vector<16x128xf32>
    %399 = arith.divf %397, %398 : vector<16x128xf32>
    %400 = vector.extract_strided_slice %376 {offsets = [0, 256], sizes = [16, 128], strides = [1, 1]} : vector<16x512xbf16> to vector<16x128xbf16>
    %c0_200 = arith.constant 0 : index
    %c256_201 = arith.constant 256 : index
    %401 = vector.load %arg9[%c0_200, %c256_201] : memref<128x512xbf16, #tpu.memory_space<vmem>>, vector<128x128xbf16>
    %cst_202 = arith.constant dense<0.000000e+00> : vector<16x128xf32>
    %402 = tpu.matmul %377, %401, %cst_202 {dimension_numbers = #tpu.dot_dimension_numbers<[1], [0], [0], [1], [0, 0, 1, 1], [], []>} : vector<16x128xbf16>, vector<128x128xbf16>, vector<16x128xf32> -> vector<16x128xf32>
    %403 = arith.extf %400 : vector<16x128xbf16> to vector<16x128xf32>
    %404 = arith.addf %403, %402 : vector<16x128xf32>
    %405 = math.tanh %404 : vector<16x128xf32>
    %406 = arith.mulf %399, %405 : vector<16x128xf32>
    %407 = arith.addf %389, %406 : vector<16x128xf32>
    %408 = vector.extract_strided_slice %376 {offsets = [0, 384], sizes = [16, 128], strides = [1, 1]} : vector<16x512xbf16> to vector<16x128xbf16>
    %c0_203 = arith.constant 0 : index
    %c384_204 = arith.constant 384 : index
    %409 = vector.load %arg9[%c0_203, %c384_204] : memref<128x512xbf16, #tpu.memory_space<vmem>>, vector<128x128xbf16>
    %cst_205 = arith.constant dense<0.000000e+00> : vector<16x128xf32>
    %410 = tpu.matmul %377, %409, %cst_205 {dimension_numbers = #tpu.dot_dimension_numbers<[1], [0], [0], [1], [0, 0, 1, 1], [], []>} : vector<16x128xbf16>, vector<128x128xbf16>, vector<16x128xf32> -> vector<16x128xf32>
    %411 = arith.extf %408 : vector<16x128xbf16> to vector<16x128xf32>
    %412 = arith.addf %411, %410 : vector<16x128xf32>
    %413 = arith.negf %412 : vector<16x128xf32>
    %414 = math.exp %413 : vector<16x128xf32>
    %cst_206 = arith.constant 1.000000e+00 : f32
    %415 = vector.broadcast %cst_206 : f32 to vector<16x128xf32>
    %416 = arith.addf %415, %414 : vector<16x128xf32>
    %417 = arith.divf %415, %416 : vector<16x128xf32>
    %418 = math.tanh %407 : vector<16x128xf32>
    %419 = arith.mulf %417, %418 : vector<16x128xf32>
    %420 = arith.truncf %419 : vector<16x128xf32> to vector<16x128xbf16>
    %c0_207 = arith.constant 0 : index
    %c0_208 = arith.constant 0 : index
    %421 = vector.load %arg10[%c0_207, %c0_208] : memref<16x128xbf16, #tpu.memory_space<vmem>>, vector<16x128xbf16>
    tpu.vector_store %arg10[%c0_207, %c0_208], %420 {strides = array<i32>} : memref<16x128xbf16, #tpu.memory_space<vmem>>, vector<16x128xbf16>,
    %c0_209 = arith.constant 0 : index
    %c0_210 = arith.constant 0 : index
    %422 = vector.load %arg11[%c0_209, %c0_210] : memref<16x128xf32, #tpu.memory_space<vmem>>, vector<16x128xf32>
    tpu.vector_store %arg11[%c0_209, %c0_210], %407 {strides = array<i32>} : memref<16x128xf32, #tpu.memory_space<vmem>>, vector<16x128xf32>,
    %423 = arith.index_cast %c7_i32 : i32 to index
    %c0_211 = arith.constant 0 : index
    %c0_212 = arith.constant 0 : index
    %424 = vector.load %arg6[%423, %c0_211, %c0_212] : memref<16x16x128xf32, #tpu.memory_space<vmem>>, vector<1x16x128xf32>
    %425 = vector.shape_cast %424 : vector<1x16x128xf32> to vector<16x128xf32>
    %426 = vector.shape_cast %419 : vector<16x128xf32> to vector<1x16x128xf32>
    tpu.vector_store %arg6[%423, %c0_211, %c0_212], %426 {strides = array<i32>} : memref<16x16x128xf32, #tpu.memory_space<vmem>>, vector<1x16x128xf32>,
    %c8_i32 = arith.constant 8 : i32
    %427 = arith.index_cast %c8_i32 : i32 to index
    %c0_213 = arith.constant 0 : index
    %c0_214 = arith.constant 0 : index
    %428 = vector.load %arg2[%427, %c0_213, %c0_214] : memref<16x16x512xbf16, #tpu.memory_space<vmem>>, vector<1x16x512xbf16>
    %429 = vector.shape_cast %428 : vector<1x16x512xbf16> to vector<16x512xbf16>
    %c0_215 = arith.constant 0 : index
    %c0_216 = arith.constant 0 : index
    %430 = vector.load %arg10[%c0_215, %c0_216] : memref<16x128xbf16, #tpu.memory_space<vmem>>, vector<16x128xbf16>
    %c0_217 = arith.constant 0 : index
    %c0_218 = arith.constant 0 : index
    %431 = vector.load %arg11[%c0_217, %c0_218] : memref<16x128xf32, #tpu.memory_space<vmem>>, vector<16x128xf32>
    %432 = vector.extract_strided_slice %429 {offsets = [0, 128], sizes = [16, 128], strides = [1, 1]} : vector<16x512xbf16> to vector<16x128xbf16>
    %c0_219 = arith.constant 0 : index
    %c128_220 = arith.constant 128 : index
    %433 = vector.load %arg9[%c0_219, %c128_220] : memref<128x512xbf16, #tpu.memory_space<vmem>>, vector<128x128xbf16>
    %cst_221 = arith.constant dense<0.000000e+00> : vector<16x128xf32>
    %434 = tpu.matmul %430, %433, %cst_221 {dimension_numbers = #tpu.dot_dimension_numbers<[1], [0], [0], [1], [0, 0, 1, 1], [], []>} : vector<16x128xbf16>, vector<128x128xbf16>, vector<16x128xf32> -> vector<16x128xf32>
    %435 = arith.extf %432 : vector<16x128xbf16> to vector<16x128xf32>
    %436 = arith.addf %435, %434 : vector<16x128xf32>
    %437 = arith.negf %436 : vector<16x128xf32>
    %438 = math.exp %437 : vector<16x128xf32>
    %cst_222 = arith.constant 1.000000e+00 : f32
    %439 = vector.broadcast %cst_222 : f32 to vector<16x128xf32>
    %440 = arith.addf %439, %438 : vector<16x128xf32>
    %441 = arith.divf %439, %440 : vector<16x128xf32>
    %442 = arith.mulf %441, %431 : vector<16x128xf32>
    %443 = vector.extract_strided_slice %429 {offsets = [0, 0], sizes = [16, 128], strides = [1, 1]} : vector<16x512xbf16> to vector<16x128xbf16>
    %c0_223 = arith.constant 0 : index
    %c0_224 = arith.constant 0 : index
    %444 = vector.load %arg9[%c0_223, %c0_224] : memref<128x512xbf16, #tpu.memory_space<vmem>>, vector<128x128xbf16>
    %cst_225 = arith.constant dense<0.000000e+00> : vector<16x128xf32>
    %445 = tpu.matmul %430, %444, %cst_225 {dimension_numbers = #tpu.dot_dimension_numbers<[1], [0], [0], [1], [0, 0, 1, 1], [], []>} : vector<16x128xbf16>, vector<128x128xbf16>, vector<16x128xf32> -> vector<16x128xf32>
    %446 = arith.extf %443 : vector<16x128xbf16> to vector<16x128xf32>
    %447 = arith.addf %446, %445 : vector<16x128xf32>
    %448 = arith.negf %447 : vector<16x128xf32>
    %449 = math.exp %448 : vector<16x128xf32>
    %cst_226 = arith.constant 1.000000e+00 : f32
    %450 = vector.broadcast %cst_226 : f32 to vector<16x128xf32>
    %451 = arith.addf %450, %449 : vector<16x128xf32>
    %452 = arith.divf %450, %451 : vector<16x128xf32>
    %453 = vector.extract_strided_slice %429 {offsets = [0, 256], sizes = [16, 128], strides = [1, 1]} : vector<16x512xbf16> to vector<16x128xbf16>
    %c0_227 = arith.constant 0 : index
    %c256_228 = arith.constant 256 : index
    %454 = vector.load %arg9[%c0_227, %c256_228] : memref<128x512xbf16, #tpu.memory_space<vmem>>, vector<128x128xbf16>
    %cst_229 = arith.constant dense<0.000000e+00> : vector<16x128xf32>
    %455 = tpu.matmul %430, %454, %cst_229 {dimension_numbers = #tpu.dot_dimension_numbers<[1], [0], [0], [1], [0, 0, 1, 1], [], []>} : vector<16x128xbf16>, vector<128x128xbf16>, vector<16x128xf32> -> vector<16x128xf32>
    %456 = arith.extf %453 : vector<16x128xbf16> to vector<16x128xf32>
    %457 = arith.addf %456, %455 : vector<16x128xf32>
    %458 = math.tanh %457 : vector<16x128xf32>
    %459 = arith.mulf %452, %458 : vector<16x128xf32>
    %460 = arith.addf %442, %459 : vector<16x128xf32>
    %461 = vector.extract_strided_slice %429 {offsets = [0, 384], sizes = [16, 128], strides = [1, 1]} : vector<16x512xbf16> to vector<16x128xbf16>
    %c0_230 = arith.constant 0 : index
    %c384_231 = arith.constant 384 : index
    %462 = vector.load %arg9[%c0_230, %c384_231] : memref<128x512xbf16, #tpu.memory_space<vmem>>, vector<128x128xbf16>
    %cst_232 = arith.constant dense<0.000000e+00> : vector<16x128xf32>
    %463 = tpu.matmul %430, %462, %cst_232 {dimension_numbers = #tpu.dot_dimension_numbers<[1], [0], [0], [1], [0, 0, 1, 1], [], []>} : vector<16x128xbf16>, vector<128x128xbf16>, vector<16x128xf32> -> vector<16x128xf32>
    %464 = arith.extf %461 : vector<16x128xbf16> to vector<16x128xf32>
    %465 = arith.addf %464, %463 : vector<16x128xf32>
    %466 = arith.negf %465 : vector<16x128xf32>
    %467 = math.exp %466 : vector<16x128xf32>
    %cst_233 = arith.constant 1.000000e+00 : f32
    %468 = vector.broadcast %cst_233 : f32 to vector<16x128xf32>
    %469 = arith.addf %468, %467 : vector<16x128xf32>
    %470 = arith.divf %468, %469 : vector<16x128xf32>
    %471 = math.tanh %460 : vector<16x128xf32>
    %472 = arith.mulf %470, %471 : vector<16x128xf32>
    %473 = arith.truncf %472 : vector<16x128xf32> to vector<16x128xbf16>
    %c0_234 = arith.constant 0 : index
    %c0_235 = arith.constant 0 : index
    %474 = vector.load %arg10[%c0_234, %c0_235] : memref<16x128xbf16, #tpu.memory_space<vmem>>, vector<16x128xbf16>
    tpu.vector_store %arg10[%c0_234, %c0_235], %473 {strides = array<i32>} : memref<16x128xbf16, #tpu.memory_space<vmem>>, vector<16x128xbf16>,
    %c0_236 = arith.constant 0 : index
    %c0_237 = arith.constant 0 : index
    %475 = vector.load %arg11[%c0_236, %c0_237] : memref<16x128xf32, #tpu.memory_space<vmem>>, vector<16x128xf32>
    tpu.vector_store %arg11[%c0_236, %c0_237], %460 {strides = array<i32>} : memref<16x128xf32, #tpu.memory_space<vmem>>, vector<16x128xf32>,
    %476 = arith.index_cast %c8_i32 : i32 to index
    %c0_238 = arith.constant 0 : index
    %c0_239 = arith.constant 0 : index
    %477 = vector.load %arg6[%476, %c0_238, %c0_239] : memref<16x16x128xf32, #tpu.memory_space<vmem>>, vector<1x16x128xf32>
    %478 = vector.shape_cast %477 : vector<1x16x128xf32> to vector<16x128xf32>
    %479 = vector.shape_cast %472 : vector<16x128xf32> to vector<1x16x128xf32>
    tpu.vector_store %arg6[%476, %c0_238, %c0_239], %479 {strides = array<i32>} : memref<16x16x128xf32, #tpu.memory_space<vmem>>, vector<1x16x128xf32>,
    %c9_i32 = arith.constant 9 : i32
    %480 = arith.index_cast %c9_i32 : i32 to index
    %c0_240 = arith.constant 0 : index
    %c0_241 = arith.constant 0 : index
    %481 = vector.load %arg2[%480, %c0_240, %c0_241] : memref<16x16x512xbf16, #tpu.memory_space<vmem>>, vector<1x16x512xbf16>
    %482 = vector.shape_cast %481 : vector<1x16x512xbf16> to vector<16x512xbf16>
    %c0_242 = arith.constant 0 : index
    %c0_243 = arith.constant 0 : index
    %483 = vector.load %arg10[%c0_242, %c0_243] : memref<16x128xbf16, #tpu.memory_space<vmem>>, vector<16x128xbf16>
    %c0_244 = arith.constant 0 : index
    %c0_245 = arith.constant 0 : index
    %484 = vector.load %arg11[%c0_244, %c0_245] : memref<16x128xf32, #tpu.memory_space<vmem>>, vector<16x128xf32>
    %485 = vector.extract_strided_slice %482 {offsets = [0, 128], sizes = [16, 128], strides = [1, 1]} : vector<16x512xbf16> to vector<16x128xbf16>
    %c0_246 = arith.constant 0 : index
    %c128_247 = arith.constant 128 : index
    %486 = vector.load %arg9[%c0_246, %c128_247] : memref<128x512xbf16, #tpu.memory_space<vmem>>, vector<128x128xbf16>
    %cst_248 = arith.constant dense<0.000000e+00> : vector<16x128xf32>
    %487 = tpu.matmul %483, %486, %cst_248 {dimension_numbers = #tpu.dot_dimension_numbers<[1], [0], [0], [1], [0, 0, 1, 1], [], []>} : vector<16x128xbf16>, vector<128x128xbf16>, vector<16x128xf32> -> vector<16x128xf32>
    %488 = arith.extf %485 : vector<16x128xbf16> to vector<16x128xf32>
    %489 = arith.addf %488, %487 : vector<16x128xf32>
    %490 = arith.negf %489 : vector<16x128xf32>
    %491 = math.exp %490 : vector<16x128xf32>
    %cst_249 = arith.constant 1.000000e+00 : f32
    %492 = vector.broadcast %cst_249 : f32 to vector<16x128xf32>
    %493 = arith.addf %492, %491 : vector<16x128xf32>
    %494 = arith.divf %492, %493 : vector<16x128xf32>
    %495 = arith.mulf %494, %484 : vector<16x128xf32>
    %496 = vector.extract_strided_slice %482 {offsets = [0, 0], sizes = [16, 128], strides = [1, 1]} : vector<16x512xbf16> to vector<16x128xbf16>
    %c0_250 = arith.constant 0 : index
    %c0_251 = arith.constant 0 : index
    %497 = vector.load %arg9[%c0_250, %c0_251] : memref<128x512xbf16, #tpu.memory_space<vmem>>, vector<128x128xbf16>
    %cst_252 = arith.constant dense<0.000000e+00> : vector<16x128xf32>
    %498 = tpu.matmul %483, %497, %cst_252 {dimension_numbers = #tpu.dot_dimension_numbers<[1], [0], [0], [1], [0, 0, 1, 1], [], []>} : vector<16x128xbf16>, vector<128x128xbf16>, vector<16x128xf32> -> vector<16x128xf32>
    %499 = arith.extf %496 : vector<16x128xbf16> to vector<16x128xf32>
    %500 = arith.addf %499, %498 : vector<16x128xf32>
    %501 = arith.negf %500 : vector<16x128xf32>
    %502 = math.exp %501 : vector<16x128xf32>
    %cst_253 = arith.constant 1.000000e+00 : f32
    %503 = vector.broadcast %cst_253 : f32 to vector<16x128xf32>
    %504 = arith.addf %503, %502 : vector<16x128xf32>
    %505 = arith.divf %503, %504 : vector<16x128xf32>
    %506 = vector.extract_strided_slice %482 {offsets = [0, 256], sizes = [16, 128], strides = [1, 1]} : vector<16x512xbf16> to vector<16x128xbf16>
    %c0_254 = arith.constant 0 : index
    %c256_255 = arith.constant 256 : index
    %507 = vector.load %arg9[%c0_254, %c256_255] : memref<128x512xbf16, #tpu.memory_space<vmem>>, vector<128x128xbf16>
    %cst_256 = arith.constant dense<0.000000e+00> : vector<16x128xf32>
    %508 = tpu.matmul %483, %507, %cst_256 {dimension_numbers = #tpu.dot_dimension_numbers<[1], [0], [0], [1], [0, 0, 1, 1], [], []>} : vector<16x128xbf16>, vector<128x128xbf16>, vector<16x128xf32> -> vector<16x128xf32>
    %509 = arith.extf %506 : vector<16x128xbf16> to vector<16x128xf32>
    %510 = arith.addf %509, %508 : vector<16x128xf32>
    %511 = math.tanh %510 : vector<16x128xf32>
    %512 = arith.mulf %505, %511 : vector<16x128xf32>
    %513 = arith.addf %495, %512 : vector<16x128xf32>
    %514 = vector.extract_strided_slice %482 {offsets = [0, 384], sizes = [16, 128], strides = [1, 1]} : vector<16x512xbf16> to vector<16x128xbf16>
    %c0_257 = arith.constant 0 : index
    %c384_258 = arith.constant 384 : index
    %515 = vector.load %arg9[%c0_257, %c384_258] : memref<128x512xbf16, #tpu.memory_space<vmem>>, vector<128x128xbf16>
    %cst_259 = arith.constant dense<0.000000e+00> : vector<16x128xf32>
    %516 = tpu.matmul %483, %515, %cst_259 {dimension_numbers = #tpu.dot_dimension_numbers<[1], [0], [0], [1], [0, 0, 1, 1], [], []>} : vector<16x128xbf16>, vector<128x128xbf16>, vector<16x128xf32> -> vector<16x128xf32>
    %517 = arith.extf %514 : vector<16x128xbf16> to vector<16x128xf32>
    %518 = arith.addf %517, %516 : vector<16x128xf32>
    %519 = arith.negf %518 : vector<16x128xf32>
    %520 = math.exp %519 : vector<16x128xf32>
    %cst_260 = arith.constant 1.000000e+00 : f32
    %521 = vector.broadcast %cst_260 : f32 to vector<16x128xf32>
    %522 = arith.addf %521, %520 : vector<16x128xf32>
    %523 = arith.divf %521, %522 : vector<16x128xf32>
    %524 = math.tanh %513 : vector<16x128xf32>
    %525 = arith.mulf %523, %524 : vector<16x128xf32>
    %526 = arith.truncf %525 : vector<16x128xf32> to vector<16x128xbf16>
    %c0_261 = arith.constant 0 : index
    %c0_262 = arith.constant 0 : index
    %527 = vector.load %arg10[%c0_261, %c0_262] : memref<16x128xbf16, #tpu.memory_space<vmem>>, vector<16x128xbf16>
    tpu.vector_store %arg10[%c0_261, %c0_262], %526 {strides = array<i32>} : memref<16x128xbf16, #tpu.memory_space<vmem>>, vector<16x128xbf16>,
    %c0_263 = arith.constant 0 : index
    %c0_264 = arith.constant 0 : index
    %528 = vector.load %arg11[%c0_263, %c0_264] : memref<16x128xf32, #tpu.memory_space<vmem>>, vector<16x128xf32>
    tpu.vector_store %arg11[%c0_263, %c0_264], %513 {strides = array<i32>} : memref<16x128xf32, #tpu.memory_space<vmem>>, vector<16x128xf32>,
    %529 = arith.index_cast %c9_i32 : i32 to index
    %c0_265 = arith.constant 0 : index
    %c0_266 = arith.constant 0 : index
    %530 = vector.load %arg6[%529, %c0_265, %c0_266] : memref<16x16x128xf32, #tpu.memory_space<vmem>>, vector<1x16x128xf32>
    %531 = vector.shape_cast %530 : vector<1x16x128xf32> to vector<16x128xf32>
    %532 = vector.shape_cast %525 : vector<16x128xf32> to vector<1x16x128xf32>
    tpu.vector_store %arg6[%529, %c0_265, %c0_266], %532 {strides = array<i32>} : memref<16x16x128xf32, #tpu.memory_space<vmem>>, vector<1x16x128xf32>,
    %c10_i32 = arith.constant 10 : i32
    %533 = arith.index_cast %c10_i32 : i32 to index
    %c0_267 = arith.constant 0 : index
    %c0_268 = arith.constant 0 : index
    %534 = vector.load %arg2[%533, %c0_267, %c0_268] : memref<16x16x512xbf16, #tpu.memory_space<vmem>>, vector<1x16x512xbf16>
    %535 = vector.shape_cast %534 : vector<1x16x512xbf16> to vector<16x512xbf16>
    %c0_269 = arith.constant 0 : index
    %c0_270 = arith.constant 0 : index
    %536 = vector.load %arg10[%c0_269, %c0_270] : memref<16x128xbf16, #tpu.memory_space<vmem>>, vector<16x128xbf16>
    %c0_271 = arith.constant 0 : index
    %c0_272 = arith.constant 0 : index
    %537 = vector.load %arg11[%c0_271, %c0_272] : memref<16x128xf32, #tpu.memory_space<vmem>>, vector<16x128xf32>
    %538 = vector.extract_strided_slice %535 {offsets = [0, 128], sizes = [16, 128], strides = [1, 1]} : vector<16x512xbf16> to vector<16x128xbf16>
    %c0_273 = arith.constant 0 : index
    %c128_274 = arith.constant 128 : index
    %539 = vector.load %arg9[%c0_273, %c128_274] : memref<128x512xbf16, #tpu.memory_space<vmem>>, vector<128x128xbf16>
    %cst_275 = arith.constant dense<0.000000e+00> : vector<16x128xf32>
    %540 = tpu.matmul %536, %539, %cst_275 {dimension_numbers = #tpu.dot_dimension_numbers<[1], [0], [0], [1], [0, 0, 1, 1], [], []>} : vector<16x128xbf16>, vector<128x128xbf16>, vector<16x128xf32> -> vector<16x128xf32>
    %541 = arith.extf %538 : vector<16x128xbf16> to vector<16x128xf32>
    %542 = arith.addf %541, %540 : vector<16x128xf32>
    %543 = arith.negf %542 : vector<16x128xf32>
    %544 = math.exp %543 : vector<16x128xf32>
    %cst_276 = arith.constant 1.000000e+00 : f32
    %545 = vector.broadcast %cst_276 : f32 to vector<16x128xf32>
    %546 = arith.addf %545, %544 : vector<16x128xf32>
    %547 = arith.divf %545, %546 : vector<16x128xf32>
    %548 = arith.mulf %547, %537 : vector<16x128xf32>
    %549 = vector.extract_strided_slice %535 {offsets = [0, 0], sizes = [16, 128], strides = [1, 1]} : vector<16x512xbf16> to vector<16x128xbf16>
    %c0_277 = arith.constant 0 : index
    %c0_278 = arith.constant 0 : index
    %550 = vector.load %arg9[%c0_277, %c0_278] : memref<128x512xbf16, #tpu.memory_space<vmem>>, vector<128x128xbf16>
    %cst_279 = arith.constant dense<0.000000e+00> : vector<16x128xf32>
    %551 = tpu.matmul %536, %550, %cst_279 {dimension_numbers = #tpu.dot_dimension_numbers<[1], [0], [0], [1], [0, 0, 1, 1], [], []>} : vector<16x128xbf16>, vector<128x128xbf16>, vector<16x128xf32> -> vector<16x128xf32>
    %552 = arith.extf %549 : vector<16x128xbf16> to vector<16x128xf32>
    %553 = arith.addf %552, %551 : vector<16x128xf32>
    %554 = arith.negf %553 : vector<16x128xf32>
    %555 = math.exp %554 : vector<16x128xf32>
    %cst_280 = arith.constant 1.000000e+00 : f32
    %556 = vector.broadcast %cst_280 : f32 to vector<16x128xf32>
    %557 = arith.addf %556, %555 : vector<16x128xf32>
    %558 = arith.divf %556, %557 : vector<16x128xf32>
    %559 = vector.extract_strided_slice %535 {offsets = [0, 256], sizes = [16, 128], strides = [1, 1]} : vector<16x512xbf16> to vector<16x128xbf16>
    %c0_281 = arith.constant 0 : index
    %c256_282 = arith.constant 256 : index
    %560 = vector.load %arg9[%c0_281, %c256_282] : memref<128x512xbf16, #tpu.memory_space<vmem>>, vector<128x128xbf16>
    %cst_283 = arith.constant dense<0.000000e+00> : vector<16x128xf32>
    %561 = tpu.matmul %536, %560, %cst_283 {dimension_numbers = #tpu.dot_dimension_numbers<[1], [0], [0], [1], [0, 0, 1, 1], [], []>} : vector<16x128xbf16>, vector<128x128xbf16>, vector<16x128xf32> -> vector<16x128xf32>
    %562 = arith.extf %559 : vector<16x128xbf16> to vector<16x128xf32>
    %563 = arith.addf %562, %561 : vector<16x128xf32>
    %564 = math.tanh %563 : vector<16x128xf32>
    %565 = arith.mulf %558, %564 : vector<16x128xf32>
    %566 = arith.addf %548, %565 : vector<16x128xf32>
    %567 = vector.extract_strided_slice %535 {offsets = [0, 384], sizes = [16, 128], strides = [1, 1]} : vector<16x512xbf16> to vector<16x128xbf16>
    %c0_284 = arith.constant 0 : index
    %c384_285 = arith.constant 384 : index
    %568 = vector.load %arg9[%c0_284, %c384_285] : memref<128x512xbf16, #tpu.memory_space<vmem>>, vector<128x128xbf16>
    %cst_286 = arith.constant dense<0.000000e+00> : vector<16x128xf32>
    %569 = tpu.matmul %536, %568, %cst_286 {dimension_numbers = #tpu.dot_dimension_numbers<[1], [0], [0], [1], [0, 0, 1, 1], [], []>} : vector<16x128xbf16>, vector<128x128xbf16>, vector<16x128xf32> -> vector<16x128xf32>
    %570 = arith.extf %567 : vector<16x128xbf16> to vector<16x128xf32>
    %571 = arith.addf %570, %569 : vector<16x128xf32>
    %572 = arith.negf %571 : vector<16x128xf32>
    %573 = math.exp %572 : vector<16x128xf32>
    %cst_287 = arith.constant 1.000000e+00 : f32
    %574 = vector.broadcast %cst_287 : f32 to vector<16x128xf32>
    %575 = arith.addf %574, %573 : vector<16x128xf32>
    %576 = arith.divf %574, %575 : vector<16x128xf32>
    %577 = math.tanh %566 : vector<16x128xf32>
    %578 = arith.mulf %576, %577 : vector<16x128xf32>
    %579 = arith.truncf %578 : vector<16x128xf32> to vector<16x128xbf16>
    %c0_288 = arith.constant 0 : index
    %c0_289 = arith.constant 0 : index
    %580 = vector.load %arg10[%c0_288, %c0_289] : memref<16x128xbf16, #tpu.memory_space<vmem>>, vector<16x128xbf16>
    tpu.vector_store %arg10[%c0_288, %c0_289], %579 {strides = array<i32>} : memref<16x128xbf16, #tpu.memory_space<vmem>>, vector<16x128xbf16>,
    %c0_290 = arith.constant 0 : index
    %c0_291 = arith.constant 0 : index
    %581 = vector.load %arg11[%c0_290, %c0_291] : memref<16x128xf32, #tpu.memory_space<vmem>>, vector<16x128xf32>
    tpu.vector_store %arg11[%c0_290, %c0_291], %566 {strides = array<i32>} : memref<16x128xf32, #tpu.memory_space<vmem>>, vector<16x128xf32>,
    %582 = arith.index_cast %c10_i32 : i32 to index
    %c0_292 = arith.constant 0 : index
    %c0_293 = arith.constant 0 : index
    %583 = vector.load %arg6[%582, %c0_292, %c0_293] : memref<16x16x128xf32, #tpu.memory_space<vmem>>, vector<1x16x128xf32>
    %584 = vector.shape_cast %583 : vector<1x16x128xf32> to vector<16x128xf32>
    %585 = vector.shape_cast %578 : vector<16x128xf32> to vector<1x16x128xf32>
    tpu.vector_store %arg6[%582, %c0_292, %c0_293], %585 {strides = array<i32>} : memref<16x16x128xf32, #tpu.memory_space<vmem>>, vector<1x16x128xf32>,
    %c11_i32 = arith.constant 11 : i32
    %586 = arith.index_cast %c11_i32 : i32 to index
    %c0_294 = arith.constant 0 : index
    %c0_295 = arith.constant 0 : index
    %587 = vector.load %arg2[%586, %c0_294, %c0_295] : memref<16x16x512xbf16, #tpu.memory_space<vmem>>, vector<1x16x512xbf16>
    %588 = vector.shape_cast %587 : vector<1x16x512xbf16> to vector<16x512xbf16>
    %c0_296 = arith.constant 0 : index
    %c0_297 = arith.constant 0 : index
    %589 = vector.load %arg10[%c0_296, %c0_297] : memref<16x128xbf16, #tpu.memory_space<vmem>>, vector<16x128xbf16>
    %c0_298 = arith.constant 0 : index
    %c0_299 = arith.constant 0 : index
    %590 = vector.load %arg11[%c0_298, %c0_299] : memref<16x128xf32, #tpu.memory_space<vmem>>, vector<16x128xf32>
    %591 = vector.extract_strided_slice %588 {offsets = [0, 128], sizes = [16, 128], strides = [1, 1]} : vector<16x512xbf16> to vector<16x128xbf16>
    %c0_300 = arith.constant 0 : index
    %c128_301 = arith.constant 128 : index
    %592 = vector.load %arg9[%c0_300, %c128_301] : memref<128x512xbf16, #tpu.memory_space<vmem>>, vector<128x128xbf16>
    %cst_302 = arith.constant dense<0.000000e+00> : vector<16x128xf32>
    %593 = tpu.matmul %589, %592, %cst_302 {dimension_numbers = #tpu.dot_dimension_numbers<[1], [0], [0], [1], [0, 0, 1, 1], [], []>} : vector<16x128xbf16>, vector<128x128xbf16>, vector<16x128xf32> -> vector<16x128xf32>
    %594 = arith.extf %591 : vector<16x128xbf16> to vector<16x128xf32>
    %595 = arith.addf %594, %593 : vector<16x128xf32>
    %596 = arith.negf %595 : vector<16x128xf32>
    %597 = math.exp %596 : vector<16x128xf32>
    %cst_303 = arith.constant 1.000000e+00 : f32
    %598 = vector.broadcast %cst_303 : f32 to vector<16x128xf32>
    %599 = arith.addf %598, %597 : vector<16x128xf32>
    %600 = arith.divf %598, %599 : vector<16x128xf32>
    %601 = arith.mulf %600, %590 : vector<16x128xf32>
    %602 = vector.extract_strided_slice %588 {offsets = [0, 0], sizes = [16, 128], strides = [1, 1]} : vector<16x512xbf16> to vector<16x128xbf16>
    %c0_304 = arith.constant 0 : index
    %c0_305 = arith.constant 0 : index
    %603 = vector.load %arg9[%c0_304, %c0_305] : memref<128x512xbf16, #tpu.memory_space<vmem>>, vector<128x128xbf16>
    %cst_306 = arith.constant dense<0.000000e+00> : vector<16x128xf32>
    %604 = tpu.matmul %589, %603, %cst_306 {dimension_numbers = #tpu.dot_dimension_numbers<[1], [0], [0], [1], [0, 0, 1, 1], [], []>} : vector<16x128xbf16>, vector<128x128xbf16>, vector<16x128xf32> -> vector<16x128xf32>
    %605 = arith.extf %602 : vector<16x128xbf16> to vector<16x128xf32>
    %606 = arith.addf %605, %604 : vector<16x128xf32>
    %607 = arith.negf %606 : vector<16x128xf32>
    %608 = math.exp %607 : vector<16x128xf32>
    %cst_307 = arith.constant 1.000000e+00 : f32
    %609 = vector.broadcast %cst_307 : f32 to vector<16x128xf32>
    %610 = arith.addf %609, %608 : vector<16x128xf32>
    %611 = arith.divf %609, %610 : vector<16x128xf32>
    %612 = vector.extract_strided_slice %588 {offsets = [0, 256], sizes = [16, 128], strides = [1, 1]} : vector<16x512xbf16> to vector<16x128xbf16>
    %c0_308 = arith.constant 0 : index
    %c256_309 = arith.constant 256 : index
    %613 = vector.load %arg9[%c0_308, %c256_309] : memref<128x512xbf16, #tpu.memory_space<vmem>>, vector<128x128xbf16>
    %cst_310 = arith.constant dense<0.000000e+00> : vector<16x128xf32>
    %614 = tpu.matmul %589, %613, %cst_310 {dimension_numbers = #tpu.dot_dimension_numbers<[1], [0], [0], [1], [0, 0, 1, 1], [], []>} : vector<16x128xbf16>, vector<128x128xbf16>, vector<16x128xf32> -> vector<16x128xf32>
    %615 = arith.extf %612 : vector<16x128xbf16> to vector<16x128xf32>
    %616 = arith.addf %615, %614 : vector<16x128xf32>
    %617 = math.tanh %616 : vector<16x128xf32>
    %618 = arith.mulf %611, %617 : vector<16x128xf32>
    %619 = arith.addf %601, %618 : vector<16x128xf32>
    %620 = vector.extract_strided_slice %588 {offsets = [0, 384], sizes = [16, 128], strides = [1, 1]} : vector<16x512xbf16> to vector<16x128xbf16>
    %c0_311 = arith.constant 0 : index
    %c384_312 = arith.constant 384 : index
    %621 = vector.load %arg9[%c0_311, %c384_312] : memref<128x512xbf16, #tpu.memory_space<vmem>>, vector<128x128xbf16>
    %cst_313 = arith.constant dense<0.000000e+00> : vector<16x128xf32>
    %622 = tpu.matmul %589, %621, %cst_313 {dimension_numbers = #tpu.dot_dimension_numbers<[1], [0], [0], [1], [0, 0, 1, 1], [], []>} : vector<16x128xbf16>, vector<128x128xbf16>, vector<16x128xf32> -> vector<16x128xf32>
    %623 = arith.extf %620 : vector<16x128xbf16> to vector<16x128xf32>
    %624 = arith.addf %623, %622 : vector<16x128xf32>
    %625 = arith.negf %624 : vector<16x128xf32>
    %626 = math.exp %625 : vector<16x128xf32>
    %cst_314 = arith.constant 1.000000e+00 : f32
    %627 = vector.broadcast %cst_314 : f32 to vector<16x128xf32>
    %628 = arith.addf %627, %626 : vector<16x128xf32>
    %629 = arith.divf %627, %628 : vector<16x128xf32>
    %630 = math.tanh %619 : vector<16x128xf32>
    %631 = arith.mulf %629, %630 : vector<16x128xf32>
    %632 = arith.truncf %631 : vector<16x128xf32> to vector<16x128xbf16>
    %c0_315 = arith.constant 0 : index
    %c0_316 = arith.constant 0 : index
    %633 = vector.load %arg10[%c0_315, %c0_316] : memref<16x128xbf16, #tpu.memory_space<vmem>>, vector<16x128xbf16>
    tpu.vector_store %arg10[%c0_315, %c0_316], %632 {strides = array<i32>} : memref<16x128xbf16, #tpu.memory_space<vmem>>, vector<16x128xbf16>,
    %c0_317 = arith.constant 0 : index
    %c0_318 = arith.constant 0 : index
    %634 = vector.load %arg11[%c0_317, %c0_318] : memref<16x128xf32, #tpu.memory_space<vmem>>, vector<16x128xf32>
    tpu.vector_store %arg11[%c0_317, %c0_318], %619 {strides = array<i32>} : memref<16x128xf32, #tpu.memory_space<vmem>>, vector<16x128xf32>,
    %635 = arith.index_cast %c11_i32 : i32 to index
    %c0_319 = arith.constant 0 : index
    %c0_320 = arith.constant 0 : index
    %636 = vector.load %arg6[%635, %c0_319, %c0_320] : memref<16x16x128xf32, #tpu.memory_space<vmem>>, vector<1x16x128xf32>
    %637 = vector.shape_cast %636 : vector<1x16x128xf32> to vector<16x128xf32>
    %638 = vector.shape_cast %631 : vector<16x128xf32> to vector<1x16x128xf32>
    tpu.vector_store %arg6[%635, %c0_319, %c0_320], %638 {strides = array<i32>} : memref<16x16x128xf32, #tpu.memory_space<vmem>>, vector<1x16x128xf32>,
    %c12_i32 = arith.constant 12 : i32
    %639 = arith.index_cast %c12_i32 : i32 to index
    %c0_321 = arith.constant 0 : index
    %c0_322 = arith.constant 0 : index
    %640 = vector.load %arg2[%639, %c0_321, %c0_322] : memref<16x16x512xbf16, #tpu.memory_space<vmem>>, vector<1x16x512xbf16>
    %641 = vector.shape_cast %640 : vector<1x16x512xbf16> to vector<16x512xbf16>
    %c0_323 = arith.constant 0 : index
    %c0_324 = arith.constant 0 : index
    %642 = vector.load %arg10[%c0_323, %c0_324] : memref<16x128xbf16, #tpu.memory_space<vmem>>, vector<16x128xbf16>
    %c0_325 = arith.constant 0 : index
    %c0_326 = arith.constant 0 : index
    %643 = vector.load %arg11[%c0_325, %c0_326] : memref<16x128xf32, #tpu.memory_space<vmem>>, vector<16x128xf32>
    %644 = vector.extract_strided_slice %641 {offsets = [0, 128], sizes = [16, 128], strides = [1, 1]} : vector<16x512xbf16> to vector<16x128xbf16>
    %c0_327 = arith.constant 0 : index
    %c128_328 = arith.constant 128 : index
    %645 = vector.load %arg9[%c0_327, %c128_328] : memref<128x512xbf16, #tpu.memory_space<vmem>>, vector<128x128xbf16>
    %cst_329 = arith.constant dense<0.000000e+00> : vector<16x128xf32>
    %646 = tpu.matmul %642, %645, %cst_329 {dimension_numbers = #tpu.dot_dimension_numbers<[1], [0], [0], [1], [0, 0, 1, 1], [], []>} : vector<16x128xbf16>, vector<128x128xbf16>, vector<16x128xf32> -> vector<16x128xf32>
    %647 = arith.extf %644 : vector<16x128xbf16> to vector<16x128xf32>
    %648 = arith.addf %647, %646 : vector<16x128xf32>
    %649 = arith.negf %648 : vector<16x128xf32>
    %650 = math.exp %649 : vector<16x128xf32>
    %cst_330 = arith.constant 1.000000e+00 : f32
    %651 = vector.broadcast %cst_330 : f32 to vector<16x128xf32>
    %652 = arith.addf %651, %650 : vector<16x128xf32>
    %653 = arith.divf %651, %652 : vector<16x128xf32>
    %654 = arith.mulf %653, %643 : vector<16x128xf32>
    %655 = vector.extract_strided_slice %641 {offsets = [0, 0], sizes = [16, 128], strides = [1, 1]} : vector<16x512xbf16> to vector<16x128xbf16>
    %c0_331 = arith.constant 0 : index
    %c0_332 = arith.constant 0 : index
    %656 = vector.load %arg9[%c0_331, %c0_332] : memref<128x512xbf16, #tpu.memory_space<vmem>>, vector<128x128xbf16>
    %cst_333 = arith.constant dense<0.000000e+00> : vector<16x128xf32>
    %657 = tpu.matmul %642, %656, %cst_333 {dimension_numbers = #tpu.dot_dimension_numbers<[1], [0], [0], [1], [0, 0, 1, 1], [], []>} : vector<16x128xbf16>, vector<128x128xbf16>, vector<16x128xf32> -> vector<16x128xf32>
    %658 = arith.extf %655 : vector<16x128xbf16> to vector<16x128xf32>
    %659 = arith.addf %658, %657 : vector<16x128xf32>
    %660 = arith.negf %659 : vector<16x128xf32>
    %661 = math.exp %660 : vector<16x128xf32>
    %cst_334 = arith.constant 1.000000e+00 : f32
    %662 = vector.broadcast %cst_334 : f32 to vector<16x128xf32>
    %663 = arith.addf %662, %661 : vector<16x128xf32>
    %664 = arith.divf %662, %663 : vector<16x128xf32>
    %665 = vector.extract_strided_slice %641 {offsets = [0, 256], sizes = [16, 128], strides = [1, 1]} : vector<16x512xbf16> to vector<16x128xbf16>
    %c0_335 = arith.constant 0 : index
    %c256_336 = arith.constant 256 : index
    %666 = vector.load %arg9[%c0_335, %c256_336] : memref<128x512xbf16, #tpu.memory_space<vmem>>, vector<128x128xbf16>
    %cst_337 = arith.constant dense<0.000000e+00> : vector<16x128xf32>
    %667 = tpu.matmul %642, %666, %cst_337 {dimension_numbers = #tpu.dot_dimension_numbers<[1], [0], [0], [1], [0, 0, 1, 1], [], []>} : vector<16x128xbf16>, vector<128x128xbf16>, vector<16x128xf32> -> vector<16x128xf32>
    %668 = arith.extf %665 : vector<16x128xbf16> to vector<16x128xf32>
    %669 = arith.addf %668, %667 : vector<16x128xf32>
    %670 = math.tanh %669 : vector<16x128xf32>
    %671 = arith.mulf %664, %670 : vector<16x128xf32>
    %672 = arith.addf %654, %671 : vector<16x128xf32>
    %673 = vector.extract_strided_slice %641 {offsets = [0, 384], sizes = [16, 128], strides = [1, 1]} : vector<16x512xbf16> to vector<16x128xbf16>
    %c0_338 = arith.constant 0 : index
    %c384_339 = arith.constant 384 : index
    %674 = vector.load %arg9[%c0_338, %c384_339] : memref<128x512xbf16, #tpu.memory_space<vmem>>, vector<128x128xbf16>
    %cst_340 = arith.constant dense<0.000000e+00> : vector<16x128xf32>
    %675 = tpu.matmul %642, %674, %cst_340 {dimension_numbers = #tpu.dot_dimension_numbers<[1], [0], [0], [1], [0, 0, 1, 1], [], []>} : vector<16x128xbf16>, vector<128x128xbf16>, vector<16x128xf32> -> vector<16x128xf32>
    %676 = arith.extf %673 : vector<16x128xbf16> to vector<16x128xf32>
    %677 = arith.addf %676, %675 : vector<16x128xf32>
    %678 = arith.negf %677 : vector<16x128xf32>
    %679 = math.exp %678 : vector<16x128xf32>
    %cst_341 = arith.constant 1.000000e+00 : f32
    %680 = vector.broadcast %cst_341 : f32 to vector<16x128xf32>
    %681 = arith.addf %680, %679 : vector<16x128xf32>
    %682 = arith.divf %680, %681 : vector<16x128xf32>
    %683 = math.tanh %672 : vector<16x128xf32>
    %684 = arith.mulf %682, %683 : vector<16x128xf32>
    %685 = arith.truncf %684 : vector<16x128xf32> to vector<16x128xbf16>
    %c0_342 = arith.constant 0 : index
    %c0_343 = arith.constant 0 : index
    %686 = vector.load %arg10[%c0_342, %c0_343] : memref<16x128xbf16, #tpu.memory_space<vmem>>, vector<16x128xbf16>
    tpu.vector_store %arg10[%c0_342, %c0_343], %685 {strides = array<i32>} : memref<16x128xbf16, #tpu.memory_space<vmem>>, vector<16x128xbf16>,
    %c0_344 = arith.constant 0 : index
    %c0_345 = arith.constant 0 : index
    %687 = vector.load %arg11[%c0_344, %c0_345] : memref<16x128xf32, #tpu.memory_space<vmem>>, vector<16x128xf32>
    tpu.vector_store %arg11[%c0_344, %c0_345], %672 {strides = array<i32>} : memref<16x128xf32, #tpu.memory_space<vmem>>, vector<16x128xf32>,
    %688 = arith.index_cast %c12_i32 : i32 to index
    %c0_346 = arith.constant 0 : index
    %c0_347 = arith.constant 0 : index
    %689 = vector.load %arg6[%688, %c0_346, %c0_347] : memref<16x16x128xf32, #tpu.memory_space<vmem>>, vector<1x16x128xf32>
    %690 = vector.shape_cast %689 : vector<1x16x128xf32> to vector<16x128xf32>
    %691 = vector.shape_cast %684 : vector<16x128xf32> to vector<1x16x128xf32>
    tpu.vector_store %arg6[%688, %c0_346, %c0_347], %691 {strides = array<i32>} : memref<16x16x128xf32, #tpu.memory_space<vmem>>, vector<1x16x128xf32>,
    %c13_i32 = arith.constant 13 : i32
    %692 = arith.index_cast %c13_i32 : i32 to index
    %c0_348 = arith.constant 0 : index
    %c0_349 = arith.constant 0 : index
    %693 = vector.load %arg2[%692, %c0_348, %c0_349] : memref<16x16x512xbf16, #tpu.memory_space<vmem>>, vector<1x16x512xbf16>
    %694 = vector.shape_cast %693 : vector<1x16x512xbf16> to vector<16x512xbf16>
    %c0_350 = arith.constant 0 : index
    %c0_351 = arith.constant 0 : index
    %695 = vector.load %arg10[%c0_350, %c0_351] : memref<16x128xbf16, #tpu.memory_space<vmem>>, vector<16x128xbf16>
    %c0_352 = arith.constant 0 : index
    %c0_353 = arith.constant 0 : index
    %696 = vector.load %arg11[%c0_352, %c0_353] : memref<16x128xf32, #tpu.memory_space<vmem>>, vector<16x128xf32>
    %697 = vector.extract_strided_slice %694 {offsets = [0, 128], sizes = [16, 128], strides = [1, 1]} : vector<16x512xbf16> to vector<16x128xbf16>
    %c0_354 = arith.constant 0 : index
    %c128_355 = arith.constant 128 : index
    %698 = vector.load %arg9[%c0_354, %c128_355] : memref<128x512xbf16, #tpu.memory_space<vmem>>, vector<128x128xbf16>
    %cst_356 = arith.constant dense<0.000000e+00> : vector<16x128xf32>
    %699 = tpu.matmul %695, %698, %cst_356 {dimension_numbers = #tpu.dot_dimension_numbers<[1], [0], [0], [1], [0, 0, 1, 1], [], []>} : vector<16x128xbf16>, vector<128x128xbf16>, vector<16x128xf32> -> vector<16x128xf32>
    %700 = arith.extf %697 : vector<16x128xbf16> to vector<16x128xf32>
    %701 = arith.addf %700, %699 : vector<16x128xf32>
    %702 = arith.negf %701 : vector<16x128xf32>
    %703 = math.exp %702 : vector<16x128xf32>
    %cst_357 = arith.constant 1.000000e+00 : f32
    %704 = vector.broadcast %cst_357 : f32 to vector<16x128xf32>
    %705 = arith.addf %704, %703 : vector<16x128xf32>
    %706 = arith.divf %704, %705 : vector<16x128xf32>
    %707 = arith.mulf %706, %696 : vector<16x128xf32>
    %708 = vector.extract_strided_slice %694 {offsets = [0, 0], sizes = [16, 128], strides = [1, 1]} : vector<16x512xbf16> to vector<16x128xbf16>
    %c0_358 = arith.constant 0 : index
    %c0_359 = arith.constant 0 : index
    %709 = vector.load %arg9[%c0_358, %c0_359] : memref<128x512xbf16, #tpu.memory_space<vmem>>, vector<128x128xbf16>
    %cst_360 = arith.constant dense<0.000000e+00> : vector<16x128xf32>
    %710 = tpu.matmul %695, %709, %cst_360 {dimension_numbers = #tpu.dot_dimension_numbers<[1], [0], [0], [1], [0, 0, 1, 1], [], []>} : vector<16x128xbf16>, vector<128x128xbf16>, vector<16x128xf32> -> vector<16x128xf32>
    %711 = arith.extf %708 : vector<16x128xbf16> to vector<16x128xf32>
    %712 = arith.addf %711, %710 : vector<16x128xf32>
    %713 = arith.negf %712 : vector<16x128xf32>
    %714 = math.exp %713 : vector<16x128xf32>
    %cst_361 = arith.constant 1.000000e+00 : f32
    %715 = vector.broadcast %cst_361 : f32 to vector<16x128xf32>
    %716 = arith.addf %715, %714 : vector<16x128xf32>
    %717 = arith.divf %715, %716 : vector<16x128xf32>
    %718 = vector.extract_strided_slice %694 {offsets = [0, 256], sizes = [16, 128], strides = [1, 1]} : vector<16x512xbf16> to vector<16x128xbf16>
    %c0_362 = arith.constant 0 : index
    %c256_363 = arith.constant 256 : index
    %719 = vector.load %arg9[%c0_362, %c256_363] : memref<128x512xbf16, #tpu.memory_space<vmem>>, vector<128x128xbf16>
    %cst_364 = arith.constant dense<0.000000e+00> : vector<16x128xf32>
    %720 = tpu.matmul %695, %719, %cst_364 {dimension_numbers = #tpu.dot_dimension_numbers<[1], [0], [0], [1], [0, 0, 1, 1], [], []>} : vector<16x128xbf16>, vector<128x128xbf16>, vector<16x128xf32> -> vector<16x128xf32>
    %721 = arith.extf %718 : vector<16x128xbf16> to vector<16x128xf32>
    %722 = arith.addf %721, %720 : vector<16x128xf32>
    %723 = math.tanh %722 : vector<16x128xf32>
    %724 = arith.mulf %717, %723 : vector<16x128xf32>
    %725 = arith.addf %707, %724 : vector<16x128xf32>
    %726 = vector.extract_strided_slice %694 {offsets = [0, 384], sizes = [16, 128], strides = [1, 1]} : vector<16x512xbf16> to vector<16x128xbf16>
    %c0_365 = arith.constant 0 : index
    %c384_366 = arith.constant 384 : index
    %727 = vector.load %arg9[%c0_365, %c384_366] : memref<128x512xbf16, #tpu.memory_space<vmem>>, vector<128x128xbf16>
    %cst_367 = arith.constant dense<0.000000e+00> : vector<16x128xf32>
    %728 = tpu.matmul %695, %727, %cst_367 {dimension_numbers = #tpu.dot_dimension_numbers<[1], [0], [0], [1], [0, 0, 1, 1], [], []>} : vector<16x128xbf16>, vector<128x128xbf16>, vector<16x128xf32> -> vector<16x128xf32>
    %729 = arith.extf %726 : vector<16x128xbf16> to vector<16x128xf32>
    %730 = arith.addf %729, %728 : vector<16x128xf32>
    %731 = arith.negf %730 : vector<16x128xf32>
    %732 = math.exp %731 : vector<16x128xf32>
    %cst_368 = arith.constant 1.000000e+00 : f32
    %733 = vector.broadcast %cst_368 : f32 to vector<16x128xf32>
    %734 = arith.addf %733, %732 : vector<16x128xf32>
    %735 = arith.divf %733, %734 : vector<16x128xf32>
    %736 = math.tanh %725 : vector<16x128xf32>
    %737 = arith.mulf %735, %736 : vector<16x128xf32>
    %738 = arith.truncf %737 : vector<16x128xf32> to vector<16x128xbf16>
    %c0_369 = arith.constant 0 : index
    %c0_370 = arith.constant 0 : index
    %739 = vector.load %arg10[%c0_369, %c0_370] : memref<16x128xbf16, #tpu.memory_space<vmem>>, vector<16x128xbf16>
    tpu.vector_store %arg10[%c0_369, %c0_370], %738 {strides = array<i32>} : memref<16x128xbf16, #tpu.memory_space<vmem>>, vector<16x128xbf16>,
    %c0_371 = arith.constant 0 : index
    %c0_372 = arith.constant 0 : index
    %740 = vector.load %arg11[%c0_371, %c0_372] : memref<16x128xf32, #tpu.memory_space<vmem>>, vector<16x128xf32>
    tpu.vector_store %arg11[%c0_371, %c0_372], %725 {strides = array<i32>} : memref<16x128xf32, #tpu.memory_space<vmem>>, vector<16x128xf32>,
    %741 = arith.index_cast %c13_i32 : i32 to index
    %c0_373 = arith.constant 0 : index
    %c0_374 = arith.constant 0 : index
    %742 = vector.load %arg6[%741, %c0_373, %c0_374] : memref<16x16x128xf32, #tpu.memory_space<vmem>>, vector<1x16x128xf32>
    %743 = vector.shape_cast %742 : vector<1x16x128xf32> to vector<16x128xf32>
    %744 = vector.shape_cast %737 : vector<16x128xf32> to vector<1x16x128xf32>
    tpu.vector_store %arg6[%741, %c0_373, %c0_374], %744 {strides = array<i32>} : memref<16x16x128xf32, #tpu.memory_space<vmem>>, vector<1x16x128xf32>,
    %c14_i32 = arith.constant 14 : i32
    %745 = arith.index_cast %c14_i32 : i32 to index
    %c0_375 = arith.constant 0 : index
    %c0_376 = arith.constant 0 : index
    %746 = vector.load %arg2[%745, %c0_375, %c0_376] : memref<16x16x512xbf16, #tpu.memory_space<vmem>>, vector<1x16x512xbf16>
    %747 = vector.shape_cast %746 : vector<1x16x512xbf16> to vector<16x512xbf16>
    %c0_377 = arith.constant 0 : index
    %c0_378 = arith.constant 0 : index
    %748 = vector.load %arg10[%c0_377, %c0_378] : memref<16x128xbf16, #tpu.memory_space<vmem>>, vector<16x128xbf16>
    %c0_379 = arith.constant 0 : index
    %c0_380 = arith.constant 0 : index
    %749 = vector.load %arg11[%c0_379, %c0_380] : memref<16x128xf32, #tpu.memory_space<vmem>>, vector<16x128xf32>
    %750 = vector.extract_strided_slice %747 {offsets = [0, 128], sizes = [16, 128], strides = [1, 1]} : vector<16x512xbf16> to vector<16x128xbf16>
    %c0_381 = arith.constant 0 : index
    %c128_382 = arith.constant 128 : index
    %751 = vector.load %arg9[%c0_381, %c128_382] : memref<128x512xbf16, #tpu.memory_space<vmem>>, vector<128x128xbf16>
    %cst_383 = arith.constant dense<0.000000e+00> : vector<16x128xf32>
    %752 = tpu.matmul %748, %751, %cst_383 {dimension_numbers = #tpu.dot_dimension_numbers<[1], [0], [0], [1], [0, 0, 1, 1], [], []>} : vector<16x128xbf16>, vector<128x128xbf16>, vector<16x128xf32> -> vector<16x128xf32>
    %753 = arith.extf %750 : vector<16x128xbf16> to vector<16x128xf32>
    %754 = arith.addf %753, %752 : vector<16x128xf32>
    %755 = arith.negf %754 : vector<16x128xf32>
    %756 = math.exp %755 : vector<16x128xf32>
    %cst_384 = arith.constant 1.000000e+00 : f32
    %757 = vector.broadcast %cst_384 : f32 to vector<16x128xf32>
    %758 = arith.addf %757, %756 : vector<16x128xf32>
    %759 = arith.divf %757, %758 : vector<16x128xf32>
    %760 = arith.mulf %759, %749 : vector<16x128xf32>
    %761 = vector.extract_strided_slice %747 {offsets = [0, 0], sizes = [16, 128], strides = [1, 1]} : vector<16x512xbf16> to vector<16x128xbf16>
    %c0_385 = arith.constant 0 : index
    %c0_386 = arith.constant 0 : index
    %762 = vector.load %arg9[%c0_385, %c0_386] : memref<128x512xbf16, #tpu.memory_space<vmem>>, vector<128x128xbf16>
    %cst_387 = arith.constant dense<0.000000e+00> : vector<16x128xf32>
    %763 = tpu.matmul %748, %762, %cst_387 {dimension_numbers = #tpu.dot_dimension_numbers<[1], [0], [0], [1], [0, 0, 1, 1], [], []>} : vector<16x128xbf16>, vector<128x128xbf16>, vector<16x128xf32> -> vector<16x128xf32>
    %764 = arith.extf %761 : vector<16x128xbf16> to vector<16x128xf32>
    %765 = arith.addf %764, %763 : vector<16x128xf32>
    %766 = arith.negf %765 : vector<16x128xf32>
    %767 = math.exp %766 : vector<16x128xf32>
    %cst_388 = arith.constant 1.000000e+00 : f32
    %768 = vector.broadcast %cst_388 : f32 to vector<16x128xf32>
    %769 = arith.addf %768, %767 : vector<16x128xf32>
    %770 = arith.divf %768, %769 : vector<16x128xf32>
    %771 = vector.extract_strided_slice %747 {offsets = [0, 256], sizes = [16, 128], strides = [1, 1]} : vector<16x512xbf16> to vector<16x128xbf16>
    %c0_389 = arith.constant 0 : index
    %c256_390 = arith.constant 256 : index
    %772 = vector.load %arg9[%c0_389, %c256_390] : memref<128x512xbf16, #tpu.memory_space<vmem>>, vector<128x128xbf16>
    %cst_391 = arith.constant dense<0.000000e+00> : vector<16x128xf32>
    %773 = tpu.matmul %748, %772, %cst_391 {dimension_numbers = #tpu.dot_dimension_numbers<[1], [0], [0], [1], [0, 0, 1, 1], [], []>} : vector<16x128xbf16>, vector<128x128xbf16>, vector<16x128xf32> -> vector<16x128xf32>
    %774 = arith.extf %771 : vector<16x128xbf16> to vector<16x128xf32>
    %775 = arith.addf %774, %773 : vector<16x128xf32>
    %776 = math.tanh %775 : vector<16x128xf32>
    %777 = arith.mulf %770, %776 : vector<16x128xf32>
    %778 = arith.addf %760, %777 : vector<16x128xf32>
    %779 = vector.extract_strided_slice %747 {offsets = [0, 384], sizes = [16, 128], strides = [1, 1]} : vector<16x512xbf16> to vector<16x128xbf16>
    %c0_392 = arith.constant 0 : index
    %c384_393 = arith.constant 384 : index
    %780 = vector.load %arg9[%c0_392, %c384_393] : memref<128x512xbf16, #tpu.memory_space<vmem>>, vector<128x128xbf16>
    %cst_394 = arith.constant dense<0.000000e+00> : vector<16x128xf32>
    %781 = tpu.matmul %748, %780, %cst_394 {dimension_numbers = #tpu.dot_dimension_numbers<[1], [0], [0], [1], [0, 0, 1, 1], [], []>} : vector<16x128xbf16>, vector<128x128xbf16>, vector<16x128xf32> -> vector<16x128xf32>
    %782 = arith.extf %779 : vector<16x128xbf16> to vector<16x128xf32>
    %783 = arith.addf %782, %781 : vector<16x128xf32>
    %784 = arith.negf %783 : vector<16x128xf32>
    %785 = math.exp %784 : vector<16x128xf32>
    %cst_395 = arith.constant 1.000000e+00 : f32
    %786 = vector.broadcast %cst_395 : f32 to vector<16x128xf32>
    %787 = arith.addf %786, %785 : vector<16x128xf32>
    %788 = arith.divf %786, %787 : vector<16x128xf32>
    %789 = math.tanh %778 : vector<16x128xf32>
    %790 = arith.mulf %788, %789 : vector<16x128xf32>
    %791 = arith.truncf %790 : vector<16x128xf32> to vector<16x128xbf16>
    %c0_396 = arith.constant 0 : index
    %c0_397 = arith.constant 0 : index
    %792 = vector.load %arg10[%c0_396, %c0_397] : memref<16x128xbf16, #tpu.memory_space<vmem>>, vector<16x128xbf16>
    tpu.vector_store %arg10[%c0_396, %c0_397], %791 {strides = array<i32>} : memref<16x128xbf16, #tpu.memory_space<vmem>>, vector<16x128xbf16>,
    %c0_398 = arith.constant 0 : index
    %c0_399 = arith.constant 0 : index
    %793 = vector.load %arg11[%c0_398, %c0_399] : memref<16x128xf32, #tpu.memory_space<vmem>>, vector<16x128xf32>
    tpu.vector_store %arg11[%c0_398, %c0_399], %778 {strides = array<i32>} : memref<16x128xf32, #tpu.memory_space<vmem>>, vector<16x128xf32>,
    %794 = arith.index_cast %c14_i32 : i32 to index
    %c0_400 = arith.constant 0 : index
    %c0_401 = arith.constant 0 : index
    %795 = vector.load %arg6[%794, %c0_400, %c0_401] : memref<16x16x128xf32, #tpu.memory_space<vmem>>, vector<1x16x128xf32>
    %796 = vector.shape_cast %795 : vector<1x16x128xf32> to vector<16x128xf32>
    %797 = vector.shape_cast %790 : vector<16x128xf32> to vector<1x16x128xf32>
    tpu.vector_store %arg6[%794, %c0_400, %c0_401], %797 {strides = array<i32>} : memref<16x16x128xf32, #tpu.memory_space<vmem>>, vector<1x16x128xf32>,
    %c15_i32 = arith.constant 15 : i32
    %798 = arith.index_cast %c15_i32 : i32 to index
    %c0_402 = arith.constant 0 : index
    %c0_403 = arith.constant 0 : index
    %799 = vector.load %arg2[%798, %c0_402, %c0_403] : memref<16x16x512xbf16, #tpu.memory_space<vmem>>, vector<1x16x512xbf16>
    %800 = vector.shape_cast %799 : vector<1x16x512xbf16> to vector<16x512xbf16>
    %c0_404 = arith.constant 0 : index
    %c0_405 = arith.constant 0 : index
    %801 = vector.load %arg10[%c0_404, %c0_405] : memref<16x128xbf16, #tpu.memory_space<vmem>>, vector<16x128xbf16>
    %c0_406 = arith.constant 0 : index
    %c0_407 = arith.constant 0 : index
    %802 = vector.load %arg11[%c0_406, %c0_407] : memref<16x128xf32, #tpu.memory_space<vmem>>, vector<16x128xf32>
    %803 = vector.extract_strided_slice %800 {offsets = [0, 128], sizes = [16, 128], strides = [1, 1]} : vector<16x512xbf16> to vector<16x128xbf16>
    %c0_408 = arith.constant 0 : index
    %c128_409 = arith.constant 128 : index
    %804 = vector.load %arg9[%c0_408, %c128_409] : memref<128x512xbf16, #tpu.memory_space<vmem>>, vector<128x128xbf16>
    %cst_410 = arith.constant dense<0.000000e+00> : vector<16x128xf32>
    %805 = tpu.matmul %801, %804, %cst_410 {dimension_numbers = #tpu.dot_dimension_numbers<[1], [0], [0], [1], [0, 0, 1, 1], [], []>} : vector<16x128xbf16>, vector<128x128xbf16>, vector<16x128xf32> -> vector<16x128xf32>
    %806 = arith.extf %803 : vector<16x128xbf16> to vector<16x128xf32>
    %807 = arith.addf %806, %805 : vector<16x128xf32>
    %808 = arith.negf %807 : vector<16x128xf32>
    %809 = math.exp %808 : vector<16x128xf32>
    %cst_411 = arith.constant 1.000000e+00 : f32
    %810 = vector.broadcast %cst_411 : f32 to vector<16x128xf32>
    %811 = arith.addf %810, %809 : vector<16x128xf32>
    %812 = arith.divf %810, %811 : vector<16x128xf32>
    %813 = arith.mulf %812, %802 : vector<16x128xf32>
    %814 = vector.extract_strided_slice %800 {offsets = [0, 0], sizes = [16, 128], strides = [1, 1]} : vector<16x512xbf16> to vector<16x128xbf16>
    %c0_412 = arith.constant 0 : index
    %c0_413 = arith.constant 0 : index
    %815 = vector.load %arg9[%c0_412, %c0_413] : memref<128x512xbf16, #tpu.memory_space<vmem>>, vector<128x128xbf16>
    %cst_414 = arith.constant dense<0.000000e+00> : vector<16x128xf32>
    %816 = tpu.matmul %801, %815, %cst_414 {dimension_numbers = #tpu.dot_dimension_numbers<[1], [0], [0], [1], [0, 0, 1, 1], [], []>} : vector<16x128xbf16>, vector<128x128xbf16>, vector<16x128xf32> -> vector<16x128xf32>
    %817 = arith.extf %814 : vector<16x128xbf16> to vector<16x128xf32>
    %818 = arith.addf %817, %816 : vector<16x128xf32>
    %819 = arith.negf %818 : vector<16x128xf32>
    %820 = math.exp %819 : vector<16x128xf32>
    %cst_415 = arith.constant 1.000000e+00 : f32
    %821 = vector.broadcast %cst_415 : f32 to vector<16x128xf32>
    %822 = arith.addf %821, %820 : vector<16x128xf32>
    %823 = arith.divf %821, %822 : vector<16x128xf32>
    %824 = vector.extract_strided_slice %800 {offsets = [0, 256], sizes = [16, 128], strides = [1, 1]} : vector<16x512xbf16> to vector<16x128xbf16>
    %c0_416 = arith.constant 0 : index
    %c256_417 = arith.constant 256 : index
    %825 = vector.load %arg9[%c0_416, %c256_417] : memref<128x512xbf16, #tpu.memory_space<vmem>>, vector<128x128xbf16>
    %cst_418 = arith.constant dense<0.000000e+00> : vector<16x128xf32>
    %826 = tpu.matmul %801, %825, %cst_418 {dimension_numbers = #tpu.dot_dimension_numbers<[1], [0], [0], [1], [0, 0, 1, 1], [], []>} : vector<16x128xbf16>, vector<128x128xbf16>, vector<16x128xf32> -> vector<16x128xf32>
    %827 = arith.extf %824 : vector<16x128xbf16> to vector<16x128xf32>
    %828 = arith.addf %827, %826 : vector<16x128xf32>
    %829 = math.tanh %828 : vector<16x128xf32>
    %830 = arith.mulf %823, %829 : vector<16x128xf32>
    %831 = arith.addf %813, %830 : vector<16x128xf32>
    %832 = vector.extract_strided_slice %800 {offsets = [0, 384], sizes = [16, 128], strides = [1, 1]} : vector<16x512xbf16> to vector<16x128xbf16>
    %c0_419 = arith.constant 0 : index
    %c384_420 = arith.constant 384 : index
    %833 = vector.load %arg9[%c0_419, %c384_420] : memref<128x512xbf16, #tpu.memory_space<vmem>>, vector<128x128xbf16>
    %cst_421 = arith.constant dense<0.000000e+00> : vector<16x128xf32>
    %834 = tpu.matmul %801, %833, %cst_421 {dimension_numbers = #tpu.dot_dimension_numbers<[1], [0], [0], [1], [0, 0, 1, 1], [], []>} : vector<16x128xbf16>, vector<128x128xbf16>, vector<16x128xf32> -> vector<16x128xf32>
    %835 = arith.extf %832 : vector<16x128xbf16> to vector<16x128xf32>
    %836 = arith.addf %835, %834 : vector<16x128xf32>
    %837 = arith.negf %836 : vector<16x128xf32>
    %838 = math.exp %837 : vector<16x128xf32>
    %cst_422 = arith.constant 1.000000e+00 : f32
    %839 = vector.broadcast %cst_422 : f32 to vector<16x128xf32>
    %840 = arith.addf %839, %838 : vector<16x128xf32>
    %841 = arith.divf %839, %840 : vector<16x128xf32>
    %842 = math.tanh %831 : vector<16x128xf32>
    %843 = arith.mulf %841, %842 : vector<16x128xf32>
    %844 = arith.truncf %843 : vector<16x128xf32> to vector<16x128xbf16>
    %c0_423 = arith.constant 0 : index
    %c0_424 = arith.constant 0 : index
    %845 = vector.load %arg10[%c0_423, %c0_424] : memref<16x128xbf16, #tpu.memory_space<vmem>>, vector<16x128xbf16>
    tpu.vector_store %arg10[%c0_423, %c0_424], %844 {strides = array<i32>} : memref<16x128xbf16, #tpu.memory_space<vmem>>, vector<16x128xbf16>,
    %c0_425 = arith.constant 0 : index
    %c0_426 = arith.constant 0 : index
    %846 = vector.load %arg11[%c0_425, %c0_426] : memref<16x128xf32, #tpu.memory_space<vmem>>, vector<16x128xf32>
    tpu.vector_store %arg11[%c0_425, %c0_426], %831 {strides = array<i32>} : memref<16x128xf32, #tpu.memory_space<vmem>>, vector<16x128xf32>,
    %847 = arith.index_cast %c15_i32 : i32 to index
    %c0_427 = arith.constant 0 : index
    %c0_428 = arith.constant 0 : index
    %848 = vector.load %arg6[%847, %c0_427, %c0_428] : memref<16x16x128xf32, #tpu.memory_space<vmem>>, vector<1x16x128xf32>
    %849 = vector.shape_cast %848 : vector<1x16x128xf32> to vector<16x128xf32>
    %850 = vector.shape_cast %843 : vector<16x128xf32> to vector<1x16x128xf32>
    tpu.vector_store %arg6[%847, %c0_427, %c0_428], %850 {strides = array<i32>} : memref<16x16x128xf32, #tpu.memory_space<vmem>>, vector<1x16x128xf32>,
    %c16_i32 = arith.constant 16 : i32
    %c0_i32_429 = arith.constant 0 : i32
    %851 = arith.cmpi eq, %arg1, %c0_i32_429 : i32
    %852 = arith.extui %851 : i1 to i32
    %c0_i32_430 = arith.constant 0 : i32
    %853 = arith.cmpi ne, %852, %c0_i32_430 : i32
    scf.if %853 {
      %c0_431 = arith.constant 0 : index
      %c0_432 = arith.constant 0 : index
      %854 = vector.load %arg10[%c0_431, %c0_432] : memref<16x128xbf16, #tpu.memory_space<vmem>>, vector<16x128xbf16>
      %855 = arith.extf %854 : vector<16x128xbf16> to vector<16x128xf32>
      %c0_433 = arith.constant 0 : index
      %c0_434 = arith.constant 0 : index
      %856 = vector.load %arg7[%c0_433, %c0_434] : memref<16x128xf32, #tpu.memory_space<vmem>>, vector<16x128xf32>
      tpu.vector_store %arg7[%c0_433, %c0_434], %855 {strides = array<i32>} : memref<16x128xf32, #tpu.memory_space<vmem>>, vector<16x128xf32>,
      %c0_435 = arith.constant 0 : index
      %c0_436 = arith.constant 0 : index
      %857 = vector.load %arg11[%c0_435, %c0_436] : memref<16x128xf32, #tpu.memory_space<vmem>>, vector<16x128xf32>
      %c0_437 = arith.constant 0 : index
      %c0_438 = arith.constant 0 : index
      %858 = vector.load %arg8[%c0_437, %c0_438] : memref<16x128xf32, #tpu.memory_space<vmem>>, vector<16x128xf32>
      tpu.vector_store %arg8[%c0_437, %c0_438], %857 {strides = array<i32>} : memref<16x128xf32, #tpu.memory_space<vmem>>, vector<16x128xf32>,
    } else {
    }
    return
  }
  func.func @transform_0(%arg0: i32, %arg1: i32) -> (i32, i32, i32) {
    %c0_i32 = arith.constant 0 : i32
    %c0_i32_0 = arith.constant 0 : i32
    return %arg1, %arg0, %c0_i32 : i32, i32, i32
  }
  func.func @transform_1(%arg0: i32, %arg1: i32) -> (i32, i32) {
    %c0_i32 = arith.constant 0 : i32
    %c0_i32_0 = arith.constant 0 : i32
    return %arg0, %c0_i32 : i32, i32
  }
  func.func @transform_2(%arg0: i32, %arg1: i32) -> (i32, i32) {
    %c0_i32 = arith.constant 0 : i32
    %c0_i32_0 = arith.constant 0 : i32
    return %arg0, %c0_i32 : i32, i32
  }
  func.func @transform_4(%arg0: i32, %arg1: i32) -> (i32, i32, i32) {
    %c0_i32 = arith.constant 0 : i32
    %c0_i32_0 = arith.constant 0 : i32
    return %arg1, %arg0, %c0_i32 : i32, i32, i32
  }
  func.func @transform_5(%arg0: i32, %arg1: i32) -> (i32, i32) {
    %c0_i32 = arith.constant 0 : i32
    %c0_i32_0 = arith.constant 0 : i32
    return %arg0, %c0_i32 : i32, i32
  }
  func.func @transform_6(%arg0: i32, %arg1: i32) -> (i32, i32) {
    %c0_i32 = arith.constant 0 : i32
    %c0_i32_0 = arith.constant 0 : i32
    return %arg0, %c0_i32 : i32, i32
  }
}

</mosaic_0001>

<llo_original>
// kernel: tpu_custom_call.1
$region0: #{tpu_custom_call.1}
  #allocation0 [shape = 'u32[]', space=smem, size = 0x4, offset = 0x4, fixed_abs, tag = 'smem constant byte address 0x4 - core index']
  #allocation1 [shape = 'u32[144,128]{1,0:T(1,128)}', space=vmem, size = 0x12000, scoped, tag = 'internal scratch']
  #allocation2 [shape = 'bf16[128,512]{1,0:T(8,128)(2,1)}', space=vmem, size = 0x20000, scoped, tag = 'scratch operand']
  #allocation3 [shape = 'bf16[16,128]{1,0:T(8,128)(2,1)}', space=vmem, size = 0x1000, scoped, tag = 'scratch operand']
  #allocation4 [shape = 'f32[16,128]{1,0:T(8,128)}', space=vmem, size = 0x2000, scoped, tag = 'scratch operand']
  #allocation5 [shape = 's32[1]{0}', space=sflag, size = 0x4, scoped, tag = 'scratch operand']
  #allocation16 [shape = 's32[]', space=sflag, size = 0x4, offset = 0, fixed_abs, tag = 'sflag constant byte address 0x0 - dummy sync flag']
  #allocation17 [shape = 's32[]', space=sflag, size = 0x4, offset = 0, fixed_abs, tag = 'sflag constant byte address 0x0 - dummy sync flag']
  #allocation18 [shape = 'u32[]', space=smem, size = 0x4, offset = 0x44, fixed_abs, tag = 'smem constant byte address 0x44 - assertion arg 0']
  #allocation19 [shape = 'u32[]', space=smem, size = 0x4, offset = 0x48, fixed_abs, tag = 'smem constant byte address 0x48 - assertion arg 1']
  %s0 = inlined_call_operand.hbm [shape: bf16[16,16,512], index: 0, kind: input, shape index: {}]
  %s1 = inlined_call_operand.hbm [shape: f32[16,128], index: 1, kind: input, shape index: {}]
  %s2 = inlined_call_operand.hbm [shape: f32[16,128], index: 2, kind: input, shape index: {}]
  %s3 = inlined_call_operand.hbm [shape: bf16[128,512], index: 3, kind: input, shape index: {}]
  %s4 = inlined_call_operand.hbm [shape: f32[16,16,128], index: 4, kind: output, shape index: {0}]
  %s5 = inlined_call_operand.hbm [shape: f32[16,128], index: 5, kind: output, shape index: {1}]
  %s6 = inlined_call_operand.hbm [shape: f32[16,128], index: 6, kind: output, shape index: {2}]
  %7 = xla_tuple %s4, %s5, %s6
  %s8 = sld [smem:[#allocation0]]
  $region62: #{tpu_custom_call.1} parent=0
    _
  %s10 = ssub.s32 1, %s8
  %s11 = scalar_select 0, %s10, %s8
  $region1: #{tpu_custom_call.1} parent=0
    #allocation6 [shape = 'u8[262144]{0}', space=vmem, size = 0x40000, scoped, tag = 'input window, operand 0, single buffered']
    #allocation7 [shape = 's32[1]{0}', space=sflag, size = 0x4, scoped, tag = 'scoped memory for tpu_custom_call.1']
    #allocation8 [shape = 's32[1]{0}', space=sflag, size = 0x4, scoped, tag = 'scoped memory for tpu_custom_call.1']
    #allocation9 [shape = 'u8[8192]{0}', space=vmem, size = 0x2000, scoped, tag = 'input window, operand 1, single buffered']
    #allocation10 [shape = 's32[1]{0}', space=sflag, size = 0x4, scoped, tag = 'scoped memory for tpu_custom_call.1']
    #allocation11 [shape = 'u8[8192]{0}', space=vmem, size = 0x2000, scoped, tag = 'input window, operand 2, single buffered']
    #allocation12 [shape = 'u8[131072]{0}', space=vmem, size = 0x20000, scoped, tag = 'output window, operand 0, single buffered']
    #allocation13 [shape = 'u8[8192]{0}', space=vmem, size = 0x2000, scoped, tag = 'output window, operand 1, single buffered']
    #allocation14 [shape = 's32[1]{0}', space=sflag, size = 0x4, scoped, tag = 'scoped memory for tpu_custom_call.1']
    #allocation15 [shape = 'u8[8192]{0}', space=vmem, size = 0x2000, scoped, tag = 'output window, operand 2, single buffered']
    %12 = vsyncpa [#allocation7], 0
    %13 = vsyncpa [#allocation10], 0
    %14 = vsyncpa [#allocation8], 0
    %15 = vsyncpa [#allocation14], 0
    // Predicated region
    $region2: #{tpu_custom_call.1} parent=1 // pred_check
      _
    $region3: #{tpu_custom_call.1} parent=1 // pred_check_branch
      %17 = sbr.rel (0) target = $region5
    $region4: #{tpu_custom_call.1} parent=1 // pred_region
      %s19 = ssub.s32 8192, 8192
      %20 = vsyncadd [#allocation7], %s19
      %s21 = sshll.u32 [#allocation6], 4
      %s22 = int_to_ptr.vmem [resolvable:$true] %s21
      %27 = dma.hbm_to_vmem [thread:$0]  %s0, 8192, %s22, [#allocation7], 256, 256, 16
    $region5: #{tpu_custom_call.1} parent=1 // pred_fallthru
      _
    // Predicated region
    $region6: #{tpu_custom_call.1} parent=1 // pred_check
      _
    $region7: #{tpu_custom_call.1} parent=1 // pred_check_branch
      %29 = sbr.rel (0) target = $region9
    $region8: #{tpu_custom_call.1} parent=1 // pred_region
      %s31 = ssub.s32 256, 256
      %32 = vsyncadd [#allocation10], %s31
      %s33 = sshll.u32 [#allocation9], 4
      %s34 = int_to_ptr.vmem [resolvable:$true] %s33
      %39 = dma.hbm_to_vmem [thread:$0]  %s1, 256, %s34, [#allocation10], 128, 128, 8
    $region9: #{tpu_custom_call.1} parent=1 // pred_fallthru
      _
    // Predicated region
    $region10: #{tpu_custom_call.1} parent=1 // pred_check
      _
    $region11: #{tpu_custom_call.1} parent=1 // pred_check_branch
      %41 = sbr.rel (0) target = $region13
    $region12: #{tpu_custom_call.1} parent=1 // pred_region
      %s43 = ssub.s32 256, 256
      %44 = vsyncadd [#allocation10], %s43
      %s45 = sshll.u32 [#allocation11], 4
      %s46 = int_to_ptr.vmem [resolvable:$true] %s45
      %51 = dma.hbm_to_vmem [thread:$0]  %s2, 256, %s46, [#allocation10], 128, 128, 8
    $region13: #{tpu_custom_call.1} parent=1 // pred_fallthru
      _
    // Predicated region
    $region14: #{tpu_custom_call.1} parent=1 // pred_check
      _
    $region15: #{tpu_custom_call.1} parent=1 // pred_check_branch
      %53 = sbr.rel (0) target = $region17
    $region16: #{tpu_custom_call.1} parent=1 // pred_region
      %54 = dma.done [#allocation7], 8192
    $region17: #{tpu_custom_call.1} parent=1 // pred_fallthru
      _
    // Predicated region
    $region18: #{tpu_custom_call.1} parent=1 // pred_check
      _
    $region19: #{tpu_custom_call.1} parent=1 // pred_check_branch
      %56 = sbr.rel (0) target = $region21
    $region20: #{tpu_custom_call.1} parent=1 // pred_region
      %57 = dma.done [#allocation10], 256
    $region21: #{tpu_custom_call.1} parent=1 // pred_fallthru
      _
    // Predicated region
    $region22: #{tpu_custom_call.1} parent=1 // pred_check
      _
    $region23: #{tpu_custom_call.1} parent=1 // pred_check_branch
      %59 = sbr.rel (0) target = $region25
    $region24: #{tpu_custom_call.1} parent=1 // pred_region
      %60 = dma.done [#allocation10], 256
    $region25: #{tpu_custom_call.1} parent=1 // pred_fallthru
      _
    %p62 = scmp.eq.s32.totalorder 0, 0
    // Predicated region
    $region26: #{tpu_custom_call.1} parent=1 // pred_check
      %p63 = pneg %p62
    $region27: #{tpu_custom_call.1} parent=1 // pred_check_branch
      %65 = sbr.rel (%p63) target = $region29
    $region28: #{tpu_custom_call.1} parent=1 // pred_region
      // Predicated region
      $region30: #{tpu_custom_call.1} parent=28 // pred_check
        _
      $region31: #{tpu_custom_call.1} parent=28 // pred_check_branch
        %67 = sbr.rel target = $region33
      $region32: #{tpu_custom_call.1} parent=28 // pred_region
        %68 = sst [smem:[#allocation18]] [#allocation17]
        %69 = sst [smem:[#allocation19]] [#allocation16]
      $region33: #{tpu_custom_call.1} parent=28 // pred_fallthru
        _
      %71 = shalt.err (0)
      %s73 = sshll.u32 [#allocation2], 4
      %s74 = int_to_ptr.vmem [resolvable:$true] %s73
      %76 = dma.hbm_to_vmem [thread:$0]  %s3, 4096, %s74, [#allocation5]
      %v77 = vld [vmem:[#allocation9] sm:$0xff]
      %v78 = vld [vmem:[#allocation9 + $0x8] sm:$0xff]
      %v79 = vpack.c.bf16 %v78, %v77
      %v81 = vunpack.c.l.b16 %v79
      %v82 = vunpack.c.h.b16 %v79
      %v83 = vpack.c.b16 %v81, %v81
      %v84 = vpack.c.b16 %v82, %v82
      %87 = vst [vmem:[#allocation3] sm:$0xf] %v83
      %88 = vst [vmem:[#allocation3 + $0x4] sm:$0xf] %v84
      %v89 = vld [vmem:[#allocation11] sm:$0xff]
      %v90 = vld [vmem:[#allocation11 + $0x8] sm:$0xff]
      %91 = vst [vmem:[#allocation4] sm:$0xff] %v89
      %92 = vst [vmem:[#allocation4 + $0x8] sm:$0xff] %v90
      %s93 = smul.u32 4, 16
      %s94 = smul.u32 %s93, 4
      %s95 = sshll.u32 %s94, 4
      %96 = dma.done [#allocation5], %s95
    $region29: #{tpu_custom_call.1} parent=1 // pred_fallthru
      _
    %v97 = vld [vmem:[#allocation6] sm:$0xff]
    %v98 = vld [vmem:[#allocation6 + $0x8] sm:$0xff]
    %v99 = vld [vmem:[#allocation6 + $0x10] sm:$0xff]
    %v100 = vld [vmem:[#allocation6 + $0x18] sm:$0xff]
    %v101 = vld [vmem:[#allocation3] sm:$0xf]
    %v102 = vld [vmem:[#allocation3 + $0x4] sm:$0xf]
    %v103 = vld [vmem:[#allocation4] sm:$0xff]
    %v104 = vld [vmem:[#allocation4 + $0x8] sm:$0xff]
    %v105 = vld [vmem:[#allocation2 + $0x4] sm:$0xf]
    %v106 = vld [vmem:[#allocation2 + $0x14] sm:$0xf]
    %v107 = vld [vmem:[#allocation2 + $0x24] sm:$0xf]
    %v108 = vld [vmem:[#allocation2 + $0x34] sm:$0xf]
    %v109 = vld [vmem:[#allocation2 + $0x44] sm:$0xf]
    %v110 = vld [vmem:[#allocation2 + $0x54] sm:$0xf]
    %v111 = vld [vmem:[#allocation2 + $0x64] sm:$0xf]
    %v112 = vld [vmem:[#allocation2 + $0x74] sm:$0xf]
    %v113 = vld [vmem:[#allocation2 + $0x84] sm:$0xf]
    %v114 = vld [vmem:[#allocation2 + $0x94] sm:$0xf]
    %v115 = vld [vmem:[#allocation2 + $0xa4] sm:$0xf]
    %v116 = vld [vmem:[#allocation2 + $0xb4] sm:$0xf]
    %v117 = vld [vmem:[#allocation2 + $0xc4] sm:$0xf]
    %v118 = vld [vmem:[#allocation2 + $0xd4] sm:$0xf]
    %v119 = vld [vmem:[#allocation2 + $0xe4] sm:$0xf]
    %v120 = vld [vmem:[#allocation2 + $0xf4] sm:$0xf]
    %v123 = vunpack.c.l.b16 %v101
    %v124 = vunpack.c.l.b16 %v102
    %v125 = vpack.c.b16 %v124, %v123
    %v143 = vunpack.c.l.b16 %v105
    %v144 = vunpack.c.l.b16 %v106
    %v145 = vunpack.c.l.b16 %v107
    %v146 = vunpack.c.l.b16 %v108
    %v147 = vunpack.c.l.b16 %v109
    %v148 = vunpack.c.l.b16 %v110
    %v149 = vunpack.c.l.b16 %v111
    %v150 = vunpack.c.l.b16 %v112
    %v151 = vunpack.c.l.b16 %v113
    %v152 = vunpack.c.l.b16 %v114
    %v153 = vunpack.c.l.b16 %v115
    %v154 = vunpack.c.l.b16 %v116
    %v155 = vunpack.c.l.b16 %v117
    %v156 = vunpack.c.l.b16 %v118
    %v157 = vunpack.c.l.b16 %v119
    %v158 = vunpack.c.l.b16 %v120
    %v159 = vpack.c.b16 %v144, %v143
    %v160 = vpack.c.b16 %v146, %v145
    %v161 = vpack.c.b16 %v148, %v147
    %v162 = vpack.c.b16 %v150, %v149
    %v163 = vpack.c.b16 %v152, %v151
    %v164 = vpack.c.b16 %v154, %v153
    %v165 = vpack.c.b16 %v156, %v155
    %v166 = vpack.c.b16 %v158, %v157
    %175 = vmatprep.subr.bf16.mxu0 0
    %176 = vmatpush1.bf16.msra.mxu0 %v166
    %177 = vmatprep.subr.bf16.mxu0 0
    %178 = vmatpush1.bf16.msra.mxu0 %v165
    %179 = vmatprep.subr.bf16.mxu0 0
    %180 = vmatpush1.bf16.msra.mxu0 %v164
    %181 = vmatprep.subr.bf16.mxu0 0
    %182 = vmatpush1.bf16.msra.mxu0 %v163
    %183 = vmatprep.subr.bf16.mxu0 0
    %184 = vmatpush1.bf16.msra.mxu0 %v162
    %185 = vmatprep.subr.bf16.mxu0 0
    %186 = vmatpush1.bf16.msra.mxu0 %v161
    %187 = vmatprep.subr.bf16.mxu0 0
    %188 = vmatpush1.bf16.msra.mxu0 %v160
    %189 = vmatprep.subr.bf16.mxu0 0
    %190 = vmatpush1.bf16.msra.mxu0 %v159
    %191 = vmatprep.subr.bf16.mxu0 0
    %192 = vmatpush2.bf16.msra.mxu0 0
    %193 = vmatprep.subr.bf16.mxu0 0
    %194 = vmatpush2.bf16.msra.mxu0 0
    %195 = vmatprep.subr.bf16.mxu0 0
    %196 = vmatpush2.bf16.msra.mxu0 0
    %197 = vmatprep.subr.bf16.mxu0 0
    %198 = vmatpush2.bf16.msra.mxu0 0
    %199 = vmatprep.subr.bf16.mxu0 0
    %200 = vmatpush2.bf16.msra.mxu0 0
    %201 = vmatprep.subr.bf16.mxu0 0
    %202 = vmatpush2.bf16.msra.mxu0 0
    %203 = vmatprep.subr.bf16.mxu0 0
    %204 = vmatpush2.bf16.msra.mxu0 0
    %205 = vmatprep.subr.bf16.mxu0 0
    %206 = vmatpush2.bf16.msra.mxu0 0
    %207 = vmatprep.mubr.bf16.mxu0 0
    %208 = vmatmul.mubr.bf16.gmra.mxu0 %v125
    %v209 = vpop.f32.mrf.mxu0
    %v210 = vadd.f32 0.0, %v209
    %v211 = vpop.f32.mrf.mxu0
    %v212 = vpop.f32.mrf.mxu0
    %v213 = vadd.f32 0.0, %v212
    %v214 = vpop.f32.mrf.mxu0
    %215 = vdwg.mxu0
    %v218 = vrot.slane %v97, 4
    %v219 = vrot.slane %v99, 4
    %v222 = vunpack.c.l.bf16 %v218
    %v223 = vunpack.c.l.bf16 %v219
    %v224 = vadd.f32 %v222, %v210
    %v225 = vadd.f32 %v223, %v213
    %v226 = vxor.u32 %v224, 2147483648
    %v227 = vxor.u32 %v225, 2147483648
    %v228 = vmul.f32 %v226, 1.442695
    %v229 = vpow.pop %v228
    %v230 = vmul.f32 %v227, 1.442695
    %v231 = vpow.pop %v230
    %v232 = vadd.f32 %v229, 1.0
    %v233 = vadd.f32 %v231, 1.0
    %v234 = vrcp.pop %v232
    %v235 = vmul.f32 1.0, %v234
    %v236 = vrcp.pop %v233
    %v237 = vmul.f32 1.0, %v236
    %v238 = vmul.f32 %v235, %v103
    %v239 = vmul.f32 %v237, %v104
    %v240 = vld [vmem:[#allocation2] sm:$0xf]
    %v241 = vld [vmem:[#allocation2 + $0x10] sm:$0xf]
    %v242 = vld [vmem:[#allocation2 + $0x20] sm:$0xf]
    %v243 = vld [vmem:[#allocation2 + $0x30] sm:$0xf]
    %v244 = vld [vmem:[#allocation2 + $0x40] sm:$0xf]
    %v245 = vld [vmem:[#allocation2 + $0x50] sm:$0xf]
    %v246 = vld [vmem:[#allocation2 + $0x60] sm:$0xf]
    %v247 = vld [vmem:[#allocation2 + $0x70] sm:$0xf]
    %v248 = vld [vmem:[#allocation2 + $0x80] sm:$0xf]
    %v249 = vld [vmem:[#allocation2 + $0x90] sm:$0xf]
    %v250 = vld [vmem:[#allocation2 + $0xa0] sm:$0xf]
    %v251 = vld [vmem:[#allocation2 + $0xb0] sm:$0xf]
    %v252 = vld [vmem:[#allocation2 + $0xc0] sm:$0xf]
    %v253 = vld [vmem:[#allocation2 + $0xd0] sm:$0xf]
    %v254 = vld [vmem:[#allocation2 + $0xe0] sm:$0xf]
    %v255 = vld [vmem:[#allocation2 + $0xf0] sm:$0xf]
    %v272 = vunpack.c.l.b16 %v240
    %v273 = vunpack.c.l.b16 %v241
    %v274 = vunpack.c.l.b16 %v242
    %v275 = vunpack.c.l.b16 %v243
    %v276 = vunpack.c.l.b16 %v244
    %v277 = vunpack.c.l.b16 %v245
    %v278 = vunpack.c.l.b16 %v246
    %v279 = vunpack.c.l.b16 %v247
    %v280 = vunpack.c.l.b16 %v248
    %v281 = vunpack.c.l.b16 %v249
    %v282 = vunpack.c.l.b16 %v250
    %v283 = vunpack.c.l.b16 %v251
    %v284 = vunpack.c.l.b16 %v252
    %v285 = vunpack.c.l.b16 %v253
    %v286 = vunpack.c.l.b16 %v254
    %v287 = vunpack.c.l.b16 %v255
    %v288 = vpack.c.b16 %v273, %v272
    %v289 = vpack.c.b16 %v275, %v274
    %v290 = vpack.c.b16 %v277, %v276
    %v291 = vpack.c.b16 %v279, %v278
    %v292 = vpack.c.b16 %v281, %v280
    %v293 = vpack.c.b16 %v283, %v282
    %v294 = vpack.c.b16 %v285, %v284
    %v295 = vpack.c.b16 %v287, %v286
    %304 = vmatprep.subr.bf16.mxu0 0
    %305 = vmatpush1.bf16.msra.mxu0 %v295
    %306 = vmatprep.subr.bf16.mxu0 0
    %307 = vmatpush1.bf16.msra.mxu0 %v294
    %308 = vmatprep.subr.bf16.mxu0 0
    %309 = vmatpush1.bf16.msra.mxu0 %v293
    %310 = vmatprep.subr.bf16.mxu0 0
    %311 = vmatpush1.bf16.msra.mxu0 %v292
    %312 = vmatprep.subr.bf16.mxu0 0
    %313 = vmatpush1.bf16.msra.mxu0 %v291
    %314 = vmatprep.subr.bf16.mxu0 0
    %315 = vmatpush1.bf16.msra.mxu0 %v290
    %316 = vmatprep.subr.bf16.mxu0 0
    %317 = vmatpush1.bf16.msra.mxu0 %v289
    %318 = vmatprep.subr.bf16.mxu0 0
    %319 = vmatpush1.bf16.msra.mxu0 %v288
    %320 = vmatprep.subr.bf16.mxu0 0
    %321 = vmatpush2.bf16.msra.mxu0 0
    %322 = vmatprep.subr.bf16.mxu0 0
    %323 = vmatpush2.bf16.msra.mxu0 0
    %324 = vmatprep.subr.bf16.mxu0 0
    %325 = vmatpush2.bf16.msra.mxu0 0
    %326 = vmatprep.subr.bf16.mxu0 0
    %327 = vmatpush2.bf16.msra.mxu0 0
    %328 = vmatprep.subr.bf16.mxu0 0
    %329 = vmatpush2.bf16.msra.mxu0 0
    %330 = vmatprep.subr.bf16.mxu0 0
    %331 = vmatpush2.bf16.msra.mxu0 0
    %332 = vmatprep.subr.bf16.mxu0 0
    %333 = vmatpush2.bf16.msra.mxu0 0
    %334 = vmatprep.subr.bf16.mxu0 0
    %335 = vmatpush2.bf16.msra.mxu0 0
    %336 = vmatprep.mubr.bf16.mxu0 0
    %337 = vmatmul.mubr.bf16.gmra.mxu0 %v125
    %v338 = vpop.f32.mrf.mxu0
    %v339 = vadd.f32 0.0, %v338
    %v340 = vpop.f32.mrf.mxu0
    %v341 = vpop.f32.mrf.mxu0
    %v342 = vadd.f32 0.0, %v341
    %v343 = vpop.f32.mrf.mxu0
    %344 = vdwg.mxu0
    %v345 = vunpack.c.l.bf16 %v97
    %v346 = vunpack.c.l.bf16 %v99
    %v347 = vadd.f32 %v345, %v339
    %v348 = vadd.f32 %v346, %v342
    %v349 = vxor.u32 %v347, 2147483648
    %v350 = vxor.u32 %v348, 2147483648
    %v351 = vmul.f32 %v349, 1.442695
    %v352 = vpow.pop %v351
    %v353 = vmul.f32 %v350, 1.442695
    %v354 = vpow.pop %v353
    %v355 = vadd.f32 %v352, 1.0
    %v356 = vadd.f32 %v354, 1.0
    %v357 = vrcp.pop %v355
    %v358 = vmul.f32 1.0, %v357
    %v359 = vrcp.pop %v356
    %v360 = vmul.f32 1.0, %v359
    %v361 = vld [vmem:[#allocation2 + $0x8] sm:$0xf]
    %v362 = vld [vmem:[#allocation2 + $0x18] sm:$0xf]
    %v363 = vld [vmem:[#allocation2 + $0x28] sm:$0xf]
    %v364 = vld [vmem:[#allocation2 + $0x38] sm:$0xf]
    %v365 = vld [vmem:[#allocation2 + $0x48] sm:$0xf]
    %v366 = vld [vmem:[#allocation2 + $0x58] sm:$0xf]
    %v367 = vld [vmem:[#allocation2 + $0x68] sm:$0xf]
    %v368 = vld [vmem:[#allocation2 + $0x78] sm:$0xf]
    %v369 = vld [vmem:[#allocation2 + $0x88] sm:$0xf]
    %v370 = vld [vmem:[#allocation2 + $0x98] sm:$0xf]
    %v371 = vld [vmem:[#allocation2 + $0xa8] sm:$0xf]
    %v372 = vld [vmem:[#allocation2 + $0xb8] sm:$0xf]
    %v373 = vld [vmem:[#allocation2 + $0xc8] sm:$0xf]
    %v374 = vld [vmem:[#allocation2 + $0xd8] sm:$0xf]
    %v375 = vld [vmem:[#allocation2 + $0xe8] sm:$0xf]
    %v376 = vld [vmem:[#allocation2 + $0xf8] sm:$0xf]
    %v393 = vunpack.c.l.b16 %v361
    %v394 = vunpack.c.l.b16 %v362
    %v395 = vunpack.c.l.b16 %v363
    %v396 = vunpack.c.l.b16 %v364
    %v397 = vunpack.c.l.b16 %v365
    %v398 = vunpack.c.l.b16 %v366
    %v399 = vunpack.c.l.b16 %v367
    %v400 = vunpack.c.l.b16 %v368
    %v401 = vunpack.c.l.b16 %v369
    %v402 = vunpack.c.l.b16 %v370
    %v403 = vunpack.c.l.b16 %v371
    %v404 = vunpack.c.l.b16 %v372
    %v405 = vunpack.c.l.b16 %v373
    %v406 = vunpack.c.l.b16 %v374
    %v407 = vunpack.c.l.b16 %v375
    %v408 = vunpack.c.l.b16 %v376
    %v409 = vpack.c.b16 %v394, %v393
    %v410 = vpack.c.b16 %v396, %v395
    %v411 = vpack.c.b16 %v398, %v397
    %v412 = vpack.c.b16 %v400, %v399
    %v413 = vpack.c.b16 %v402, %v401
    %v414 = vpack.c.b16 %v404, %v403
    %v415 = vpack.c.b16 %v406, %v405
    %v416 = vpack.c.b16 %v408, %v407
    %425 = vmatprep.subr.bf16.mxu0 0
    %426 = vmatpush1.bf16.msra.mxu0 %v416
    %427 = vmatprep.subr.bf16.mxu0 0
    %428 = vmatpush1.bf16.msra.mxu0 %v415
    %429 = vmatprep.subr.bf16.mxu0 0
    %430 = vmatpush1.bf16.msra.mxu0 %v414
    %431 = vmatprep.subr.bf16.mxu0 0
    %432 = vmatpush1.bf16.msra.mxu0 %v413
    %433 = vmatprep.subr.bf16.mxu0 0
    %434 = vmatpush1.bf16.msra.mxu0 %v412
    %435 = vmatprep.subr.bf16.mxu0 0
    %436 = vmatpush1.bf16.msra.mxu0 %v411
    %437 = vmatprep.subr.bf16.mxu0 0
    %438 = vmatpush1.bf16.msra.mxu0 %v410
    %439 = vmatprep.subr.bf16.mxu0 0
    %440 = vmatpush1.bf16.msra.mxu0 %v409
    %441 = vmatprep.subr.bf16.mxu0 0
    %442 = vmatpush2.bf16.msra.mxu0 0
    %443 = vmatprep.subr.bf16.mxu0 0
    %444 = vmatpush2.bf16.msra.mxu0 0
    %445 = vmatprep.subr.bf16.mxu0 0
    %446 = vmatpush2.bf16.msra.mxu0 0
    %447 = vmatprep.subr.bf16.mxu0 0
    %448 = vmatpush2.bf16.msra.mxu0 0
    %449 = vmatprep.subr.bf16.mxu0 0
    %450 = vmatpush2.bf16.msra.mxu0 0
    %451 = vmatprep.subr.bf16.mxu0 0
    %452 = vmatpush2.bf16.msra.mxu0 0
    %453 = vmatprep.subr.bf16.mxu0 0
    %454 = vmatpush2.bf16.msra.mxu0 0
    %455 = vmatprep.subr.bf16.mxu0 0
    %456 = vmatpush2.bf16.msra.mxu0 0
    %457 = vmatprep.mubr.bf16.mxu0 0
    %458 = vmatmul.mubr.bf16.gmra.mxu0 %v125
    %v459 = vpop.f32.mrf.mxu0
    %v460 = vadd.f32 0.0, %v459
    %v461 = vpop.f32.mrf.mxu0
    %v462 = vpop.f32.mrf.mxu0
    %v463 = vadd.f32 0.0, %v462
    %v464 = vpop.f32.mrf.mxu0
    %465 = vdwg.mxu0
    %v466 = vunpack.c.l.bf16 %v98
    %v467 = vunpack.c.l.bf16 %v100
    %v468 = vadd.f32 %v466, %v460
    %v469 = vadd.f32 %v467, %v463
    %v470 = vtanh.pop %v468
    %v471 = vtanh.pop %v469
    %v472 = vmul.f32 %v358, %v470
    %v473 = vmul.f32 %v360, %v471
    %v474 = vadd.f32 %v238, %v472
    %v475 = vadd.f32 %v239, %v473
    %v476 = vld [vmem:[#allocation2 + $0xc] sm:$0xf]
    %v477 = vld [vmem:[#allocation2 + $0x1c] sm:$0xf]
    %v478 = vld [vmem:[#allocation2 + $0x2c] sm:$0xf]
    %v479 = vld [vmem:[#allocation2 + $0x3c] sm:$0xf]
    %v480 = vld [vmem:[#allocation2 + $0x4c] sm:$0xf]
    %v481 = vld [vmem:[#allocation2 + $0x5c] sm:$0xf]
    %v482 = vld [vmem:[#allocation2 + $0x6c] sm:$0xf]
    %v483 = vld [vmem:[#allocation2 + $0x7c] sm:$0xf]
    %v484 = vld [vmem:[#allocation2 + $0x8c] sm:$0xf]
    %v485 = vld [vmem:[#allocation2 + $0x9c] sm:$0xf]
    %v486 = vld [vmem:[#allocation2 + $0xac] sm:$0xf]
    %v487 = vld [vmem:[#allocation2 + $0xbc] sm:$0xf]
    %v488 = vld [vmem:[#allocation2 + $0xcc] sm:$0xf]
    %v489 = vld [vmem:[#allocation2 + $0xdc] sm:$0xf]
    %v490 = vld [vmem:[#allocation2 + $0xec] sm:$0xf]
    %v491 = vld [vmem:[#allocation2 + $0xfc] sm:$0xf]
    %v508 = vunpack.c.l.b16 %v476
    %v509 = vunpack.c.l.b16 %v477
    %v510 = vunpack.c.l.b16 %v478
    %v511 = vunpack.c.l.b16 %v479
    %v512 = vunpack.c.l.b16 %v480
    %v513 = vunpack.c.l.b16 %v481
    %v514 = vunpack.c.l.b16 %v482
    %v515 = vunpack.c.l.b16 %v483
    %v516 = vunpack.c.l.b16 %v484
    %v517 = vunpack.c.l.b16 %v485
    %v518 = vunpack.c.l.b16 %v486
    %v519 = vunpack.c.l.b16 %v487
    %v520 = vunpack.c.l.b16 %v488
    %v521 = vunpack.c.l.b16 %v489
    %v522 = vunpack.c.l.b16 %v490
    %v523 = vunpack.c.l.b16 %v491
    %v524 = vpack.c.b16 %v509, %v508
    %v525 = vpack.c.b16 %v511, %v510
    %v526 = vpack.c.b16 %v513, %v512
    %v527 = vpack.c.b16 %v515, %v514
    %v528 = vpack.c.b16 %v517, %v516
    %v529 = vpack.c.b16 %v519, %v518
    %v530 = vpack.c.b16 %v521, %v520
    %v531 = vpack.c.b16 %v523, %v522
    %540 = vmatprep.subr.bf16.mxu0 0
    %541 = vmatpush1.bf16.msra.mxu0 %v531
    %542 = vmatprep.subr.bf16.mxu0 0
    %543 = vmatpush1.bf16.msra.mxu0 %v530
    %544 = vmatprep.subr.bf16.mxu0 0
    %545 = vmatpush1.bf16.msra.mxu0 %v529
    %546 = vmatprep.subr.bf16.mxu0 0
    %547 = vmatpush1.bf16.msra.mxu0 %v528
    %548 = vmatprep.subr.bf16.mxu0 0
    %549 = vmatpush1.bf16.msra.mxu0 %v527
    %550 = vmatprep.subr.bf16.mxu0 0
    %551 = vmatpush1.bf16.msra.mxu0 %v526
    %552 = vmatprep.subr.bf16.mxu0 0
    %553 = vmatpush1.bf16.msra.mxu0 %v525
    %554 = vmatprep.subr.bf16.mxu0 0
    %555 = vmatpush1.bf16.msra.mxu0 %v524
    %556 = vmatprep.subr.bf16.mxu0 0
    %557 = vmatpush2.bf16.msra.mxu0 0
    %558 = vmatprep.subr.bf16.mxu0 0
    %559 = vmatpush2.bf16.msra.mxu0 0
    %560 = vmatprep.subr.bf16.mxu0 0
    %561 = vmatpush2.bf16.msra.mxu0 0
    %562 = vmatprep.subr.bf16.mxu0 0
    %563 = vmatpush2.bf16.msra.mxu0 0
    %564 = vmatprep.subr.bf16.mxu0 0
    %565 = vmatpush2.bf16.msra.mxu0 0
    %566 = vmatprep.subr.bf16.mxu0 0
    %567 = vmatpush2.bf16.msra.mxu0 0
    %568 = vmatprep.subr.bf16.mxu0 0
    %569 = vmatpush2.bf16.msra.mxu0 0
    %570 = vmatprep.subr.bf16.mxu0 0
    %571 = vmatpush2.bf16.msra.mxu0 0
    %572 = vmatprep.mubr.bf16.mxu0 0
    %573 = vmatmul.mubr.bf16.gmra.mxu0 %v125
    %v574 = vpop.f32.mrf.mxu0
    %v575 = vadd.f32 0.0, %v574
    %v576 = vpop.f32.mrf.mxu0
    %v577 = vpop.f32.mrf.mxu0
    %v578 = vadd.f32 0.0, %v577
    %v579 = vpop.f32.mrf.mxu0
    %580 = vdwg.mxu0
    %v583 = vrot.slane %v98, 4
    %v584 = vrot.slane %v100, 4
    %v587 = vunpack.c.l.bf16 %v583
    %v588 = vunpack.c.l.bf16 %v584
    %v589 = vadd.f32 %v587, %v575
    %v590 = vadd.f32 %v588, %v578
    %v591 = vxor.u32 %v589, 2147483648
    %v592 = vxor.u32 %v590, 2147483648
    %v593 = vmul.f32 %v591, 1.442695
    %v594 = vpow.pop %v593
    %v595 = vmul.f32 %v592, 1.442695
    %v596 = vpow.pop %v595
    %v597 = vadd.f32 %v594, 1.0
    %v598 = vadd.f32 %v596, 1.0
    %v599 = vrcp.pop %v597
    %v600 = vmul.f32 1.0, %v599
    %v601 = vrcp.pop %v598
    %v602 = vmul.f32 1.0, %v601
    %v603 = vtanh.pop %v474
    %v604 = vtanh.pop %v475
    %v605 = vmul.f32 %v600, %v603
    %v606 = vmul.f32 %v602, %v604
    %v607 = vpack.c.bf16 %v606, %v605
    %v609 = vunpack.c.l.b16 %v607
    %v610 = vunpack.c.h.b16 %v607
    %v611 = vpack.c.b16 %v609, %v609
    %v612 = vpack.c.b16 %v610, %v610
    %615 = vst [vmem:[#allocation3] sm:$0xf] %v611
    %616 = vst [vmem:[#allocation3 + $0x4] sm:$0xf] %v612
    %617 = vst [vmem:[#allocation4] sm:$0xff] %v474
    %618 = vst [vmem:[#allocation4 + $0x8] sm:$0xff] %v475
    %619 = vst [vmem:[#allocation12] sm:$0xff] %v605
    %620 = vst [vmem:[#allocation12 + $0x8] sm:$0xff] %v606
    %s621 = scalar_lea.vmem [#allocation6], 32
    %v622 = vld [vmem:[%s621] sm:$0xff]
    %v623 = vld [vmem:[%s621 + $0x8] sm:$0xff]
    %v624 = vld [vmem:[%s621 + $0x10] sm:$0xff]
    %v625 = vld [vmem:[%s621 + $0x18] sm:$0xff]
    %v626 = vld [vmem:[#allocation3] sm:$0xf]
    %v627 = vld [vmem:[#allocation3 + $0x4] sm:$0xf]
    %v628 = vld [vmem:[#allocation4] sm:$0xff]
    %v629 = vld [vmem:[#allocation4 + $0x8] sm:$0xff]
    %v630 = vld [vmem:[#allocation2 + $0x4] sm:$0xf]
    %v631 = vld [vmem:[#allocation2 + $0x14] sm:$0xf]
    %v632 = vld [vmem:[#allocation2 + $0x24] sm:$0xf]
    %v633 = vld [vmem:[#allocation2 + $0x34] sm:$0xf]
    %v634 = vld [vmem:[#allocation2 + $0x44] sm:$0xf]
    %v635 = vld [vmem:[#allocation2 + $0x54] sm:$0xf]
    %v636 = vld [vmem:[#allocation2 + $0x64] sm:$0xf]
    %v637 = vld [vmem:[#allocation2 + $0x74] sm:$0xf]
    %v638 = vld [vmem:[#allocation2 + $0x84] sm:$0xf]
    %v639 = vld [vmem:[#allocation2 + $0x94] sm:$0xf]
    %v640 = vld [vmem:[#allocation2 + $0xa4] sm:$0xf]
    %v641 = vld [vmem:[#allocation2 + $0xb4] sm:$0xf]
    %v642 = vld [vmem:[#allocation2 + $0xc4] sm:$0xf]
    %v643 = vld [vmem:[#allocation2 + $0xd4] sm:$0xf]
    %v644 = vld [vmem:[#allocation2 + $0xe4] sm:$0xf]
    %v645 = vld [vmem:[#allocation2 + $0xf4] sm:$0xf]
    %v648 = vunpack.c.l.b16 %v626
    %v649 = vunpack.c.l.b16 %v627
    %v650 = vpack.c.b16 %v649, %v648
    %v668 = vunpack.c.l.b16 %v630
    %v669 = vunpack.c.l.b16 %v631
    %v670 = vunpack.c.l.b16 %v632
    %v671 = vunpack.c.l.b16 %v633
    %v672 = vunpack.c.l.b16 %v634
    %v673 = vunpack.c.l.b16 %v635
    %v674 = vunpack.c.l.b16 %v636
    %v675 = vunpack.c.l.b16 %v637
    %v676 = vunpack.c.l.b16 %v638
    %v677 = vunpack.c.l.b16 %v639
    %v678 = vunpack.c.l.b16 %v640
    %v679 = vunpack.c.l.b16 %v641
    %v680 = vunpack.c.l.b16 %v642
    %v681 = vunpack.c.l.b16 %v643
    %v682 = vunpack.c.l.b16 %v644
    %v683 = vunpack.c.l.b16 %v645
    %v684 = vpack.c.b16 %v669, %v668
    %v685 = vpack.c.b16 %v671, %v670
    %v686 = vpack.c.b16 %v673, %v672
    %v687 = vpack.c.b16 %v675, %v674
    %v688 = vpack.c.b16 %v677, %v676
    %v689 = vpack.c.b16 %v679, %v678
    %v690 = vpack.c.b16 %v681, %v680
    %v691 = vpack.c.b16 %v683, %v682
    %700 = vmatprep.subr.bf16.mxu0 0
    %701 = vmatpush1.bf16.msra.mxu0 %v691
    %702 = vmatprep.subr.bf16.mxu0 0
    %703 = vmatpush1.bf16.msra.mxu0 %v690
    %704 = vmatprep.subr.bf16.mxu0 0
    %705 = vmatpush1.bf16.msra.mxu0 %v689
    %706 = vmatprep.subr.bf16.mxu0 0
    %707 = vmatpush1.bf16.msra.mxu0 %v688
    %708 = vmatprep.subr.bf16.mxu0 0
    %709 = vmatpush1.bf16.msra.mxu0 %v687
    %710 = vmatprep.subr.bf16.mxu0 0
    %711 = vmatpush1.bf16.msra.mxu0 %v686
    %712 = vmatprep.subr.bf16.mxu0 0
    %713 = vmatpush1.bf16.msra.mxu0 %v685
    %714 = vmatprep.subr.bf16.mxu0 0
    %715 = vmatpush1.bf16.msra.mxu0 %v684
    %716 = vmatprep.subr.bf16.mxu0 0
    %717 = vmatpush2.bf16.msra.mxu0 0
    %718 = vmatprep.subr.bf16.mxu0 0
    %719 = vmatpush2.bf16.msra.mxu0 0
    %720 = vmatprep.subr.bf16.mxu0 0
    %721 = vmatpush2.bf16.msra.mxu0 0
    %722 = vmatprep.subr.bf16.mxu0 0
    %723 = vmatpush2.bf16.msra.mxu0 0
    %724 = vmatprep.subr.bf16.mxu0 0
    %725 = vmatpush2.bf16.msra.mxu0 0
    %726 = vmatprep.subr.bf16.mxu0 0
    %727 = vmatpush2.bf16.msra.mxu0 0
    %728 = vmatprep.subr.bf16.mxu0 0
    %729 = vmatpush2.bf16.msra.mxu0 0
    %730 = vmatprep.subr.bf16.mxu0 0
    %731 = vmatpush2.bf16.msra.mxu0 0
    %732 = vmatprep.mubr.bf16.mxu0 0
    %733 = vmatmul.mubr.bf16.gmra.mxu0 %v650
    %v734 = vpop.f32.mrf.mxu0
    %v735 = vadd.f32 0.0, %v734
    %v736 = vpop.f32.mrf.mxu0
    %v737 = vpop.f32.mrf.mxu0
    %v738 = vadd.f32 0.0, %v737
    %v739 = vpop.f32.mrf.mxu0
    %740 = vdwg.mxu0
    %v743 = vrot.slane %v622, 4
    %v744 = vrot.slane %v624, 4
    %v747 = vunpack.c.l.bf16 %v743
    %v748 = vunpack.c.l.bf16 %v744
    %v749 = vadd.f32 %v747, %v735
    %v750 = vadd.f32 %v748, %v738
    %v751 = vxor.u32 %v749, 2147483648
    %v752 = vxor.u32 %v750, 2147483648
    %v753 = vmul.f32 %v751, 1.442695
    %v754 = vpow.pop %v753
    %v755 = vmul.f32 %v752, 1.442695
    %v756 = vpow.pop %v755
    %v757 = vadd.f32 %v754, 1.0
    %v758 = vadd.f32 %v756, 1.0
    %v759 = vrcp.pop %v757
    %v760 = vmul.f32 1.0, %v759
    %v761 = vrcp.pop %v758
    %v762 = vmul.f32 1.0, %v761
    %v763 = vmul.f32 %v760, %v628
    %v764 = vmul.f32 %v762, %v629
    %v765 = vld [vmem:[#allocation2] sm:$0xf]
    %v766 = vld [vmem:[#allocation2 + $0x10] sm:$0xf]
    %v767 = vld [vmem:[#allocation2 + $0x20] sm:$0xf]
    %v768 = vld [vmem:[#allocation2 + $0x30] sm:$0xf]
    %v769 = vld [vmem:[#allocation2 + $0x40] sm:$0xf]
    %v770 = vld [vmem:[#allocation2 + $0x50] sm:$0xf]
    %v771 = vld [vmem:[#allocation2 + $0x60] sm:$0xf]
    %v772 = vld [vmem:[#allocation2 + $0x70] sm:$0xf]
    %v773 = vld [vmem:[#allocation2 + $0x80] sm:$0xf]
    %v774 = vld [vmem:[#allocation2 + $0x90] sm:$0xf]
    %v775 = vld [vmem:[#allocation2 + $0xa0] sm:$0xf]
    %v776 = vld [vmem:[#allocation2 + $0xb0] sm:$0xf]
    %v777 = vld [vmem:[#allocation2 + $0xc0] sm:$0xf]
    %v778 = vld [vmem:[#allocation2 + $0xd0] sm:$0xf]
    %v779 = vld [vmem:[#allocation2 + $0xe0] sm:$0xf]
    %v780 = vld [vmem:[#allocation2 + $0xf0] sm:$0xf]
    %v797 = vunpack.c.l.b16 %v765
    %v798 = vunpack.c.l.b16 %v766
    %v799 = vunpack.c.l.b16 %v767
    %v800 = vunpack.c.l.b16 %v768
    %v801 = vunpack.c.l.b16 %v769
    %v802 = vunpack.c.l.b16 %v770
    %v803 = vunpack.c.l.b16 %v771
    %v804 = vunpack.c.l.b16 %v772
    %v805 = vunpack.c.l.b16 %v773
    %v806 = vunpack.c.l.b16 %v774
    %v807 = vunpack.c.l.b16 %v775
    %v808 = vunpack.c.l.b16 %v776
    %v809 = vunpack.c.l.b16 %v777
    %v810 = vunpack.c.l.b16 %v778
    %v811 = vunpack.c.l.b16 %v779
    %v812 = vunpack.c.l.b16 %v780
    %v813 = vpack.c.b16 %v798, %v797
    %v814 = vpack.c.b16 %v800, %v799
    %v815 = vpack.c.b16 %v802, %v801
    %v816 = vpack.c.b16 %v804, %v803
    %v817 = vpack.c.b16 %v806, %v805
    %v818 = vpack.c.b16 %v808, %v807
    %v819 = vpack.c.b16 %v810, %v809
    %v820 = vpack.c.b16 %v812, %v811
    %829 = vmatprep.subr.bf16.mxu0 0
    %830 = vmatpush1.bf16.msra.mxu0 %v820
    %831 = vmatprep.subr.bf16.mxu0 0
    %832 = vmatpush1.bf16.msra.mxu0 %v819
    %833 = vmatprep.subr.bf16.mxu0 0
    %834 = vmatpush1.bf16.msra.mxu0 %v818
    %835 = vmatprep.subr.bf16.mxu0 0
    %836 = vmatpush1.bf16.msra.mxu0 %v817
    %837 = vmatprep.subr.bf16.mxu0 0
    %838 = vmatpush1.bf16.msra.mxu0 %v816
    %839 = vmatprep.subr.bf16.mxu0 0
    %840 = vmatpush1.bf16.msra.mxu0 %v815
    %841 = vmatprep.subr.bf16.mxu0 0
    %842 = vmatpush1.bf16.msra.mxu0 %v814
    %843 = vmatprep.subr.bf16.mxu0 0
    %844 = vmatpush1.bf16.msra.mxu0 %v813
    %845 = vmatprep.subr.bf16.mxu0 0
    %846 = vmatpush2.bf16.msra.mxu0 0
    %847 = vmatprep.subr.bf16.mxu0 0
    %848 = vmatpush2.bf16.msra.mxu0 0
    %849 = vmatprep.subr.bf16.mxu0 0
    %850 = vmatpush2.bf16.msra.mxu0 0
    %851 = vmatprep.subr.bf16.mxu0 0
    %852 = vmatpush2.bf16.msra.mxu0 0
    %853 = vmatprep.subr.bf16.mxu0 0
    %854 = vmatpush2.bf16.msra.mxu0 0
    %855 = vmatprep.subr.bf16.mxu0 0
    %856 = vmatpush2.bf16.msra.mxu0 0
    %857 = vmatprep.subr.bf16.mxu0 0
    %858 = vmatpush2.bf16.msra.mxu0 0
    %859 = vmatprep.subr.bf16.mxu0 0
    %860 = vmatpush2.bf16.msra.mxu0 0
    %861 = vmatprep.mubr.bf16.mxu0 0
    %862 = vmatmul.mubr.bf16.gmra.mxu0 %v650
    %v863 = vpop.f32.mrf.mxu0
    %v864 = vadd.f32 0.0, %v863
    %v865 = vpop.f32.mrf.mxu0
    %v866 = vpop.f32.mrf.mxu0
    %v867 = vadd.f32 0.0, %v866
    %v868 = vpop.f32.mrf.mxu0
    %869 = vdwg.mxu0
    %v870 = vunpack.c.l.bf16 %v622
    %v871 = vunpack.c.l.bf16 %v624
    %v872 = vadd.f32 %v870, %v864
    %v873 = vadd.f32 %v871, %v867
    %v874 = vxor.u32 %v872, 2147483648
    %v875 = vxor.u32 %v873, 2147483648
    %v876 = vmul.f32 %v874, 1.442695
    %v877 = vpow.pop %v876
    %v878 = vmul.f32 %v875, 1.442695
    %v879 = vpow.pop %v878
    %v880 = vadd.f32 %v877, 1.0
    %v881 = vadd.f32 %v879, 1.0
    %v882 = vrcp.pop %v880
    %v883 = vmul.f32 1.0, %v882
    %v884 = vrcp.pop %v881
    %v885 = vmul.f32 1.0, %v884
    %v886 = vld [vmem:[#allocation2 + $0x8] sm:$0xf]
    %v887 = vld [vmem:[#allocation2 + $0x18] sm:$0xf]
    %v888 = vld [vmem:[#allocation2 + $0x28] sm:$0xf]
    %v889 = vld [vmem:[#allocation2 + $0x38] sm:$0xf]
    %v890 = vld [vmem:[#allocation2 + $0x48] sm:$0xf]
    %v891 = vld [vmem:[#allocation2 + $0x58] sm:$0xf]
    %v892 = vld [vmem:[#allocation2 + $0x68] sm:$0xf]
    %v893 = vld [vmem:[#allocation2 + $0x78] sm:$0xf]
    %v894 = vld [vmem:[#allocation2 + $0x88] sm:$0xf]
    %v895 = vld [vmem:[#allocation2 + $0x98] sm:$0xf]
    %v896 = vld [vmem:[#allocation2 + $0xa8] sm:$0xf]
    %v897 = vld [vmem:[#allocation2 + $0xb8] sm:$0xf]
    %v898 = vld [vmem:[#allocation2 + $0xc8] sm:$0xf]
    %v899 = vld [vmem:[#allocation2 + $0xd8] sm:$0xf]
    %v900 = vld [vmem:[#allocation2 + $0xe8] sm:$0xf]
    %v901 = vld [vmem:[#allocation2 + $0xf8] sm:$0xf]
    %v918 = vunpack.c.l.b16 %v886
    %v919 = vunpack.c.l.b16 %v887
    %v920 = vunpack.c.l.b16 %v888
    %v921 = vunpack.c.l.b16 %v889
    %v922 = vunpack.c.l.b16 %v890
    %v923 = vunpack.c.l.b16 %v891
    %v924 = vunpack.c.l.b16 %v892
    %v925 = vunpack.c.l.b16 %v893
    %v926 = vunpack.c.l.b16 %v894
    %v927 = vunpack.c.l.b16 %v895
    %v928 = vunpack.c.l.b16 %v896
    %v929 = vunpack.c.l.b16 %v897
    %v930 = vunpack.c.l.b16 %v898
    %v931 = vunpack.c.l.b16 %v899
    %v932 = vunpack.c.l.b16 %v900
    %v933 = vunpack.c.l.b16 %v901
    %v934 = vpack.c.b16 %v919, %v918
    %v935 = vpack.c.b16 %v921, %v920
    %v936 = vpack.c.b16 %v923, %v922
    %v937 = vpack.c.b16 %v925, %v924
    %v938 = vpack.c.b16 %v927, %v926
    %v939 = vpack.c.b16 %v929, %v928
    %v940 = vpack.c.b16 %v931, %v930
    %v941 = vpack.c.b16 %v933, %v932
    %950 = vmatprep.subr.bf16.mxu0 0
    %951 = vmatpush1.bf16.msra.mxu0 %v941
    %952 = vmatprep.subr.bf16.mxu0 0
    %953 = vmatpush1.bf16.msra.mxu0 %v940
    %954 = vmatprep.subr.bf16.mxu0 0
    %955 = vmatpush1.bf16.msra.mxu0 %v939
    %956 = vmatprep.subr.bf16.mxu0 0
    %957 = vmatpush1.bf16.msra.mxu0 %v938
    %958 = vmatprep.subr.bf16.mxu0 0
    %959 = vmatpush1.bf16.msra.mxu0 %v937
    %960 = vmatprep.subr.bf16.mxu0 0
    %961 = vmatpush1.bf16.msra.mxu0 %v936
    %962 = vmatprep.subr.bf16.mxu0 0
    %963 = vmatpush1.bf16.msra.mxu0 %v935
    %964 = vmatprep.subr.bf16.mxu0 0
    %965 = vmatpush1.bf16.msra.mxu0 %v934
    %966 = vmatprep.subr.bf16.mxu0 0
    %967 = vmatpush2.bf16.msra.mxu0 0
    %968 = vmatprep.subr.bf16.mxu0 0
    %969 = vmatpush2.bf16.msra.mxu0 0
    %970 = vmatprep.subr.bf16.mxu0 0
    %971 = vmatpush2.bf16.msra.mxu0 0
    %972 = vmatprep.subr.bf16.mxu0 0
    %973 = vmatpush2.bf16.msra.mxu0 0
    %974 = vmatprep.subr.bf16.mxu0 0
    %975 = vmatpush2.bf16.msra.mxu0 0
    %976 = vmatprep.subr.bf16.mxu0 0
    %977 = vmatpush2.bf16.msra.mxu0 0
    %978 = vmatprep.subr.bf16.mxu0 0
    %979 = vmatpush2.bf16.msra.mxu0 0
    %980 = vmatprep.subr.bf16.mxu0 0
    %981 = vmatpush2.bf16.msra.mxu0 0
    %982 = vmatprep.mubr.bf16.mxu0 0
    %983 = vmatmul.mubr.bf16.gmra.mxu0 %v650
    %v984 = vpop.f32.mrf.mxu0
    %v985 = vadd.f32 0.0, %v984
    %v986 = vpop.f32.mrf.mxu0
    %v987 = vpop.f32.mrf.mxu0
    %v988 = vadd.f32 0.0, %v987
    %v989 = vpop.f32.mrf.mxu0
    %990 = vdwg.mxu0
    %v991 = vunpack.c.l.bf16 %v623
    %v992 = vunpack.c.l.bf16 %v625
    %v993 = vadd.f32 %v991, %v985
    %v994 = vadd.f32 %v992, %v988
    %v995 = vtanh.pop %v993
    %v996 = vtanh.pop %v994
    %v997 = vmul.f32 %v883, %v995
    %v998 = vmul.f32 %v885, %v996
    %v999 = vadd.f32 %v763, %v997
    %v1000 = vadd.f32 %v764, %v998
    %v1001 = vld [vmem:[#allocation2 + $0xc] sm:$0xf]
    %v1002 = vld [vmem:[#allocation2 + $0x1c] sm:$0xf]
    %v1003 = vld [vmem:[#allocation2 + $0x2c] sm:$0xf]
    %v1004 = vld [vmem:[#allocation2 + $0x3c] sm:$0xf]
    %v1005 = vld [vmem:[#allocation2 + $0x4c] sm:$0xf]
    %v1006 = vld [vmem:[#allocation2 + $0x5c] sm:$0xf]
    %v1007 = vld [vmem:[#allocation2 + $0x6c] sm:$0xf]
    %v1008 = vld [vmem:[#allocation2 + $0x7c] sm:$0xf]
    %v1009 = vld [vmem:[#allocation2 + $0x8c] sm:$0xf]
    %v1010 = vld [vmem:[#allocation2 + $0x9c] sm:$0xf]
    %v1011 = vld [vmem:[#allocation2 + $0xac] sm:$0xf]
    %v1012 = vld [vmem:[#allocation2 + $0xbc] sm:$0xf]
    %v1013 = vld [vmem:[#allocation2 + $0xcc] sm:$0xf]
    %v1014 = vld [vmem:[#allocation2 + $0xdc] sm:$0xf]
    %v1015 = vld [vmem:[#allocation2 + $0xec] sm:$0xf]
    %v1016 = vld [vmem:[#allocation2 + $0xfc] sm:$0xf]
    %v1033 = vunpack.c.l.b16 %v1001
    %v1034 = vunpack.c.l.b16 %v1002
    %v1035 = vunpack.c.l.b16 %v1003
    %v1036 = vunpack.c.l.b16 %v1004
    %v1037 = vunpack.c.l.b16 %v1005
    %v1038 = vunpack.c.l.b16 %v1006
    %v1039 = vunpack.c.l.b16 %v1007
    %v1040 = vunpack.c.l.b16 %v1008
    %v1041 = vunpack.c.l.b16 %v1009
    %v1042 = vunpack.c.l.b16 %v1010
    %v1043 = vunpack.c.l.b16 %v1011
    %v1044 = vunpack.c.l.b16 %v1012
    %v1045 = vunpack.c.l.b16 %v1013
    %v1046 = vunpack.c.l.b16 %v1014
    %v1047 = vunpack.c.l.b16 %v1015
    %v1048 = vunpack.c.l.b16 %v1016
    %v1049 = vpack.c.b16 %v1034, %v1033
    %v1050 = vpack.c.b16 %v1036, %v1035
    %v1051 = vpack.c.b16 %v1038, %v1037
    %v1052 = vpack.c.b16 %v1040, %v1039
    %v1053 = vpack.c.b16 %v1042, %v1041
    %v1054 = vpack.c.b16 %v1044, %v1043
    %v1055 = vpack.c.b16 %v1046, %v1045
    %v1056 = vpack.c.b16 %v1048, %v1047
    %1065 = vmatprep.subr.bf16.mxu0 0
    %1066 = vmatpush1.bf16.msra.mxu0 %v1056
    %1067 = vmatprep.subr.bf16.mxu0 0
    %1068 = vmatpush1.bf16.msra.mxu0 %v1055
    %1069 = vmatprep.subr.bf16.mxu0 0
    %1070 = vmatpush1.bf16.msra.mxu0 %v1054
    %1071 = vmatprep.subr.bf16.mxu0 0
    %1072 = vmatpush1.bf16.msra.mxu0 %v1053
    %1073 = vmatprep.subr.bf16.mxu0 0
    %1074 = vmatpush1.bf16.msra.mxu0 %v1052
    %1075 = vmatprep.subr.bf16.mxu0 0
    %1076 = vmatpush1.bf16.msra.mxu0 %v1051
    %1077 = vmatprep.subr.bf16.mxu0 0
    %1078 = vmatpush1.bf16.msra.mxu0 %v1050
    %1079 = vmatprep.subr.bf16.mxu0 0
    %1080 = vmatpush1.bf16.msra.mxu0 %v1049
    %1081 = vmatprep.subr.bf16.mxu0 0
    %1082 = vmatpush2.bf16.msra.mxu0 0
    %1083 = vmatprep.subr.bf16.mxu0 0
    %1084 = vmatpush2.bf16.msra.mxu0 0
    %1085 = vmatprep.subr.bf16.mxu0 0
    %1086 = vmatpush2.bf16.msra.mxu0 0
    %1087 = vmatprep.subr.bf16.mxu0 0
    %1088 = vmatpush2.bf16.msra.mxu0 0
    %1089 = vmatprep.subr.bf16.mxu0 0
    %1090 = vmatpush2.bf16.msra.mxu0 0
    %1091 = vmatprep.subr.bf16.mxu0 0
    %1092 = vmatpush2.bf16.msra.mxu0 0
    %1093 = vmatprep.subr.bf16.mxu0 0
    %1094 = vmatpush2.bf16.msra.mxu0 0
    %1095 = vmatprep.subr.bf16.mxu0 0
    %1096 = vmatpush2.bf16.msra.mxu0 0
    %1097 = vmatprep.mubr.bf16.mxu0 0
    %1098 = vmatmul.mubr.bf16.gmra.mxu0 %v650
    %v1099 = vpop.f32.mrf.mxu0
    %v1100 = vadd.f32 0.0, %v1099
    %v1101 = vpop.f32.mrf.mxu0
    %v1102 = vpop.f32.mrf.mxu0
    %v1103 = vadd.f32 0.0, %v1102
    %v1104 = vpop.f32.mrf.mxu0
    %1105 = vdwg.mxu0
    %v1108 = vrot.slane %v623, 4
    %v1109 = vrot.slane %v625, 4
    %v1112 = vunpack.c.l.bf16 %v1108
    %v1113 = vunpack.c.l.bf16 %v1109
    %v1114 = vadd.f32 %v1112, %v1100
    %v1115 = vadd.f32 %v1113, %v1103
    %v1116 = vxor.u32 %v1114, 2147483648
    %v1117 = vxor.u32 %v1115, 2147483648
    %v1118 = vmul.f32 %v1116, 1.442695
    %v1119 = vpow.pop %v1118
    %v1120 = vmul.f32 %v1117, 1.442695
    %v1121 = vpow.pop %v1120
    %v1122 = vadd.f32 %v1119, 1.0
    %v1123 = vadd.f32 %v1121, 1.0
    %v1124 = vrcp.pop %v1122
    %v1125 = vmul.f32 1.0, %v1124
    %v1126 = vrcp.pop %v1123
    %v1127 = vmul.f32 1.0, %v1126
    %v1128 = vtanh.pop %v999
    %v1129 = vtanh.pop %v1000
    %v1130 = vmul.f32 %v1125, %v1128
    %v1131 = vmul.f32 %v1127, %v1129
    %v1132 = vpack.c.bf16 %v1131, %v1130
    %v1134 = vunpack.c.l.b16 %v1132
    %v1135 = vunpack.c.h.b16 %v1132
    %v1136 = vpack.c.b16 %v1134, %v1134
    %v1137 = vpack.c.b16 %v1135, %v1135
    %1140 = vst [vmem:[#allocation3] sm:$0xf] %v1136
    %1141 = vst [vmem:[#allocation3 + $0x4] sm:$0xf] %v1137
    %1142 = vst [vmem:[#allocation4] sm:$0xff] %v999
    %1143 = vst [vmem:[#allocation4 + $0x8] sm:$0xff] %v1000
    %s1144 = scalar_lea.vmem [#allocation12], 16
    %1145 = vst [vmem:[%s1144] sm:$0xff] %v1130
    %1146 = vst [vmem:[%s1144 + $0x8] sm:$0xff] %v1131
    %s1147 = scalar_lea.vmem [#allocation6], 64
    %v1148 = vld [vmem:[%s1147] sm:$0xff]
    %v1149 = vld [vmem:[%s1147 + $0x8] sm:$0xff]
    %v1150 = vld [vmem:[%s1147 + $0x10] sm:$0xff]
    %v1151 = vld [vmem:[%s1147 + $0x18] sm:$0xff]
    %v1152 = vld [vmem:[#allocation3] sm:$0xf]
    %v1153 = vld [vmem:[#allocation3 + $0x4] sm:$0xf]
    %v1154 = vld [vmem:[#allocation4] sm:$0xff]
    %v1155 = vld [vmem:[#allocation4 + $0x8] sm:$0xff]
    %v1156 = vld [vmem:[#allocation2 + $0x4] sm:$0xf]
    %v1157 = vld [vmem:[#allocation2 + $0x14] sm:$0xf]
    %v1158 = vld [vmem:[#allocation2 + $0x24] sm:$0xf]
    %v1159 = vld [vmem:[#allocation2 + $0x34] sm:$0xf]
    %v1160 = vld [vmem:[#allocation2 + $0x44] sm:$0xf]
    %v1161 = vld [vmem:[#allocation2 + $0x54] sm:$0xf]
    %v1162 = vld [vmem:[#allocation2 + $0x64] sm:$0xf]
    %v1163 = vld [vmem:[#allocation2 + $0x74] sm:$0xf]
    %v1164 = vld [vmem:[#allocation2 + $0x84] sm:$0xf]
    %v1165 = vld [vmem:[#allocation2 + $0x94] sm:$0xf]
    %v1166 = vld [vmem:[#allocation2 + $0xa4] sm:$0xf]
    %v1167 = vld [vmem:[#allocation2 + $0xb4] sm:$0xf]
    %v1168 = vld [vmem:[#allocation2 + $0xc4] sm:$0xf]
    %v1169 = vld [vmem:[#allocation2 + $0xd4] sm:$0xf]
    %v1170 = vld [vmem:[#allocation2 + $0xe4] sm:$0xf]
    %v1171 = vld [vmem:[#allocation2 + $0xf4] sm:$0xf]
    %v1174 = vunpack.c.l.b16 %v1152
    %v1175 = vunpack.c.l.b16 %v1153
    %v1176 = vpack.c.b16 %v1175, %v1174
    %v1194 = vunpack.c.l.b16 %v1156
    %v1195 = vunpack.c.l.b16 %v1157
    %v1196 = vunpack.c.l.b16 %v1158
    %v1197 = vunpack.c.l.b16 %v1159
    %v1198 = vunpack.c.l.b16 %v1160
    %v1199 = vunpack.c.l.b16 %v1161
    %v1200 = vunpack.c.l.b16 %v1162
    %v1201 = vunpack.c.l.b16 %v1163
    %v1202 = vunpack.c.l.b16 %v1164
    %v1203 = vunpack.c.l.b16 %v1165
    %v1204 = vunpack.c.l.b16 %v1166
    %v1205 = vunpack.c.l.b16 %v1167
    %v1206 = vunpack.c.l.b16 %v1168
    %v1207 = vunpack.c.l.b16 %v1169
    %v1208 = vunpack.c.l.b16 %v1170
    %v1209 = vunpack.c.l.b16 %v1171
    %v1210 = vpack.c.b16 %v1195, %v1194
    %v1211 = vpack.c.b16 %v1197, %v1196
    %v1212 = vpack.c.b16 %v1199, %v1198
    %v1213 = vpack.c.b16 %v1201, %v1200
    %v1214 = vpack.c.b16 %v1203, %v1202
    %v1215 = vpack.c.b16 %v1205, %v1204
    %v1216 = vpack.c.b16 %v1207, %v1206
    %v1217 = vpack.c.b16 %v1209, %v1208
    %1226 = vmatprep.subr.bf16.mxu0 0
    %1227 = vmatpush1.bf16.msra.mxu0 %v1217
    %1228 = vmatprep.subr.bf16.mxu0 0
    %1229 = vmatpush1.bf16.msra.mxu0 %v1216
    %1230 = vmatprep.subr.bf16.mxu0 0
    %1231 = vmatpush1.bf16.msra.mxu0 %v1215
    %1232 = vmatprep.subr.bf16.mxu0 0
    %1233 = vmatpush1.bf16.msra.mxu0 %v1214
    %1234 = vmatprep.subr.bf16.mxu0 0
    %1235 = vmatpush1.bf16.msra.mxu0 %v1213
    %1236 = vmatprep.subr.bf16.mxu0 0
    %1237 = vmatpush1.bf16.msra.mxu0 %v1212
    %1238 = vmatprep.subr.bf16.mxu0 0
    %1239 = vmatpush1.bf16.msra.mxu0 %v1211
    %1240 = vmatprep.subr.bf16.mxu0 0
    %1241 = vmatpush1.bf16.msra.mxu0 %v1210
    %1242 = vmatprep.subr.bf16.mxu0 0
    %1243 = vmatpush2.bf16.msra.mxu0 0
    %1244 = vmatprep.subr.bf16.mxu0 0
    %1245 = vmatpush2.bf16.msra.mxu0 0
    %1246 = vmatprep.subr.bf16.mxu0 0
    %1247 = vmatpush2.bf16.msra.mxu0 0
    %1248 = vmatprep.subr.bf16.mxu0 0
    %1249 = vmatpush2.bf16.msra.mxu0 0
    %1250 = vmatprep.subr.bf16.mxu0 0
    %1251 = vmatpush2.bf16.msra.mxu0 0
    %1252 = vmatprep.subr.bf16.mxu0 0
    %1253 = vmatpush2.bf16.msra.mxu0 0
    %1254 = vmatprep.subr.bf16.mxu0 0
    %1255 = vmatpush2.bf16.msra.mxu0 0
    %1256 = vmatprep.subr.bf16.mxu0 0
    %1257 = vmatpush2.bf16.msra.mxu0 0
    %1258 = vmatprep.mubr.bf16.mxu0 0
    %1259 = vmatmul.mubr.bf16.gmra.mxu0 %v1176
    %v1260 = vpop.f32.mrf.mxu0
    %v1261 = vadd.f32 0.0, %v1260
    %v1262 = vpop.f32.mrf.mxu0
    %v1263 = vpop.f32.mrf.mxu0
    %v1264 = vadd.f32 0.0, %v1263
    %v1265 = vpop.f32.mrf.mxu0
    %1266 = vdwg.mxu0
    %v1269 = vrot.slane %v1148, 4
    %v1270 = vrot.slane %v1150, 4
    %v1273 = vunpack.c.l.bf16 %v1269
    %v1274 = vunpack.c.l.bf16 %v1270
    %v1275 = vadd.f32 %v1273, %v1261
    %v1276 = vadd.f32 %v1274, %v1264
    %v1277 = vxor.u32 %v1275, 2147483648
    %v1278 = vxor.u32 %v1276, 2147483648
    %v1279 = vmul.f32 %v1277, 1.442695
    %v1280 = vpow.pop %v1279
    %v1281 = vmul.f32 %v1278, 1.442695
    %v1282 = vpow.pop %v1281
    %v1283 = vadd.f32 %v1280, 1.0
    %v1284 = vadd.f32 %v1282, 1.0
    %v1285 = vrcp.pop %v1283
    %v1286 = vmul.f32 1.0, %v1285
    %v1287 = vrcp.pop %v1284
    %v1288 = vmul.f32 1.0, %v1287
    %v1289 = vmul.f32 %v1286, %v1154
    %v1290 = vmul.f32 %v1288, %v1155
    %v1291 = vld [vmem:[#allocation2] sm:$0xf]
    %v1292 = vld [vmem:[#allocation2 + $0x10] sm:$0xf]
    %v1293 = vld [vmem:[#allocation2 + $0x20] sm:$0xf]
    %v1294 = vld [vmem:[#allocation2 + $0x30] sm:$0xf]
    %v1295 = vld [vmem:[#allocation2 + $0x40] sm:$0xf]
    %v1296 = vld [vmem:[#allocation2 + $0x50] sm:$0xf]
    %v1297 = vld [vmem:[#allocation2 + $0x60] sm:$0xf]
    %v1298 = vld [vmem:[#allocation2 + $0x70] sm:$0xf]
    %v1299 = vld [vmem:[#allocation2 + $0x80] sm:$0xf]
    %v1300 = vld [vmem:[#allocation2 + $0x90] sm:$0xf]
    %v1301 = vld [vmem:[#allocation2 + $0xa0] sm:$0xf]
    %v1302 = vld [vmem:[#allocation2 + $0xb0] sm:$0xf]
    %v1303 = vld [vmem:[#allocation2 + $0xc0] sm:$0xf]
    %v1304 = vld [vmem:[#allocation2 + $0xd0] sm:$0xf]
    %v1305 = vld [vmem:[#allocation2 + $0xe0] sm:$0xf]
    %v1306 = vld [vmem:[#allocation2 + $0xf0] sm:$0xf]
    %v1323 = vunpack.c.l.b16 %v1291
    %v1324 = vunpack.c.l.b16 %v1292
    %v1325 = vunpack.c.l.b16 %v1293
    %v1326 = vunpack.c.l.b16 %v1294
    %v1327 = vunpack.c.l.b16 %v1295
    %v1328 = vunpack.c.l.b16 %v1296
    %v1329 = vunpack.c.l.b16 %v1297
    %v1330 = vunpack.c.l.b16 %v1298
    %v1331 = vunpack.c.l.b16 %v1299
    %v1332 = vunpack.c.l.b16 %v1300
    %v1333 = vunpack.c.l.b16 %v1301
    %v1334 = vunpack.c.l.b16 %v1302
    %v1335 = vunpack.c.l.b16 %v1303
    %v1336 = vunpack.c.l.b16 %v1304
    %v1337 = vunpack.c.l.b16 %v1305
    %v1338 = vunpack.c.l.b16 %v1306
    %v1339 = vpack.c.b16 %v1324, %v1323
    %v1340 = vpack.c.b16 %v1326, %v1325
    %v1341 = vpack.c.b16 %v1328, %v1327
    %v1342 = vpack.c.b16 %v1330, %v1329
    %v1343 = vpack.c.b16 %v1332, %v1331
    %v1344 = vpack.c.b16 %v1334, %v1333
    %v1345 = vpack.c.b16 %v1336, %v1335
    %v1346 = vpack.c.b16 %v1338, %v1337
    %1355 = vmatprep.subr.bf16.mxu0 0
    %1356 = vmatpush1.bf16.msra.mxu0 %v1346
    %1357 = vmatprep.subr.bf16.mxu0 0
    %1358 = vmatpush1.bf16.msra.mxu0 %v1345
    %1359 = vmatprep.subr.bf16.mxu0 0
    %1360 = vmatpush1.bf16.msra.mxu0 %v1344
    %1361 = vmatprep.subr.bf16.mxu0 0
    %1362 = vmatpush1.bf16.msra.mxu0 %v1343
    %1363 = vmatprep.subr.bf16.mxu0 0
    %1364 = vmatpush1.bf16.msra.mxu0 %v1342
    %1365 = vmatprep.subr.bf16.mxu0 0
    %1366 = vmatpush1.bf16.msra.mxu0 %v1341
    %1367 = vmatprep.subr.bf16.mxu0 0
    %1368 = vmatpush1.bf16.msra.mxu0 %v1340
    %1369 = vmatprep.subr.bf16.mxu0 0
    %1370 = vmatpush1.bf16.msra.mxu0 %v1339
    %1371 = vmatprep.subr.bf16.mxu0 0
    %1372 = vmatpush2.bf16.msra.mxu0 0
    %1373 = vmatprep.subr.bf16.mxu0 0
    %1374 = vmatpush2.bf16.msra.mxu0 0
    %1375 = vmatprep.subr.bf16.mxu0 0
    %1376 = vmatpush2.bf16.msra.mxu0 0
    %1377 = vmatprep.subr.bf16.mxu0 0
    %1378 = vmatpush2.bf16.msra.mxu0 0
    %1379 = vmatprep.subr.bf16.mxu0 0
    %1380 = vmatpush2.bf16.msra.mxu0 0
    %1381 = vmatprep.subr.bf16.mxu0 0
    %1382 = vmatpush2.bf16.msra.mxu0 0
    %1383 = vmatprep.subr.bf16.mxu0 0
    %1384 = vmatpush2.bf16.msra.mxu0 0
    %1385 = vmatprep.subr.bf16.mxu0 0
    %1386 = vmatpush2.bf16.msra.mxu0 0
    %1387 = vmatprep.mubr.bf16.mxu0 0
    %1388 = vmatmul.mubr.bf16.gmra.mxu0 %v1176
    %v1389 = vpop.f32.mrf.mxu0
    %v1390 = vadd.f32 0.0, %v1389
    %v1391 = vpop.f32.mrf.mxu0
    %v1392 = vpop.f32.mrf.mxu0
    %v1393 = vadd.f32 0.0, %v1392
    %v1394 = vpop.f32.mrf.mxu0
    %1395 = vdwg.mxu0
    %v1396 = vunpack.c.l.bf16 %v1148
    %v1397 = vunpack.c.l.bf16 %v1150
    %v1398 = vadd.f32 %v1396, %v1390
    %v1399 = vadd.f32 %v1397, %v1393
    %v1400 = vxor.u32 %v1398, 2147483648
    %v1401 = vxor.u32 %v1399, 2147483648
    %v1402 = vmul.f32 %v1400, 1.442695
    %v1403 = vpow.pop %v1402
    %v1404 = vmul.f32 %v1401, 1.442695
    %v1405 = vpow.pop %v1404
    %v1406 = vadd.f32 %v1403, 1.0
    %v1407 = vadd.f32 %v1405, 1.0
    %v1408 = vrcp.pop %v1406
    %v1409 = vmul.f32 1.0, %v1408
    %v1410 = vrcp.pop %v1407
    %v1411 = vmul.f32 1.0, %v1410
    %v1412 = vld [vmem:[#allocation2 + $0x8] sm:$0xf]
    %v1413 = vld [vmem:[#allocation2 + $0x18] sm:$0xf]
    %v1414 = vld [vmem:[#allocation2 + $0x28] sm:$0xf]
    %v1415 = vld [vmem:[#allocation2 + $0x38] sm:$0xf]
    %v1416 = vld [vmem:[#allocation2 + $0x48] sm:$0xf]
    %v1417 = vld [vmem:[#allocation2 + $0x58] sm:$0xf]
    %v1418 = vld [vmem:[#allocation2 + $0x68] sm:$0xf]
    %v1419 = vld [vmem:[#allocation2 + $0x78] sm:$0xf]
    %v1420 = vld [vmem:[#allocation2 + $0x88] sm:$0xf]
    %v1421 = vld [vmem:[#allocation2 + $0x98] sm:$0xf]
    %v1422 = vld [vmem:[#allocation2 + $0xa8] sm:$0xf]
    %v1423 = vld [vmem:[#allocation2 + $0xb8] sm:$0xf]
    %v1424 = vld [vmem:[#allocation2 + $0xc8] sm:$0xf]
    %v1425 = vld [vmem:[#allocation2 + $0xd8] sm:$0xf]
    %v1426 = vld [vmem:[#allocation2 + $0xe8] sm:$0xf]
    %v1427 = vld [vmem:[#allocation2 + $0xf8] sm:$0xf]
    %v1444 = vunpack.c.l.b16 %v1412
    %v1445 = vunpack.c.l.b16 %v1413
    %v1446 = vunpack.c.l.b16 %v1414
    %v1447 = vunpack.c.l.b16 %v1415
    %v1448 = vunpack.c.l.b16 %v1416
    %v1449 = vunpack.c.l.b16 %v1417
    %v1450 = vunpack.c.l.b16 %v1418
    %v1451 = vunpack.c.l.b16 %v1419
    %v1452 = vunpack.c.l.b16 %v1420
    %v1453 = vunpack.c.l.b16 %v1421
    %v1454 = vunpack.c.l.b16 %v1422
    %v1455 = vunpack.c.l.b16 %v1423
    %v1456 = vunpack.c.l.b16 %v1424
    %v1457 = vunpack.c.l.b16 %v1425
    %v1458 = vunpack.c.l.b16 %v1426
    %v1459 = vunpack.c.l.b16 %v1427
    %v1460 = vpack.c.b16 %v1445, %v1444
    %v1461 = vpack.c.b16 %v1447, %v1446
    %v1462 = vpack.c.b16 %v1449, %v1448
    %v1463 = vpack.c.b16 %v1451, %v1450
    %v1464 = vpack.c.b16 %v1453, %v1452
    %v1465 = vpack.c.b16 %v1455, %v1454
    %v1466 = vpack.c.b16 %v1457, %v1456
    %v1467 = vpack.c.b16 %v1459, %v1458
    %1476 = vmatprep.subr.bf16.mxu0 0
    %1477 = vmatpush1.bf16.msra.mxu0 %v1467
    %1478 = vmatprep.subr.bf16.mxu0 0
    %1479 = vmatpush1.bf16.msra.mxu0 %v1466
    %1480 = vmatprep.subr.bf16.mxu0 0
    %1481 = vmatpush1.bf16.msra.mxu0 %v1465
    %1482 = vmatprep.subr.bf16.mxu0 0
    %1483 = vmatpush1.bf16.msra.mxu0 %v1464
    %1484 = vmatprep.subr.bf16.mxu0 0
    %1485 = vmatpush1.bf16.msra.mxu0 %v1463
    %1486 = vmatprep.subr.bf16.mxu0 0
    %1487 = vmatpush1.bf16.msra.mxu0 %v1462
    %1488 = vmatprep.subr.bf16.mxu0 0
    %1489 = vmatpush1.bf16.msra.mxu0 %v1461
    %1490 = vmatprep.subr.bf16.mxu0 0
    %1491 = vmatpush1.bf16.msra.mxu0 %v1460
    %1492 = vmatprep.subr.bf16.mxu0 0
    %1493 = vmatpush2.bf16.msra.mxu0 0
    %1494 = vmatprep.subr.bf16.mxu0 0
    %1495 = vmatpush2.bf16.msra.mxu0 0
    %1496 = vmatprep.subr.bf16.mxu0 0
    %1497 = vmatpush2.bf16.msra.mxu0 0
    %1498 = vmatprep.subr.bf16.mxu0 0
    %1499 = vmatpush2.bf16.msra.mxu0 0
    %1500 = vmatprep.subr.bf16.mxu0 0
    %1501 = vmatpush2.bf16.msra.mxu0 0
    %1502 = vmatprep.subr.bf16.mxu0 0
    %1503 = vmatpush2.bf16.msra.mxu0 0
    %1504 = vmatprep.subr.bf16.mxu0 0
    %1505 = vmatpush2.bf16.msra.mxu0 0
    %1506 = vmatprep.subr.bf16.mxu0 0
    %1507 = vmatpush2.bf16.msra.mxu0 0
    %1508 = vmatprep.mubr.bf16.mxu0 0
    %1509 = vmatmul.mubr.bf16.gmra.mxu0 %v1176
    %v1510 = vpop.f32.mrf.mxu0
    %v1511 = vadd.f32 0.0, %v1510
    %v1512 = vpop.f32.mrf.mxu0
    %v1513 = vpop.f32.mrf.mxu0
    %v1514 = vadd.f32 0.0, %v1513
    %v1515 = vpop.f32.mrf.mxu0
    %1516 = vdwg.mxu0
    %v1517 = vunpack.c.l.bf16 %v1149
    %v1518 = vunpack.c.l.bf16 %v1151
    %v1519 = vadd.f32 %v1517, %v1511
    %v1520 = vadd.f32 %v1518, %v1514
    %v1521 = vtanh.pop %v1519
    %v1522 = vtanh.pop %v1520
    %v1523 = vmul.f32 %v1409, %v1521
    %v1524 = vmul.f32 %v1411, %v1522
    %v1525 = vadd.f32 %v1289, %v1523
    %v1526 = vadd.f32 %v1290, %v1524
    %v1527 = vld [vmem:[#allocation2 + $0xc] sm:$0xf]
    %v1528 = vld [vmem:[#allocation2 + $0x1c] sm:$0xf]
    %v1529 = vld [vmem:[#allocation2 + $0x2c] sm:$0xf]
    %v1530 = vld [vmem:[#allocation2 + $0x3c] sm:$0xf]
    %v1531 = vld [vmem:[#allocation2 + $0x4c] sm:$0xf]
    %v1532 = vld [vmem:[#allocation2 + $0x5c] sm:$0xf]
    %v1533 = vld [vmem:[#allocation2 + $0x6c] sm:$0xf]
    %v1534 = vld [vmem:[#allocation2 + $0x7c] sm:$0xf]
    %v1535 = vld [vmem:[#allocation2 + $0x8c] sm:$0xf]
    %v1536 = vld [vmem:[#allocation2 + $0x9c] sm:$0xf]
    %v1537 = vld [vmem:[#allocation2 + $0xac] sm:$0xf]
    %v1538 = vld [vmem:[#allocation2 + $0xbc] sm:$0xf]
    %v1539 = vld [vmem:[#allocation2 + $0xcc] sm:$0xf]
    %v1540 = vld [vmem:[#allocation2 + $0xdc] sm:$0xf]
    %v1541 = vld [vmem:[#allocation2 + $0xec] sm:$0xf]
    %v1542 = vld [vmem:[#allocation2 + $0xfc] sm:$0xf]
    %v1559 = vunpack.c.l.b16 %v1527
    %v1560 = vunpack.c.l.b16 %v1528
    %v1561 = vunpack.c.l.b16 %v1529
    %v1562 = vunpack.c.l.b16 %v1530
    %v1563 = vunpack.c.l.b16 %v1531
    %v1564 = vunpack.c.l.b16 %v1532
    %v1565 = vunpack.c.l.b16 %v1533
    %v1566 = vunpack.c.l.b16 %v1534
    %v1567 = vunpack.c.l.b16 %v1535
    %v1568 = vunpack.c.l.b16 %v1536
    %v1569 = vunpack.c.l.b16 %v1537
    %v1570 = vunpack.c.l.b16 %v1538
    %v1571 = vunpack.c.l.b16 %v1539
    %v1572 = vunpack.c.l.b16 %v1540
    %v1573 = vunpack.c.l.b16 %v1541
    %v1574 = vunpack.c.l.b16 %v1542
    %v1575 = vpack.c.b16 %v1560, %v1559
    %v1576 = vpack.c.b16 %v1562, %v1561
    %v1577 = vpack.c.b16 %v1564, %v1563
    %v1578 = vpack.c.b16 %v1566, %v1565
    %v1579 = vpack.c.b16 %v1568, %v1567
    %v1580 = vpack.c.b16 %v1570, %v1569
    %v1581 = vpack.c.b16 %v1572, %v1571
    %v1582 = vpack.c.b16 %v1574, %v1573
    %1591 = vmatprep.subr.bf16.mxu0 0
    %1592 = vmatpush1.bf16.msra.mxu0 %v1582
    %1593 = vmatprep.subr.bf16.mxu0 0
    %1594 = vmatpush1.bf16.msra.mxu0 %v1581
    %1595 = vmatprep.subr.bf16.mxu0 0
    %1596 = vmatpush1.bf16.msra.mxu0 %v1580
    %1597 = vmatprep.subr.bf16.mxu0 0
    %1598 = vmatpush1.bf16.msra.mxu0 %v1579
    %1599 = vmatprep.subr.bf16.mxu0 0
    %1600 = vmatpush1.bf16.msra.mxu0 %v1578
    %1601 = vmatprep.subr.bf16.mxu0 0
    %1602 = vmatpush1.bf16.msra.mxu0 %v1577
    %1603 = vmatprep.subr.bf16.mxu0 0
    %1604 = vmatpush1.bf16.msra.mxu0 %v1576
    %1605 = vmatprep.subr.bf16.mxu0 0
    %1606 = vmatpush1.bf16.msra.mxu0 %v1575
    %1607 = vmatprep.subr.bf16.mxu0 0
    %1608 = vmatpush2.bf16.msra.mxu0 0
    %1609 = vmatprep.subr.bf16.mxu0 0
    %1610 = vmatpush2.bf16.msra.mxu0 0
    %1611 = vmatprep.subr.bf16.mxu0 0
    %1612 = vmatpush2.bf16.msra.mxu0 0
    %1613 = vmatprep.subr.bf16.mxu0 0
    %1614 = vmatpush2.bf16.msra.mxu0 0
    %1615 = vmatprep.subr.bf16.mxu0 0
    %1616 = vmatpush2.bf16.msra.mxu0 0
    %1617 = vmatprep.subr.bf16.mxu0 0
    %1618 = vmatpush2.bf16.msra.mxu0 0
    %1619 = vmatprep.subr.bf16.mxu0 0
    %1620 = vmatpush2.bf16.msra.mxu0 0
    %1621 = vmatprep.subr.bf16.mxu0 0
    %1622 = vmatpush2.bf16.msra.mxu0 0
    %1623 = vmatprep.mubr.bf16.mxu0 0
    %1624 = vmatmul.mubr.bf16.gmra.mxu0 %v1176
    %v1625 = vpop.f32.mrf.mxu0
    %v1626 = vadd.f32 0.0, %v1625
    %v1627 = vpop.f32.mrf.mxu0
    %v1628 = vpop.f32.mrf.mxu0
    %v1629 = vadd.f32 0.0, %v1628
    %v1630 = vpop.f32.mrf.mxu0
    %1631 = vdwg.mxu0
    %v1634 = vrot.slane %v1149, 4
    %v1635 = vrot.slane %v1151, 4
    %v1638 = vunpack.c.l.bf16 %v1634
    %v1639 = vunpack.c.l.bf16 %v1635
    %v1640 = vadd.f32 %v1638, %v1626
    %v1641 = vadd.f32 %v1639, %v1629
    %v1642 = vxor.u32 %v1640, 2147483648
    %v1643 = vxor.u32 %v1641, 2147483648
    %v1644 = vmul.f32 %v1642, 1.442695
    %v1645 = vpow.pop %v1644
    %v1646 = vmul.f32 %v1643, 1.442695
    %v1647 = vpow.pop %v1646
    %v1648 = vadd.f32 %v1645, 1.0
    %v1649 = vadd.f32 %v1647, 1.0
    %v1650 = vrcp.pop %v1648
    %v1651 = vmul.f32 1.0, %v1650
    %v1652 = vrcp.pop %v1649
    %v1653 = vmul.f32 1.0, %v1652
    %v1654 = vtanh.pop %v1525
    %v1655 = vtanh.pop %v1526
    %v1656 = vmul.f32 %v1651, %v1654
    %v1657 = vmul.f32 %v1653, %v1655
    %v1658 = vpack.c.bf16 %v1657, %v1656
    %v1660 = vunpack.c.l.b16 %v1658
    %v1661 = vunpack.c.h.b16 %v1658
    %v1662 = vpack.c.b16 %v1660, %v1660
    %v1663 = vpack.c.b16 %v1661, %v1661
    %1666 = vst [vmem:[#allocation3] sm:$0xf] %v1662
    %1667 = vst [vmem:[#allocation3 + $0x4] sm:$0xf] %v1663
    %1668 = vst [vmem:[#allocation4] sm:$0xff] %v1525
    %1669 = vst [vmem:[#allocation4 + $0x8] sm:$0xff] %v1526
    %s1670 = scalar_lea.vmem [#allocation12], 32
    %1671 = vst [vmem:[%s1670] sm:$0xff] %v1656
    %1672 = vst [vmem:[%s1670 + $0x8] sm:$0xff] %v1657
    %s1673 = scalar_lea.vmem [#allocation6], 96
    %v1674 = vld [vmem:[%s1673] sm:$0xff]
    %v1675 = vld [vmem:[%s1673 + $0x8] sm:$0xff]
    %v1676 = vld [vmem:[%s1673 + $0x10] sm:$0xff]
    %v1677 = vld [vmem:[%s1673 + $0x18] sm:$0xff]
    %v1678 = vld [vmem:[#allocation3] sm:$0xf]
    %v1679 = vld [vmem:[#allocation3 + $0x4] sm:$0xf]
    %v1680 = vld [vmem:[#allocation4] sm:$0xff]
    %v1681 = vld [vmem:[#allocation4 + $0x8] sm:$0xff]
    %v1682 = vld [vmem:[#allocation2 + $0x4] sm:$0xf]
    %v1683 = vld [vmem:[#allocation2 + $0x14] sm:$0xf]
    %v1684 = vld [vmem:[#allocation2 + $0x24] sm:$0xf]
    %v1685 = vld [vmem:[#allocation2 + $0x34] sm:$0xf]
    %v1686 = vld [vmem:[#allocation2 + $0x44] sm:$0xf]
    %v1687 = vld [vmem:[#allocation2 + $0x54] sm:$0xf]
    %v1688 = vld [vmem:[#allocation2 + $0x64] sm:$0xf]
    %v1689 = vld [vmem:[#allocation2 + $0x74] sm:$0xf]
    %v1690 = vld [vmem:[#allocation2 + $0x84] sm:$0xf]
    %v1691 = vld [vmem:[#allocation2 + $0x94] sm:$0xf]
    %v1692 = vld [vmem:[#allocation2 + $0xa4] sm:$0xf]
    %v1693 = vld [vmem:[#allocation2 + $0xb4] sm:$0xf]
    %v1694 = vld [vmem:[#allocation2 + $0xc4] sm:$0xf]
    %v1695 = vld [vmem:[#allocation2 + $0xd4] sm:$0xf]
    %v1696 = vld [vmem:[#allocation2 + $0xe4] sm:$0xf]
    %v1697 = vld [vmem:[#allocation2 + $0xf4] sm:$0xf]
    %v1700 = vunpack.c.l.b16 %v1678
    %v1701 = vunpack.c.l.b16 %v1679
    %v1702 = vpack.c.b16 %v1701, %v1700
    %v1720 = vunpack.c.l.b16 %v1682
    %v1721 = vunpack.c.l.b16 %v1683
    %v1722 = vunpack.c.l.b16 %v1684
    %v1723 = vunpack.c.l.b16 %v1685
    %v1724 = vunpack.c.l.b16 %v1686
    %v1725 = vunpack.c.l.b16 %v1687
    %v1726 = vunpack.c.l.b16 %v1688
    %v1727 = vunpack.c.l.b16 %v1689
    %v1728 = vunpack.c.l.b16 %v1690
    %v1729 = vunpack.c.l.b16 %v1691
    %v1730 = vunpack.c.l.b16 %v1692
    %v1731 = vunpack.c.l.b16 %v1693
    %v1732 = vunpack.c.l.b16 %v1694
    %v1733 = vunpack.c.l.b16 %v1695
    %v1734 = vunpack.c.l.b16 %v1696
    %v1735 = vunpack.c.l.b16 %v1697
    %v1736 = vpack.c.b16 %v1721, %v1720
    %v1737 = vpack.c.b16 %v1723, %v1722
    %v1738 = vpack.c.b16 %v1725, %v1724
    %v1739 = vpack.c.b16 %v1727, %v1726
    %v1740 = vpack.c.b16 %v1729, %v1728
    %v1741 = vpack.c.b16 %v1731, %v1730
    %v1742 = vpack.c.b16 %v1733, %v1732
    %v1743 = vpack.c.b16 %v1735, %v1734
    %1752 = vmatprep.subr.bf16.mxu0 0
    %1753 = vmatpush1.bf16.msra.mxu0 %v1743
    %1754 = vmatprep.subr.bf16.mxu0 0
    %1755 = vmatpush1.bf16.msra.mxu0 %v1742
    %1756 = vmatprep.subr.bf16.mxu0 0
    %1757 = vmatpush1.bf16.msra.mxu0 %v1741
    %1758 = vmatprep.subr.bf16.mxu0 0
    %1759 = vmatpush1.bf16.msra.mxu0 %v1740
    %1760 = vmatprep.subr.bf16.mxu0 0
    %1761 = vmatpush1.bf16.msra.mxu0 %v1739
    %1762 = vmatprep.subr.bf16.mxu0 0
    %1763 = vmatpush1.bf16.msra.mxu0 %v1738
    %1764 = vmatprep.subr.bf16.mxu0 0
    %1765 = vmatpush1.bf16.msra.mxu0 %v1737
    %1766 = vmatprep.subr.bf16.mxu0 0
    %1767 = vmatpush1.bf16.msra.mxu0 %v1736
    %1768 = vmatprep.subr.bf16.mxu0 0
    %1769 = vmatpush2.bf16.msra.mxu0 0
    %1770 = vmatprep.subr.bf16.mxu0 0
    %1771 = vmatpush2.bf16.msra.mxu0 0
    %1772 = vmatprep.subr.bf16.mxu0 0
    %1773 = vmatpush2.bf16.msra.mxu0 0
    %1774 = vmatprep.subr.bf16.mxu0 0
    %1775 = vmatpush2.bf16.msra.mxu0 0
    %1776 = vmatprep.subr.bf16.mxu0 0
    %1777 = vmatpush2.bf16.msra.mxu0 0
    %1778 = vmatprep.subr.bf16.mxu0 0
    %1779 = vmatpush2.bf16.msra.mxu0 0
    %1780 = vmatprep.subr.bf16.mxu0 0
    %1781 = vmatpush2.bf16.msra.mxu0 0
    %1782 = vmatprep.subr.bf16.mxu0 0
    %1783 = vmatpush2.bf16.msra.mxu0 0
    %1784 = vmatprep.mubr.bf16.mxu0 0
    %1785 = vmatmul.mubr.bf16.gmra.mxu0 %v1702
    %v1786 = vpop.f32.mrf.mxu0
    %v1787 = vadd.f32 0.0, %v1786
    %v1788 = vpop.f32.mrf.mxu0
    %v1789 = vpop.f32.mrf.mxu0
    %v1790 = vadd.f32 0.0, %v1789
    %v1791 = vpop.f32.mrf.mxu0
    %1792 = vdwg.mxu0
    %v1795 = vrot.slane %v1674, 4
    %v1796 = vrot.slane %v1676, 4
    %v1799 = vunpack.c.l.bf16 %v1795
    %v1800 = vunpack.c.l.bf16 %v1796
    %v1801 = vadd.f32 %v1799, %v1787
    %v1802 = vadd.f32 %v1800, %v1790
    %v1803 = vxor.u32 %v1801, 2147483648
    %v1804 = vxor.u32 %v1802, 2147483648
    %v1805 = vmul.f32 %v1803, 1.442695
    %v1806 = vpow.pop %v1805
    %v1807 = vmul.f32 %v1804, 1.442695
    %v1808 = vpow.pop %v1807
    %v1809 = vadd.f32 %v1806, 1.0
    %v1810 = vadd.f32 %v1808, 1.0
    %v1811 = vrcp.pop %v1809
    %v1812 = vmul.f32 1.0, %v1811
    %v1813 = vrcp.pop %v1810
    %v1814 = vmul.f32 1.0, %v1813
    %v1815 = vmul.f32 %v1812, %v1680
    %v1816 = vmul.f32 %v1814, %v1681
    %v1817 = vld [vmem:[#allocation2] sm:$0xf]
    %v1818 = vld [vmem:[#allocation2 + $0x10] sm:$0xf]
    %v1819 = vld [vmem:[#allocation2 + $0x20] sm:$0xf]
    %v1820 = vld [vmem:[#allocation2 + $0x30] sm:$0xf]
    %v1821 = vld [vmem:[#allocation2 + $0x40] sm:$0xf]
    %v1822 = vld [vmem:[#allocation2 + $0x50] sm:$0xf]
    %v1823 = vld [vmem:[#allocation2 + $0x60] sm:$0xf]
    %v1824 = vld [vmem:[#allocation2 + $0x70] sm:$0xf]
    %v1825 = vld [vmem:[#allocation2 + $0x80] sm:$0xf]
    %v1826 = vld [vmem:[#allocation2 + $0x90] sm:$0xf]
    %v1827 = vld [vmem:[#allocation2 + $0xa0] sm:$0xf]
    %v1828 = vld [vmem:[#allocation2 + $0xb0] sm:$0xf]
    %v1829 = vld [vmem:[#allocation2 + $0xc0] sm:$0xf]
    %v1830 = vld [vmem:[#allocation2 + $0xd0] sm:$0xf]
    %v1831 = vld [vmem:[#allocation2 + $0xe0] sm:$0xf]
    %v1832 = vld [vmem:[#allocation2 + $0xf0] sm:$0xf]
    %v1849 = vunpack.c.l.b16 %v1817
    %v1850 = vunpack.c.l.b16 %v1818
    %v1851 = vunpack.c.l.b16 %v1819
    %v1852 = vunpack.c.l.b16 %v1820
    %v1853 = vunpack.c.l.b16 %v1821
    %v1854 = vunpack.c.l.b16 %v1822
    %v1855 = vunpack.c.l.b16 %v1823
    %v1856 = vunpack.c.l.b16 %v1824
    %v1857 = vunpack.c.l.b16 %v1825
    %v1858 = vunpack.c.l.b16 %v1826
    %v1859 = vunpack.c.l.b16 %v1827
    %v1860 = vunpack.c.l.b16 %v1828
    %v1861 = vunpack.c.l.b16 %v1829
    %v1862 = vunpack.c.l.b16 %v1830
    %v1863 = vunpack.c.l.b16 %v1831
    %v1864 = vunpack.c.l.b16 %v1832
    %v1865 = vpack.c.b16 %v1850, %v1849
    %v1866 = vpack.c.b16 %v1852, %v1851
    %v1867 = vpack.c.b16 %v1854, %v1853
    %v1868 = vpack.c.b16 %v1856, %v1855
    %v1869 = vpack.c.b16 %v1858, %v1857
    %v1870 = vpack.c.b16 %v1860, %v1859
    %v1871 = vpack.c.b16 %v1862, %v1861
    %v1872 = vpack.c.b16 %v1864, %v1863
    %1881 = vmatprep.subr.bf16.mxu0 0
    %1882 = vmatpush1.bf16.msra.mxu0 %v1872
    %1883 = vmatprep.subr.bf16.mxu0 0
    %1884 = vmatpush1.bf16.msra.mxu0 %v1871
    %1885 = vmatprep.subr.bf16.mxu0 0
    %1886 = vmatpush1.bf16.msra.mxu0 %v1870
    %1887 = vmatprep.subr.bf16.mxu0 0
    %1888 = vmatpush1.bf16.msra.mxu0 %v1869
    %1889 = vmatprep.subr.bf16.mxu0 0
    %1890 = vmatpush1.bf16.msra.mxu0 %v1868
    %1891 = vmatprep.subr.bf16.mxu0 0
    %1892 = vmatpush1.bf16.msra.mxu0 %v1867
    %1893 = vmatprep.subr.bf16.mxu0 0
    %1894 = vmatpush1.bf16.msra.mxu0 %v1866
    %1895 = vmatprep.subr.bf16.mxu0 0
    %1896 = vmatpush1.bf16.msra.mxu0 %v1865
    %1897 = vmatprep.subr.bf16.mxu0 0
    %1898 = vmatpush2.bf16.msra.mxu0 0
    %1899 = vmatprep.subr.bf16.mxu0 0
    %1900 = vmatpush2.bf16.msra.mxu0 0
    %1901 = vmatprep.subr.bf16.mxu0 0
    %1902 = vmatpush2.bf16.msra.mxu0 0
    %1903 = vmatprep.subr.bf16.mxu0 0
    %1904 = vmatpush2.bf16.msra.mxu0 0
    %1905 = vmatprep.subr.bf16.mxu0 0
    %1906 = vmatpush2.bf16.msra.mxu0 0
    %1907 = vmatprep.subr.bf16.mxu0 0
    %1908 = vmatpush2.bf16.msra.mxu0 0
    %1909 = vmatprep.subr.bf16.mxu0 0
    %1910 = vmatpush2.bf16.msra.mxu0 0
    %1911 = vmatprep.subr.bf16.mxu0 0
    %1912 = vmatpush2.bf16.msra.mxu0 0
    %1913 = vmatprep.mubr.bf16.mxu0 0
    %1914 = vmatmul.mubr.bf16.gmra.mxu0 %v1702
    %v1915 = vpop.f32.mrf.mxu0
    %v1916 = vadd.f32 0.0, %v1915
    %v1917 = vpop.f32.mrf.mxu0
    %v1918 = vpop.f32.mrf.mxu0
    %v1919 = vadd.f32 0.0, %v1918
    %v1920 = vpop.f32.mrf.mxu0
    %1921 = vdwg.mxu0
    %v1922 = vunpack.c.l.bf16 %v1674
    %v1923 = vunpack.c.l.bf16 %v1676
    %v1924 = vadd.f32 %v1922, %v1916
    %v1925 = vadd.f32 %v1923, %v1919
    %v1926 = vxor.u32 %v1924, 2147483648
    %v1927 = vxor.u32 %v1925, 2147483648
    %v1928 = vmul.f32 %v1926, 1.442695
    %v1929 = vpow.pop %v1928
    %v1930 = vmul.f32 %v1927, 1.442695
    %v1931 = vpow.pop %v1930
    %v1932 = vadd.f32 %v1929, 1.0
    %v1933 = vadd.f32 %v1931, 1.0
    %v1934 = vrcp.pop %v1932
    %v1935 = vmul.f32 1.0, %v1934
    %v1936 = vrcp.pop %v1933
    %v1937 = vmul.f32 1.0, %v1936
    %v1938 = vld [vmem:[#allocation2 + $0x8] sm:$0xf]
    %v1939 = vld [vmem:[#allocation2 + $0x18] sm:$0xf]
    %v1940 = vld [vmem:[#allocation2 + $0x28] sm:$0xf]
    %v1941 = vld [vmem:[#allocation2 + $0x38] sm:$0xf]
    %v1942 = vld [vmem:[#allocation2 + $0x48] sm:$0xf]
    %v1943 = vld [vmem:[#allocation2 + $0x58] sm:$0xf]
    %v1944 = vld [vmem:[#allocation2 + $0x68] sm:$0xf]
    %v1945 = vld [vmem:[#allocation2 + $0x78] sm:$0xf]
    %v1946 = vld [vmem:[#allocation2 + $0x88] sm:$0xf]
    %v1947 = vld [vmem:[#allocation2 + $0x98] sm:$0xf]
    %v1948 = vld [vmem:[#allocation2 + $0xa8] sm:$0xf]
    %v1949 = vld [vmem:[#allocation2 + $0xb8] sm:$0xf]
    %v1950 = vld [vmem:[#allocation2 + $0xc8] sm:$0xf]
    %v1951 = vld [vmem:[#allocation2 + $0xd8] sm:$0xf]
    %v1952 = vld [vmem:[#allocation2 + $0xe8] sm:$0xf]
    %v1953 = vld [vmem:[#allocation2 + $0xf8] sm:$0xf]
    %v1970 = vunpack.c.l.b16 %v1938
    %v1971 = vunpack.c.l.b16 %v1939
    %v1972 = vunpack.c.l.b16 %v1940
    %v1973 = vunpack.c.l.b16 %v1941
    %v1974 = vunpack.c.l.b16 %v1942
    %v1975 = vunpack.c.l.b16 %v1943
    %v1976 = vunpack.c.l.b16 %v1944
    %v1977 = vunpack.c.l.b16 %v1945
    %v1978 = vunpack.c.l.b16 %v1946
    %v1979 = vunpack.c.l.b16 %v1947
    %v1980 = vunpack.c.l.b16 %v1948
    %v1981 = vunpack.c.l.b16 %v1949
    %v1982 = vunpack.c.l.b16 %v1950
    %v1983 = vunpack.c.l.b16 %v1951
    %v1984 = vunpack.c.l.b16 %v1952
    %v1985 = vunpack.c.l.b16 %v1953
    %v1986 = vpack.c.b16 %v1971, %v1970
    %v1987 = vpack.c.b16 %v1973, %v1972
    %v1988 = vpack.c.b16 %v1975, %v1974
    %v1989 = vpack.c.b16 %v1977, %v1976
    %v1990 = vpack.c.b16 %v1979, %v1978
    %v1991 = vpack.c.b16 %v1981, %v1980
    %v1992 = vpack.c.b16 %v1983, %v1982
    %v1993 = vpack.c.b16 %v1985, %v1984
    %2002 = vmatprep.subr.bf16.mxu0 0
    %2003 = vmatpush1.bf16.msra.mxu0 %v1993
    %2004 = vmatprep.subr.bf16.mxu0 0
    %2005 = vmatpush1.bf16.msra.mxu0 %v1992
    %2006 = vmatprep.subr.bf16.mxu0 0
    %2007 = vmatpush1.bf16.msra.mxu0 %v1991
    %2008 = vmatprep.subr.bf16.mxu0 0
    %2009 = vmatpush1.bf16.msra.mxu0 %v1990
    %2010 = vmatprep.subr.bf16.mxu0 0
    %2011 = vmatpush1.bf16.msra.mxu0 %v1989
    %2012 = vmatprep.subr.bf16.mxu0 0
    %2013 = vmatpush1.bf16.msra.mxu0 %v1988
    %2014 = vmatprep.subr.bf16.mxu0 0
    %2015 = vmatpush1.bf16.msra.mxu0 %v1987
    %2016 = vmatprep.subr.bf16.mxu0 0
    %2017 = vmatpush1.bf16.msra.mxu0 %v1986
    %2018 = vmatprep.subr.bf16.mxu0 0
    %2019 = vmatpush2.bf16.msra.mxu0 0
    %2020 = vmatprep.subr.bf16.mxu0 0
    %2021 = vmatpush2.bf16.msra.mxu0 0
    %2022 = vmatprep.subr.bf16.mxu0 0
    %2023 = vmatpush2.bf16.msra.mxu0 0
    %2024 = vmatprep.subr.bf16.mxu0 0
    %2025 = vmatpush2.bf16.msra.mxu0 0
    %2026 = vmatprep.subr.bf16.mxu0 0
    %2027 = vmatpush2.bf16.msra.mxu0 0
    %2028 = vmatprep.subr.bf16.mxu0 0
    %2029 = vmatpush2.bf16.msra.mxu0 0
    %2030 = vmatprep.subr.bf16.mxu0 0
    %2031 = vmatpush2.bf16.msra.mxu0 0
    %2032 = vmatprep.subr.bf16.mxu0 0
    %2033 = vmatpush2.bf16.msra.mxu0 0
    %2034 = vmatprep.mubr.bf16.mxu0 0
    %2035 = vmatmul.mubr.bf16.gmra.mxu0 %v1702
    %v2036 = vpop.f32.mrf.mxu0
    %v2037 = vadd.f32 0.0, %v2036
    %v2038 = vpop.f32.mrf.mxu0
    %v2039 = vpop.f32.mrf.mxu0
    %v2040 = vadd.f32 0.0, %v2039
    %v2041 = vpop.f32.mrf.mxu0
    %2042 = vdwg.mxu0
    %v2043 = vunpack.c.l.bf16 %v1675
    %v2044 = vunpack.c.l.bf16 %v1677
    %v2045 = vadd.f32 %v2043, %v2037
    %v2046 = vadd.f32 %v2044, %v2040
    %v2047 = vtanh.pop %v2045
    %v2048 = vtanh.pop %v2046
    %v2049 = vmul.f32 %v1935, %v2047
    %v2050 = vmul.f32 %v1937, %v2048
    %v2051 = vadd.f32 %v1815, %v2049
    %v2052 = vadd.f32 %v1816, %v2050
    %v2053 = vld [vmem:[#allocation2 + $0xc] sm:$0xf]
    %v2054 = vld [vmem:[#allocation2 + $0x1c] sm:$0xf]
    %v2055 = vld [vmem:[#allocation2 + $0x2c] sm:$0xf]
    %v2056 = vld [vmem:[#allocation2 + $0x3c] sm:$0xf]
    %v2057 = vld [vmem:[#allocation2 + $0x4c] sm:$0xf]
    %v2058 = vld [vmem:[#allocation2 + $0x5c] sm:$0xf]
    %v2059 = vld [vmem:[#allocation2 + $0x6c] sm:$0xf]
    %v2060 = vld [vmem:[#allocation2 + $0x7c] sm:$0xf]
    %v2061 = vld [vmem:[#allocation2 + $0x8c] sm:$0xf]
    %v2062 = vld [vmem:[#allocation2 + $0x9c] sm:$0xf]
    %v2063 = vld [vmem:[#allocation2 + $0xac] sm:$0xf]
    %v2064 = vld [vmem:[#allocation2 + $0xbc] sm:$0xf]
    %v2065 = vld [vmem:[#allocation2 + $0xcc] sm:$0xf]
    %v2066 = vld [vmem:[#allocation2 + $0xdc] sm:$0xf]
    %v2067 = vld [vmem:[#allocation2 + $0xec] sm:$0xf]
    %v2068 = vld [vmem:[#allocation2 + $0xfc] sm:$0xf]
    %v2085 = vunpack.c.l.b16 %v2053
    %v2086 = vunpack.c.l.b16 %v2054
    %v2087 = vunpack.c.l.b16 %v2055
    %v2088 = vunpack.c.l.b16 %v2056
    %v2089 = vunpack.c.l.b16 %v2057
    %v2090 = vunpack.c.l.b16 %v2058
    %v2091 = vunpack.c.l.b16 %v2059
    %v2092 = vunpack.c.l.b16 %v2060
    %v2093 = vunpack.c.l.b16 %v2061
    %v2094 = vunpack.c.l.b16 %v2062
    %v2095 = vunpack.c.l.b16 %v2063
    %v2096 = vunpack.c.l.b16 %v2064
    %v2097 = vunpack.c.l.b16 %v2065
    %v2098 = vunpack.c.l.b16 %v2066
    %v2099 = vunpack.c.l.b16 %v2067
    %v2100 = vunpack.c.l.b16 %v2068
    %v2101 = vpack.c.b16 %v2086, %v2085
    %v2102 = vpack.c.b16 %v2088, %v2087
    %v2103 = vpack.c.b16 %v2090, %v2089
    %v2104 = vpack.c.b16 %v2092, %v2091
    %v2105 = vpack.c.b16 %v2094, %v2093
    %v2106 = vpack.c.b16 %v2096, %v2095
    %v2107 = vpack.c.b16 %v2098, %v2097
    %v2108 = vpack.c.b16 %v2100, %v2099
    %2117 = vmatprep.subr.bf16.mxu0 0
    %2118 = vmatpush1.bf16.msra.mxu0 %v2108
    %2119 = vmatprep.subr.bf16.mxu0 0
    %2120 = vmatpush1.bf16.msra.mxu0 %v2107
    %2121 = vmatprep.subr.bf16.mxu0 0
    %2122 = vmatpush1.bf16.msra.mxu0 %v2106
    %2123 = vmatprep.subr.bf16.mxu0 0
    %2124 = vmatpush1.bf16.msra.mxu0 %v2105
    %2125 = vmatprep.subr.bf16.mxu0 0
    %2126 = vmatpush1.bf16.msra.mxu0 %v2104
    %2127 = vmatprep.subr.bf16.mxu0 0
    %2128 = vmatpush1.bf16.msra.mxu0 %v2103
    %2129 = vmatprep.subr.bf16.mxu0 0
    %2130 = vmatpush1.bf16.msra.mxu0 %v2102
    %2131 = vmatprep.subr.bf16.mxu0 0
    %2132 = vmatpush1.bf16.msra.mxu0 %v2101
    %2133 = vmatprep.subr.bf16.mxu0 0
    %2134 = vmatpush2.bf16.msra.mxu0 0
    %2135 = vmatprep.subr.bf16.mxu0 0
    %2136 = vmatpush2.bf16.msra.mxu0 0
    %2137 = vmatprep.subr.bf16.mxu0 0
    %2138 = vmatpush2.bf16.msra.mxu0 0
    %2139 = vmatprep.subr.bf16.mxu0 0
    %2140 = vmatpush2.bf16.msra.mxu0 0
    %2141 = vmatprep.subr.bf16.mxu0 0
    %2142 = vmatpush2.bf16.msra.mxu0 0
    %2143 = vmatprep.subr.bf16.mxu0 0
    %2144 = vmatpush2.bf16.msra.mxu0 0
    %2145 = vmatprep.subr.bf16.mxu0 0
    %2146 = vmatpush2.bf16.msra.mxu0 0
    %2147 = vmatprep.subr.bf16.mxu0 0
    %2148 = vmatpush2.bf16.msra.mxu0 0
    %2149 = vmatprep.mubr.bf16.mxu0 0
    %2150 = vmatmul.mubr.bf16.gmra.mxu0 %v1702
    %v2151 = vpop.f32.mrf.mxu0
    %v2152 = vadd.f32 0.0, %v2151
    %v2153 = vpop.f32.mrf.mxu0
    %v2154 = vpop.f32.mrf.mxu0
    %v2155 = vadd.f32 0.0, %v2154
    %v2156 = vpop.f32.mrf.mxu0
    %2157 = vdwg.mxu0
    %v2160 = vrot.slane %v1675, 4
    %v2161 = vrot.slane %v1677, 4
    %v2164 = vunpack.c.l.bf16 %v2160
    %v2165 = vunpack.c.l.bf16 %v2161
    %v2166 = vadd.f32 %v2164, %v2152
    %v2167 = vadd.f32 %v2165, %v2155
    %v2168 = vxor.u32 %v2166, 2147483648
    %v2169 = vxor.u32 %v2167, 2147483648
    %v2170 = vmul.f32 %v2168, 1.442695
    %v2171 = vpow.pop %v2170
    %v2172 = vmul.f32 %v2169, 1.442695
    %v2173 = vpow.pop %v2172
    %v2174 = vadd.f32 %v2171, 1.0
    %v2175 = vadd.f32 %v2173, 1.0
    %v2176 = vrcp.pop %v2174
    %v2177 = vmul.f32 1.0, %v2176
    %v2178 = vrcp.pop %v2175
    %v2179 = vmul.f32 1.0, %v2178
    %v2180 = vtanh.pop %v2051
    %v2181 = vtanh.pop %v2052
    %v2182 = vmul.f32 %v2177, %v2180
    %v2183 = vmul.f32 %v2179, %v2181
    %v2184 = vpack.c.bf16 %v2183, %v2182
    %v2186 = vunpack.c.l.b16 %v2184
    %v2187 = vunpack.c.h.b16 %v2184
    %v2188 = vpack.c.b16 %v2186, %v2186
    %v2189 = vpack.c.b16 %v2187, %v2187
    %2192 = vst [vmem:[#allocation3] sm:$0xf] %v2188
    %2193 = vst [vmem:[#allocation3 + $0x4] sm:$0xf] %v2189
    %2194 = vst [vmem:[#allocation4] sm:$0xff] %v2051
    %2195 = vst [vmem:[#allocation4 + $0x8] sm:$0xff] %v2052
    %s2196 = scalar_lea.vmem [#allocation12], 48
    %2197 = vst [vmem:[%s2196] sm:$0xff] %v2182
    %2198 = vst [vmem:[%s2196 + $0x8] sm:$0xff] %v2183
    %s2199 = scalar_lea.vmem [#allocation6], 128
    %v2200 = vld [vmem:[%s2199] sm:$0xff]
    %v2201 = vld [vmem:[%s2199 + $0x8] sm:$0xff]
    %v2202 = vld [vmem:[%s2199 + $0x10] sm:$0xff]
    %v2203 = vld [vmem:[%s2199 + $0x18] sm:$0xff]
    %v2204 = vld [vmem:[#allocation3] sm:$0xf]
    %v2205 = vld [vmem:[#allocation3 + $0x4] sm:$0xf]
    %v2206 = vld [vmem:[#allocation4] sm:$0xff]
    %v2207 = vld [vmem:[#allocation4 + $0x8] sm:$0xff]
    %v2208 = vld [vmem:[#allocation2 + $0x4] sm:$0xf]
    %v2209 = vld [vmem:[#allocation2 + $0x14] sm:$0xf]
    %v2210 = vld [vmem:[#allocation2 + $0x24] sm:$0xf]
    %v2211 = vld [vmem:[#allocation2 + $0x34] sm:$0xf]
    %v2212 = vld [vmem:[#allocation2 + $0x44] sm:$0xf]
    %v2213 = vld [vmem:[#allocation2 + $0x54] sm:$0xf]
    %v2214 = vld [vmem:[#allocation2 + $0x64] sm:$0xf]
    %v2215 = vld [vmem:[#allocation2 + $0x74] sm:$0xf]
    %v2216 = vld [vmem:[#allocation2 + $0x84] sm:$0xf]
    %v2217 = vld [vmem:[#allocation2 + $0x94] sm:$0xf]
    %v2218 = vld [vmem:[#allocation2 + $0xa4] sm:$0xf]
    %v2219 = vld [vmem:[#allocation2 + $0xb4] sm:$0xf]
    %v2220 = vld [vmem:[#allocation2 + $0xc4] sm:$0xf]
    %v2221 = vld [vmem:[#allocation2 + $0xd4] sm:$0xf]
    %v2222 = vld [vmem:[#allocation2 + $0xe4] sm:$0xf]
    %v2223 = vld [vmem:[#allocation2 + $0xf4] sm:$0xf]
    %v2226 = vunpack.c.l.b16 %v2204
    %v2227 = vunpack.c.l.b16 %v2205
    %v2228 = vpack.c.b16 %v2227, %v2226
    %v2246 = vunpack.c.l.b16 %v2208
    %v2247 = vunpack.c.l.b16 %v2209
    %v2248 = vunpack.c.l.b16 %v2210
    %v2249 = vunpack.c.l.b16 %v2211
    %v2250 = vunpack.c.l.b16 %v2212
    %v2251 = vunpack.c.l.b16 %v2213
    %v2252 = vunpack.c.l.b16 %v2214
    %v2253 = vunpack.c.l.b16 %v2215
    %v2254 = vunpack.c.l.b16 %v2216
    %v2255 = vunpack.c.l.b16 %v2217
    %v2256 = vunpack.c.l.b16 %v2218
    %v2257 = vunpack.c.l.b16 %v2219
    %v2258 = vunpack.c.l.b16 %v2220
    %v2259 = vunpack.c.l.b16 %v2221
    %v2260 = vunpack.c.l.b16 %v2222
    %v2261 = vunpack.c.l.b16 %v2223
    %v2262 = vpack.c.b16 %v2247, %v2246
    %v2263 = vpack.c.b16 %v2249, %v2248
    %v2264 = vpack.c.b16 %v2251, %v2250
    %v2265 = vpack.c.b16 %v2253, %v2252
    %v2266 = vpack.c.b16 %v2255, %v2254
    %v2267 = vpack.c.b16 %v2257, %v2256
    %v2268 = vpack.c.b16 %v2259, %v2258
    %v2269 = vpack.c.b16 %v2261, %v2260
    %2278 = vmatprep.subr.bf16.mxu0 0
    %2279 = vmatpush1.bf16.msra.mxu0 %v2269
    %2280 = vmatprep.subr.bf16.mxu0 0
    %2281 = vmatpush1.bf16.msra.mxu0 %v2268
    %2282 = vmatprep.subr.bf16.mxu0 0
    %2283 = vmatpush1.bf16.msra.mxu0 %v2267
    %2284 = vmatprep.subr.bf16.mxu0 0
    %2285 = vmatpush1.bf16.msra.mxu0 %v2266
    %2286 = vmatprep.subr.bf16.mxu0 0
    %2287 = vmatpush1.bf16.msra.mxu0 %v2265
    %2288 = vmatprep.subr.bf16.mxu0 0
    %2289 = vmatpush1.bf16.msra.mxu0 %v2264
    %2290 = vmatprep.subr.bf16.mxu0 0
    %2291 = vmatpush1.bf16.msra.mxu0 %v2263
    %2292 = vmatprep.subr.bf16.mxu0 0
    %2293 = vmatpush1.bf16.msra.mxu0 %v2262
    %2294 = vmatprep.subr.bf16.mxu0 0
    %2295 = vmatpush2.bf16.msra.mxu0 0
    %2296 = vmatprep.subr.bf16.mxu0 0
    %2297 = vmatpush2.bf16.msra.mxu0 0
    %2298 = vmatprep.subr.bf16.mxu0 0
    %2299 = vmatpush2.bf16.msra.mxu0 0
    %2300 = vmatprep.subr.bf16.mxu0 0
    %2301 = vmatpush2.bf16.msra.mxu0 0
    %2302 = vmatprep.subr.bf16.mxu0 0
    %2303 = vmatpush2.bf16.msra.mxu0 0
    %2304 = vmatprep.subr.bf16.mxu0 0
    %2305 = vmatpush2.bf16.msra.mxu0 0
    %2306 = vmatprep.subr.bf16.mxu0 0
    %2307 = vmatpush2.bf16.msra.mxu0 0
    %2308 = vmatprep.subr.bf16.mxu0 0
    %2309 = vmatpush2.bf16.msra.mxu0 0
    %2310 = vmatprep.mubr.bf16.mxu0 0
    %2311 = vmatmul.mubr.bf16.gmra.mxu0 %v2228
    %v2312 = vpop.f32.mrf.mxu0
    %v2313 = vadd.f32 0.0, %v2312
    %v2314 = vpop.f32.mrf.mxu0
    %v2315 = vpop.f32.mrf.mxu0
    %v2316 = vadd.f32 0.0, %v2315
    %v2317 = vpop.f32.mrf.mxu0
    %2318 = vdwg.mxu0
    %v2321 = vrot.slane %v2200, 4
    %v2322 = vrot.slane %v2202, 4
    %v2325 = vunpack.c.l.bf16 %v2321
    %v2326 = vunpack.c.l.bf16 %v2322
    %v2327 = vadd.f32 %v2325, %v2313
    %v2328 = vadd.f32 %v2326, %v2316
    %v2329 = vxor.u32 %v2327, 2147483648
    %v2330 = vxor.u32 %v2328, 2147483648
    %v2331 = vmul.f32 %v2329, 1.442695
    %v2332 = vpow.pop %v2331
    %v2333 = vmul.f32 %v2330, 1.442695
    %v2334 = vpow.pop %v2333
    %v2335 = vadd.f32 %v2332, 1.0
    %v2336 = vadd.f32 %v2334, 1.0
    %v2337 = vrcp.pop %v2335
    %v2338 = vmul.f32 1.0, %v2337
    %v2339 = vrcp.pop %v2336
    %v2340 = vmul.f32 1.0, %v2339
    %v2341 = vmul.f32 %v2338, %v2206
    %v2342 = vmul.f32 %v2340, %v2207
    %v2343 = vld [vmem:[#allocation2] sm:$0xf]
    %v2344 = vld [vmem:[#allocation2 + $0x10] sm:$0xf]
    %v2345 = vld [vmem:[#allocation2 + $0x20] sm:$0xf]
    %v2346 = vld [vmem:[#allocation2 + $0x30] sm:$0xf]
    %v2347 = vld [vmem:[#allocation2 + $0x40] sm:$0xf]
    %v2348 = vld [vmem:[#allocation2 + $0x50] sm:$0xf]
    %v2349 = vld [vmem:[#allocation2 + $0x60] sm:$0xf]
    %v2350 = vld [vmem:[#allocation2 + $0x70] sm:$0xf]
    %v2351 = vld [vmem:[#allocation2 + $0x80] sm:$0xf]
    %v2352 = vld [vmem:[#allocation2 + $0x90] sm:$0xf]
    %v2353 = vld [vmem:[#allocation2 + $0xa0] sm:$0xf]
    %v2354 = vld [vmem:[#allocation2 + $0xb0] sm:$0xf]
    %v2355 = vld [vmem:[#allocation2 + $0xc0] sm:$0xf]
    %v2356 = vld [vmem:[#allocation2 + $0xd0] sm:$0xf]
    %v2357 = vld [vmem:[#allocation2 + $0xe0] sm:$0xf]
    %v2358 = vld [vmem:[#allocation2 + $0xf0] sm:$0xf]
    %v2375 = vunpack.c.l.b16 %v2343
    %v2376 = vunpack.c.l.b16 %v2344
    %v2377 = vunpack.c.l.b16 %v2345
    %v2378 = vunpack.c.l.b16 %v2346
    %v2379 = vunpack.c.l.b16 %v2347
    %v2380 = vunpack.c.l.b16 %v2348
    %v2381 = vunpack.c.l.b16 %v2349
    %v2382 = vunpack.c.l.b16 %v2350
    %v2383 = vunpack.c.l.b16 %v2351
    %v2384 = vunpack.c.l.b16 %v2352
    %v2385 = vunpack.c.l.b16 %v2353
    %v2386 = vunpack.c.l.b16 %v2354
    %v2387 = vunpack.c.l.b16 %v2355
    %v2388 = vunpack.c.l.b16 %v2356
    %v2389 = vunpack.c.l.b16 %v2357
    %v2390 = vunpack.c.l.b16 %v2358
    %v2391 = vpack.c.b16 %v2376, %v2375
    %v2392 = vpack.c.b16 %v2378, %v2377
    %v2393 = vpack.c.b16 %v2380, %v2379
    %v2394 = vpack.c.b16 %v2382, %v2381
    %v2395 = vpack.c.b16 %v2384, %v2383
    %v2396 = vpack.c.b16 %v2386, %v2385
    %v2397 = vpack.c.b16 %v2388, %v2387
    %v2398 = vpack.c.b16 %v2390, %v2389
    %2407 = vmatprep.subr.bf16.mxu0 0
    %2408 = vmatpush1.bf16.msra.mxu0 %v2398
    %2409 = vmatprep.subr.bf16.mxu0 0
    %2410 = vmatpush1.bf16.msra.mxu0 %v2397
    %2411 = vmatprep.subr.bf16.mxu0 0
    %2412 = vmatpush1.bf16.msra.mxu0 %v2396
    %2413 = vmatprep.subr.bf16.mxu0 0
    %2414 = vmatpush1.bf16.msra.mxu0 %v2395
    %2415 = vmatprep.subr.bf16.mxu0 0
    %2416 = vmatpush1.bf16.msra.mxu0 %v2394
    %2417 = vmatprep.subr.bf16.mxu0 0
    %2418 = vmatpush1.bf16.msra.mxu0 %v2393
    %2419 = vmatprep.subr.bf16.mxu0 0
    %2420 = vmatpush1.bf16.msra.mxu0 %v2392
    %2421 = vmatprep.subr.bf16.mxu0 0
    %2422 = vmatpush1.bf16.msra.mxu0 %v2391
    %2423 = vmatprep.subr.bf16.mxu0 0
    %2424 = vmatpush2.bf16.msra.mxu0 0
    %2425 = vmatprep.subr.bf16.mxu0 0
    %2426 = vmatpush2.bf16.msra.mxu0 0
    %2427 = vmatprep.subr.bf16.mxu0 0
    %2428 = vmatpush2.bf16.msra.mxu0 0
    %2429 = vmatprep.subr.bf16.mxu0 0
    %2430 = vmatpush2.bf16.msra.mxu0 0
    %2431 = vmatprep.subr.bf16.mxu0 0
    %2432 = vmatpush2.bf16.msra.mxu0 0
    %2433 = vmatprep.subr.bf16.mxu0 0
    %2434 = vmatpush2.bf16.msra.mxu0 0
    %2435 = vmatprep.subr.bf16.mxu0 0
    %2436 = vmatpush2.bf16.msra.mxu0 0
    %2437 = vmatprep.subr.bf16.mxu0 0
    %2438 = vmatpush2.bf16.msra.mxu0 0
    %2439 = vmatprep.mubr.bf16.mxu0 0
    %2440 = vmatmul.mubr.bf16.gmra.mxu0 %v2228
    %v2441 = vpop.f32.mrf.mxu0
    %v2442 = vadd.f32 0.0, %v2441
    %v2443 = vpop.f32.mrf.mxu0
    %v2444 = vpop.f32.mrf.mxu0
    %v2445 = vadd.f32 0.0, %v2444
    %v2446 = vpop.f32.mrf.mxu0
    %2447 = vdwg.mxu0
    %v2448 = vunpack.c.l.bf16 %v2200
    %v2449 = vunpack.c.l.bf16 %v2202
    %v2450 = vadd.f32 %v2448, %v2442
    %v2451 = vadd.f32 %v2449, %v2445
    %v2452 = vxor.u32 %v2450, 2147483648
    %v2453 = vxor.u32 %v2451, 2147483648
    %v2454 = vmul.f32 %v2452, 1.442695
    %v2455 = vpow.pop %v2454
    %v2456 = vmul.f32 %v2453, 1.442695
    %v2457 = vpow.pop %v2456
    %v2458 = vadd.f32 %v2455, 1.0
    %v2459 = vadd.f32 %v2457, 1.0
    %v2460 = vrcp.pop %v2458
    %v2461 = vmul.f32 1.0, %v2460
    %v2462 = vrcp.pop %v2459
    %v2463 = vmul.f32 1.0, %v2462
    %v2464 = vld [vmem:[#allocation2 + $0x8] sm:$0xf]
    %v2465 = vld [vmem:[#allocation2 + $0x18] sm:$0xf]
    %v2466 = vld [vmem:[#allocation2 + $0x28] sm:$0xf]
    %v2467 = vld [vmem:[#allocation2 + $0x38] sm:$0xf]
    %v2468 = vld [vmem:[#allocation2 + $0x48] sm:$0xf]
    %v2469 = vld [vmem:[#allocation2 + $0x58] sm:$0xf]
    %v2470 = vld [vmem:[#allocation2 + $0x68] sm:$0xf]
    %v2471 = vld [vmem:[#allocation2 + $0x78] sm:$0xf]
    %v2472 = vld [vmem:[#allocation2 + $0x88] sm:$0xf]
    %v2473 = vld [vmem:[#allocation2 + $0x98] sm:$0xf]
    %v2474 = vld [vmem:[#allocation2 + $0xa8] sm:$0xf]
    %v2475 = vld [vmem:[#allocation2 + $0xb8] sm:$0xf]
    %v2476 = vld [vmem:[#allocation2 + $0xc8] sm:$0xf]
    %v2477 = vld [vmem:[#allocation2 + $0xd8] sm:$0xf]
    %v2478 = vld [vmem:[#allocation2 + $0xe8] sm:$0xf]
    %v2479 = vld [vmem:[#allocation2 + $0xf8] sm:$0xf]
    %v2496 = vunpack.c.l.b16 %v2464
    %v2497 = vunpack.c.l.b16 %v2465
    %v2498 = vunpack.c.l.b16 %v2466
    %v2499 = vunpack.c.l.b16 %v2467
    %v2500 = vunpack.c.l.b16 %v2468
    %v2501 = vunpack.c.l.b16 %v2469
    %v2502 = vunpack.c.l.b16 %v2470
    %v2503 = vunpack.c.l.b16 %v2471
    %v2504 = vunpack.c.l.b16 %v2472
    %v2505 = vunpack.c.l.b16 %v2473
    %v2506 = vunpack.c.l.b16 %v2474
    %v2507 = vunpack.c.l.b16 %v2475
    %v2508 = vunpack.c.l.b16 %v2476
    %v2509 = vunpack.c.l.b16 %v2477
    %v2510 = vunpack.c.l.b16 %v2478
    %v2511 = vunpack.c.l.b16 %v2479
    %v2512 = vpack.c.b16 %v2497, %v2496
    %v2513 = vpack.c.b16 %v2499, %v2498
    %v2514 = vpack.c.b16 %v2501, %v2500
    %v2515 = vpack.c.b16 %v2503, %v2502
    %v2516 = vpack.c.b16 %v2505, %v2504
    %v2517 = vpack.c.b16 %v2507, %v2506
    %v2518 = vpack.c.b16 %v2509, %v2508
    %v2519 = vpack.c.b16 %v2511, %v2510
    %2528 = vmatprep.subr.bf16.mxu0 0
    %2529 = vmatpush1.bf16.msra.mxu0 %v2519
    %2530 = vmatprep.subr.bf16.mxu0 0
    %2531 = vmatpush1.bf16.msra.mxu0 %v2518
    %2532 = vmatprep.subr.bf16.mxu0 0
    %2533 = vmatpush1.bf16.msra.mxu0 %v2517
    %2534 = vmatprep.subr.bf16.mxu0 0
    %2535 = vmatpush1.bf16.msra.mxu0 %v2516
    %2536 = vmatprep.subr.bf16.mxu0 0
    %2537 = vmatpush1.bf16.msra.mxu0 %v2515
    %2538 = vmatprep.subr.bf16.mxu0 0
    %2539 = vmatpush1.bf16.msra.mxu0 %v2514
    %2540 = vmatprep.subr.bf16.mxu0 0
    %2541 = vmatpush1.bf16.msra.mxu0 %v2513
    %2542 = vmatprep.subr.bf16.mxu0 0
    %2543 = vmatpush1.bf16.msra.mxu0 %v2512
    %2544 = vmatprep.subr.bf16.mxu0 0
    %2545 = vmatpush2.bf16.msra.mxu0 0
    %2546 = vmatprep.subr.bf16.mxu0 0
    %2547 = vmatpush2.bf16.msra.mxu0 0
    %2548 = vmatprep.subr.bf16.mxu0 0
    %2549 = vmatpush2.bf16.msra.mxu0 0
    %2550 = vmatprep.subr.bf16.mxu0 0
    %2551 = vmatpush2.bf16.msra.mxu0 0
    %2552 = vmatprep.subr.bf16.mxu0 0
    %2553 = vmatpush2.bf16.msra.mxu0 0
    %2554 = vmatprep.subr.bf16.mxu0 0
    %2555 = vmatpush2.bf16.msra.mxu0 0
    %2556 = vmatprep.subr.bf16.mxu0 0
    %2557 = vmatpush2.bf16.msra.mxu0 0
    %2558 = vmatprep.subr.bf16.mxu0 0
    %2559 = vmatpush2.bf16.msra.mxu0 0
    %2560 = vmatprep.mubr.bf16.mxu0 0
    %2561 = vmatmul.mubr.bf16.gmra.mxu0 %v2228
    %v2562 = vpop.f32.mrf.mxu0
    %v2563 = vadd.f32 0.0, %v2562
    %v2564 = vpop.f32.mrf.mxu0
    %v2565 = vpop.f32.mrf.mxu0
    %v2566 = vadd.f32 0.0, %v2565
    %v2567 = vpop.f32.mrf.mxu0
    %2568 = vdwg.mxu0
    %v2569 = vunpack.c.l.bf16 %v2201
    %v2570 = vunpack.c.l.bf16 %v2203
    %v2571 = vadd.f32 %v2569, %v2563
    %v2572 = vadd.f32 %v2570, %v2566
    %v2573 = vtanh.pop %v2571
    %v2574 = vtanh.pop %v2572
    %v2575 = vmul.f32 %v2461, %v2573
    %v2576 = vmul.f32 %v2463, %v2574
    %v2577 = vadd.f32 %v2341, %v2575
    %v2578 = vadd.f32 %v2342, %v2576
    %v2579 = vld [vmem:[#allocation2 + $0xc] sm:$0xf]
    %v2580 = vld [vmem:[#allocation2 + $0x1c] sm:$0xf]
    %v2581 = vld [vmem:[#allocation2 + $0x2c] sm:$0xf]
    %v2582 = vld [vmem:[#allocation2 + $0x3c] sm:$0xf]
    %v2583 = vld [vmem:[#allocation2 + $0x4c] sm:$0xf]
    %v2584 = vld [vmem:[#allocation2 + $0x5c] sm:$0xf]
    %v2585 = vld [vmem:[#allocation2 + $0x6c] sm:$0xf]
    %v2586 = vld [vmem:[#allocation2 + $0x7c] sm:$0xf]
    %v2587 = vld [vmem:[#allocation2 + $0x8c] sm:$0xf]
    %v2588 = vld [vmem:[#allocation2 + $0x9c] sm:$0xf]
    %v2589 = vld [vmem:[#allocation2 + $0xac] sm:$0xf]
    %v2590 = vld [vmem:[#allocation2 + $0xbc] sm:$0xf]
    %v2591 = vld [vmem:[#allocation2 + $0xcc] sm:$0xf]
    %v2592 = vld [vmem:[#allocation2 + $0xdc] sm:$0xf]
    %v2593 = vld [vmem:[#allocation2 + $0xec] sm:$0xf]
    %v2594 = vld [vmem:[#allocation2 + $0xfc] sm:$0xf]
    %v2611 = vunpack.c.l.b16 %v2579
    %v2612 = vunpack.c.l.b16 %v2580
    %v2613 = vunpack.c.l.b16 %v2581
    %v2614 = vunpack.c.l.b16 %v2582
    %v2615 = vunpack.c.l.b16 %v2583
    %v2616 = vunpack.c.l.b16 %v2584
    %v2617 = vunpack.c.l.b16 %v2585
    %v2618 = vunpack.c.l.b16 %v2586
    %v2619 = vunpack.c.l.b16 %v2587
    %v2620 = vunpack.c.l.b16 %v2588
    %v2621 = vunpack.c.l.b16 %v2589
    %v2622 = vunpack.c.l.b16 %v2590
    %v2623 = vunpack.c.l.b16 %v2591
    %v2624 = vunpack.c.l.b16 %v2592
    %v2625 = vunpack.c.l.b16 %v2593
    %v2626 = vunpack.c.l.b16 %v2594
    %v2627 = vpack.c.b16 %v2612, %v2611
    %v2628 = vpack.c.b16 %v2614, %v2613
    %v2629 = vpack.c.b16 %v2616, %v2615
    %v2630 = vpack.c.b16 %v2618, %v2617
    %v2631 = vpack.c.b16 %v2620, %v2619
    %v2632 = vpack.c.b16 %v2622, %v2621
    %v2633 = vpack.c.b16 %v2624, %v2623
    %v2634 = vpack.c.b16 %v2626, %v2625
    %2643 = vmatprep.subr.bf16.mxu0 0
    %2644 = vmatpush1.bf16.msra.mxu0 %v2634
    %2645 = vmatprep.subr.bf16.mxu0 0
    %2646 = vmatpush1.bf16.msra.mxu0 %v2633
    %2647 = vmatprep.subr.bf16.mxu0 0
    %2648 = vmatpush1.bf16.msra.mxu0 %v2632
    %2649 = vmatprep.subr.bf16.mxu0 0
    %2650 = vmatpush1.bf16.msra.mxu0 %v2631
    %2651 = vmatprep.subr.bf16.mxu0 0
    %2652 = vmatpush1.bf16.msra.mxu0 %v2630
    %2653 = vmatprep.subr.bf16.mxu0 0
    %2654 = vmatpush1.bf16.msra.mxu0 %v2629
    %2655 = vmatprep.subr.bf16.mxu0 0
    %2656 = vmatpush1.bf16.msra.mxu0 %v2628
    %2657 = vmatprep.subr.bf16.mxu0 0
    %2658 = vmatpush1.bf16.msra.mxu0 %v2627
    %2659 = vmatprep.subr.bf16.mxu0 0
    %2660 = vmatpush2.bf16.msra.mxu0 0
    %2661 = vmatprep.subr.bf16.mxu0 0
    %2662 = vmatpush2.bf16.msra.mxu0 0
    %2663 = vmatprep.subr.bf16.mxu0 0
    %2664 = vmatpush2.bf16.msra.mxu0 0
    %2665 = vmatprep.subr.bf16.mxu0 0
    %2666 = vmatpush2.bf16.msra.mxu0 0
    %2667 = vmatprep.subr.bf16.mxu0 0
    %2668 = vmatpush2.bf16.msra.mxu0 0
    %2669 = vmatprep.subr.bf16.mxu0 0
    %2670 = vmatpush2.bf16.msra.mxu0 0
    %2671 = vmatprep.subr.bf16.mxu0 0
    %2672 = vmatpush2.bf16.msra.mxu0 0
    %2673 = vmatprep.subr.bf16.mxu0 0
    %2674 = vmatpush2.bf16.msra.mxu0 0
    %2675 = vmatprep.mubr.bf16.mxu0 0
    %2676 = vmatmul.mubr.bf16.gmra.mxu0 %v2228
    %v2677 = vpop.f32.mrf.mxu0
    %v2678 = vadd.f32 0.0, %v2677
    %v2679 = vpop.f32.mrf.mxu0
    %v2680 = vpop.f32.mrf.mxu0
    %v2681 = vadd.f32 0.0, %v2680
    %v2682 = vpop.f32.mrf.mxu0
    %2683 = vdwg.mxu0
    %v2686 = vrot.slane %v2201, 4
    %v2687 = vrot.slane %v2203, 4
    %v2690 = vunpack.c.l.bf16 %v2686
    %v2691 = vunpack.c.l.bf16 %v2687
    %v2692 = vadd.f32 %v2690, %v2678
    %v2693 = vadd.f32 %v2691, %v2681
    %v2694 = vxor.u32 %v2692, 2147483648
    %v2695 = vxor.u32 %v2693, 2147483648
    %v2696 = vmul.f32 %v2694, 1.442695
    %v2697 = vpow.pop %v2696
    %v2698 = vmul.f32 %v2695, 1.442695
    %v2699 = vpow.pop %v2698
    %v2700 = vadd.f32 %v2697, 1.0
    %v2701 = vadd.f32 %v2699, 1.0
    %v2702 = vrcp.pop %v2700
    %v2703 = vmul.f32 1.0, %v2702
    %v2704 = vrcp.pop %v2701
    %v2705 = vmul.f32 1.0, %v2704
    %v2706 = vtanh.pop %v2577
    %v2707 = vtanh.pop %v2578
    %v2708 = vmul.f32 %v2703, %v2706
    %v2709 = vmul.f32 %v2705, %v2707
    %v2710 = vpack.c.bf16 %v2709, %v2708
    %v2712 = vunpack.c.l.b16 %v2710
    %v2713 = vunpack.c.h.b16 %v2710
    %v2714 = vpack.c.b16 %v2712, %v2712
    %v2715 = vpack.c.b16 %v2713, %v2713
    %2718 = vst [vmem:[#allocation3] sm:$0xf] %v2714
    %2719 = vst [vmem:[#allocation3 + $0x4] sm:$0xf] %v2715
    %2720 = vst [vmem:[#allocation4] sm:$0xff] %v2577
    %2721 = vst [vmem:[#allocation4 + $0x8] sm:$0xff] %v2578
    %s2722 = scalar_lea.vmem [#allocation12], 64
    %2723 = vst [vmem:[%s2722] sm:$0xff] %v2708
    %2724 = vst [vmem:[%s2722 + $0x8] sm:$0xff] %v2709
    %s2725 = scalar_lea.vmem [#allocation6], 160
    %v2726 = vld [vmem:[%s2725] sm:$0xff]
    %v2727 = vld [vmem:[%s2725 + $0x8] sm:$0xff]
    %v2728 = vld [vmem:[%s2725 + $0x10] sm:$0xff]
    %v2729 = vld [vmem:[%s2725 + $0x18] sm:$0xff]
    %v2730 = vld [vmem:[#allocation3] sm:$0xf]
    %v2731 = vld [vmem:[#allocation3 + $0x4] sm:$0xf]
    %v2732 = vld [vmem:[#allocation4] sm:$0xff]
    %v2733 = vld [vmem:[#allocation4 + $0x8] sm:$0xff]
    %v2734 = vld [vmem:[#allocation2 + $0x4] sm:$0xf]
    %v2735 = vld [vmem:[#allocation2 + $0x14] sm:$0xf]
    %v2736 = vld [vmem:[#allocation2 + $0x24] sm:$0xf]
    %v2737 = vld [vmem:[#allocation2 + $0x34] sm:$0xf]
    %v2738 = vld [vmem:[#allocation2 + $0x44] sm:$0xf]
    %v2739 = vld [vmem:[#allocation2 + $0x54] sm:$0xf]
    %v2740 = vld [vmem:[#allocation2 + $0x64] sm:$0xf]
    %v2741 = vld [vmem:[#allocation2 + $0x74] sm:$0xf]
    %v2742 = vld [vmem:[#allocation2 + $0x84] sm:$0xf]
    %v2743 = vld [vmem:[#allocation2 + $0x94] sm:$0xf]
    %v2744 = vld [vmem:[#allocation2 + $0xa4] sm:$0xf]
    %v2745 = vld [vmem:[#allocation2 + $0xb4] sm:$0xf]
    %v2746 = vld [vmem:[#allocation2 + $0xc4] sm:$0xf]
    %v2747 = vld [vmem:[#allocation2 + $0xd4] sm:$0xf]
    %v2748 = vld [vmem:[#allocation2 + $0xe4] sm:$0xf]
    %v2749 = vld [vmem:[#allocation2 + $0xf4] sm:$0xf]
    %v2752 = vunpack.c.l.b16 %v2730
    %v2753 = vunpack.c.l.b16 %v2731
    %v2754 = vpack.c.b16 %v2753, %v2752
    %v2772 = vunpack.c.l.b16 %v2734
    %v2773 = vunpack.c.l.b16 %v2735
    %v2774 = vunpack.c.l.b16 %v2736
    %v2775 = vunpack.c.l.b16 %v2737
    %v2776 = vunpack.c.l.b16 %v2738
    %v2777 = vunpack.c.l.b16 %v2739
    %v2778 = vunpack.c.l.b16 %v2740
    %v2779 = vunpack.c.l.b16 %v2741
    %v2780 = vunpack.c.l.b16 %v2742
    %v2781 = vunpack.c.l.b16 %v2743
    %v2782 = vunpack.c.l.b16 %v2744
    %v2783 = vunpack.c.l.b16 %v2745
    %v2784 = vunpack.c.l.b16 %v2746
    %v2785 = vunpack.c.l.b16 %v2747
    %v2786 = vunpack.c.l.b16 %v2748
    %v2787 = vunpack.c.l.b16 %v2749
    %v2788 = vpack.c.b16 %v2773, %v2772
    %v2789 = vpack.c.b16 %v2775, %v2774
    %v2790 = vpack.c.b16 %v2777, %v2776
    %v2791 = vpack.c.b16 %v2779, %v2778
    %v2792 = vpack.c.b16 %v2781, %v2780
    %v2793 = vpack.c.b16 %v2783, %v2782
    %v2794 = vpack.c.b16 %v2785, %v2784
    %v2795 = vpack.c.b16 %v2787, %v2786
    %2804 = vmatprep.subr.bf16.mxu0 0
    %2805 = vmatpush1.bf16.msra.mxu0 %v2795
    %2806 = vmatprep.subr.bf16.mxu0 0
    %2807 = vmatpush1.bf16.msra.mxu0 %v2794
    %2808 = vmatprep.subr.bf16.mxu0 0
    %2809 = vmatpush1.bf16.msra.mxu0 %v2793
    %2810 = vmatprep.subr.bf16.mxu0 0
    %2811 = vmatpush1.bf16.msra.mxu0 %v2792
    %2812 = vmatprep.subr.bf16.mxu0 0
    %2813 = vmatpush1.bf16.msra.mxu0 %v2791
    %2814 = vmatprep.subr.bf16.mxu0 0
    %2815 = vmatpush1.bf16.msra.mxu0 %v2790
    %2816 = vmatprep.subr.bf16.mxu0 0
    %2817 = vmatpush1.bf16.msra.mxu0 %v2789
    %2818 = vmatprep.subr.bf16.mxu0 0
    %2819 = vmatpush1.bf16.msra.mxu0 %v2788
    %2820 = vmatprep.subr.bf16.mxu0 0
    %2821 = vmatpush2.bf16.msra.mxu0 0
    %2822 = vmatprep.subr.bf16.mxu0 0
    %2823 = vmatpush2.bf16.msra.mxu0 0
    %2824 = vmatprep.subr.bf16.mxu0 0
    %2825 = vmatpush2.bf16.msra.mxu0 0
    %2826 = vmatprep.subr.bf16.mxu0 0
    %2827 = vmatpush2.bf16.msra.mxu0 0
    %2828 = vmatprep.subr.bf16.mxu0 0
    %2829 = vmatpush2.bf16.msra.mxu0 0
    %2830 = vmatprep.subr.bf16.mxu0 0
    %2831 = vmatpush2.bf16.msra.mxu0 0
    %2832 = vmatprep.subr.bf16.mxu0 0
    %2833 = vmatpush2.bf16.msra.mxu0 0
    %2834 = vmatprep.subr.bf16.mxu0 0
    %2835 = vmatpush2.bf16.msra.mxu0 0
    %2836 = vmatprep.mubr.bf16.mxu0 0
    %2837 = vmatmul.mubr.bf16.gmra.mxu0 %v2754
    %v2838 = vpop.f32.mrf.mxu0
    %v2839 = vadd.f32 0.0, %v2838
    %v2840 = vpop.f32.mrf.mxu0
    %v2841 = vpop.f32.mrf.mxu0
    %v2842 = vadd.f32 0.0, %v2841
    %v2843 = vpop.f32.mrf.mxu0
    %2844 = vdwg.mxu0
    %v2847 = vrot.slane %v2726, 4
    %v2848 = vrot.slane %v2728, 4
    %v2851 = vunpack.c.l.bf16 %v2847
    %v2852 = vunpack.c.l.bf16 %v2848
    %v2853 = vadd.f32 %v2851, %v2839
    %v2854 = vadd.f32 %v2852, %v2842
    %v2855 = vxor.u32 %v2853, 2147483648
    %v2856 = vxor.u32 %v2854, 2147483648
    %v2857 = vmul.f32 %v2855, 1.442695
    %v2858 = vpow.pop %v2857
    %v2859 = vmul.f32 %v2856, 1.442695
    %v2860 = vpow.pop %v2859
    %v2861 = vadd.f32 %v2858, 1.0
    %v2862 = vadd.f32 %v2860, 1.0
    %v2863 = vrcp.pop %v2861
    %v2864 = vmul.f32 1.0, %v2863
    %v2865 = vrcp.pop %v2862
    %v2866 = vmul.f32 1.0, %v2865
    %v2867 = vmul.f32 %v2864, %v2732
    %v2868 = vmul.f32 %v2866, %v2733
    %v2869 = vld [vmem:[#allocation2] sm:$0xf]
    %v2870 = vld [vmem:[#allocation2 + $0x10] sm:$0xf]
    %v2871 = vld [vmem:[#allocation2 + $0x20] sm:$0xf]
    %v2872 = vld [vmem:[#allocation2 + $0x30] sm:$0xf]
    %v2873 = vld [vmem:[#allocation2 + $0x40] sm:$0xf]
    %v2874 = vld [vmem:[#allocation2 + $0x50] sm:$0xf]
    %v2875 = vld [vmem:[#allocation2 + $0x60] sm:$0xf]
    %v2876 = vld [vmem:[#allocation2 + $0x70] sm:$0xf]
    %v2877 = vld [vmem:[#allocation2 + $0x80] sm:$0xf]
    %v2878 = vld [vmem:[#allocation2 + $0x90] sm:$0xf]
    %v2879 = vld [vmem:[#allocation2 + $0xa0] sm:$0xf]
    %v2880 = vld [vmem:[#allocation2 + $0xb0] sm:$0xf]
    %v2881 = vld [vmem:[#allocation2 + $0xc0] sm:$0xf]
    %v2882 = vld [vmem:[#allocation2 + $0xd0] sm:$0xf]
    %v2883 = vld [vmem:[#allocation2 + $0xe0] sm:$0xf]
    %v2884 = vld [vmem:[#allocation2 + $0xf0] sm:$0xf]
    %v2901 = vunpack.c.l.b16 %v2869
    %v2902 = vunpack.c.l.b16 %v2870
    %v2903 = vunpack.c.l.b16 %v2871
    %v2904 = vunpack.c.l.b16 %v2872
    %v2905 = vunpack.c.l.b16 %v2873
    %v2906 = vunpack.c.l.b16 %v2874
    %v2907 = vunpack.c.l.b16 %v2875
    %v2908 = vunpack.c.l.b16 %v2876
    %v2909 = vunpack.c.l.b16 %v2877
    %v2910 = vunpack.c.l.b16 %v2878
    %v2911 = vunpack.c.l.b16 %v2879
    %v2912 = vunpack.c.l.b16 %v2880
    %v2913 = vunpack.c.l.b16 %v2881
    %v2914 = vunpack.c.l.b16 %v2882
    %v2915 = vunpack.c.l.b16 %v2883
    %v2916 = vunpack.c.l.b16 %v2884
    %v2917 = vpack.c.b16 %v2902, %v2901
    %v2918 = vpack.c.b16 %v2904, %v2903
    %v2919 = vpack.c.b16 %v2906, %v2905
    %v2920 = vpack.c.b16 %v2908, %v2907
    %v2921 = vpack.c.b16 %v2910, %v2909
    %v2922 = vpack.c.b16 %v2912, %v2911
    %v2923 = vpack.c.b16 %v2914, %v2913
    %v2924 = vpack.c.b16 %v2916, %v2915
    %2933 = vmatprep.subr.bf16.mxu0 0
    %2934 = vmatpush1.bf16.msra.mxu0 %v2924
    %2935 = vmatprep.subr.bf16.mxu0 0
    %2936 = vmatpush1.bf16.msra.mxu0 %v2923
    %2937 = vmatprep.subr.bf16.mxu0 0
    %2938 = vmatpush1.bf16.msra.mxu0 %v2922
    %2939 = vmatprep.subr.bf16.mxu0 0
    %2940 = vmatpush1.bf16.msra.mxu0 %v2921
    %2941 = vmatprep.subr.bf16.mxu0 0
    %2942 = vmatpush1.bf16.msra.mxu0 %v2920
    %2943 = vmatprep.subr.bf16.mxu0 0
    %2944 = vmatpush1.bf16.msra.mxu0 %v2919
    %2945 = vmatprep.subr.bf16.mxu0 0
    %2946 = vmatpush1.bf16.msra.mxu0 %v2918
    %2947 = vmatprep.subr.bf16.mxu0 0
    %2948 = vmatpush1.bf16.msra.mxu0 %v2917
    %2949 = vmatprep.subr.bf16.mxu0 0
    %2950 = vmatpush2.bf16.msra.mxu0 0
    %2951 = vmatprep.subr.bf16.mxu0 0
    %2952 = vmatpush2.bf16.msra.mxu0 0
    %2953 = vmatprep.subr.bf16.mxu0 0
    %2954 = vmatpush2.bf16.msra.mxu0 0
    %2955 = vmatprep.subr.bf16.mxu0 0
    %2956 = vmatpush2.bf16.msra.mxu0 0
    %2957 = vmatprep.subr.bf16.mxu0 0
    %2958 = vmatpush2.bf16.msra.mxu0 0
    %2959 = vmatprep.subr.bf16.mxu0 0
    %2960 = vmatpush2.bf16.msra.mxu0 0
    %2961 = vmatprep.subr.bf16.mxu0 0
    %2962 = vmatpush2.bf16.msra.mxu0 0
    %2963 = vmatprep.subr.bf16.mxu0 0
    %2964 = vmatpush2.bf16.msra.mxu0 0
    %2965 = vmatprep.mubr.bf16.mxu0 0
    %2966 = vmatmul.mubr.bf16.gmra.mxu0 %v2754
    %v2967 = vpop.f32.mrf.mxu0
    %v2968 = vadd.f32 0.0, %v2967
    %v2969 = vpop.f32.mrf.mxu0
    %v2970 = vpop.f32.mrf.mxu0
    %v2971 = vadd.f32 0.0, %v2970
    %v2972 = vpop.f32.mrf.mxu0
    %2973 = vdwg.mxu0
    %v2974 = vunpack.c.l.bf16 %v2726
    %v2975 = vunpack.c.l.bf16 %v2728
    %v2976 = vadd.f32 %v2974, %v2968
    %v2977 = vadd.f32 %v2975, %v2971
    %v2978 = vxor.u32 %v2976, 2147483648
    %v2979 = vxor.u32 %v2977, 2147483648
    %v2980 = vmul.f32 %v2978, 1.442695
    %v2981 = vpow.pop %v2980
    %v2982 = vmul.f32 %v2979, 1.442695
    %v2983 = vpow.pop %v2982
    %v2984 = vadd.f32 %v2981, 1.0
    %v2985 = vadd.f32 %v2983, 1.0
    %v2986 = vrcp.pop %v2984
    %v2987 = vmul.f32 1.0, %v2986
    %v2988 = vrcp.pop %v2985
    %v2989 = vmul.f32 1.0, %v2988
    %v2990 = vld [vmem:[#allocation2 + $0x8] sm:$0xf]
    %v2991 = vld [vmem:[#allocation2 + $0x18] sm:$0xf]
    %v2992 = vld [vmem:[#allocation2 + $0x28] sm:$0xf]
    %v2993 = vld [vmem:[#allocation2 + $0x38] sm:$0xf]
    %v2994 = vld [vmem:[#allocation2 + $0x48] sm:$0xf]
    %v2995 = vld [vmem:[#allocation2 + $0x58] sm:$0xf]
    %v2996 = vld [vmem:[#allocation2 + $0x68] sm:$0xf]
    %v2997 = vld [vmem:[#allocation2 + $0x78] sm:$0xf]
    %v2998 = vld [vmem:[#allocation2 + $0x88] sm:$0xf]
    %v2999 = vld [vmem:[#allocation2 + $0x98] sm:$0xf]
    %v3000 = vld [vmem:[#allocation2 + $0xa8] sm:$0xf]
    %v3001 = vld [vmem:[#allocation2 + $0xb8] sm:$0xf]
    %v3002 = vld [vmem:[#allocation2 + $0xc8] sm:$0xf]
    %v3003 = vld [vmem:[#allocation2 + $0xd8] sm:$0xf]
    %v3004 = vld [vmem:[#allocation2 + $0xe8] sm:$0xf]
    %v3005 = vld [vmem:[#allocation2 + $0xf8] sm:$0xf]
    %v3022 = vunpack.c.l.b16 %v2990
    %v3023 = vunpack.c.l.b16 %v2991
    %v3024 = vunpack.c.l.b16 %v2992
    %v3025 = vunpack.c.l.b16 %v2993
    %v3026 = vunpack.c.l.b16 %v2994
    %v3027 = vunpack.c.l.b16 %v2995
    %v3028 = vunpack.c.l.b16 %v2996
    %v3029 = vunpack.c.l.b16 %v2997
    %v3030 = vunpack.c.l.b16 %v2998
    %v3031 = vunpack.c.l.b16 %v2999
    %v3032 = vunpack.c.l.b16 %v3000
    %v3033 = vunpack.c.l.b16 %v3001
    %v3034 = vunpack.c.l.b16 %v3002
    %v3035 = vunpack.c.l.b16 %v3003
    %v3036 = vunpack.c.l.b16 %v3004
    %v3037 = vunpack.c.l.b16 %v3005
    %v3038 = vpack.c.b16 %v3023, %v3022
    %v3039 = vpack.c.b16 %v3025, %v3024
    %v3040 = vpack.c.b16 %v3027, %v3026
    %v3041 = vpack.c.b16 %v3029, %v3028
    %v3042 = vpack.c.b16 %v3031, %v3030
    %v3043 = vpack.c.b16 %v3033, %v3032
    %v3044 = vpack.c.b16 %v3035, %v3034
    %v3045 = vpack.c.b16 %v3037, %v3036
    %3054 = vmatprep.subr.bf16.mxu0 0
    %3055 = vmatpush1.bf16.msra.mxu0 %v3045
    %3056 = vmatprep.subr.bf16.mxu0 0
    %3057 = vmatpush1.bf16.msra.mxu0 %v3044
    %3058 = vmatprep.subr.bf16.mxu0 0
    %3059 = vmatpush1.bf16.msra.mxu0 %v3043
    %3060 = vmatprep.subr.bf16.mxu0 0
    %3061 = vmatpush1.bf16.msra.mxu0 %v3042
    %3062 = vmatprep.subr.bf16.mxu0 0
    %3063 = vmatpush1.bf16.msra.mxu0 %v3041
    %3064 = vmatprep.subr.bf16.mxu0 0
    %3065 = vmatpush1.bf16.msra.mxu0 %v3040
    %3066 = vmatprep.subr.bf16.mxu0 0
    %3067 = vmatpush1.bf16.msra.mxu0 %v3039
    %3068 = vmatprep.subr.bf16.mxu0 0
    %3069 = vmatpush1.bf16.msra.mxu0 %v3038
    %3070 = vmatprep.subr.bf16.mxu0 0
    %3071 = vmatpush2.bf16.msra.mxu0 0
    %3072 = vmatprep.subr.bf16.mxu0 0
    %3073 = vmatpush2.bf16.msra.mxu0 0
    %3074 = vmatprep.subr.bf16.mxu0 0
    %3075 = vmatpush2.bf16.msra.mxu0 0
    %3076 = vmatprep.subr.bf16.mxu0 0
    %3077 = vmatpush2.bf16.msra.mxu0 0
    %3078 = vmatprep.subr.bf16.mxu0 0
    %3079 = vmatpush2.bf16.msra.mxu0 0
    %3080 = vmatprep.subr.bf16.mxu0 0
    %3081 = vmatpush2.bf16.msra.mxu0 0
    %3082 = vmatprep.subr.bf16.mxu0 0
    %3083 = vmatpush2.bf16.msra.mxu0 0
    %3084 = vmatprep.subr.bf16.mxu0 0
    %3085 = vmatpush2.bf16.msra.mxu0 0
    %3086 = vmatprep.mubr.bf16.mxu0 0
    %3087 = vmatmul.mubr.bf16.gmra.mxu0 %v2754
    %v3088 = vpop.f32.mrf.mxu0
    %v3089 = vadd.f32 0.0, %v3088
    %v3090 = vpop.f32.mrf.mxu0
    %v3091 = vpop.f32.mrf.mxu0
    %v3092 = vadd.f32 0.0, %v3091
    %v3093 = vpop.f32.mrf.mxu0
    %3094 = vdwg.mxu0
    %v3095 = vunpack.c.l.bf16 %v2727
    %v3096 = vunpack.c.l.bf16 %v2729
    %v3097 = vadd.f32 %v3095, %v3089
    %v3098 = vadd.f32 %v3096, %v3092
    %v3099 = vtanh.pop %v3097
    %v3100 = vtanh.pop %v3098
    %v3101 = vmul.f32 %v2987, %v3099
    %v3102 = vmul.f32 %v2989, %v3100
    %v3103 = vadd.f32 %v2867, %v3101
    %v3104 = vadd.f32 %v2868, %v3102
    %v3105 = vld [vmem:[#allocation2 + $0xc] sm:$0xf]
    %v3106 = vld [vmem:[#allocation2 + $0x1c] sm:$0xf]
    %v3107 = vld [vmem:[#allocation2 + $0x2c] sm:$0xf]
    %v3108 = vld [vmem:[#allocation2 + $0x3c] sm:$0xf]
    %v3109 = vld [vmem:[#allocation2 + $0x4c] sm:$0xf]
    %v3110 = vld [vmem:[#allocation2 + $0x5c] sm:$0xf]
    %v3111 = vld [vmem:[#allocation2 + $0x6c] sm:$0xf]
    %v3112 = vld [vmem:[#allocation2 + $0x7c] sm:$0xf]
    %v3113 = vld [vmem:[#allocation2 + $0x8c] sm:$0xf]
    %v3114 = vld [vmem:[#allocation2 + $0x9c] sm:$0xf]
    %v3115 = vld [vmem:[#allocation2 + $0xac] sm:$0xf]
    %v3116 = vld [vmem:[#allocation2 + $0xbc] sm:$0xf]
    %v3117 = vld [vmem:[#allocation2 + $0xcc] sm:$0xf]
    %v3118 = vld [vmem:[#allocation2 + $0xdc] sm:$0xf]
    %v3119 = vld [vmem:[#allocation2 + $0xec] sm:$0xf]
    %v3120 = vld [vmem:[#allocation2 + $0xfc] sm:$0xf]
    %v3137 = vunpack.c.l.b16 %v3105
    %v3138 = vunpack.c.l.b16 %v3106
    %v3139 = vunpack.c.l.b16 %v3107
    %v3140 = vunpack.c.l.b16 %v3108
    %v3141 = vunpack.c.l.b16 %v3109
    %v3142 = vunpack.c.l.b16 %v3110
    %v3143 = vunpack.c.l.b16 %v3111
    %v3144 = vunpack.c.l.b16 %v3112
    %v3145 = vunpack.c.l.b16 %v3113
    %v3146 = vunpack.c.l.b16 %v3114
    %v3147 = vunpack.c.l.b16 %v3115
    %v3148 = vunpack.c.l.b16 %v3116
    %v3149 = vunpack.c.l.b16 %v3117
    %v3150 = vunpack.c.l.b16 %v3118
    %v3151 = vunpack.c.l.b16 %v3119
    %v3152 = vunpack.c.l.b16 %v3120
    %v3153 = vpack.c.b16 %v3138, %v3137
    %v3154 = vpack.c.b16 %v3140, %v3139
    %v3155 = vpack.c.b16 %v3142, %v3141
    %v3156 = vpack.c.b16 %v3144, %v3143
    %v3157 = vpack.c.b16 %v3146, %v3145
    %v3158 = vpack.c.b16 %v3148, %v3147
    %v3159 = vpack.c.b16 %v3150, %v3149
    %v3160 = vpack.c.b16 %v3152, %v3151
    %3169 = vmatprep.subr.bf16.mxu0 0
    %3170 = vmatpush1.bf16.msra.mxu0 %v3160
    %3171 = vmatprep.subr.bf16.mxu0 0
    %3172 = vmatpush1.bf16.msra.mxu0 %v3159
    %3173 = vmatprep.subr.bf16.mxu0 0
    %3174 = vmatpush1.bf16.msra.mxu0 %v3158
    %3175 = vmatprep.subr.bf16.mxu0 0
    %3176 = vmatpush1.bf16.msra.mxu0 %v3157
    %3177 = vmatprep.subr.bf16.mxu0 0
    %3178 = vmatpush1.bf16.msra.mxu0 %v3156
    %3179 = vmatprep.subr.bf16.mxu0 0
    %3180 = vmatpush1.bf16.msra.mxu0 %v3155
    %3181 = vmatprep.subr.bf16.mxu0 0
    %3182 = vmatpush1.bf16.msra.mxu0 %v3154
    %3183 = vmatprep.subr.bf16.mxu0 0
    %3184 = vmatpush1.bf16.msra.mxu0 %v3153
    %3185 = vmatprep.subr.bf16.mxu0 0
    %3186 = vmatpush2.bf16.msra.mxu0 0
    %3187 = vmatprep.subr.bf16.mxu0 0
    %3188 = vmatpush2.bf16.msra.mxu0 0
    %3189 = vmatprep.subr.bf16.mxu0 0
    %3190 = vmatpush2.bf16.msra.mxu0 0
    %3191 = vmatprep.subr.bf16.mxu0 0
    %3192 = vmatpush2.bf16.msra.mxu0 0
    %3193 = vmatprep.subr.bf16.mxu0 0
    %3194 = vmatpush2.bf16.msra.mxu0 0
    %3195 = vmatprep.subr.bf16.mxu0 0
    %3196 = vmatpush2.bf16.msra.mxu0 0
    %3197 = vmatprep.subr.bf16.mxu0 0
    %3198 = vmatpush2.bf16.msra.mxu0 0
    %3199 = vmatprep.subr.bf16.mxu0 0
    %3200 = vmatpush2.bf16.msra.mxu0 0
    %3201 = vmatprep.mubr.bf16.mxu0 0
    %3202 = vmatmul.mubr.bf16.gmra.mxu0 %v2754
    %v3203 = vpop.f32.mrf.mxu0
    %v3204 = vadd.f32 0.0, %v3203
    %v3205 = vpop.f32.mrf.mxu0
    %v3206 = vpop.f32.mrf.mxu0
    %v3207 = vadd.f32 0.0, %v3206
    %v3208 = vpop.f32.mrf.mxu0
    %3209 = vdwg.mxu0
    %v3212 = vrot.slane %v2727, 4
    %v3213 = vrot.slane %v2729, 4
    %v3216 = vunpack.c.l.bf16 %v3212
    %v3217 = vunpack.c.l.bf16 %v3213
    %v3218 = vadd.f32 %v3216, %v3204
    %v3219 = vadd.f32 %v3217, %v3207
    %v3220 = vxor.u32 %v3218, 2147483648
    %v3221 = vxor.u32 %v3219, 2147483648
    %v3222 = vmul.f32 %v3220, 1.442695
    %v3223 = vpow.pop %v3222
    %v3224 = vmul.f32 %v3221, 1.442695
    %v3225 = vpow.pop %v3224
    %v3226 = vadd.f32 %v3223, 1.0
    %v3227 = vadd.f32 %v3225, 1.0
    %v3228 = vrcp.pop %v3226
    %v3229 = vmul.f32 1.0, %v3228
    %v3230 = vrcp.pop %v3227
    %v3231 = vmul.f32 1.0, %v3230
    %v3232 = vtanh.pop %v3103
    %v3233 = vtanh.pop %v3104
    %v3234 = vmul.f32 %v3229, %v3232
    %v3235 = vmul.f32 %v3231, %v3233
    %v3236 = vpack.c.bf16 %v3235, %v3234
    %v3238 = vunpack.c.l.b16 %v3236
    %v3239 = vunpack.c.h.b16 %v3236
    %v3240 = vpack.c.b16 %v3238, %v3238
    %v3241 = vpack.c.b16 %v3239, %v3239
    %3244 = vst [vmem:[#allocation3] sm:$0xf] %v3240
    %3245 = vst [vmem:[#allocation3 + $0x4] sm:$0xf] %v3241
    %3246 = vst [vmem:[#allocation4] sm:$0xff] %v3103
    %3247 = vst [vmem:[#allocation4 + $0x8] sm:$0xff] %v3104
    %s3248 = scalar_lea.vmem [#allocation12], 80
    %3249 = vst [vmem:[%s3248] sm:$0xff] %v3234
    %3250 = vst [vmem:[%s3248 + $0x8] sm:$0xff] %v3235
    %s3251 = scalar_lea.vmem [#allocation6], 192
    %v3252 = vld [vmem:[%s3251] sm:$0xff]
    %v3253 = vld [vmem:[%s3251 + $0x8] sm:$0xff]
    %v3254 = vld [vmem:[%s3251 + $0x10] sm:$0xff]
    %v3255 = vld [vmem:[%s3251 + $0x18] sm:$0xff]
    %v3256 = vld [vmem:[#allocation3] sm:$0xf]
    %v3257 = vld [vmem:[#allocation3 + $0x4] sm:$0xf]
    %v3258 = vld [vmem:[#allocation4] sm:$0xff]
    %v3259 = vld [vmem:[#allocation4 + $0x8] sm:$0xff]
    %v3260 = vld [vmem:[#allocation2 + $0x4] sm:$0xf]
    %v3261 = vld [vmem:[#allocation2 + $0x14] sm:$0xf]
    %v3262 = vld [vmem:[#allocation2 + $0x24] sm:$0xf]
    %v3263 = vld [vmem:[#allocation2 + $0x34] sm:$0xf]
    %v3264 = vld [vmem:[#allocation2 + $0x44] sm:$0xf]
    %v3265 = vld [vmem:[#allocation2 + $0x54] sm:$0xf]
    %v3266 = vld [vmem:[#allocation2 + $0x64] sm:$0xf]
    %v3267 = vld [vmem:[#allocation2 + $0x74] sm:$0xf]
    %v3268 = vld [vmem:[#allocation2 + $0x84] sm:$0xf]
    %v3269 = vld [vmem:[#allocation2 + $0x94] sm:$0xf]
    %v3270 = vld [vmem:[#allocation2 + $0xa4] sm:$0xf]
    %v3271 = vld [vmem:[#allocation2 + $0xb4] sm:$0xf]
    %v3272 = vld [vmem:[#allocation2 + $0xc4] sm:$0xf]
    %v3273 = vld [vmem:[#allocation2 + $0xd4] sm:$0xf]
    %v3274 = vld [vmem:[#allocation2 + $0xe4] sm:$0xf]
    %v3275 = vld [vmem:[#allocation2 + $0xf4] sm:$0xf]
    %v3278 = vunpack.c.l.b16 %v3256
    %v3279 = vunpack.c.l.b16 %v3257
    %v3280 = vpack.c.b16 %v3279, %v3278
    %v3298 = vunpack.c.l.b16 %v3260
    %v3299 = vunpack.c.l.b16 %v3261
    %v3300 = vunpack.c.l.b16 %v3262
    %v3301 = vunpack.c.l.b16 %v3263
    %v3302 = vunpack.c.l.b16 %v3264
    %v3303 = vunpack.c.l.b16 %v3265
    %v3304 = vunpack.c.l.b16 %v3266
    %v3305 = vunpack.c.l.b16 %v3267
    %v3306 = vunpack.c.l.b16 %v3268
    %v3307 = vunpack.c.l.b16 %v3269
    %v3308 = vunpack.c.l.b16 %v3270
    %v3309 = vunpack.c.l.b16 %v3271
    %v3310 = vunpack.c.l.b16 %v3272
    %v3311 = vunpack.c.l.b16 %v3273
    %v3312 = vunpack.c.l.b16 %v3274
    %v3313 = vunpack.c.l.b16 %v3275
    %v3314 = vpack.c.b16 %v3299, %v3298
    %v3315 = vpack.c.b16 %v3301, %v3300
    %v3316 = vpack.c.b16 %v3303, %v3302
    %v3317 = vpack.c.b16 %v3305, %v3304
    %v3318 = vpack.c.b16 %v3307, %v3306
    %v3319 = vpack.c.b16 %v3309, %v3308
    %v3320 = vpack.c.b16 %v3311, %v3310
    %v3321 = vpack.c.b16 %v3313, %v3312
    %3330 = vmatprep.subr.bf16.mxu0 0
    %3331 = vmatpush1.bf16.msra.mxu0 %v3321
    %3332 = vmatprep.subr.bf16.mxu0 0
    %3333 = vmatpush1.bf16.msra.mxu0 %v3320
    %3334 = vmatprep.subr.bf16.mxu0 0
    %3335 = vmatpush1.bf16.msra.mxu0 %v3319
    %3336 = vmatprep.subr.bf16.mxu0 0
    %3337 = vmatpush1.bf16.msra.mxu0 %v3318
    %3338 = vmatprep.subr.bf16.mxu0 0
    %3339 = vmatpush1.bf16.msra.mxu0 %v3317
    %3340 = vmatprep.subr.bf16.mxu0 0
    %3341 = vmatpush1.bf16.msra.mxu0 %v3316
    %3342 = vmatprep.subr.bf16.mxu0 0
    %3343 = vmatpush1.bf16.msra.mxu0 %v3315
    %3344 = vmatprep.subr.bf16.mxu0 0
    %3345 = vmatpush1.bf16.msra.mxu0 %v3314
    %3346 = vmatprep.subr.bf16.mxu0 0
    %3347 = vmatpush2.bf16.msra.mxu0 0
    %3348 = vmatprep.subr.bf16.mxu0 0
    %3349 = vmatpush2.bf16.msra.mxu0 0
    %3350 = vmatprep.subr.bf16.mxu0 0
    %3351 = vmatpush2.bf16.msra.mxu0 0
    %3352 = vmatprep.subr.bf16.mxu0 0
    %3353 = vmatpush2.bf16.msra.mxu0 0
    %3354 = vmatprep.subr.bf16.mxu0 0
    %3355 = vmatpush2.bf16.msra.mxu0 0
    %3356 = vmatprep.subr.bf16.mxu0 0
    %3357 = vmatpush2.bf16.msra.mxu0 0
    %3358 = vmatprep.subr.bf16.mxu0 0
    %3359 = vmatpush2.bf16.msra.mxu0 0
    %3360 = vmatprep.subr.bf16.mxu0 0
    %3361 = vmatpush2.bf16.msra.mxu0 0
    %3362 = vmatprep.mubr.bf16.mxu0 0
    %3363 = vmatmul.mubr.bf16.gmra.mxu0 %v3280
    %v3364 = vpop.f32.mrf.mxu0
    %v3365 = vadd.f32 0.0, %v3364
    %v3366 = vpop.f32.mrf.mxu0
    %v3367 = vpop.f32.mrf.mxu0
    %v3368 = vadd.f32 0.0, %v3367
    %v3369 = vpop.f32.mrf.mxu0
    %3370 = vdwg.mxu0
    %v3373 = vrot.slane %v3252, 4
    %v3374 = vrot.slane %v3254, 4
    %v3377 = vunpack.c.l.bf16 %v3373
    %v3378 = vunpack.c.l.bf16 %v3374
    %v3379 = vadd.f32 %v3377, %v3365
    %v3380 = vadd.f32 %v3378, %v3368
    %v3381 = vxor.u32 %v3379, 2147483648
    %v3382 = vxor.u32 %v3380, 2147483648
    %v3383 = vmul.f32 %v3381, 1.442695
    %v3384 = vpow.pop %v3383
    %v3385 = vmul.f32 %v3382, 1.442695
    %v3386 = vpow.pop %v3385
    %v3387 = vadd.f32 %v3384, 1.0
    %v3388 = vadd.f32 %v3386, 1.0
    %v3389 = vrcp.pop %v3387
    %v3390 = vmul.f32 1.0, %v3389
    %v3391 = vrcp.pop %v3388
    %v3392 = vmul.f32 1.0, %v3391
    %v3393 = vmul.f32 %v3390, %v3258
    %v3394 = vmul.f32 %v3392, %v3259
    %v3395 = vld [vmem:[#allocation2] sm:$0xf]
    %v3396 = vld [vmem:[#allocation2 + $0x10] sm:$0xf]
    %v3397 = vld [vmem:[#allocation2 + $0x20] sm:$0xf]
    %v3398 = vld [vmem:[#allocation2 + $0x30] sm:$0xf]
    %v3399 = vld [vmem:[#allocation2 + $0x40] sm:$0xf]
    %v3400 = vld [vmem:[#allocation2 + $0x50] sm:$0xf]
    %v3401 = vld [vmem:[#allocation2 + $0x60] sm:$0xf]
    %v3402 = vld [vmem:[#allocation2 + $0x70] sm:$0xf]
    %v3403 = vld [vmem:[#allocation2 + $0x80] sm:$0xf]
    %v3404 = vld [vmem:[#allocation2 + $0x90] sm:$0xf]
    %v3405 = vld [vmem:[#allocation2 + $0xa0] sm:$0xf]
    %v3406 = vld [vmem:[#allocation2 + $0xb0] sm:$0xf]
    %v3407 = vld [vmem:[#allocation2 + $0xc0] sm:$0xf]
    %v3408 = vld [vmem:[#allocation2 + $0xd0] sm:$0xf]
    %v3409 = vld [vmem:[#allocation2 + $0xe0] sm:$0xf]
    %v3410 = vld [vmem:[#allocation2 + $0xf0] sm:$0xf]
    %v3427 = vunpack.c.l.b16 %v3395
    %v3428 = vunpack.c.l.b16 %v3396
    %v3429 = vunpack.c.l.b16 %v3397
    %v3430 = vunpack.c.l.b16 %v3398
    %v3431 = vunpack.c.l.b16 %v3399
    %v3432 = vunpack.c.l.b16 %v3400
    %v3433 = vunpack.c.l.b16 %v3401
    %v3434 = vunpack.c.l.b16 %v3402
    %v3435 = vunpack.c.l.b16 %v3403
    %v3436 = vunpack.c.l.b16 %v3404
    %v3437 = vunpack.c.l.b16 %v3405
    %v3438 = vunpack.c.l.b16 %v3406
    %v3439 = vunpack.c.l.b16 %v3407
    %v3440 = vunpack.c.l.b16 %v3408
    %v3441 = vunpack.c.l.b16 %v3409
    %v3442 = vunpack.c.l.b16 %v3410
    %v3443 = vpack.c.b16 %v3428, %v3427
    %v3444 = vpack.c.b16 %v3430, %v3429
    %v3445 = vpack.c.b16 %v3432, %v3431
    %v3446 = vpack.c.b16 %v3434, %v3433
    %v3447 = vpack.c.b16 %v3436, %v3435
    %v3448 = vpack.c.b16 %v3438, %v3437
    %v3449 = vpack.c.b16 %v3440, %v3439
    %v3450 = vpack.c.b16 %v3442, %v3441
    %3459 = vmatprep.subr.bf16.mxu0 0
    %3460 = vmatpush1.bf16.msra.mxu0 %v3450
    %3461 = vmatprep.subr.bf16.mxu0 0
    %3462 = vmatpush1.bf16.msra.mxu0 %v3449
    %3463 = vmatprep.subr.bf16.mxu0 0
    %3464 = vmatpush1.bf16.msra.mxu0 %v3448
    %3465 = vmatprep.subr.bf16.mxu0 0
    %3466 = vmatpush1.bf16.msra.mxu0 %v3447
    %3467 = vmatprep.subr.bf16.mxu0 0
    %3468 = vmatpush1.bf16.msra.mxu0 %v3446
    %3469 = vmatprep.subr.bf16.mxu0 0
    %3470 = vmatpush1.bf16.msra.mxu0 %v3445
    %3471 = vmatprep.subr.bf16.mxu0 0
    %3472 = vmatpush1.bf16.msra.mxu0 %v3444
    %3473 = vmatprep.subr.bf16.mxu0 0
    %3474 = vmatpush1.bf16.msra.mxu0 %v3443
    %3475 = vmatprep.subr.bf16.mxu0 0
    %3476 = vmatpush2.bf16.msra.mxu0 0
    %3477 = vmatprep.subr.bf16.mxu0 0
    %3478 = vmatpush2.bf16.msra.mxu0 0
    %3479 = vmatprep.subr.bf16.mxu0 0
    %3480 = vmatpush2.bf16.msra.mxu0 0
    %3481 = vmatprep.subr.bf16.mxu0 0
    %3482 = vmatpush2.bf16.msra.mxu0 0
    %3483 = vmatprep.subr.bf16.mxu0 0
    %3484 = vmatpush2.bf16.msra.mxu0 0
    %3485 = vmatprep.subr.bf16.mxu0 0
    %3486 = vmatpush2.bf16.msra.mxu0 0
    %3487 = vmatprep.subr.bf16.mxu0 0
    %3488 = vmatpush2.bf16.msra.mxu0 0
    %3489 = vmatprep.subr.bf16.mxu0 0
    %3490 = vmatpush2.bf16.msra.mxu0 0
    %3491 = vmatprep.mubr.bf16.mxu0 0
    %3492 = vmatmul.mubr.bf16.gmra.mxu0 %v3280
    %v3493 = vpop.f32.mrf.mxu0
    %v3494 = vadd.f32 0.0, %v3493
    %v3495 = vpop.f32.mrf.mxu0
    %v3496 = vpop.f32.mrf.mxu0
    %v3497 = vadd.f32 0.0, %v3496
    %v3498 = vpop.f32.mrf.mxu0
    %3499 = vdwg.mxu0
    %v3500 = vunpack.c.l.bf16 %v3252
    %v3501 = vunpack.c.l.bf16 %v3254
    %v3502 = vadd.f32 %v3500, %v3494
    %v3503 = vadd.f32 %v3501, %v3497
    %v3504 = vxor.u32 %v3502, 2147483648
    %v3505 = vxor.u32 %v3503, 2147483648
    %v3506 = vmul.f32 %v3504, 1.442695
    %v3507 = vpow.pop %v3506
    %v3508 = vmul.f32 %v3505, 1.442695
    %v3509 = vpow.pop %v3508
    %v3510 = vadd.f32 %v3507, 1.0
    %v3511 = vadd.f32 %v3509, 1.0
    %v3512 = vrcp.pop %v3510
    %v3513 = vmul.f32 1.0, %v3512
    %v3514 = vrcp.pop %v3511
    %v3515 = vmul.f32 1.0, %v3514
    %v3516 = vld [vmem:[#allocation2 + $0x8] sm:$0xf]
    %v3517 = vld [vmem:[#allocation2 + $0x18] sm:$0xf]
    %v3518 = vld [vmem:[#allocation2 + $0x28] sm:$0xf]
    %v3519 = vld [vmem:[#allocation2 + $0x38] sm:$0xf]
    %v3520 = vld [vmem:[#allocation2 + $0x48] sm:$0xf]
    %v3521 = vld [vmem:[#allocation2 + $0x58] sm:$0xf]
    %v3522 = vld [vmem:[#allocation2 + $0x68] sm:$0xf]
    %v3523 = vld [vmem:[#allocation2 + $0x78] sm:$0xf]
    %v3524 = vld [vmem:[#allocation2 + $0x88] sm:$0xf]
    %v3525 = vld [vmem:[#allocation2 + $0x98] sm:$0xf]
    %v3526 = vld [vmem:[#allocation2 + $0xa8] sm:$0xf]
    %v3527 = vld [vmem:[#allocation2 + $0xb8] sm:$0xf]
    %v3528 = vld [vmem:[#allocation2 + $0xc8] sm:$0xf]
    %v3529 = vld [vmem:[#allocation2 + $0xd8] sm:$0xf]
    %v3530 = vld [vmem:[#allocation2 + $0xe8] sm:$0xf]
    %v3531 = vld [vmem:[#allocation2 + $0xf8] sm:$0xf]
    %v3548 = vunpack.c.l.b16 %v3516
    %v3549 = vunpack.c.l.b16 %v3517
    %v3550 = vunpack.c.l.b16 %v3518
    %v3551 = vunpack.c.l.b16 %v3519
    %v3552 = vunpack.c.l.b16 %v3520
    %v3553 = vunpack.c.l.b16 %v3521
    %v3554 = vunpack.c.l.b16 %v3522
    %v3555 = vunpack.c.l.b16 %v3523
    %v3556 = vunpack.c.l.b16 %v3524
    %v3557 = vunpack.c.l.b16 %v3525
    %v3558 = vunpack.c.l.b16 %v3526
    %v3559 = vunpack.c.l.b16 %v3527
    %v3560 = vunpack.c.l.b16 %v3528
    %v3561 = vunpack.c.l.b16 %v3529
    %v3562 = vunpack.c.l.b16 %v3530
    %v3563 = vunpack.c.l.b16 %v3531
    %v3564 = vpack.c.b16 %v3549, %v3548
    %v3565 = vpack.c.b16 %v3551, %v3550
    %v3566 = vpack.c.b16 %v3553, %v3552
    %v3567 = vpack.c.b16 %v3555, %v3554
    %v3568 = vpack.c.b16 %v3557, %v3556
    %v3569 = vpack.c.b16 %v3559, %v3558
    %v3570 = vpack.c.b16 %v3561, %v3560
    %v3571 = vpack.c.b16 %v3563, %v3562
    %3580 = vmatprep.subr.bf16.mxu0 0
    %3581 = vmatpush1.bf16.msra.mxu0 %v3571
    %3582 = vmatprep.subr.bf16.mxu0 0
    %3583 = vmatpush1.bf16.msra.mxu0 %v3570
    %3584 = vmatprep.subr.bf16.mxu0 0
    %3585 = vmatpush1.bf16.msra.mxu0 %v3569
    %3586 = vmatprep.subr.bf16.mxu0 0
    %3587 = vmatpush1.bf16.msra.mxu0 %v3568
    %3588 = vmatprep.subr.bf16.mxu0 0
    %3589 = vmatpush1.bf16.msra.mxu0 %v3567
    %3590 = vmatprep.subr.bf16.mxu0 0
    %3591 = vmatpush1.bf16.msra.mxu0 %v3566
    %3592 = vmatprep.subr.bf16.mxu0 0
    %3593 = vmatpush1.bf16.msra.mxu0 %v3565
    %3594 = vmatprep.subr.bf16.mxu0 0
    %3595 = vmatpush1.bf16.msra.mxu0 %v3564
    %3596 = vmatprep.subr.bf16.mxu0 0
    %3597 = vmatpush2.bf16.msra.mxu0 0
    %3598 = vmatprep.subr.bf16.mxu0 0
    %3599 = vmatpush2.bf16.msra.mxu0 0
    %3600 = vmatprep.subr.bf16.mxu0 0
    %3601 = vmatpush2.bf16.msra.mxu0 0
    %3602 = vmatprep.subr.bf16.mxu0 0
    %3603 = vmatpush2.bf16.msra.mxu0 0
    %3604 = vmatprep.subr.bf16.mxu0 0
    %3605 = vmatpush2.bf16.msra.mxu0 0
    %3606 = vmatprep.subr.bf16.mxu0 0
    %3607 = vmatpush2.bf16.msra.mxu0 0
    %3608 = vmatprep.subr.bf16.mxu0 0
    %3609 = vmatpush2.bf16.msra.mxu0 0
    %3610 = vmatprep.subr.bf16.mxu0 0
    %3611 = vmatpush2.bf16.msra.mxu0 0
    %3612 = vmatprep.mubr.bf16.mxu0 0
    %3613 = vmatmul.mubr.bf16.gmra.mxu0 %v3280
    %v3614 = vpop.f32.mrf.mxu0
    %v3615 = vadd.f32 0.0, %v3614
    %v3616 = vpop.f32.mrf.mxu0
    %v3617 = vpop.f32.mrf.mxu0
    %v3618 = vadd.f32 0.0, %v3617
    %v3619 = vpop.f32.mrf.mxu0
    %3620 = vdwg.mxu0
    %v3621 = vunpack.c.l.bf16 %v3253
    %v3622 = vunpack.c.l.bf16 %v3255
    %v3623 = vadd.f32 %v3621, %v3615
    %v3624 = vadd.f32 %v3622, %v3618
    %v3625 = vtanh.pop %v3623
    %v3626 = vtanh.pop %v3624
    %v3627 = vmul.f32 %v3513, %v3625
    %v3628 = vmul.f32 %v3515, %v3626
    %v3629 = vadd.f32 %v3393, %v3627
    %v3630 = vadd.f32 %v3394, %v3628
    %v3631 = vld [vmem:[#allocation2 + $0xc] sm:$0xf]
    %v3632 = vld [vmem:[#allocation2 + $0x1c] sm:$0xf]
    %v3633 = vld [vmem:[#allocation2 + $0x2c] sm:$0xf]
    %v3634 = vld [vmem:[#allocation2 + $0x3c] sm:$0xf]
    %v3635 = vld [vmem:[#allocation2 + $0x4c] sm:$0xf]
    %v3636 = vld [vmem:[#allocation2 + $0x5c] sm:$0xf]
    %v3637 = vld [vmem:[#allocation2 + $0x6c] sm:$0xf]
    %v3638 = vld [vmem:[#allocation2 + $0x7c] sm:$0xf]
    %v3639 = vld [vmem:[#allocation2 + $0x8c] sm:$0xf]
    %v3640 = vld [vmem:[#allocation2 + $0x9c] sm:$0xf]
    %v3641 = vld [vmem:[#allocation2 + $0xac] sm:$0xf]
    %v3642 = vld [vmem:[#allocation2 + $0xbc] sm:$0xf]
    %v3643 = vld [vmem:[#allocation2 + $0xcc] sm:$0xf]
    %v3644 = vld [vmem:[#allocation2 + $0xdc] sm:$0xf]
    %v3645 = vld [vmem:[#allocation2 + $0xec] sm:$0xf]
    %v3646 = vld [vmem:[#allocation2 + $0xfc] sm:$0xf]
    %v3663 = vunpack.c.l.b16 %v3631
    %v3664 = vunpack.c.l.b16 %v3632
    %v3665 = vunpack.c.l.b16 %v3633
    %v3666 = vunpack.c.l.b16 %v3634
    %v3667 = vunpack.c.l.b16 %v3635
    %v3668 = vunpack.c.l.b16 %v3636
    %v3669 = vunpack.c.l.b16 %v3637
    %v3670 = vunpack.c.l.b16 %v3638
    %v3671 = vunpack.c.l.b16 %v3639
    %v3672 = vunpack.c.l.b16 %v3640
    %v3673 = vunpack.c.l.b16 %v3641
    %v3674 = vunpack.c.l.b16 %v3642
    %v3675 = vunpack.c.l.b16 %v3643
    %v3676 = vunpack.c.l.b16 %v3644
    %v3677 = vunpack.c.l.b16 %v3645
    %v3678 = vunpack.c.l.b16 %v3646
    %v3679 = vpack.c.b16 %v3664, %v3663
    %v3680 = vpack.c.b16 %v3666, %v3665
    %v3681 = vpack.c.b16 %v3668, %v3667
    %v3682 = vpack.c.b16 %v3670, %v3669
    %v3683 = vpack.c.b16 %v3672, %v3671
    %v3684 = vpack.c.b16 %v3674, %v3673
    %v3685 = vpack.c.b16 %v3676, %v3675
    %v3686 = vpack.c.b16 %v3678, %v3677
    %3695 = vmatprep.subr.bf16.mxu0 0
    %3696 = vmatpush1.bf16.msra.mxu0 %v3686
    %3697 = vmatprep.subr.bf16.mxu0 0
    %3698 = vmatpush1.bf16.msra.mxu0 %v3685
    %3699 = vmatprep.subr.bf16.mxu0 0
    %3700 = vmatpush1.bf16.msra.mxu0 %v3684
    %3701 = vmatprep.subr.bf16.mxu0 0
    %3702 = vmatpush1.bf16.msra.mxu0 %v3683
    %3703 = vmatprep.subr.bf16.mxu0 0
    %3704 = vmatpush1.bf16.msra.mxu0 %v3682
    %3705 = vmatprep.subr.bf16.mxu0 0
    %3706 = vmatpush1.bf16.msra.mxu0 %v3681
    %3707 = vmatprep.subr.bf16.mxu0 0
    %3708 = vmatpush1.bf16.msra.mxu0 %v3680
    %3709 = vmatprep.subr.bf16.mxu0 0
    %3710 = vmatpush1.bf16.msra.mxu0 %v3679
    %3711 = vmatprep.subr.bf16.mxu0 0
    %3712 = vmatpush2.bf16.msra.mxu0 0
    %3713 = vmatprep.subr.bf16.mxu0 0
    %3714 = vmatpush2.bf16.msra.mxu0 0
    %3715 = vmatprep.subr.bf16.mxu0 0
    %3716 = vmatpush2.bf16.msra.mxu0 0
    %3717 = vmatprep.subr.bf16.mxu0 0
    %3718 = vmatpush2.bf16.msra.mxu0 0
    %3719 = vmatprep.subr.bf16.mxu0 0
    %3720 = vmatpush2.bf16.msra.mxu0 0
    %3721 = vmatprep.subr.bf16.mxu0 0
    %3722 = vmatpush2.bf16.msra.mxu0 0
    %3723 = vmatprep.subr.bf16.mxu0 0
    %3724 = vmatpush2.bf16.msra.mxu0 0
    %3725 = vmatprep.subr.bf16.mxu0 0
    %3726 = vmatpush2.bf16.msra.mxu0 0
    %3727 = vmatprep.mubr.bf16.mxu0 0
    %3728 = vmatmul.mubr.bf16.gmra.mxu0 %v3280
    %v3729 = vpop.f32.mrf.mxu0
    %v3730 = vadd.f32 0.0, %v3729
    %v3731 = vpop.f32.mrf.mxu0
    %v3732 = vpop.f32.mrf.mxu0
    %v3733 = vadd.f32 0.0, %v3732
    %v3734 = vpop.f32.mrf.mxu0
    %3735 = vdwg.mxu0
    %v3738 = vrot.slane %v3253, 4
    %v3739 = vrot.slane %v3255, 4
    %v3742 = vunpack.c.l.bf16 %v3738
    %v3743 = vunpack.c.l.bf16 %v3739
    %v3744 = vadd.f32 %v3742, %v3730
    %v3745 = vadd.f32 %v3743, %v3733
    %v3746 = vxor.u32 %v3744, 2147483648
    %v3747 = vxor.u32 %v3745, 2147483648
    %v3748 = vmul.f32 %v3746, 1.442695
    %v3749 = vpow.pop %v3748
    %v3750 = vmul.f32 %v3747, 1.442695
    %v3751 = vpow.pop %v3750
    %v3752 = vadd.f32 %v3749, 1.0
    %v3753 = vadd.f32 %v3751, 1.0
    %v3754 = vrcp.pop %v3752
    %v3755 = vmul.f32 1.0, %v3754
    %v3756 = vrcp.pop %v3753
    %v3757 = vmul.f32 1.0, %v3756
    %v3758 = vtanh.pop %v3629
    %v3759 = vtanh.pop %v3630
    %v3760 = vmul.f32 %v3755, %v3758
    %v3761 = vmul.f32 %v3757, %v3759
    %v3762 = vpack.c.bf16 %v3761, %v3760
    %v3764 = vunpack.c.l.b16 %v3762
    %v3765 = vunpack.c.h.b16 %v3762
    %v3766 = vpack.c.b16 %v3764, %v3764
    %v3767 = vpack.c.b16 %v3765, %v3765
    %3770 = vst [vmem:[#allocation3] sm:$0xf] %v3766
    %3771 = vst [vmem:[#allocation3 + $0x4] sm:$0xf] %v3767
    %3772 = vst [vmem:[#allocation4] sm:$0xff] %v3629
    %3773 = vst [vmem:[#allocation4 + $0x8] sm:$0xff] %v3630
    %s3774 = scalar_lea.vmem [#allocation12], 96
    %3775 = vst [vmem:[%s3774] sm:$0xff] %v3760
    %3776 = vst [vmem:[%s3774 + $0x8] sm:$0xff] %v3761
    %s3777 = scalar_lea.vmem [#allocation6], 224
    %v3778 = vld [vmem:[%s3777] sm:$0xff]
    %v3779 = vld [vmem:[%s3777 + $0x8] sm:$0xff]
    %v3780 = vld [vmem:[%s3777 + $0x10] sm:$0xff]
    %v3781 = vld [vmem:[%s3777 + $0x18] sm:$0xff]
    %v3782 = vld [vmem:[#allocation3] sm:$0xf]
    %v3783 = vld [vmem:[#allocation3 + $0x4] sm:$0xf]
    %v3784 = vld [vmem:[#allocation4] sm:$0xff]
    %v3785 = vld [vmem:[#allocation4 + $0x8] sm:$0xff]
    %v3786 = vld [vmem:[#allocation2 + $0x4] sm:$0xf]
    %v3787 = vld [vmem:[#allocation2 + $0x14] sm:$0xf]
    %v3788 = vld [vmem:[#allocation2 + $0x24] sm:$0xf]
    %v3789 = vld [vmem:[#allocation2 + $0x34] sm:$0xf]
    %v3790 = vld [vmem:[#allocation2 + $0x44] sm:$0xf]
    %v3791 = vld [vmem:[#allocation2 + $0x54] sm:$0xf]
    %v3792 = vld [vmem:[#allocation2 + $0x64] sm:$0xf]
    %v3793 = vld [vmem:[#allocation2 + $0x74] sm:$0xf]
    %v3794 = vld [vmem:[#allocation2 + $0x84] sm:$0xf]
    %v3795 = vld [vmem:[#allocation2 + $0x94] sm:$0xf]
    %v3796 = vld [vmem:[#allocation2 + $0xa4] sm:$0xf]
    %v3797 = vld [vmem:[#allocation2 + $0xb4] sm:$0xf]
    %v3798 = vld [vmem:[#allocation2 + $0xc4] sm:$0xf]
    %v3799 = vld [vmem:[#allocation2 + $0xd4] sm:$0xf]
    %v3800 = vld [vmem:[#allocation2 + $0xe4] sm:$0xf]
    %v3801 = vld [vmem:[#allocation2 + $0xf4] sm:$0xf]
    %v3804 = vunpack.c.l.b16 %v3782
    %v3805 = vunpack.c.l.b16 %v3783
    %v3806 = vpack.c.b16 %v3805, %v3804
    %v3824 = vunpack.c.l.b16 %v3786
    %v3825 = vunpack.c.l.b16 %v3787
    %v3826 = vunpack.c.l.b16 %v3788
    %v3827 = vunpack.c.l.b16 %v3789
    %v3828 = vunpack.c.l.b16 %v3790
    %v3829 = vunpack.c.l.b16 %v3791
    %v3830 = vunpack.c.l.b16 %v3792
    %v3831 = vunpack.c.l.b16 %v3793
    %v3832 = vunpack.c.l.b16 %v3794
    %v3833 = vunpack.c.l.b16 %v3795
    %v3834 = vunpack.c.l.b16 %v3796
    %v3835 = vunpack.c.l.b16 %v3797
    %v3836 = vunpack.c.l.b16 %v3798
    %v3837 = vunpack.c.l.b16 %v3799
    %v3838 = vunpack.c.l.b16 %v3800
    %v3839 = vunpack.c.l.b16 %v3801
    %v3840 = vpack.c.b16 %v3825, %v3824
    %v3841 = vpack.c.b16 %v3827, %v3826
    %v3842 = vpack.c.b16 %v3829, %v3828
    %v3843 = vpack.c.b16 %v3831, %v3830
    %v3844 = vpack.c.b16 %v3833, %v3832
    %v3845 = vpack.c.b16 %v3835, %v3834
    %v3846 = vpack.c.b16 %v3837, %v3836
    %v3847 = vpack.c.b16 %v3839, %v3838
    %3856 = vmatprep.subr.bf16.mxu0 0
    %3857 = vmatpush1.bf16.msra.mxu0 %v3847
    %3858 = vmatprep.subr.bf16.mxu0 0
    %3859 = vmatpush1.bf16.msra.mxu0 %v3846
    %3860 = vmatprep.subr.bf16.mxu0 0
    %3861 = vmatpush1.bf16.msra.mxu0 %v3845
    %3862 = vmatprep.subr.bf16.mxu0 0
    %3863 = vmatpush1.bf16.msra.mxu0 %v3844
    %3864 = vmatprep.subr.bf16.mxu0 0
    %3865 = vmatpush1.bf16.msra.mxu0 %v3843
    %3866 = vmatprep.subr.bf16.mxu0 0
    %3867 = vmatpush1.bf16.msra.mxu0 %v3842
    %3868 = vmatprep.subr.bf16.mxu0 0
    %3869 = vmatpush1.bf16.msra.mxu0 %v3841
    %3870 = vmatprep.subr.bf16.mxu0 0
    %3871 = vmatpush1.bf16.msra.mxu0 %v3840
    %3872 = vmatprep.subr.bf16.mxu0 0
    %3873 = vmatpush2.bf16.msra.mxu0 0
    %3874 = vmatprep.subr.bf16.mxu0 0
    %3875 = vmatpush2.bf16.msra.mxu0 0
    %3876 = vmatprep.subr.bf16.mxu0 0
    %3877 = vmatpush2.bf16.msra.mxu0 0
    %3878 = vmatprep.subr.bf16.mxu0 0
    %3879 = vmatpush2.bf16.msra.mxu0 0
    %3880 = vmatprep.subr.bf16.mxu0 0
    %3881 = vmatpush2.bf16.msra.mxu0 0
    %3882 = vmatprep.subr.bf16.mxu0 0
    %3883 = vmatpush2.bf16.msra.mxu0 0
    %3884 = vmatprep.subr.bf16.mxu0 0
    %3885 = vmatpush2.bf16.msra.mxu0 0
    %3886 = vmatprep.subr.bf16.mxu0 0
    %3887 = vmatpush2.bf16.msra.mxu0 0
    %3888 = vmatprep.mubr.bf16.mxu0 0
    %3889 = vmatmul.mubr.bf16.gmra.mxu0 %v3806
    %v3890 = vpop.f32.mrf.mxu0
    %v3891 = vadd.f32 0.0, %v3890
    %v3892 = vpop.f32.mrf.mxu0
    %v3893 = vpop.f32.mrf.mxu0
    %v3894 = vadd.f32 0.0, %v3893
    %v3895 = vpop.f32.mrf.mxu0
    %3896 = vdwg.mxu0
    %v3899 = vrot.slane %v3778, 4
    %v3900 = vrot.slane %v3780, 4
    %v3903 = vunpack.c.l.bf16 %v3899
    %v3904 = vunpack.c.l.bf16 %v3900
    %v3905 = vadd.f32 %v3903, %v3891
    %v3906 = vadd.f32 %v3904, %v3894
    %v3907 = vxor.u32 %v3905, 2147483648
    %v3908 = vxor.u32 %v3906, 2147483648
    %v3909 = vmul.f32 %v3907, 1.442695
    %v3910 = vpow.pop %v3909
    %v3911 = vmul.f32 %v3908, 1.442695
    %v3912 = vpow.pop %v3911
    %v3913 = vadd.f32 %v3910, 1.0
    %v3914 = vadd.f32 %v3912, 1.0
    %v3915 = vrcp.pop %v3913
    %v3916 = vmul.f32 1.0, %v3915
    %v3917 = vrcp.pop %v3914
    %v3918 = vmul.f32 1.0, %v3917
    %v3919 = vmul.f32 %v3916, %v3784
    %v3920 = vmul.f32 %v3918, %v3785
    %v3921 = vld [vmem:[#allocation2] sm:$0xf]
    %v3922 = vld [vmem:[#allocation2 + $0x10] sm:$0xf]
    %v3923 = vld [vmem:[#allocation2 + $0x20] sm:$0xf]
    %v3924 = vld [vmem:[#allocation2 + $0x30] sm:$0xf]
    %v3925 = vld [vmem:[#allocation2 + $0x40] sm:$0xf]
    %v3926 = vld [vmem:[#allocation2 + $0x50] sm:$0xf]
    %v3927 = vld [vmem:[#allocation2 + $0x60] sm:$0xf]
    %v3928 = vld [vmem:[#allocation2 + $0x70] sm:$0xf]
    %v3929 = vld [vmem:[#allocation2 + $0x80] sm:$0xf]
    %v3930 = vld [vmem:[#allocation2 + $0x90] sm:$0xf]
    %v3931 = vld [vmem:[#allocation2 + $0xa0] sm:$0xf]
    %v3932 = vld [vmem:[#allocation2 + $0xb0] sm:$0xf]
    %v3933 = vld [vmem:[#allocation2 + $0xc0] sm:$0xf]
    %v3934 = vld [vmem:[#allocation2 + $0xd0] sm:$0xf]
    %v3935 = vld [vmem:[#allocation2 + $0xe0] sm:$0xf]
    %v3936 = vld [vmem:[#allocation2 + $0xf0] sm:$0xf]
    %v3953 = vunpack.c.l.b16 %v3921
    %v3954 = vunpack.c.l.b16 %v3922
    %v3955 = vunpack.c.l.b16 %v3923
    %v3956 = vunpack.c.l.b16 %v3924
    %v3957 = vunpack.c.l.b16 %v3925
    %v3958 = vunpack.c.l.b16 %v3926
    %v3959 = vunpack.c.l.b16 %v3927
    %v3960 = vunpack.c.l.b16 %v3928
    %v3961 = vunpack.c.l.b16 %v3929
    %v3962 = vunpack.c.l.b16 %v3930
    %v3963 = vunpack.c.l.b16 %v3931
    %v3964 = vunpack.c.l.b16 %v3932
    %v3965 = vunpack.c.l.b16 %v3933
    %v3966 = vunpack.c.l.b16 %v3934
    %v3967 = vunpack.c.l.b16 %v3935
    %v3968 = vunpack.c.l.b16 %v3936
    %v3969 = vpack.c.b16 %v3954, %v3953
    %v3970 = vpack.c.b16 %v3956, %v3955
    %v3971 = vpack.c.b16 %v3958, %v3957
    %v3972 = vpack.c.b16 %v3960, %v3959
    %v3973 = vpack.c.b16 %v3962, %v3961
    %v3974 = vpack.c.b16 %v3964, %v3963
    %v3975 = vpack.c.b16 %v3966, %v3965
    %v3976 = vpack.c.b16 %v3968, %v3967
    %3985 = vmatprep.subr.bf16.mxu0 0
    %3986 = vmatpush1.bf16.msra.mxu0 %v3976
    %3987 = vmatprep.subr.bf16.mxu0 0
    %3988 = vmatpush1.bf16.msra.mxu0 %v3975
    %3989 = vmatprep.subr.bf16.mxu0 0
    %3990 = vmatpush1.bf16.msra.mxu0 %v3974
    %3991 = vmatprep.subr.bf16.mxu0 0
    %3992 = vmatpush1.bf16.msra.mxu0 %v3973
    %3993 = vmatprep.subr.bf16.mxu0 0
    %3994 = vmatpush1.bf16.msra.mxu0 %v3972
    %3995 = vmatprep.subr.bf16.mxu0 0
    %3996 = vmatpush1.bf16.msra.mxu0 %v3971
    %3997 = vmatprep.subr.bf16.mxu0 0
    %3998 = vmatpush1.bf16.msra.mxu0 %v3970
    %3999 = vmatprep.subr.bf16.mxu0 0
    %4000 = vmatpush1.bf16.msra.mxu0 %v3969
    %4001 = vmatprep.subr.bf16.mxu0 0
    %4002 = vmatpush2.bf16.msra.mxu0 0
    %4003 = vmatprep.subr.bf16.mxu0 0
    %4004 = vmatpush2.bf16.msra.mxu0 0
    %4005 = vmatprep.subr.bf16.mxu0 0
    %4006 = vmatpush2.bf16.msra.mxu0 0
    %4007 = vmatprep.subr.bf16.mxu0 0
    %4008 = vmatpush2.bf16.msra.mxu0 0
    %4009 = vmatprep.subr.bf16.mxu0 0
    %4010 = vmatpush2.bf16.msra.mxu0 0
    %4011 = vmatprep.subr.bf16.mxu0 0
    %4012 = vmatpush2.bf16.msra.mxu0 0
    %4013 = vmatprep.subr.bf16.mxu0 0
    %4014 = vmatpush2.bf16.msra.mxu0 0
    %4015 = vmatprep.subr.bf16.mxu0 0
    %4016 = vmatpush2.bf16.msra.mxu0 0
    %4017 = vmatprep.mubr.bf16.mxu0 0
    %4018 = vmatmul.mubr.bf16.gmra.mxu0 %v3806
    %v4019 = vpop.f32.mrf.mxu0
    %v4020 = vadd.f32 0.0, %v4019
    %v4021 = vpop.f32.mrf.mxu0
    %v4022 = vpop.f32.mrf.mxu0
    %v4023 = vadd.f32 0.0, %v4022
    %v4024 = vpop.f32.mrf.mxu0
    %4025 = vdwg.mxu0
    %v4026 = vunpack.c.l.bf16 %v3778
    %v4027 = vunpack.c.l.bf16 %v3780
    %v4028 = vadd.f32 %v4026, %v4020
    %v4029 = vadd.f32 %v4027, %v4023
    %v4030 = vxor.u32 %v4028, 2147483648
    %v4031 = vxor.u32 %v4029, 2147483648
    %v4032 = vmul.f32 %v4030, 1.442695
    %v4033 = vpow.pop %v4032
    %v4034 = vmul.f32 %v4031, 1.442695
    %v4035 = vpow.pop %v4034
    %v4036 = vadd.f32 %v4033, 1.0
    %v4037 = vadd.f32 %v4035, 1.0
    %v4038 = vrcp.pop %v4036
    %v4039 = vmul.f32 1.0, %v4038
    %v4040 = vrcp.pop %v4037
    %v4041 = vmul.f32 1.0, %v4040
    %v4042 = vld [vmem:[#allocation2 + $0x8] sm:$0xf]
    %v4043 = vld [vmem:[#allocation2 + $0x18] sm:$0xf]
    %v4044 = vld [vmem:[#allocation2 + $0x28] sm:$0xf]
    %v4045 = vld [vmem:[#allocation2 + $0x38] sm:$0xf]
    %v4046 = vld [vmem:[#allocation2 + $0x48] sm:$0xf]
    %v4047 = vld [vmem:[#allocation2 + $0x58] sm:$0xf]
    %v4048 = vld [vmem:[#allocation2 + $0x68] sm:$0xf]
    %v4049 = vld [vmem:[#allocation2 + $0x78] sm:$0xf]
    %v4050 = vld [vmem:[#allocation2 + $0x88] sm:$0xf]
    %v4051 = vld [vmem:[#allocation2 + $0x98] sm:$0xf]
    %v4052 = vld [vmem:[#allocation2 + $0xa8] sm:$0xf]
    %v4053 = vld [vmem:[#allocation2 + $0xb8] sm:$0xf]
    %v4054 = vld [vmem:[#allocation2 + $0xc8] sm:$0xf]
    %v4055 = vld [vmem:[#allocation2 + $0xd8] sm:$0xf]
    %v4056 = vld [vmem:[#allocation2 + $0xe8] sm:$0xf]
    %v4057 = vld [vmem:[#allocation2 + $0xf8] sm:$0xf]
    %v4074 = vunpack.c.l.b16 %v4042
    %v4075 = vunpack.c.l.b16 %v4043
    %v4076 = vunpack.c.l.b16 %v4044
    %v4077 = vunpack.c.l.b16 %v4045
    %v4078 = vunpack.c.l.b16 %v4046
    %v4079 = vunpack.c.l.b16 %v4047
    %v4080 = vunpack.c.l.b16 %v4048
    %v4081 = vunpack.c.l.b16 %v4049
    %v4082 = vunpack.c.l.b16 %v4050
    %v4083 = vunpack.c.l.b16 %v4051
    %v4084 = vunpack.c.l.b16 %v4052
    %v4085 = vunpack.c.l.b16 %v4053
    %v4086 = vunpack.c.l.b16 %v4054
    %v4087 = vunpack.c.l.b16 %v4055
    %v4088 = vunpack.c.l.b16 %v4056
    %v4089 = vunpack.c.l.b16 %v4057
    %v4090 = vpack.c.b16 %v4075, %v4074
    %v4091 = vpack.c.b16 %v4077, %v4076
    %v4092 = vpack.c.b16 %v4079, %v4078
    %v4093 = vpack.c.b16 %v4081, %v4080
    %v4094 = vpack.c.b16 %v4083, %v4082
    %v4095 = vpack.c.b16 %v4085, %v4084
    %v4096 = vpack.c.b16 %v4087, %v4086
    %v4097 = vpack.c.b16 %v4089, %v4088
    %4106 = vmatprep.subr.bf16.mxu0 0
    %4107 = vmatpush1.bf16.msra.mxu0 %v4097
    %4108 = vmatprep.subr.bf16.mxu0 0
    %4109 = vmatpush1.bf16.msra.mxu0 %v4096
    %4110 = vmatprep.subr.bf16.mxu0 0
    %4111 = vmatpush1.bf16.msra.mxu0 %v4095
    %4112 = vmatprep.subr.bf16.mxu0 0
    %4113 = vmatpush1.bf16.msra.mxu0 %v4094
    %4114 = vmatprep.subr.bf16.mxu0 0
    %4115 = vmatpush1.bf16.msra.mxu0 %v4093
    %4116 = vmatprep.subr.bf16.mxu0 0
    %4117 = vmatpush1.bf16.msra.mxu0 %v4092
    %4118 = vmatprep.subr.bf16.mxu0 0
    %4119 = vmatpush1.bf16.msra.mxu0 %v4091
    %4120 = vmatprep.subr.bf16.mxu0 0
    %4121 = vmatpush1.bf16.msra.mxu0 %v4090
    %4122 = vmatprep.subr.bf16.mxu0 0
    %4123 = vmatpush2.bf16.msra.mxu0 0
    %4124 = vmatprep.subr.bf16.mxu0 0
    %4125 = vmatpush2.bf16.msra.mxu0 0
    %4126 = vmatprep.subr.bf16.mxu0 0
    %4127 = vmatpush2.bf16.msra.mxu0 0
    %4128 = vmatprep.subr.bf16.mxu0 0
    %4129 = vmatpush2.bf16.msra.mxu0 0
    %4130 = vmatprep.subr.bf16.mxu0 0
    %4131 = vmatpush2.bf16.msra.mxu0 0
    %4132 = vmatprep.subr.bf16.mxu0 0
    %4133 = vmatpush2.bf16.msra.mxu0 0
    %4134 = vmatprep.subr.bf16.mxu0 0
    %4135 = vmatpush2.bf16.msra.mxu0 0
    %4136 = vmatprep.subr.bf16.mxu0 0
    %4137 = vmatpush2.bf16.msra.mxu0 0
    %4138 = vmatprep.mubr.bf16.mxu0 0
    %4139 = vmatmul.mubr.bf16.gmra.mxu0 %v3806
    %v4140 = vpop.f32.mrf.mxu0
    %v4141 = vadd.f32 0.0, %v4140
    %v4142 = vpop.f32.mrf.mxu0
    %v4143 = vpop.f32.mrf.mxu0
    %v4144 = vadd.f32 0.0, %v4143
    %v4145 = vpop.f32.mrf.mxu0
    %4146 = vdwg.mxu0
    %v4147 = vunpack.c.l.bf16 %v3779
    %v4148 = vunpack.c.l.bf16 %v3781
    %v4149 = vadd.f32 %v4147, %v4141
    %v4150 = vadd.f32 %v4148, %v4144
    %v4151 = vtanh.pop %v4149
    %v4152 = vtanh.pop %v4150
    %v4153 = vmul.f32 %v4039, %v4151
    %v4154 = vmul.f32 %v4041, %v4152
    %v4155 = vadd.f32 %v3919, %v4153
    %v4156 = vadd.f32 %v3920, %v4154
    %v4157 = vld [vmem:[#allocation2 + $0xc] sm:$0xf]
    %v4158 = vld [vmem:[#allocation2 + $0x1c] sm:$0xf]
    %v4159 = vld [vmem:[#allocation2 + $0x2c] sm:$0xf]
    %v4160 = vld [vmem:[#allocation2 + $0x3c] sm:$0xf]
    %v4161 = vld [vmem:[#allocation2 + $0x4c] sm:$0xf]
    %v4162 = vld [vmem:[#allocation2 + $0x5c] sm:$0xf]
    %v4163 = vld [vmem:[#allocation2 + $0x6c] sm:$0xf]
    %v4164 = vld [vmem:[#allocation2 + $0x7c] sm:$0xf]
    %v4165 = vld [vmem:[#allocation2 + $0x8c] sm:$0xf]
    %v4166 = vld [vmem:[#allocation2 + $0x9c] sm:$0xf]
    %v4167 = vld [vmem:[#allocation2 + $0xac] sm:$0xf]
    %v4168 = vld [vmem:[#allocation2 + $0xbc] sm:$0xf]
    %v4169 = vld [vmem:[#allocation2 + $0xcc] sm:$0xf]
    %v4170 = vld [vmem:[#allocation2 + $0xdc] sm:$0xf]
    %v4171 = vld [vmem:[#allocation2 + $0xec] sm:$0xf]
    %v4172 = vld [vmem:[#allocation2 + $0xfc] sm:$0xf]
    %v4189 = vunpack.c.l.b16 %v4157
    %v4190 = vunpack.c.l.b16 %v4158
    %v4191 = vunpack.c.l.b16 %v4159
    %v4192 = vunpack.c.l.b16 %v4160
    %v4193 = vunpack.c.l.b16 %v4161
    %v4194 = vunpack.c.l.b16 %v4162
    %v4195 = vunpack.c.l.b16 %v4163
    %v4196 = vunpack.c.l.b16 %v4164
    %v4197 = vunpack.c.l.b16 %v4165
    %v4198 = vunpack.c.l.b16 %v4166
    %v4199 = vunpack.c.l.b16 %v4167
    %v4200 = vunpack.c.l.b16 %v4168
    %v4201 = vunpack.c.l.b16 %v4169
    %v4202 = vunpack.c.l.b16 %v4170
    %v4203 = vunpack.c.l.b16 %v4171
    %v4204 = vunpack.c.l.b16 %v4172
    %v4205 = vpack.c.b16 %v4190, %v4189
    %v4206 = vpack.c.b16 %v4192, %v4191
    %v4207 = vpack.c.b16 %v4194, %v4193
    %v4208 = vpack.c.b16 %v4196, %v4195
    %v4209 = vpack.c.b16 %v4198, %v4197
    %v4210 = vpack.c.b16 %v4200, %v4199
    %v4211 = vpack.c.b16 %v4202, %v4201
    %v4212 = vpack.c.b16 %v4204, %v4203
    %4221 = vmatprep.subr.bf16.mxu0 0
    %4222 = vmatpush1.bf16.msra.mxu0 %v4212
    %4223 = vmatprep.subr.bf16.mxu0 0
    %4224 = vmatpush1.bf16.msra.mxu0 %v4211
    %4225 = vmatprep.subr.bf16.mxu0 0
    %4226 = vmatpush1.bf16.msra.mxu0 %v4210
    %4227 = vmatprep.subr.bf16.mxu0 0
    %4228 = vmatpush1.bf16.msra.mxu0 %v4209
    %4229 = vmatprep.subr.bf16.mxu0 0
    %4230 = vmatpush1.bf16.msra.mxu0 %v4208
    %4231 = vmatprep.subr.bf16.mxu0 0
    %4232 = vmatpush1.bf16.msra.mxu0 %v4207
    %4233 = vmatprep.subr.bf16.mxu0 0
    %4234 = vmatpush1.bf16.msra.mxu0 %v4206
    %4235 = vmatprep.subr.bf16.mxu0 0
    %4236 = vmatpush1.bf16.msra.mxu0 %v4205
    %4237 = vmatprep.subr.bf16.mxu0 0
    %4238 = vmatpush2.bf16.msra.mxu0 0
    %4239 = vmatprep.subr.bf16.mxu0 0
    %4240 = vmatpush2.bf16.msra.mxu0 0
    %4241 = vmatprep.subr.bf16.mxu0 0
    %4242 = vmatpush2.bf16.msra.mxu0 0
    %4243 = vmatprep.subr.bf16.mxu0 0
    %4244 = vmatpush2.bf16.msra.mxu0 0
    %4245 = vmatprep.subr.bf16.mxu0 0
    %4246 = vmatpush2.bf16.msra.mxu0 0
    %4247 = vmatprep.subr.bf16.mxu0 0
    %4248 = vmatpush2.bf16.msra.mxu0 0
    %4249 = vmatprep.subr.bf16.mxu0 0
    %4250 = vmatpush2.bf16.msra.mxu0 0
    %4251 = vmatprep.subr.bf16.mxu0 0
    %4252 = vmatpush2.bf16.msra.mxu0 0
    %4253 = vmatprep.mubr.bf16.mxu0 0
    %4254 = vmatmul.mubr.bf16.gmra.mxu0 %v3806
    %v4255 = vpop.f32.mrf.mxu0
    %v4256 = vadd.f32 0.0, %v4255
    %v4257 = vpop.f32.mrf.mxu0
    %v4258 = vpop.f32.mrf.mxu0
    %v4259 = vadd.f32 0.0, %v4258
    %v4260 = vpop.f32.mrf.mxu0
    %4261 = vdwg.mxu0
    %v4264 = vrot.slane %v3779, 4
    %v4265 = vrot.slane %v3781, 4
    %v4268 = vunpack.c.l.bf16 %v4264
    %v4269 = vunpack.c.l.bf16 %v4265
    %v4270 = vadd.f32 %v4268, %v4256
    %v4271 = vadd.f32 %v4269, %v4259
    %v4272 = vxor.u32 %v4270, 2147483648
    %v4273 = vxor.u32 %v4271, 2147483648
    %v4274 = vmul.f32 %v4272, 1.442695
    %v4275 = vpow.pop %v4274
    %v4276 = vmul.f32 %v4273, 1.442695
    %v4277 = vpow.pop %v4276
    %v4278 = vadd.f32 %v4275, 1.0
    %v4279 = vadd.f32 %v4277, 1.0
    %v4280 = vrcp.pop %v4278
    %v4281 = vmul.f32 1.0, %v4280
    %v4282 = vrcp.pop %v4279
    %v4283 = vmul.f32 1.0, %v4282
    %v4284 = vtanh.pop %v4155
    %v4285 = vtanh.pop %v4156
    %v4286 = vmul.f32 %v4281, %v4284
    %v4287 = vmul.f32 %v4283, %v4285
    %v4288 = vpack.c.bf16 %v4287, %v4286
    %v4290 = vunpack.c.l.b16 %v4288
    %v4291 = vunpack.c.h.b16 %v4288
    %v4292 = vpack.c.b16 %v4290, %v4290
    %v4293 = vpack.c.b16 %v4291, %v4291
    %4296 = vst [vmem:[#allocation3] sm:$0xf] %v4292
    %4297 = vst [vmem:[#allocation3 + $0x4] sm:$0xf] %v4293
    %4298 = vst [vmem:[#allocation4] sm:$0xff] %v4155
    %4299 = vst [vmem:[#allocation4 + $0x8] sm:$0xff] %v4156
    %s4300 = scalar_lea.vmem [#allocation12], 112
    %4301 = vst [vmem:[%s4300] sm:$0xff] %v4286
    %4302 = vst [vmem:[%s4300 + $0x8] sm:$0xff] %v4287
    %s4303 = scalar_lea.vmem [#allocation6], 256
    %v4304 = vld [vmem:[%s4303] sm:$0xff]
    %v4305 = vld [vmem:[%s4303 + $0x8] sm:$0xff]
    %v4306 = vld [vmem:[%s4303 + $0x10] sm:$0xff]
    %v4307 = vld [vmem:[%s4303 + $0x18] sm:$0xff]
    %v4308 = vld [vmem:[#allocation3] sm:$0xf]
    %v4309 = vld [vmem:[#allocation3 + $0x4] sm:$0xf]
    %v4310 = vld [vmem:[#allocation4] sm:$0xff]
    %v4311 = vld [vmem:[#allocation4 + $0x8] sm:$0xff]
    %v4312 = vld [vmem:[#allocation2 + $0x4] sm:$0xf]
    %v4313 = vld [vmem:[#allocation2 + $0x14] sm:$0xf]
    %v4314 = vld [vmem:[#allocation2 + $0x24] sm:$0xf]
    %v4315 = vld [vmem:[#allocation2 + $0x34] sm:$0xf]
    %v4316 = vld [vmem:[#allocation2 + $0x44] sm:$0xf]
    %v4317 = vld [vmem:[#allocation2 + $0x54] sm:$0xf]
    %v4318 = vld [vmem:[#allocation2 + $0x64] sm:$0xf]
    %v4319 = vld [vmem:[#allocation2 + $0x74] sm:$0xf]
    %v4320 = vld [vmem:[#allocation2 + $0x84] sm:$0xf]
    %v4321 = vld [vmem:[#allocation2 + $0x94] sm:$0xf]
    %v4322 = vld [vmem:[#allocation2 + $0xa4] sm:$0xf]
    %v4323 = vld [vmem:[#allocation2 + $0xb4] sm:$0xf]
    %v4324 = vld [vmem:[#allocation2 + $0xc4] sm:$0xf]
    %v4325 = vld [vmem:[#allocation2 + $0xd4] sm:$0xf]
    %v4326 = vld [vmem:[#allocation2 + $0xe4] sm:$0xf]
    %v4327 = vld [vmem:[#allocation2 + $0xf4] sm:$0xf]
    %v4330 = vunpack.c.l.b16 %v4308
    %v4331 = vunpack.c.l.b16 %v4309
    %v4332 = vpack.c.b16 %v4331, %v4330
    %v4350 = vunpack.c.l.b16 %v4312
    %v4351 = vunpack.c.l.b16 %v4313
    %v4352 = vunpack.c.l.b16 %v4314
    %v4353 = vunpack.c.l.b16 %v4315
    %v4354 = vunpack.c.l.b16 %v4316
    %v4355 = vunpack.c.l.b16 %v4317
    %v4356 = vunpack.c.l.b16 %v4318
    %v4357 = vunpack.c.l.b16 %v4319
    %v4358 = vunpack.c.l.b16 %v4320
    %v4359 = vunpack.c.l.b16 %v4321
    %v4360 = vunpack.c.l.b16 %v4322
    %v4361 = vunpack.c.l.b16 %v4323
    %v4362 = vunpack.c.l.b16 %v4324
    %v4363 = vunpack.c.l.b16 %v4325
    %v4364 = vunpack.c.l.b16 %v4326
    %v4365 = vunpack.c.l.b16 %v4327
    %v4366 = vpack.c.b16 %v4351, %v4350
    %v4367 = vpack.c.b16 %v4353, %v4352
    %v4368 = vpack.c.b16 %v4355, %v4354
    %v4369 = vpack.c.b16 %v4357, %v4356
    %v4370 = vpack.c.b16 %v4359, %v4358
    %v4371 = vpack.c.b16 %v4361, %v4360
    %v4372 = vpack.c.b16 %v4363, %v4362
    %v4373 = vpack.c.b16 %v4365, %v4364
    %4382 = vmatprep.subr.bf16.mxu0 0
    %4383 = vmatpush1.bf16.msra.mxu0 %v4373
    %4384 = vmatprep.subr.bf16.mxu0 0
    %4385 = vmatpush1.bf16.msra.mxu0 %v4372
    %4386 = vmatprep.subr.bf16.mxu0 0
    %4387 = vmatpush1.bf16.msra.mxu0 %v4371
    %4388 = vmatprep.subr.bf16.mxu0 0
    %4389 = vmatpush1.bf16.msra.mxu0 %v4370
    %4390 = vmatprep.subr.bf16.mxu0 0
    %4391 = vmatpush1.bf16.msra.mxu0 %v4369
    %4392 = vmatprep.subr.bf16.mxu0 0
    %4393 = vmatpush1.bf16.msra.mxu0 %v4368
    %4394 = vmatprep.subr.bf16.mxu0 0
    %4395 = vmatpush1.bf16.msra.mxu0 %v4367
    %4396 = vmatprep.subr.bf16.mxu0 0
    %4397 = vmatpush1.bf16.msra.mxu0 %v4366
    %4398 = vmatprep.subr.bf16.mxu0 0
    %4399 = vmatpush2.bf16.msra.mxu0 0
    %4400 = vmatprep.subr.bf16.mxu0 0
    %4401 = vmatpush2.bf16.msra.mxu0 0
    %4402 = vmatprep.subr.bf16.mxu0 0
    %4403 = vmatpush2.bf16.msra.mxu0 0
    %4404 = vmatprep.subr.bf16.mxu0 0
    %4405 = vmatpush2.bf16.msra.mxu0 0
    %4406 = vmatprep.subr.bf16.mxu0 0
    %4407 = vmatpush2.bf16.msra.mxu0 0
    %4408 = vmatprep.subr.bf16.mxu0 0
    %4409 = vmatpush2.bf16.msra.mxu0 0
    %4410 = vmatprep.subr.bf16.mxu0 0
    %4411 = vmatpush2.bf16.msra.mxu0 0
    %4412 = vmatprep.subr.bf16.mxu0 0
    %4413 = vmatpush2.bf16.msra.mxu0 0
    %4414 = vmatprep.mubr.bf16.mxu0 0
    %4415 = vmatmul.mubr.bf16.gmra.mxu0 %v4332
    %v4416 = vpop.f32.mrf.mxu0
    %v4417 = vadd.f32 0.0, %v4416
    %v4418 = vpop.f32.mrf.mxu0
    %v4419 = vpop.f32.mrf.mxu0
    %v4420 = vadd.f32 0.0, %v4419
    %v4421 = vpop.f32.mrf.mxu0
    %4422 = vdwg.mxu0
    %v4425 = vrot.slane %v4304, 4
    %v4426 = vrot.slane %v4306, 4
    %v4429 = vunpack.c.l.bf16 %v4425
    %v4430 = vunpack.c.l.bf16 %v4426
    %v4431 = vadd.f32 %v4429, %v4417
    %v4432 = vadd.f32 %v4430, %v4420
    %v4433 = vxor.u32 %v4431, 2147483648
    %v4434 = vxor.u32 %v4432, 2147483648
    %v4435 = vmul.f32 %v4433, 1.442695
    %v4436 = vpow.pop %v4435
    %v4437 = vmul.f32 %v4434, 1.442695
    %v4438 = vpow.pop %v4437
    %v4439 = vadd.f32 %v4436, 1.0
    %v4440 = vadd.f32 %v4438, 1.0
    %v4441 = vrcp.pop %v4439
    %v4442 = vmul.f32 1.0, %v4441
    %v4443 = vrcp.pop %v4440
    %v4444 = vmul.f32 1.0, %v4443
    %v4445 = vmul.f32 %v4442, %v4310
    %v4446 = vmul.f32 %v4444, %v4311
    %v4447 = vld [vmem:[#allocation2] sm:$0xf]
    %v4448 = vld [vmem:[#allocation2 + $0x10] sm:$0xf]
    %v4449 = vld [vmem:[#allocation2 + $0x20] sm:$0xf]
    %v4450 = vld [vmem:[#allocation2 + $0x30] sm:$0xf]
    %v4451 = vld [vmem:[#allocation2 + $0x40] sm:$0xf]
    %v4452 = vld [vmem:[#allocation2 + $0x50] sm:$0xf]
    %v4453 = vld [vmem:[#allocation2 + $0x60] sm:$0xf]
    %v4454 = vld [vmem:[#allocation2 + $0x70] sm:$0xf]
    %v4455 = vld [vmem:[#allocation2 + $0x80] sm:$0xf]
    %v4456 = vld [vmem:[#allocation2 + $0x90] sm:$0xf]
    %v4457 = vld [vmem:[#allocation2 + $0xa0] sm:$0xf]
    %v4458 = vld [vmem:[#allocation2 + $0xb0] sm:$0xf]
    %v4459 = vld [vmem:[#allocation2 + $0xc0] sm:$0xf]
    %v4460 = vld [vmem:[#allocation2 + $0xd0] sm:$0xf]
    %v4461 = vld [vmem:[#allocation2 + $0xe0] sm:$0xf]
    %v4462 = vld [vmem:[#allocation2 + $0xf0] sm:$0xf]
    %v4479 = vunpack.c.l.b16 %v4447
    %v4480 = vunpack.c.l.b16 %v4448
    %v4481 = vunpack.c.l.b16 %v4449
    %v4482 = vunpack.c.l.b16 %v4450
    %v4483 = vunpack.c.l.b16 %v4451
    %v4484 = vunpack.c.l.b16 %v4452
    %v4485 = vunpack.c.l.b16 %v4453
    %v4486 = vunpack.c.l.b16 %v4454
    %v4487 = vunpack.c.l.b16 %v4455
    %v4488 = vunpack.c.l.b16 %v4456
    %v4489 = vunpack.c.l.b16 %v4457
    %v4490 = vunpack.c.l.b16 %v4458
    %v4491 = vunpack.c.l.b16 %v4459
    %v4492 = vunpack.c.l.b16 %v4460
    %v4493 = vunpack.c.l.b16 %v4461
    %v4494 = vunpack.c.l.b16 %v4462
    %v4495 = vpack.c.b16 %v4480, %v4479
    %v4496 = vpack.c.b16 %v4482, %v4481
    %v4497 = vpack.c.b16 %v4484, %v4483
    %v4498 = vpack.c.b16 %v4486, %v4485
    %v4499 = vpack.c.b16 %v4488, %v4487
    %v4500 = vpack.c.b16 %v4490, %v4489
    %v4501 = vpack.c.b16 %v4492, %v4491
    %v4502 = vpack.c.b16 %v4494, %v4493
    %4511 = vmatprep.subr.bf16.mxu0 0
    %4512 = vmatpush1.bf16.msra.mxu0 %v4502
    %4513 = vmatprep.subr.bf16.mxu0 0
    %4514 = vmatpush1.bf16.msra.mxu0 %v4501
    %4515 = vmatprep.subr.bf16.mxu0 0
    %4516 = vmatpush1.bf16.msra.mxu0 %v4500
    %4517 = vmatprep.subr.bf16.mxu0 0
    %4518 = vmatpush1.bf16.msra.mxu0 %v4499
    %4519 = vmatprep.subr.bf16.mxu0 0
    %4520 = vmatpush1.bf16.msra.mxu0 %v4498
    %4521 = vmatprep.subr.bf16.mxu0 0
    %4522 = vmatpush1.bf16.msra.mxu0 %v4497
    %4523 = vmatprep.subr.bf16.mxu0 0
    %4524 = vmatpush1.bf16.msra.mxu0 %v4496
    %4525 = vmatprep.subr.bf16.mxu0 0
    %4526 = vmatpush1.bf16.msra.mxu0 %v4495
    %4527 = vmatprep.subr.bf16.mxu0 0
    %4528 = vmatpush2.bf16.msra.mxu0 0
    %4529 = vmatprep.subr.bf16.mxu0 0
    %4530 = vmatpush2.bf16.msra.mxu0 0
    %4531 = vmatprep.subr.bf16.mxu0 0
    %4532 = vmatpush2.bf16.msra.mxu0 0
    %4533 = vmatprep.subr.bf16.mxu0 0
    %4534 = vmatpush2.bf16.msra.mxu0 0
    %4535 = vmatprep.subr.bf16.mxu0 0
    %4536 = vmatpush2.bf16.msra.mxu0 0
    %4537 = vmatprep.subr.bf16.mxu0 0
    %4538 = vmatpush2.bf16.msra.mxu0 0
    %4539 = vmatprep.subr.bf16.mxu0 0
    %4540 = vmatpush2.bf16.msra.mxu0 0
    %4541 = vmatprep.subr.bf16.mxu0 0
    %4542 = vmatpush2.bf16.msra.mxu0 0
    %4543 = vmatprep.mubr.bf16.mxu0 0
    %4544 = vmatmul.mubr.bf16.gmra.mxu0 %v4332
    %v4545 = vpop.f32.mrf.mxu0
    %v4546 = vadd.f32 0.0, %v4545
    %v4547 = vpop.f32.mrf.mxu0
    %v4548 = vpop.f32.mrf.mxu0
    %v4549 = vadd.f32 0.0, %v4548
    %v4550 = vpop.f32.mrf.mxu0
    %4551 = vdwg.mxu0
    %v4552 = vunpack.c.l.bf16 %v4304
    %v4553 = vunpack.c.l.bf16 %v4306
    %v4554 = vadd.f32 %v4552, %v4546
    %v4555 = vadd.f32 %v4553, %v4549
    %v4556 = vxor.u32 %v4554, 2147483648
    %v4557 = vxor.u32 %v4555, 2147483648
    %v4558 = vmul.f32 %v4556, 1.442695
    %v4559 = vpow.pop %v4558
    %v4560 = vmul.f32 %v4557, 1.442695
    %v4561 = vpow.pop %v4560
    %v4562 = vadd.f32 %v4559, 1.0
    %v4563 = vadd.f32 %v4561, 1.0
    %v4564 = vrcp.pop %v4562
    %v4565 = vmul.f32 1.0, %v4564
    %v4566 = vrcp.pop %v4563
    %v4567 = vmul.f32 1.0, %v4566
    %v4568 = vld [vmem:[#allocation2 + $0x8] sm:$0xf]
    %v4569 = vld [vmem:[#allocation2 + $0x18] sm:$0xf]
    %v4570 = vld [vmem:[#allocation2 + $0x28] sm:$0xf]
    %v4571 = vld [vmem:[#allocation2 + $0x38] sm:$0xf]
    %v4572 = vld [vmem:[#allocation2 + $0x48] sm:$0xf]
    %v4573 = vld [vmem:[#allocation2 + $0x58] sm:$0xf]
    %v4574 = vld [vmem:[#allocation2 + $0x68] sm:$0xf]
    %v4575 = vld [vmem:[#allocation2 + $0x78] sm:$0xf]
    %v4576 = vld [vmem:[#allocation2 + $0x88] sm:$0xf]
    %v4577 = vld [vmem:[#allocation2 + $0x98] sm:$0xf]
    %v4578 = vld [vmem:[#allocation2 + $0xa8] sm:$0xf]
    %v4579 = vld [vmem:[#allocation2 + $0xb8] sm:$0xf]
    %v4580 = vld [vmem:[#allocation2 + $0xc8] sm:$0xf]
    %v4581 = vld [vmem:[#allocation2 + $0xd8] sm:$0xf]
    %v4582 = vld [vmem:[#allocation2 + $0xe8] sm:$0xf]
    %v4583 = vld [vmem:[#allocation2 + $0xf8] sm:$0xf]
    %v4600 = vunpack.c.l.b16 %v4568
    %v4601 = vunpack.c.l.b16 %v4569
    %v4602 = vunpack.c.l.b16 %v4570
    %v4603 = vunpack.c.l.b16 %v4571
    %v4604 = vunpack.c.l.b16 %v4572
    %v4605 = vunpack.c.l.b16 %v4573
    %v4606 = vunpack.c.l.b16 %v4574
    %v4607 = vunpack.c.l.b16 %v4575
    %v4608 = vunpack.c.l.b16 %v4576
    %v4609 = vunpack.c.l.b16 %v4577
    %v4610 = vunpack.c.l.b16 %v4578
    %v4611 = vunpack.c.l.b16 %v4579
    %v4612 = vunpack.c.l.b16 %v4580
    %v4613 = vunpack.c.l.b16 %v4581
    %v4614 = vunpack.c.l.b16 %v4582
    %v4615 = vunpack.c.l.b16 %v4583
    %v4616 = vpack.c.b16 %v4601, %v4600
    %v4617 = vpack.c.b16 %v4603, %v4602
    %v4618 = vpack.c.b16 %v4605, %v4604
    %v4619 = vpack.c.b16 %v4607, %v4606
    %v4620 = vpack.c.b16 %v4609, %v4608
    %v4621 = vpack.c.b16 %v4611, %v4610
    %v4622 = vpack.c.b16 %v4613, %v4612
    %v4623 = vpack.c.b16 %v4615, %v4614
    %4632 = vmatprep.subr.bf16.mxu0 0
    %4633 = vmatpush1.bf16.msra.mxu0 %v4623
    %4634 = vmatprep.subr.bf16.mxu0 0
    %4635 = vmatpush1.bf16.msra.mxu0 %v4622
    %4636 = vmatprep.subr.bf16.mxu0 0
    %4637 = vmatpush1.bf16.msra.mxu0 %v4621
    %4638 = vmatprep.subr.bf16.mxu0 0
    %4639 = vmatpush1.bf16.msra.mxu0 %v4620
    %4640 = vmatprep.subr.bf16.mxu0 0
    %4641 = vmatpush1.bf16.msra.mxu0 %v4619
    %4642 = vmatprep.subr.bf16.mxu0 0
    %4643 = vmatpush1.bf16.msra.mxu0 %v4618
    %4644 = vmatprep.subr.bf16.mxu0 0
    %4645 = vmatpush1.bf16.msra.mxu0 %v4617
    %4646 = vmatprep.subr.bf16.mxu0 0
    %4647 = vmatpush1.bf16.msra.mxu0 %v4616
    %4648 = vmatprep.subr.bf16.mxu0 0
    %4649 = vmatpush2.bf16.msra.mxu0 0
    %4650 = vmatprep.subr.bf16.mxu0 0
    %4651 = vmatpush2.bf16.msra.mxu0 0
    %4652 = vmatprep.subr.bf16.mxu0 0
    %4653 = vmatpush2.bf16.msra.mxu0 0
    %4654 = vmatprep.subr.bf16.mxu0 0
    %4655 = vmatpush2.bf16.msra.mxu0 0
    %4656 = vmatprep.subr.bf16.mxu0 0
    %4657 = vmatpush2.bf16.msra.mxu0 0
    %4658 = vmatprep.subr.bf16.mxu0 0
    %4659 = vmatpush2.bf16.msra.mxu0 0
    %4660 = vmatprep.subr.bf16.mxu0 0
    %4661 = vmatpush2.bf16.msra.mxu0 0
    %4662 = vmatprep.subr.bf16.mxu0 0
    %4663 = vmatpush2.bf16.msra.mxu0 0
    %4664 = vmatprep.mubr.bf16.mxu0 0
    %4665 = vmatmul.mubr.bf16.gmra.mxu0 %v4332
    %v4666 = vpop.f32.mrf.mxu0
    %v4667 = vadd.f32 0.0, %v4666
    %v4668 = vpop.f32.mrf.mxu0
    %v4669 = vpop.f32.mrf.mxu0
    %v4670 = vadd.f32 0.0, %v4669
    %v4671 = vpop.f32.mrf.mxu0
    %4672 = vdwg.mxu0
    %v4673 = vunpack.c.l.bf16 %v4305
    %v4674 = vunpack.c.l.bf16 %v4307
    %v4675 = vadd.f32 %v4673, %v4667
    %v4676 = vadd.f32 %v4674, %v4670
    %v4677 = vtanh.pop %v4675
    %v4678 = vtanh.pop %v4676
    %v4679 = vmul.f32 %v4565, %v4677
    %v4680 = vmul.f32 %v4567, %v4678
    %v4681 = vadd.f32 %v4445, %v4679
    %v4682 = vadd.f32 %v4446, %v4680
    %v4683 = vld [vmem:[#allocation2 + $0xc] sm:$0xf]
    %v4684 = vld [vmem:[#allocation2 + $0x1c] sm:$0xf]
    %v4685 = vld [vmem:[#allocation2 + $0x2c] sm:$0xf]
    %v4686 = vld [vmem:[#allocation2 + $0x3c] sm:$0xf]
    %v4687 = vld [vmem:[#allocation2 + $0x4c] sm:$0xf]
    %v4688 = vld [vmem:[#allocation2 + $0x5c] sm:$0xf]
    %v4689 = vld [vmem:[#allocation2 + $0x6c] sm:$0xf]
    %v4690 = vld [vmem:[#allocation2 + $0x7c] sm:$0xf]
    %v4691 = vld [vmem:[#allocation2 + $0x8c] sm:$0xf]
    %v4692 = vld [vmem:[#allocation2 + $0x9c] sm:$0xf]
    %v4693 = vld [vmem:[#allocation2 + $0xac] sm:$0xf]
    %v4694 = vld [vmem:[#allocation2 + $0xbc] sm:$0xf]
    %v4695 = vld [vmem:[#allocation2 + $0xcc] sm:$0xf]
    %v4696 = vld [vmem:[#allocation2 + $0xdc] sm:$0xf]
    %v4697 = vld [vmem:[#allocation2 + $0xec] sm:$0xf]
    %v4698 = vld [vmem:[#allocation2 + $0xfc] sm:$0xf]
    %v4715 = vunpack.c.l.b16 %v4683
    %v4716 = vunpack.c.l.b16 %v4684
    %v4717 = vunpack.c.l.b16 %v4685
    %v4718 = vunpack.c.l.b16 %v4686
    %v4719 = vunpack.c.l.b16 %v4687
    %v4720 = vunpack.c.l.b16 %v4688
    %v4721 = vunpack.c.l.b16 %v4689
    %v4722 = vunpack.c.l.b16 %v4690
    %v4723 = vunpack.c.l.b16 %v4691
    %v4724 = vunpack.c.l.b16 %v4692
    %v4725 = vunpack.c.l.b16 %v4693
    %v4726 = vunpack.c.l.b16 %v4694
    %v4727 = vunpack.c.l.b16 %v4695
    %v4728 = vunpack.c.l.b16 %v4696
    %v4729 = vunpack.c.l.b16 %v4697
    %v4730 = vunpack.c.l.b16 %v4698
    %v4731 = vpack.c.b16 %v4716, %v4715
    %v4732 = vpack.c.b16 %v4718, %v4717
    %v4733 = vpack.c.b16 %v4720, %v4719
    %v4734 = vpack.c.b16 %v4722, %v4721
    %v4735 = vpack.c.b16 %v4724, %v4723
    %v4736 = vpack.c.b16 %v4726, %v4725
    %v4737 = vpack.c.b16 %v4728, %v4727
    %v4738 = vpack.c.b16 %v4730, %v4729
    %4747 = vmatprep.subr.bf16.mxu0 0
    %4748 = vmatpush1.bf16.msra.mxu0 %v4738
    %4749 = vmatprep.subr.bf16.mxu0 0
    %4750 = vmatpush1.bf16.msra.mxu0 %v4737
    %4751 = vmatprep.subr.bf16.mxu0 0
    %4752 = vmatpush1.bf16.msra.mxu0 %v4736
    %4753 = vmatprep.subr.bf16.mxu0 0
    %4754 = vmatpush1.bf16.msra.mxu0 %v4735
    %4755 = vmatprep.subr.bf16.mxu0 0
    %4756 = vmatpush1.bf16.msra.mxu0 %v4734
    %4757 = vmatprep.subr.bf16.mxu0 0
    %4758 = vmatpush1.bf16.msra.mxu0 %v4733
    %4759 = vmatprep.subr.bf16.mxu0 0
    %4760 = vmatpush1.bf16.msra.mxu0 %v4732
    %4761 = vmatprep.subr.bf16.mxu0 0
    %4762 = vmatpush1.bf16.msra.mxu0 %v4731
    %4763 = vmatprep.subr.bf16.mxu0 0
    %4764 = vmatpush2.bf16.msra.mxu0 0
    %4765 = vmatprep.subr.bf16.mxu0 0
    %4766 = vmatpush2.bf16.msra.mxu0 0
    %4767 = vmatprep.subr.bf16.mxu0 0
    %4768 = vmatpush2.bf16.msra.mxu0 0
    %4769 = vmatprep.subr.bf16.mxu0 0
    %4770 = vmatpush2.bf16.msra.mxu0 0
    %4771 = vmatprep.subr.bf16.mxu0 0
    %4772 = vmatpush2.bf16.msra.mxu0 0
    %4773 = vmatprep.subr.bf16.mxu0 0
    %4774 = vmatpush2.bf16.msra.mxu0 0
    %4775 = vmatprep.subr.bf16.mxu0 0
    %4776 = vmatpush2.bf16.msra.mxu0 0
    %4777 = vmatprep.subr.bf16.mxu0 0
    %4778 = vmatpush2.bf16.msra.mxu0 0
    %4779 = vmatprep.mubr.bf16.mxu0 0
    %4780 = vmatmul.mubr.bf16.gmra.mxu0 %v4332
    %v4781 = vpop.f32.mrf.mxu0
    %v4782 = vadd.f32 0.0, %v4781
    %v4783 = vpop.f32.mrf.mxu0
    %v4784 = vpop.f32.mrf.mxu0
    %v4785 = vadd.f32 0.0, %v4784
    %v4786 = vpop.f32.mrf.mxu0
    %4787 = vdwg.mxu0
    %v4790 = vrot.slane %v4305, 4
    %v4791 = vrot.slane %v4307, 4
    %v4794 = vunpack.c.l.bf16 %v4790
    %v4795 = vunpack.c.l.bf16 %v4791
    %v4796 = vadd.f32 %v4794, %v4782
    %v4797 = vadd.f32 %v4795, %v4785
    %v4798 = vxor.u32 %v4796, 2147483648
    %v4799 = vxor.u32 %v4797, 2147483648
    %v4800 = vmul.f32 %v4798, 1.442695
    %v4801 = vpow.pop %v4800
    %v4802 = vmul.f32 %v4799, 1.442695
    %v4803 = vpow.pop %v4802
    %v4804 = vadd.f32 %v4801, 1.0
    %v4805 = vadd.f32 %v4803, 1.0
    %v4806 = vrcp.pop %v4804
    %v4807 = vmul.f32 1.0, %v4806
    %v4808 = vrcp.pop %v4805
    %v4809 = vmul.f32 1.0, %v4808
    %v4810 = vtanh.pop %v4681
    %v4811 = vtanh.pop %v4682
    %v4812 = vmul.f32 %v4807, %v4810
    %v4813 = vmul.f32 %v4809, %v4811
    %v4814 = vpack.c.bf16 %v4813, %v4812
    %v4816 = vunpack.c.l.b16 %v4814
    %v4817 = vunpack.c.h.b16 %v4814
    %v4818 = vpack.c.b16 %v4816, %v4816
    %v4819 = vpack.c.b16 %v4817, %v4817
    %4822 = vst [vmem:[#allocation3] sm:$0xf] %v4818
    %4823 = vst [vmem:[#allocation3 + $0x4] sm:$0xf] %v4819
    %4824 = vst [vmem:[#allocation4] sm:$0xff] %v4681
    %4825 = vst [vmem:[#allocation4 + $0x8] sm:$0xff] %v4682
    %s4826 = scalar_lea.vmem [#allocation12], 128
    %4827 = vst [vmem:[%s4826] sm:$0xff] %v4812
    %4828 = vst [vmem:[%s4826 + $0x8] sm:$0xff] %v4813
    %s4829 = scalar_lea.vmem [#allocation6], 288
    %v4830 = vld [vmem:[%s4829] sm:$0xff]
    %v4831 = vld [vmem:[%s4829 + $0x8] sm:$0xff]
    %v4832 = vld [vmem:[%s4829 + $0x10] sm:$0xff]
    %v4833 = vld [vmem:[%s4829 + $0x18] sm:$0xff]
    %v4834 = vld [vmem:[#allocation3] sm:$0xf]
    %v4835 = vld [vmem:[#allocation3 + $0x4] sm:$0xf]
    %v4836 = vld [vmem:[#allocation4] sm:$0xff]
    %v4837 = vld [vmem:[#allocation4 + $0x8] sm:$0xff]
    %v4838 = vld [vmem:[#allocation2 + $0x4] sm:$0xf]
    %v4839 = vld [vmem:[#allocation2 + $0x14] sm:$0xf]
    %v4840 = vld [vmem:[#allocation2 + $0x24] sm:$0xf]
    %v4841 = vld [vmem:[#allocation2 + $0x34] sm:$0xf]
    %v4842 = vld [vmem:[#allocation2 + $0x44] sm:$0xf]
    %v4843 = vld [vmem:[#allocation2 + $0x54] sm:$0xf]
    %v4844 = vld [vmem:[#allocation2 + $0x64] sm:$0xf]
    %v4845 = vld [vmem:[#allocation2 + $0x74] sm:$0xf]
    %v4846 = vld [vmem:[#allocation2 + $0x84] sm:$0xf]
    %v4847 = vld [vmem:[#allocation2 + $0x94] sm:$0xf]
    %v4848 = vld [vmem:[#allocation2 + $0xa4] sm:$0xf]
    %v4849 = vld [vmem:[#allocation2 + $0xb4] sm:$0xf]
    %v4850 = vld [vmem:[#allocation2 + $0xc4] sm:$0xf]
    %v4851 = vld [vmem:[#allocation2 + $0xd4] sm:$0xf]
    %v4852 = vld [vmem:[#allocation2 + $0xe4] sm:$0xf]
    %v4853 = vld [vmem:[#allocation2 + $0xf4] sm:$0xf]
    %v4856 = vunpack.c.l.b16 %v4834
    %v4857 = vunpack.c.l.b16 %v4835
    %v4858 = vpack.c.b16 %v4857, %v4856
    %v4876 = vunpack.c.l.b16 %v4838
    %v4877 = vunpack.c.l.b16 %v4839
    %v4878 = vunpack.c.l.b16 %v4840
    %v4879 = vunpack.c.l.b16 %v4841
    %v4880 = vunpack.c.l.b16 %v4842
    %v4881 = vunpack.c.l.b16 %v4843
    %v4882 = vunpack.c.l.b16 %v4844
    %v4883 = vunpack.c.l.b16 %v4845
    %v4884 = vunpack.c.l.b16 %v4846
    %v4885 = vunpack.c.l.b16 %v4847
    %v4886 = vunpack.c.l.b16 %v4848
    %v4887 = vunpack.c.l.b16 %v4849
    %v4888 = vunpack.c.l.b16 %v4850
    %v4889 = vunpack.c.l.b16 %v4851
    %v4890 = vunpack.c.l.b16 %v4852
    %v4891 = vunpack.c.l.b16 %v4853
    %v4892 = vpack.c.b16 %v4877, %v4876
    %v4893 = vpack.c.b16 %v4879, %v4878
    %v4894 = vpack.c.b16 %v4881, %v4880
    %v4895 = vpack.c.b16 %v4883, %v4882
    %v4896 = vpack.c.b16 %v4885, %v4884
    %v4897 = vpack.c.b16 %v4887, %v4886
    %v4898 = vpack.c.b16 %v4889, %v4888
    %v4899 = vpack.c.b16 %v4891, %v4890
    %4908 = vmatprep.subr.bf16.mxu0 0
    %4909 = vmatpush1.bf16.msra.mxu0 %v4899
    %4910 = vmatprep.subr.bf16.mxu0 0
    %4911 = vmatpush1.bf16.msra.mxu0 %v4898
    %4912 = vmatprep.subr.bf16.mxu0 0
    %4913 = vmatpush1.bf16.msra.mxu0 %v4897
    %4914 = vmatprep.subr.bf16.mxu0 0
    %4915 = vmatpush1.bf16.msra.mxu0 %v4896
    %4916 = vmatprep.subr.bf16.mxu0 0
    %4917 = vmatpush1.bf16.msra.mxu0 %v4895
    %4918 = vmatprep.subr.bf16.mxu0 0
    %4919 = vmatpush1.bf16.msra.mxu0 %v4894
    %4920 = vmatprep.subr.bf16.mxu0 0
    %4921 = vmatpush1.bf16.msra.mxu0 %v4893
    %4922 = vmatprep.subr.bf16.mxu0 0
    %4923 = vmatpush1.bf16.msra.mxu0 %v4892
    %4924 = vmatprep.subr.bf16.mxu0 0
    %4925 = vmatpush2.bf16.msra.mxu0 0
    %4926 = vmatprep.subr.bf16.mxu0 0
    %4927 = vmatpush2.bf16.msra.mxu0 0
    %4928 = vmatprep.subr.bf16.mxu0 0
    %4929 = vmatpush2.bf16.msra.mxu0 0
    %4930 = vmatprep.subr.bf16.mxu0 0
    %4931 = vmatpush2.bf16.msra.mxu0 0
    %4932 = vmatprep.subr.bf16.mxu0 0
    %4933 = vmatpush2.bf16.msra.mxu0 0
    %4934 = vmatprep.subr.bf16.mxu0 0
    %4935 = vmatpush2.bf16.msra.mxu0 0
    %4936 = vmatprep.subr.bf16.mxu0 0
    %4937 = vmatpush2.bf16.msra.mxu0 0
    %4938 = vmatprep.subr.bf16.mxu0 0
    %4939 = vmatpush2.bf16.msra.mxu0 0
    %4940 = vmatprep.mubr.bf16.mxu0 0
    %4941 = vmatmul.mubr.bf16.gmra.mxu0 %v4858
    %v4942 = vpop.f32.mrf.mxu0
    %v4943 = vadd.f32 0.0, %v4942
    %v4944 = vpop.f32.mrf.mxu0
    %v4945 = vpop.f32.mrf.mxu0
    %v4946 = vadd.f32 0.0, %v4945
    %v4947 = vpop.f32.mrf.mxu0
    %4948 = vdwg.mxu0
    %v4951 = vrot.slane %v4830, 4
    %v4952 = vrot.slane %v4832, 4
    %v4955 = vunpack.c.l.bf16 %v4951
    %v4956 = vunpack.c.l.bf16 %v4952
    %v4957 = vadd.f32 %v4955, %v4943
    %v4958 = vadd.f32 %v4956, %v4946
    %v4959 = vxor.u32 %v4957, 2147483648
    %v4960 = vxor.u32 %v4958, 2147483648
    %v4961 = vmul.f32 %v4959, 1.442695
    %v4962 = vpow.pop %v4961
    %v4963 = vmul.f32 %v4960, 1.442695
    %v4964 = vpow.pop %v4963
    %v4965 = vadd.f32 %v4962, 1.0
    %v4966 = vadd.f32 %v4964, 1.0
    %v4967 = vrcp.pop %v4965
    %v4968 = vmul.f32 1.0, %v4967
    %v4969 = vrcp.pop %v4966
    %v4970 = vmul.f32 1.0, %v4969
    %v4971 = vmul.f32 %v4968, %v4836
    %v4972 = vmul.f32 %v4970, %v4837
    %v4973 = vld [vmem:[#allocation2] sm:$0xf]
    %v4974 = vld [vmem:[#allocation2 + $0x10] sm:$0xf]
    %v4975 = vld [vmem:[#allocation2 + $0x20] sm:$0xf]
    %v4976 = vld [vmem:[#allocation2 + $0x30] sm:$0xf]
    %v4977 = vld [vmem:[#allocation2 + $0x40] sm:$0xf]
    %v4978 = vld [vmem:[#allocation2 + $0x50] sm:$0xf]
    %v4979 = vld [vmem:[#allocation2 + $0x60] sm:$0xf]
    %v4980 = vld [vmem:[#allocation2 + $0x70] sm:$0xf]
    %v4981 = vld [vmem:[#allocation2 + $0x80] sm:$0xf]
    %v4982 = vld [vmem:[#allocation2 + $0x90] sm:$0xf]
    %v4983 = vld [vmem:[#allocation2 + $0xa0] sm:$0xf]
    %v4984 = vld [vmem:[#allocation2 + $0xb0] sm:$0xf]
    %v4985 = vld [vmem:[#allocation2 + $0xc0] sm:$0xf]
    %v4986 = vld [vmem:[#allocation2 + $0xd0] sm:$0xf]
    %v4987 = vld [vmem:[#allocation2 + $0xe0] sm:$0xf]
    %v4988 = vld [vmem:[#allocation2 + $0xf0] sm:$0xf]
    %v5005 = vunpack.c.l.b16 %v4973
    %v5006 = vunpack.c.l.b16 %v4974
    %v5007 = vunpack.c.l.b16 %v4975
    %v5008 = vunpack.c.l.b16 %v4976
    %v5009 = vunpack.c.l.b16 %v4977
    %v5010 = vunpack.c.l.b16 %v4978
    %v5011 = vunpack.c.l.b16 %v4979
    %v5012 = vunpack.c.l.b16 %v4980
    %v5013 = vunpack.c.l.b16 %v4981
    %v5014 = vunpack.c.l.b16 %v4982
    %v5015 = vunpack.c.l.b16 %v4983
    %v5016 = vunpack.c.l.b16 %v4984
    %v5017 = vunpack.c.l.b16 %v4985
    %v5018 = vunpack.c.l.b16 %v4986
    %v5019 = vunpack.c.l.b16 %v4987
    %v5020 = vunpack.c.l.b16 %v4988
    %v5021 = vpack.c.b16 %v5006, %v5005
    %v5022 = vpack.c.b16 %v5008, %v5007
    %v5023 = vpack.c.b16 %v5010, %v5009
    %v5024 = vpack.c.b16 %v5012, %v5011
    %v5025 = vpack.c.b16 %v5014, %v5013
    %v5026 = vpack.c.b16 %v5016, %v5015
    %v5027 = vpack.c.b16 %v5018, %v5017
    %v5028 = vpack.c.b16 %v5020, %v5019
    %5037 = vmatprep.subr.bf16.mxu0 0
    %5038 = vmatpush1.bf16.msra.mxu0 %v5028
    %5039 = vmatprep.subr.bf16.mxu0 0
    %5040 = vmatpush1.bf16.msra.mxu0 %v5027
    %5041 = vmatprep.subr.bf16.mxu0 0
    %5042 = vmatpush1.bf16.msra.mxu0 %v5026
    %5043 = vmatprep.subr.bf16.mxu0 0
    %5044 = vmatpush1.bf16.msra.mxu0 %v5025
    %5045 = vmatprep.subr.bf16.mxu0 0
    %5046 = vmatpush1.bf16.msra.mxu0 %v5024
    %5047 = vmatprep.subr.bf16.mxu0 0
    %5048 = vmatpush1.bf16.msra.mxu0 %v5023
    %5049 = vmatprep.subr.bf16.mxu0 0
    %5050 = vmatpush1.bf16.msra.mxu0 %v5022
    %5051 = vmatprep.subr.bf16.mxu0 0
    %5052 = vmatpush1.bf16.msra.mxu0 %v5021
    %5053 = vmatprep.subr.bf16.mxu0 0
    %5054 = vmatpush2.bf16.msra.mxu0 0
    %5055 = vmatprep.subr.bf16.mxu0 0
    %5056 = vmatpush2.bf16.msra.mxu0 0
    %5057 = vmatprep.subr.bf16.mxu0 0
    %5058 = vmatpush2.bf16.msra.mxu0 0
    %5059 = vmatprep.subr.bf16.mxu0 0
    %5060 = vmatpush2.bf16.msra.mxu0 0
    %5061 = vmatprep.subr.bf16.mxu0 0
    %5062 = vmatpush2.bf16.msra.mxu0 0
    %5063 = vmatprep.subr.bf16.mxu0 0
    %5064 = vmatpush2.bf16.msra.mxu0 0
    %5065 = vmatprep.subr.bf16.mxu0 0
    %5066 = vmatpush2.bf16.msra.mxu0 0
    %5067 = vmatprep.subr.bf16.mxu0 0
    %5068 = vmatpush2.bf16.msra.mxu0 0
    %5069 = vmatprep.mubr.bf16.mxu0 0
    %5070 = vmatmul.mubr.bf16.gmra.mxu0 %v4858
    %v5071 = vpop.f32.mrf.mxu0
    %v5072 = vadd.f32 0.0, %v5071
    %v5073 = vpop.f32.mrf.mxu0
    %v5074 = vpop.f32.mrf.mxu0
    %v5075 = vadd.f32 0.0, %v5074
    %v5076 = vpop.f32.mrf.mxu0
    %5077 = vdwg.mxu0
    %v5078 = vunpack.c.l.bf16 %v4830
    %v5079 = vunpack.c.l.bf16 %v4832
    %v5080 = vadd.f32 %v5078, %v5072
    %v5081 = vadd.f32 %v5079, %v5075
    %v5082 = vxor.u32 %v5080, 2147483648
    %v5083 = vxor.u32 %v5081, 2147483648
    %v5084 = vmul.f32 %v5082, 1.442695
    %v5085 = vpow.pop %v5084
    %v5086 = vmul.f32 %v5083, 1.442695
    %v5087 = vpow.pop %v5086
    %v5088 = vadd.f32 %v5085, 1.0
    %v5089 = vadd.f32 %v5087, 1.0
    %v5090 = vrcp.pop %v5088
    %v5091 = vmul.f32 1.0, %v5090
    %v5092 = vrcp.pop %v5089
    %v5093 = vmul.f32 1.0, %v5092
    %v5094 = vld [vmem:[#allocation2 + $0x8] sm:$0xf]
    %v5095 = vld [vmem:[#allocation2 + $0x18] sm:$0xf]
    %v5096 = vld [vmem:[#allocation2 + $0x28] sm:$0xf]
    %v5097 = vld [vmem:[#allocation2 + $0x38] sm:$0xf]
    %v5098 = vld [vmem:[#allocation2 + $0x48] sm:$0xf]
    %v5099 = vld [vmem:[#allocation2 + $0x58] sm:$0xf]
    %v5100 = vld [vmem:[#allocation2 + $0x68] sm:$0xf]
    %v5101 = vld [vmem:[#allocation2 + $0x78] sm:$0xf]
    %v5102 = vld [vmem:[#allocation2 + $0x88] sm:$0xf]
    %v5103 = vld [vmem:[#allocation2 + $0x98] sm:$0xf]
    %v5104 = vld [vmem:[#allocation2 + $0xa8] sm:$0xf]
    %v5105 = vld [vmem:[#allocation2 + $0xb8] sm:$0xf]
    %v5106 = vld [vmem:[#allocation2 + $0xc8] sm:$0xf]
    %v5107 = vld [vmem:[#allocation2 + $0xd8] sm:$0xf]
    %v5108 = vld [vmem:[#allocation2 + $0xe8] sm:$0xf]
    %v5109 = vld [vmem:[#allocation2 + $0xf8] sm:$0xf]
    %v5126 = vunpack.c.l.b16 %v5094
    %v5127 = vunpack.c.l.b16 %v5095
    %v5128 = vunpack.c.l.b16 %v5096
    %v5129 = vunpack.c.l.b16 %v5097
    %v5130 = vunpack.c.l.b16 %v5098
    %v5131 = vunpack.c.l.b16 %v5099
    %v5132 = vunpack.c.l.b16 %v5100
    %v5133 = vunpack.c.l.b16 %v5101
    %v5134 = vunpack.c.l.b16 %v5102
    %v5135 = vunpack.c.l.b16 %v5103
    %v5136 = vunpack.c.l.b16 %v5104
    %v5137 = vunpack.c.l.b16 %v5105
    %v5138 = vunpack.c.l.b16 %v5106
    %v5139 = vunpack.c.l.b16 %v5107
    %v5140 = vunpack.c.l.b16 %v5108
    %v5141 = vunpack.c.l.b16 %v5109
    %v5142 = vpack.c.b16 %v5127, %v5126
    %v5143 = vpack.c.b16 %v5129, %v5128
    %v5144 = vpack.c.b16 %v5131, %v5130
    %v5145 = vpack.c.b16 %v5133, %v5132
    %v5146 = vpack.c.b16 %v5135, %v5134
    %v5147 = vpack.c.b16 %v5137, %v5136
    %v5148 = vpack.c.b16 %v5139, %v5138
    %v5149 = vpack.c.b16 %v5141, %v5140
    %5158 = vmatprep.subr.bf16.mxu0 0
    %5159 = vmatpush1.bf16.msra.mxu0 %v5149
    %5160 = vmatprep.subr.bf16.mxu0 0
    %5161 = vmatpush1.bf16.msra.mxu0 %v5148
    %5162 = vmatprep.subr.bf16.mxu0 0
    %5163 = vmatpush1.bf16.msra.mxu0 %v5147
    %5164 = vmatprep.subr.bf16.mxu0 0
    %5165 = vmatpush1.bf16.msra.mxu0 %v5146
    %5166 = vmatprep.subr.bf16.mxu0 0
    %5167 = vmatpush1.bf16.msra.mxu0 %v5145
    %5168 = vmatprep.subr.bf16.mxu0 0
    %5169 = vmatpush1.bf16.msra.mxu0 %v5144
    %5170 = vmatprep.subr.bf16.mxu0 0
    %5171 = vmatpush1.bf16.msra.mxu0 %v5143
    %5172 = vmatprep.subr.bf16.mxu0 0
    %5173 = vmatpush1.bf16.msra.mxu0 %v5142
    %5174 = vmatprep.subr.bf16.mxu0 0
    %5175 = vmatpush2.bf16.msra.mxu0 0
    %5176 = vmatprep.subr.bf16.mxu0 0
    %5177 = vmatpush2.bf16.msra.mxu0 0
    %5178 = vmatprep.subr.bf16.mxu0 0
    %5179 = vmatpush2.bf16.msra.mxu0 0
    %5180 = vmatprep.subr.bf16.mxu0 0
    %5181 = vmatpush2.bf16.msra.mxu0 0
    %5182 = vmatprep.subr.bf16.mxu0 0
    %5183 = vmatpush2.bf16.msra.mxu0 0
    %5184 = vmatprep.subr.bf16.mxu0 0
    %5185 = vmatpush2.bf16.msra.mxu0 0
    %5186 = vmatprep.subr.bf16.mxu0 0
    %5187 = vmatpush2.bf16.msra.mxu0 0
    %5188 = vmatprep.subr.bf16.mxu0 0
    %5189 = vmatpush2.bf16.msra.mxu0 0
    %5190 = vmatprep.mubr.bf16.mxu0 0
    %5191 = vmatmul.mubr.bf16.gmra.mxu0 %v4858
    %v5192 = vpop.f32.mrf.mxu0
    %v5193 = vadd.f32 0.0, %v5192
    %v5194 = vpop.f32.mrf.mxu0
    %v5195 = vpop.f32.mrf.mxu0
    %v5196 = vadd.f32 0.0, %v5195
    %v5197 = vpop.f32.mrf.mxu0
    %5198 = vdwg.mxu0
    %v5199 = vunpack.c.l.bf16 %v4831
    %v5200 = vunpack.c.l.bf16 %v4833
    %v5201 = vadd.f32 %v5199, %v5193
    %v5202 = vadd.f32 %v5200, %v5196
    %v5203 = vtanh.pop %v5201
    %v5204 = vtanh.pop %v5202
    %v5205 = vmul.f32 %v5091, %v5203
    %v5206 = vmul.f32 %v5093, %v5204
    %v5207 = vadd.f32 %v4971, %v5205
    %v5208 = vadd.f32 %v4972, %v5206
    %v5209 = vld [vmem:[#allocation2 + $0xc] sm:$0xf]
    %v5210 = vld [vmem:[#allocation2 + $0x1c] sm:$0xf]
    %v5211 = vld [vmem:[#allocation2 + $0x2c] sm:$0xf]
    %v5212 = vld [vmem:[#allocation2 + $0x3c] sm:$0xf]
    %v5213 = vld [vmem:[#allocation2 + $0x4c] sm:$0xf]
    %v5214 = vld [vmem:[#allocation2 + $0x5c] sm:$0xf]
    %v5215 = vld [vmem:[#allocation2 + $0x6c] sm:$0xf]
    %v5216 = vld [vmem:[#allocation2 + $0x7c] sm:$0xf]
    %v5217 = vld [vmem:[#allocation2 + $0x8c] sm:$0xf]
    %v5218 = vld [vmem:[#allocation2 + $0x9c] sm:$0xf]
    %v5219 = vld [vmem:[#allocation2 + $0xac] sm:$0xf]
    %v5220 = vld [vmem:[#allocation2 + $0xbc] sm:$0xf]
    %v5221 = vld [vmem:[#allocation2 + $0xcc] sm:$0xf]
    %v5222 = vld [vmem:[#allocation2 + $0xdc] sm:$0xf]
    %v5223 = vld [vmem:[#allocation2 + $0xec] sm:$0xf]
    %v5224 = vld [vmem:[#allocation2 + $0xfc] sm:$0xf]
    %v5241 = vunpack.c.l.b16 %v5209
    %v5242 = vunpack.c.l.b16 %v5210
    %v5243 = vunpack.c.l.b16 %v5211
    %v5244 = vunpack.c.l.b16 %v5212
    %v5245 = vunpack.c.l.b16 %v5213
    %v5246 = vunpack.c.l.b16 %v5214
    %v5247 = vunpack.c.l.b16 %v5215
    %v5248 = vunpack.c.l.b16 %v5216
    %v5249 = vunpack.c.l.b16 %v5217
    %v5250 = vunpack.c.l.b16 %v5218
    %v5251 = vunpack.c.l.b16 %v5219
    %v5252 = vunpack.c.l.b16 %v5220
    %v5253 = vunpack.c.l.b16 %v5221
    %v5254 = vunpack.c.l.b16 %v5222
    %v5255 = vunpack.c.l.b16 %v5223
    %v5256 = vunpack.c.l.b16 %v5224
    %v5257 = vpack.c.b16 %v5242, %v5241
    %v5258 = vpack.c.b16 %v5244, %v5243
    %v5259 = vpack.c.b16 %v5246, %v5245
    %v5260 = vpack.c.b16 %v5248, %v5247
    %v5261 = vpack.c.b16 %v5250, %v5249
    %v5262 = vpack.c.b16 %v5252, %v5251
    %v5263 = vpack.c.b16 %v5254, %v5253
    %v5264 = vpack.c.b16 %v5256, %v5255
    %5273 = vmatprep.subr.bf16.mxu0 0
    %5274 = vmatpush1.bf16.msra.mxu0 %v5264
    %5275 = vmatprep.subr.bf16.mxu0 0
    %5276 = vmatpush1.bf16.msra.mxu0 %v5263
    %5277 = vmatprep.subr.bf16.mxu0 0
    %5278 = vmatpush1.bf16.msra.mxu0 %v5262
    %5279 = vmatprep.subr.bf16.mxu0 0
    %5280 = vmatpush1.bf16.msra.mxu0 %v5261
    %5281 = vmatprep.subr.bf16.mxu0 0
    %5282 = vmatpush1.bf16.msra.mxu0 %v5260
    %5283 = vmatprep.subr.bf16.mxu0 0
    %5284 = vmatpush1.bf16.msra.mxu0 %v5259
    %5285 = vmatprep.subr.bf16.mxu0 0
    %5286 = vmatpush1.bf16.msra.mxu0 %v5258
    %5287 = vmatprep.subr.bf16.mxu0 0
    %5288 = vmatpush1.bf16.msra.mxu0 %v5257
    %5289 = vmatprep.subr.bf16.mxu0 0
    %5290 = vmatpush2.bf16.msra.mxu0 0
    %5291 = vmatprep.subr.bf16.mxu0 0
    %5292 = vmatpush2.bf16.msra.mxu0 0
    %5293 = vmatprep.subr.bf16.mxu0 0
    %5294 = vmatpush2.bf16.msra.mxu0 0
    %5295 = vmatprep.subr.bf16.mxu0 0
    %5296 = vmatpush2.bf16.msra.mxu0 0
    %5297 = vmatprep.subr.bf16.mxu0 0
    %5298 = vmatpush2.bf16.msra.mxu0 0
    %5299 = vmatprep.subr.bf16.mxu0 0
    %5300 = vmatpush2.bf16.msra.mxu0 0
    %5301 = vmatprep.subr.bf16.mxu0 0
    %5302 = vmatpush2.bf16.msra.mxu0 0
    %5303 = vmatprep.subr.bf16.mxu0 0
    %5304 = vmatpush2.bf16.msra.mxu0 0
    %5305 = vmatprep.mubr.bf16.mxu0 0
    %5306 = vmatmul.mubr.bf16.gmra.mxu0 %v4858
    %v5307 = vpop.f32.mrf.mxu0
    %v5308 = vadd.f32 0.0, %v5307
    %v5309 = vpop.f32.mrf.mxu0
    %v5310 = vpop.f32.mrf.mxu0
    %v5311 = vadd.f32 0.0, %v5310
    %v5312 = vpop.f32.mrf.mxu0
    %5313 = vdwg.mxu0
    %v5316 = vrot.slane %v4831, 4
    %v5317 = vrot.slane %v4833, 4
    %v5320 = vunpack.c.l.bf16 %v5316
    %v5321 = vunpack.c.l.bf16 %v5317
    %v5322 = vadd.f32 %v5320, %v5308
    %v5323 = vadd.f32 %v5321, %v5311
    %v5324 = vxor.u32 %v5322, 2147483648
    %v5325 = vxor.u32 %v5323, 2147483648
    %v5326 = vmul.f32 %v5324, 1.442695
    %v5327 = vpow.pop %v5326
    %v5328 = vmul.f32 %v5325, 1.442695
    %v5329 = vpow.pop %v5328
    %v5330 = vadd.f32 %v5327, 1.0
    %v5331 = vadd.f32 %v5329, 1.0
    %v5332 = vrcp.pop %v5330
    %v5333 = vmul.f32 1.0, %v5332
    %v5334 = vrcp.pop %v5331
    %v5335 = vmul.f32 1.0, %v5334
    %v5336 = vtanh.pop %v5207
    %v5337 = vtanh.pop %v5208
    %v5338 = vmul.f32 %v5333, %v5336
    %v5339 = vmul.f32 %v5335, %v5337
    %v5340 = vpack.c.bf16 %v5339, %v5338
    %v5342 = vunpack.c.l.b16 %v5340
    %v5343 = vunpack.c.h.b16 %v5340
    %v5344 = vpack.c.b16 %v5342, %v5342
    %v5345 = vpack.c.b16 %v5343, %v5343
    %5348 = vst [vmem:[#allocation3] sm:$0xf] %v5344
    %5349 = vst [vmem:[#allocation3 + $0x4] sm:$0xf] %v5345
    %5350 = vst [vmem:[#allocation4] sm:$0xff] %v5207
    %5351 = vst [vmem:[#allocation4 + $0x8] sm:$0xff] %v5208
    %s5352 = scalar_lea.vmem [#allocation12], 144
    %5353 = vst [vmem:[%s5352] sm:$0xff] %v5338
    %5354 = vst [vmem:[%s5352 + $0x8] sm:$0xff] %v5339
    %s5355 = scalar_lea.vmem [#allocation6], 320
    %v5356 = vld [vmem:[%s5355] sm:$0xff]
    %v5357 = vld [vmem:[%s5355 + $0x8] sm:$0xff]
    %v5358 = vld [vmem:[%s5355 + $0x10] sm:$0xff]
    %v5359 = vld [vmem:[%s5355 + $0x18] sm:$0xff]
    %v5360 = vld [vmem:[#allocation3] sm:$0xf]
    %v5361 = vld [vmem:[#allocation3 + $0x4] sm:$0xf]
    %v5362 = vld [vmem:[#allocation4] sm:$0xff]
    %v5363 = vld [vmem:[#allocation4 + $0x8] sm:$0xff]
    %v5364 = vld [vmem:[#allocation2 + $0x4] sm:$0xf]
    %v5365 = vld [vmem:[#allocation2 + $0x14] sm:$0xf]
    %v5366 = vld [vmem:[#allocation2 + $0x24] sm:$0xf]
    %v5367 = vld [vmem:[#allocation2 + $0x34] sm:$0xf]
    %v5368 = vld [vmem:[#allocation2 + $0x44] sm:$0xf]
    %v5369 = vld [vmem:[#allocation2 + $0x54] sm:$0xf]
    %v5370 = vld [vmem:[#allocation2 + $0x64] sm:$0xf]
    %v5371 = vld [vmem:[#allocation2 + $0x74] sm:$0xf]
    %v5372 = vld [vmem:[#allocation2 + $0x84] sm:$0xf]
    %v5373 = vld [vmem:[#allocation2 + $0x94] sm:$0xf]
    %v5374 = vld [vmem:[#allocation2 + $0xa4] sm:$0xf]
    %v5375 = vld [vmem:[#allocation2 + $0xb4] sm:$0xf]
    %v5376 = vld [vmem:[#allocation2 + $0xc4] sm:$0xf]
    %v5377 = vld [vmem:[#allocation2 + $0xd4] sm:$0xf]
    %v5378 = vld [vmem:[#allocation2 + $0xe4] sm:$0xf]
    %v5379 = vld [vmem:[#allocation2 + $0xf4] sm:$0xf]
    %v5382 = vunpack.c.l.b16 %v5360
    %v5383 = vunpack.c.l.b16 %v5361
    %v5384 = vpack.c.b16 %v5383, %v5382
    %v5402 = vunpack.c.l.b16 %v5364
    %v5403 = vunpack.c.l.b16 %v5365
    %v5404 = vunpack.c.l.b16 %v5366
    %v5405 = vunpack.c.l.b16 %v5367
    %v5406 = vunpack.c.l.b16 %v5368
    %v5407 = vunpack.c.l.b16 %v5369
    %v5408 = vunpack.c.l.b16 %v5370
    %v5409 = vunpack.c.l.b16 %v5371
    %v5410 = vunpack.c.l.b16 %v5372
    %v5411 = vunpack.c.l.b16 %v5373
    %v5412 = vunpack.c.l.b16 %v5374
    %v5413 = vunpack.c.l.b16 %v5375
    %v5414 = vunpack.c.l.b16 %v5376
    %v5415 = vunpack.c.l.b16 %v5377
    %v5416 = vunpack.c.l.b16 %v5378
    %v5417 = vunpack.c.l.b16 %v5379
    %v5418 = vpack.c.b16 %v5403, %v5402
    %v5419 = vpack.c.b16 %v5405, %v5404
    %v5420 = vpack.c.b16 %v5407, %v5406
    %v5421 = vpack.c.b16 %v5409, %v5408
    %v5422 = vpack.c.b16 %v5411, %v5410
    %v5423 = vpack.c.b16 %v5413, %v5412
    %v5424 = vpack.c.b16 %v5415, %v5414
    %v5425 = vpack.c.b16 %v5417, %v5416
    %5434 = vmatprep.subr.bf16.mxu0 0
    %5435 = vmatpush1.bf16.msra.mxu0 %v5425
    %5436 = vmatprep.subr.bf16.mxu0 0
    %5437 = vmatpush1.bf16.msra.mxu0 %v5424
    %5438 = vmatprep.subr.bf16.mxu0 0
    %5439 = vmatpush1.bf16.msra.mxu0 %v5423
    %5440 = vmatprep.subr.bf16.mxu0 0
    %5441 = vmatpush1.bf16.msra.mxu0 %v5422
    %5442 = vmatprep.subr.bf16.mxu0 0
    %5443 = vmatpush1.bf16.msra.mxu0 %v5421
    %5444 = vmatprep.subr.bf16.mxu0 0
    %5445 = vmatpush1.bf16.msra.mxu0 %v5420
    %5446 = vmatprep.subr.bf16.mxu0 0
    %5447 = vmatpush1.bf16.msra.mxu0 %v5419
    %5448 = vmatprep.subr.bf16.mxu0 0
    %5449 = vmatpush1.bf16.msra.mxu0 %v5418
    %5450 = vmatprep.subr.bf16.mxu0 0
    %5451 = vmatpush2.bf16.msra.mxu0 0
    %5452 = vmatprep.subr.bf16.mxu0 0
    %5453 = vmatpush2.bf16.msra.mxu0 0
    %5454 = vmatprep.subr.bf16.mxu0 0
    %5455 = vmatpush2.bf16.msra.mxu0 0
    %5456 = vmatprep.subr.bf16.mxu0 0
    %5457 = vmatpush2.bf16.msra.mxu0 0
    %5458 = vmatprep.subr.bf16.mxu0 0
    %5459 = vmatpush2.bf16.msra.mxu0 0
    %5460 = vmatprep.subr.bf16.mxu0 0
    %5461 = vmatpush2.bf16.msra.mxu0 0
    %5462 = vmatprep.subr.bf16.mxu0 0
    %5463 = vmatpush2.bf16.msra.mxu0 0
    %5464 = vmatprep.subr.bf16.mxu0 0
    %5465 = vmatpush2.bf16.msra.mxu0 0
    %5466 = vmatprep.mubr.bf16.mxu0 0
    %5467 = vmatmul.mubr.bf16.gmra.mxu0 %v5384
    %v5468 = vpop.f32.mrf.mxu0
    %v5469 = vadd.f32 0.0, %v5468
    %v5470 = vpop.f32.mrf.mxu0
    %v5471 = vpop.f32.mrf.mxu0
    %v5472 = vadd.f32 0.0, %v5471
    %v5473 = vpop.f32.mrf.mxu0
    %5474 = vdwg.mxu0
    %v5477 = vrot.slane %v5356, 4
    %v5478 = vrot.slane %v5358, 4
    %v5481 = vunpack.c.l.bf16 %v5477
    %v5482 = vunpack.c.l.bf16 %v5478
    %v5483 = vadd.f32 %v5481, %v5469
    %v5484 = vadd.f32 %v5482, %v5472
    %v5485 = vxor.u32 %v5483, 2147483648
    %v5486 = vxor.u32 %v5484, 2147483648
    %v5487 = vmul.f32 %v5485, 1.442695
    %v5488 = vpow.pop %v5487
    %v5489 = vmul.f32 %v5486, 1.442695
    %v5490 = vpow.pop %v5489
    %v5491 = vadd.f32 %v5488, 1.0
    %v5492 = vadd.f32 %v5490, 1.0
    %v5493 = vrcp.pop %v5491
    %v5494 = vmul.f32 1.0, %v5493
    %v5495 = vrcp.pop %v5492
    %v5496 = vmul.f32 1.0, %v5495
    %v5497 = vmul.f32 %v5494, %v5362
    %v5498 = vmul.f32 %v5496, %v5363
    %v5499 = vld [vmem:[#allocation2] sm:$0xf]
    %v5500 = vld [vmem:[#allocation2 + $0x10] sm:$0xf]
    %v5501 = vld [vmem:[#allocation2 + $0x20] sm:$0xf]
    %v5502 = vld [vmem:[#allocation2 + $0x30] sm:$0xf]
    %v5503 = vld [vmem:[#allocation2 + $0x40] sm:$0xf]
    %v5504 = vld [vmem:[#allocation2 + $0x50] sm:$0xf]
    %v5505 = vld [vmem:[#allocation2 + $0x60] sm:$0xf]
    %v5506 = vld [vmem:[#allocation2 + $0x70] sm:$0xf]
    %v5507 = vld [vmem:[#allocation2 + $0x80] sm:$0xf]
    %v5508 = vld [vmem:[#allocation2 + $0x90] sm:$0xf]
    %v5509 = vld [vmem:[#allocation2 + $0xa0] sm:$0xf]
    %v5510 = vld [vmem:[#allocation2 + $0xb0] sm:$0xf]
    %v5511 = vld [vmem:[#allocation2 + $0xc0] sm:$0xf]
    %v5512 = vld [vmem:[#allocation2 + $0xd0] sm:$0xf]
    %v5513 = vld [vmem:[#allocation2 + $0xe0] sm:$0xf]
    %v5514 = vld [vmem:[#allocation2 + $0xf0] sm:$0xf]
    %v5531 = vunpack.c.l.b16 %v5499
    %v5532 = vunpack.c.l.b16 %v5500
    %v5533 = vunpack.c.l.b16 %v5501
    %v5534 = vunpack.c.l.b16 %v5502
    %v5535 = vunpack.c.l.b16 %v5503
    %v5536 = vunpack.c.l.b16 %v5504
    %v5537 = vunpack.c.l.b16 %v5505
    %v5538 = vunpack.c.l.b16 %v5506
    %v5539 = vunpack.c.l.b16 %v5507
    %v5540 = vunpack.c.l.b16 %v5508
    %v5541 = vunpack.c.l.b16 %v5509
    %v5542 = vunpack.c.l.b16 %v5510
    %v5543 = vunpack.c.l.b16 %v5511
    %v5544 = vunpack.c.l.b16 %v5512
    %v5545 = vunpack.c.l.b16 %v5513
    %v5546 = vunpack.c.l.b16 %v5514
    %v5547 = vpack.c.b16 %v5532, %v5531
    %v5548 = vpack.c.b16 %v5534, %v5533
    %v5549 = vpack.c.b16 %v5536, %v5535
    %v5550 = vpack.c.b16 %v5538, %v5537
    %v5551 = vpack.c.b16 %v5540, %v5539
    %v5552 = vpack.c.b16 %v5542, %v5541
    %v5553 = vpack.c.b16 %v5544, %v5543
    %v5554 = vpack.c.b16 %v5546, %v5545
    %5563 = vmatprep.subr.bf16.mxu0 0
    %5564 = vmatpush1.bf16.msra.mxu0 %v5554
    %5565 = vmatprep.subr.bf16.mxu0 0
    %5566 = vmatpush1.bf16.msra.mxu0 %v5553
    %5567 = vmatprep.subr.bf16.mxu0 0
    %5568 = vmatpush1.bf16.msra.mxu0 %v5552
    %5569 = vmatprep.subr.bf16.mxu0 0
    %5570 = vmatpush1.bf16.msra.mxu0 %v5551
    %5571 = vmatprep.subr.bf16.mxu0 0
    %5572 = vmatpush1.bf16.msra.mxu0 %v5550
    %5573 = vmatprep.subr.bf16.mxu0 0
    %5574 = vmatpush1.bf16.msra.mxu0 %v5549
    %5575 = vmatprep.subr.bf16.mxu0 0
    %5576 = vmatpush1.bf16.msra.mxu0 %v5548
    %5577 = vmatprep.subr.bf16.mxu0 0
    %5578 = vmatpush1.bf16.msra.mxu0 %v5547
    %5579 = vmatprep.subr.bf16.mxu0 0
    %5580 = vmatpush2.bf16.msra.mxu0 0
    %5581 = vmatprep.subr.bf16.mxu0 0
    %5582 = vmatpush2.bf16.msra.mxu0 0
    %5583 = vmatprep.subr.bf16.mxu0 0
    %5584 = vmatpush2.bf16.msra.mxu0 0
    %5585 = vmatprep.subr.bf16.mxu0 0
    %5586 = vmatpush2.bf16.msra.mxu0 0
    %5587 = vmatprep.subr.bf16.mxu0 0
    %5588 = vmatpush2.bf16.msra.mxu0 0
    %5589 = vmatprep.subr.bf16.mxu0 0
    %5590 = vmatpush2.bf16.msra.mxu0 0
    %5591 = vmatprep.subr.bf16.mxu0 0
    %5592 = vmatpush2.bf16.msra.mxu0 0
    %5593 = vmatprep.subr.bf16.mxu0 0
    %5594 = vmatpush2.bf16.msra.mxu0 0
    %5595 = vmatprep.mubr.bf16.mxu0 0
    %5596 = vmatmul.mubr.bf16.gmra.mxu0 %v5384
    %v5597 = vpop.f32.mrf.mxu0
    %v5598 = vadd.f32 0.0, %v5597
    %v5599 = vpop.f32.mrf.mxu0
    %v5600 = vpop.f32.mrf.mxu0
    %v5601 = vadd.f32 0.0, %v5600
    %v5602 = vpop.f32.mrf.mxu0
    %5603 = vdwg.mxu0
    %v5604 = vunpack.c.l.bf16 %v5356
    %v5605 = vunpack.c.l.bf16 %v5358
    %v5606 = vadd.f32 %v5604, %v5598
    %v5607 = vadd.f32 %v5605, %v5601
    %v5608 = vxor.u32 %v5606, 2147483648
    %v5609 = vxor.u32 %v5607, 2147483648
    %v5610 = vmul.f32 %v5608, 1.442695
    %v5611 = vpow.pop %v5610
    %v5612 = vmul.f32 %v5609, 1.442695
    %v5613 = vpow.pop %v5612
    %v5614 = vadd.f32 %v5611, 1.0
    %v5615 = vadd.f32 %v5613, 1.0
    %v5616 = vrcp.pop %v5614
    %v5617 = vmul.f32 1.0, %v5616
    %v5618 = vrcp.pop %v5615
    %v5619 = vmul.f32 1.0, %v5618
    %v5620 = vld [vmem:[#allocation2 + $0x8] sm:$0xf]
    %v5621 = vld [vmem:[#allocation2 + $0x18] sm:$0xf]
    %v5622 = vld [vmem:[#allocation2 + $0x28] sm:$0xf]
    %v5623 = vld [vmem:[#allocation2 + $0x38] sm:$0xf]
    %v5624 = vld [vmem:[#allocation2 + $0x48] sm:$0xf]
    %v5625 = vld [vmem:[#allocation2 + $0x58] sm:$0xf]
    %v5626 = vld [vmem:[#allocation2 + $0x68] sm:$0xf]
    %v5627 = vld [vmem:[#allocation2 + $0x78] sm:$0xf]
    %v5628 = vld [vmem:[#allocation2 + $0x88] sm:$0xf]
    %v5629 = vld [vmem:[#allocation2 + $0x98] sm:$0xf]
    %v5630 = vld [vmem:[#allocation2 + $0xa8] sm:$0xf]
    %v5631 = vld [vmem:[#allocation2 + $0xb8] sm:$0xf]
    %v5632 = vld [vmem:[#allocation2 + $0xc8] sm:$0xf]
    %v5633 = vld [vmem:[#allocation2 + $0xd8] sm:$0xf]
    %v5634 = vld [vmem:[#allocation2 + $0xe8] sm:$0xf]
    %v5635 = vld [vmem:[#allocation2 + $0xf8] sm:$0xf]
    %v5652 = vunpack.c.l.b16 %v5620
    %v5653 = vunpack.c.l.b16 %v5621
    %v5654 = vunpack.c.l.b16 %v5622
    %v5655 = vunpack.c.l.b16 %v5623
    %v5656 = vunpack.c.l.b16 %v5624
    %v5657 = vunpack.c.l.b16 %v5625
    %v5658 = vunpack.c.l.b16 %v5626
    %v5659 = vunpack.c.l.b16 %v5627
    %v5660 = vunpack.c.l.b16 %v5628
    %v5661 = vunpack.c.l.b16 %v5629
    %v5662 = vunpack.c.l.b16 %v5630
    %v5663 = vunpack.c.l.b16 %v5631
    %v5664 = vunpack.c.l.b16 %v5632
    %v5665 = vunpack.c.l.b16 %v5633
    %v5666 = vunpack.c.l.b16 %v5634
    %v5667 = vunpack.c.l.b16 %v5635
    %v5668 = vpack.c.b16 %v5653, %v5652
    %v5669 = vpack.c.b16 %v5655, %v5654
    %v5670 = vpack.c.b16 %v5657, %v5656
    %v5671 = vpack.c.b16 %v5659, %v5658
    %v5672 = vpack.c.b16 %v5661, %v5660
    %v5673 = vpack.c.b16 %v5663, %v5662
    %v5674 = vpack.c.b16 %v5665, %v5664
    %v5675 = vpack.c.b16 %v5667, %v5666
    %5684 = vmatprep.subr.bf16.mxu0 0
    %5685 = vmatpush1.bf16.msra.mxu0 %v5675
    %5686 = vmatprep.subr.bf16.mxu0 0
    %5687 = vmatpush1.bf16.msra.mxu0 %v5674
    %5688 = vmatprep.subr.bf16.mxu0 0
    %5689 = vmatpush1.bf16.msra.mxu0 %v5673
    %5690 = vmatprep.subr.bf16.mxu0 0
    %5691 = vmatpush1.bf16.msra.mxu0 %v5672
    %5692 = vmatprep.subr.bf16.mxu0 0
    %5693 = vmatpush1.bf16.msra.mxu0 %v5671
    %5694 = vmatprep.subr.bf16.mxu0 0
    %5695 = vmatpush1.bf16.msra.mxu0 %v5670
    %5696 = vmatprep.subr.bf16.mxu0 0
    %5697 = vmatpush1.bf16.msra.mxu0 %v5669
    %5698 = vmatprep.subr.bf16.mxu0 0
    %5699 = vmatpush1.bf16.msra.mxu0 %v5668
    %5700 = vmatprep.subr.bf16.mxu0 0
    %5701 = vmatpush2.bf16.msra.mxu0 0
    %5702 = vmatprep.subr.bf16.mxu0 0
    %5703 = vmatpush2.bf16.msra.mxu0 0
    %5704 = vmatprep.subr.bf16.mxu0 0
    %5705 = vmatpush2.bf16.msra.mxu0 0
    %5706 = vmatprep.subr.bf16.mxu0 0
    %5707 = vmatpush2.bf16.msra.mxu0 0
    %5708 = vmatprep.subr.bf16.mxu0 0
    %5709 = vmatpush2.bf16.msra.mxu0 0
    %5710 = vmatprep.subr.bf16.mxu0 0
    %5711 = vmatpush2.bf16.msra.mxu0 0
    %5712 = vmatprep.subr.bf16.mxu0 0
    %5713 = vmatpush2.bf16.msra.mxu0 0
    %5714 = vmatprep.subr.bf16.mxu0 0
    %5715 = vmatpush2.bf16.msra.mxu0 0
    %5716 = vmatprep.mubr.bf16.mxu0 0
    %5717 = vmatmul.mubr.bf16.gmra.mxu0 %v5384
    %v5718 = vpop.f32.mrf.mxu0
    %v5719 = vadd.f32 0.0, %v5718
    %v5720 = vpop.f32.mrf.mxu0
    %v5721 = vpop.f32.mrf.mxu0
    %v5722 = vadd.f32 0.0, %v5721
    %v5723 = vpop.f32.mrf.mxu0
    %5724 = vdwg.mxu0
    %v5725 = vunpack.c.l.bf16 %v5357
    %v5726 = vunpack.c.l.bf16 %v5359
    %v5727 = vadd.f32 %v5725, %v5719
    %v5728 = vadd.f32 %v5726, %v5722
    %v5729 = vtanh.pop %v5727
    %v5730 = vtanh.pop %v5728
    %v5731 = vmul.f32 %v5617, %v5729
    %v5732 = vmul.f32 %v5619, %v5730
    %v5733 = vadd.f32 %v5497, %v5731
    %v5734 = vadd.f32 %v5498, %v5732
    %v5735 = vld [vmem:[#allocation2 + $0xc] sm:$0xf]
    %v5736 = vld [vmem:[#allocation2 + $0x1c] sm:$0xf]
    %v5737 = vld [vmem:[#allocation2 + $0x2c] sm:$0xf]
    %v5738 = vld [vmem:[#allocation2 + $0x3c] sm:$0xf]
    %v5739 = vld [vmem:[#allocation2 + $0x4c] sm:$0xf]
    %v5740 = vld [vmem:[#allocation2 + $0x5c] sm:$0xf]
    %v5741 = vld [vmem:[#allocation2 + $0x6c] sm:$0xf]
    %v5742 = vld [vmem:[#allocation2 + $0x7c] sm:$0xf]
    %v5743 = vld [vmem:[#allocation2 + $0x8c] sm:$0xf]
    %v5744 = vld [vmem:[#allocation2 + $0x9c] sm:$0xf]
    %v5745 = vld [vmem:[#allocation2 + $0xac] sm:$0xf]
    %v5746 = vld [vmem:[#allocation2 + $0xbc] sm:$0xf]
    %v5747 = vld [vmem:[#allocation2 + $0xcc] sm:$0xf]
    %v5748 = vld [vmem:[#allocation2 + $0xdc] sm:$0xf]
    %v5749 = vld [vmem:[#allocation2 + $0xec] sm:$0xf]
    %v5750 = vld [vmem:[#allocation2 + $0xfc] sm:$0xf]
    %v5767 = vunpack.c.l.b16 %v5735
    %v5768 = vunpack.c.l.b16 %v5736
    %v5769 = vunpack.c.l.b16 %v5737
    %v5770 = vunpack.c.l.b16 %v5738
    %v5771 = vunpack.c.l.b16 %v5739
    %v5772 = vunpack.c.l.b16 %v5740
    %v5773 = vunpack.c.l.b16 %v5741
    %v5774 = vunpack.c.l.b16 %v5742
    %v5775 = vunpack.c.l.b16 %v5743
    %v5776 = vunpack.c.l.b16 %v5744
    %v5777 = vunpack.c.l.b16 %v5745
    %v5778 = vunpack.c.l.b16 %v5746
    %v5779 = vunpack.c.l.b16 %v5747
    %v5780 = vunpack.c.l.b16 %v5748
    %v5781 = vunpack.c.l.b16 %v5749
    %v5782 = vunpack.c.l.b16 %v5750
    %v5783 = vpack.c.b16 %v5768, %v5767
    %v5784 = vpack.c.b16 %v5770, %v5769
    %v5785 = vpack.c.b16 %v5772, %v5771
    %v5786 = vpack.c.b16 %v5774, %v5773
    %v5787 = vpack.c.b16 %v5776, %v5775
    %v5788 = vpack.c.b16 %v5778, %v5777
    %v5789 = vpack.c.b16 %v5780, %v5779
    %v5790 = vpack.c.b16 %v5782, %v5781
    %5799 = vmatprep.subr.bf16.mxu0 0
    %5800 = vmatpush1.bf16.msra.mxu0 %v5790
    %5801 = vmatprep.subr.bf16.mxu0 0
    %5802 = vmatpush1.bf16.msra.mxu0 %v5789
    %5803 = vmatprep.subr.bf16.mxu0 0
    %5804 = vmatpush1.bf16.msra.mxu0 %v5788
    %5805 = vmatprep.subr.bf16.mxu0 0
    %5806 = vmatpush1.bf16.msra.mxu0 %v5787
    %5807 = vmatprep.subr.bf16.mxu0 0
    %5808 = vmatpush1.bf16.msra.mxu0 %v5786
    %5809 = vmatprep.subr.bf16.mxu0 0
    %5810 = vmatpush1.bf16.msra.mxu0 %v5785
    %5811 = vmatprep.subr.bf16.mxu0 0
    %5812 = vmatpush1.bf16.msra.mxu0 %v5784
    %5813 = vmatprep.subr.bf16.mxu0 0
    %5814 = vmatpush1.bf16.msra.mxu0 %v5783
    %5815 = vmatprep.subr.bf16.mxu0 0
    %5816 = vmatpush2.bf16.msra.mxu0 0
    %5817 = vmatprep.subr.bf16.mxu0 0
    %5818 = vmatpush2.bf16.msra.mxu0 0
    %5819 = vmatprep.subr.bf16.mxu0 0
    %5820 = vmatpush2.bf16.msra.mxu0 0
    %5821 = vmatprep.subr.bf16.mxu0 0
    %5822 = vmatpush2.bf16.msra.mxu0 0
    %5823 = vmatprep.subr.bf16.mxu0 0
    %5824 = vmatpush2.bf16.msra.mxu0 0
    %5825 = vmatprep.subr.bf16.mxu0 0
    %5826 = vmatpush2.bf16.msra.mxu0 0
    %5827 = vmatprep.subr.bf16.mxu0 0
    %5828 = vmatpush2.bf16.msra.mxu0 0
    %5829 = vmatprep.subr.bf16.mxu0 0
    %5830 = vmatpush2.bf16.msra.mxu0 0
    %5831 = vmatprep.mubr.bf16.mxu0 0
    %5832 = vmatmul.mubr.bf16.gmra.mxu0 %v5384
    %v5833 = vpop.f32.mrf.mxu0
    %v5834 = vadd.f32 0.0, %v5833
    %v5835 = vpop.f32.mrf.mxu0
    %v5836 = vpop.f32.mrf.mxu0
    %v5837 = vadd.f32 0.0, %v5836
    %v5838 = vpop.f32.mrf.mxu0
    %5839 = vdwg.mxu0
    %v5842 = vrot.slane %v5357, 4
    %v5843 = vrot.slane %v5359, 4
    %v5846 = vunpack.c.l.bf16 %v5842
    %v5847 = vunpack.c.l.bf16 %v5843
    %v5848 = vadd.f32 %v5846, %v5834
    %v5849 = vadd.f32 %v5847, %v5837
    %v5850 = vxor.u32 %v5848, 2147483648
    %v5851 = vxor.u32 %v5849, 2147483648
    %v5852 = vmul.f32 %v5850, 1.442695
    %v5853 = vpow.pop %v5852
    %v5854 = vmul.f32 %v5851, 1.442695
    %v5855 = vpow.pop %v5854
    %v5856 = vadd.f32 %v5853, 1.0
    %v5857 = vadd.f32 %v5855, 1.0
    %v5858 = vrcp.pop %v5856
    %v5859 = vmul.f32 1.0, %v5858
    %v5860 = vrcp.pop %v5857
    %v5861 = vmul.f32 1.0, %v5860
    %v5862 = vtanh.pop %v5733
    %v5863 = vtanh.pop %v5734
    %v5864 = vmul.f32 %v5859, %v5862
    %v5865 = vmul.f32 %v5861, %v5863
    %v5866 = vpack.c.bf16 %v5865, %v5864
    %v5868 = vunpack.c.l.b16 %v5866
    %v5869 = vunpack.c.h.b16 %v5866
    %v5870 = vpack.c.b16 %v5868, %v5868
    %v5871 = vpack.c.b16 %v5869, %v5869
    %5874 = vst [vmem:[#allocation3] sm:$0xf] %v5870
    %5875 = vst [vmem:[#allocation3 + $0x4] sm:$0xf] %v5871
    %5876 = vst [vmem:[#allocation4] sm:$0xff] %v5733
    %5877 = vst [vmem:[#allocation4 + $0x8] sm:$0xff] %v5734
    %s5878 = scalar_lea.vmem [#allocation12], 160
    %5879 = vst [vmem:[%s5878] sm:$0xff] %v5864
    %5880 = vst [vmem:[%s5878 + $0x8] sm:$0xff] %v5865
    %s5881 = scalar_lea.vmem [#allocation6], 352
    %v5882 = vld [vmem:[%s5881] sm:$0xff]
    %v5883 = vld [vmem:[%s5881 + $0x8] sm:$0xff]
    %v5884 = vld [vmem:[%s5881 + $0x10] sm:$0xff]
    %v5885 = vld [vmem:[%s5881 + $0x18] sm:$0xff]
    %v5886 = vld [vmem:[#allocation3] sm:$0xf]
    %v5887 = vld [vmem:[#allocation3 + $0x4] sm:$0xf]
    %v5888 = vld [vmem:[#allocation4] sm:$0xff]
    %v5889 = vld [vmem:[#allocation4 + $0x8] sm:$0xff]
    %v5890 = vld [vmem:[#allocation2 + $0x4] sm:$0xf]
    %v5891 = vld [vmem:[#allocation2 + $0x14] sm:$0xf]
    %v5892 = vld [vmem:[#allocation2 + $0x24] sm:$0xf]
    %v5893 = vld [vmem:[#allocation2 + $0x34] sm:$0xf]
    %v5894 = vld [vmem:[#allocation2 + $0x44] sm:$0xf]
    %v5895 = vld [vmem:[#allocation2 + $0x54] sm:$0xf]
    %v5896 = vld [vmem:[#allocation2 + $0x64] sm:$0xf]
    %v5897 = vld [vmem:[#allocation2 + $0x74] sm:$0xf]
    %v5898 = vld [vmem:[#allocation2 + $0x84] sm:$0xf]
    %v5899 = vld [vmem:[#allocation2 + $0x94] sm:$0xf]
    %v5900 = vld [vmem:[#allocation2 + $0xa4] sm:$0xf]
    %v5901 = vld [vmem:[#allocation2 + $0xb4] sm:$0xf]
    %v5902 = vld [vmem:[#allocation2 + $0xc4] sm:$0xf]
    %v5903 = vld [vmem:[#allocation2 + $0xd4] sm:$0xf]
    %v5904 = vld [vmem:[#allocation2 + $0xe4] sm:$0xf]
    %v5905 = vld [vmem:[#allocation2 + $0xf4] sm:$0xf]
    %v5908 = vunpack.c.l.b16 %v5886
    %v5909 = vunpack.c.l.b16 %v5887
    %v5910 = vpack.c.b16 %v5909, %v5908
    %v5928 = vunpack.c.l.b16 %v5890
    %v5929 = vunpack.c.l.b16 %v5891
    %v5930 = vunpack.c.l.b16 %v5892
    %v5931 = vunpack.c.l.b16 %v5893
    %v5932 = vunpack.c.l.b16 %v5894
    %v5933 = vunpack.c.l.b16 %v5895
    %v5934 = vunpack.c.l.b16 %v5896
    %v5935 = vunpack.c.l.b16 %v5897
    %v5936 = vunpack.c.l.b16 %v5898
    %v5937 = vunpack.c.l.b16 %v5899
    %v5938 = vunpack.c.l.b16 %v5900
    %v5939 = vunpack.c.l.b16 %v5901
    %v5940 = vunpack.c.l.b16 %v5902
    %v5941 = vunpack.c.l.b16 %v5903
    %v5942 = vunpack.c.l.b16 %v5904
    %v5943 = vunpack.c.l.b16 %v5905
    %v5944 = vpack.c.b16 %v5929, %v5928
    %v5945 = vpack.c.b16 %v5931, %v5930
    %v5946 = vpack.c.b16 %v5933, %v5932
    %v5947 = vpack.c.b16 %v5935, %v5934
    %v5948 = vpack.c.b16 %v5937, %v5936
    %v5949 = vpack.c.b16 %v5939, %v5938
    %v5950 = vpack.c.b16 %v5941, %v5940
    %v5951 = vpack.c.b16 %v5943, %v5942
    %5960 = vmatprep.subr.bf16.mxu0 0
    %5961 = vmatpush1.bf16.msra.mxu0 %v5951
    %5962 = vmatprep.subr.bf16.mxu0 0
    %5963 = vmatpush1.bf16.msra.mxu0 %v5950
    %5964 = vmatprep.subr.bf16.mxu0 0
    %5965 = vmatpush1.bf16.msra.mxu0 %v5949
    %5966 = vmatprep.subr.bf16.mxu0 0
    %5967 = vmatpush1.bf16.msra.mxu0 %v5948
    %5968 = vmatprep.subr.bf16.mxu0 0
    %5969 = vmatpush1.bf16.msra.mxu0 %v5947
    %5970 = vmatprep.subr.bf16.mxu0 0
    %5971 = vmatpush1.bf16.msra.mxu0 %v5946
    %5972 = vmatprep.subr.bf16.mxu0 0
    %5973 = vmatpush1.bf16.msra.mxu0 %v5945
    %5974 = vmatprep.subr.bf16.mxu0 0
    %5975 = vmatpush1.bf16.msra.mxu0 %v5944
    %5976 = vmatprep.subr.bf16.mxu0 0
    %5977 = vmatpush2.bf16.msra.mxu0 0
    %5978 = vmatprep.subr.bf16.mxu0 0
    %5979 = vmatpush2.bf16.msra.mxu0 0
    %5980 = vmatprep.subr.bf16.mxu0 0
    %5981 = vmatpush2.bf16.msra.mxu0 0
    %5982 = vmatprep.subr.bf16.mxu0 0
    %5983 = vmatpush2.bf16.msra.mxu0 0
    %5984 = vmatprep.subr.bf16.mxu0 0
    %5985 = vmatpush2.bf16.msra.mxu0 0
    %5986 = vmatprep.subr.bf16.mxu0 0
    %5987 = vmatpush2.bf16.msra.mxu0 0
    %5988 = vmatprep.subr.bf16.mxu0 0
    %5989 = vmatpush2.bf16.msra.mxu0 0
    %5990 = vmatprep.subr.bf16.mxu0 0
    %5991 = vmatpush2.bf16.msra.mxu0 0
    %5992 = vmatprep.mubr.bf16.mxu0 0
    %5993 = vmatmul.mubr.bf16.gmra.mxu0 %v5910
    %v5994 = vpop.f32.mrf.mxu0
    %v5995 = vadd.f32 0.0, %v5994
    %v5996 = vpop.f32.mrf.mxu0
    %v5997 = vpop.f32.mrf.mxu0
    %v5998 = vadd.f32 0.0, %v5997
    %v5999 = vpop.f32.mrf.mxu0
    %6000 = vdwg.mxu0
    %v6003 = vrot.slane %v5882, 4
    %v6004 = vrot.slane %v5884, 4
    %v6007 = vunpack.c.l.bf16 %v6003
    %v6008 = vunpack.c.l.bf16 %v6004
    %v6009 = vadd.f32 %v6007, %v5995
    %v6010 = vadd.f32 %v6008, %v5998
    %v6011 = vxor.u32 %v6009, 2147483648
    %v6012 = vxor.u32 %v6010, 2147483648
    %v6013 = vmul.f32 %v6011, 1.442695
    %v6014 = vpow.pop %v6013
    %v6015 = vmul.f32 %v6012, 1.442695
    %v6016 = vpow.pop %v6015
    %v6017 = vadd.f32 %v6014, 1.0
    %v6018 = vadd.f32 %v6016, 1.0
    %v6019 = vrcp.pop %v6017
    %v6020 = vmul.f32 1.0, %v6019
    %v6021 = vrcp.pop %v6018
    %v6022 = vmul.f32 1.0, %v6021
    %v6023 = vmul.f32 %v6020, %v5888
    %v6024 = vmul.f32 %v6022, %v5889
    %v6025 = vld [vmem:[#allocation2] sm:$0xf]
    %v6026 = vld [vmem:[#allocation2 + $0x10] sm:$0xf]
    %v6027 = vld [vmem:[#allocation2 + $0x20] sm:$0xf]
    %v6028 = vld [vmem:[#allocation2 + $0x30] sm:$0xf]
    %v6029 = vld [vmem:[#allocation2 + $0x40] sm:$0xf]
    %v6030 = vld [vmem:[#allocation2 + $0x50] sm:$0xf]
    %v6031 = vld [vmem:[#allocation2 + $0x60] sm:$0xf]
    %v6032 = vld [vmem:[#allocation2 + $0x70] sm:$0xf]
    %v6033 = vld [vmem:[#allocation2 + $0x80] sm:$0xf]
    %v6034 = vld [vmem:[#allocation2 + $0x90] sm:$0xf]
    %v6035 = vld [vmem:[#allocation2 + $0xa0] sm:$0xf]
    %v6036 = vld [vmem:[#allocation2 + $0xb0] sm:$0xf]
    %v6037 = vld [vmem:[#allocation2 + $0xc0] sm:$0xf]
    %v6038 = vld [vmem:[#allocation2 + $0xd0] sm:$0xf]
    %v6039 = vld [vmem:[#allocation2 + $0xe0] sm:$0xf]
    %v6040 = vld [vmem:[#allocation2 + $0xf0] sm:$0xf]
    %v6057 = vunpack.c.l.b16 %v6025
    %v6058 = vunpack.c.l.b16 %v6026
    %v6059 = vunpack.c.l.b16 %v6027
    %v6060 = vunpack.c.l.b16 %v6028
    %v6061 = vunpack.c.l.b16 %v6029
    %v6062 = vunpack.c.l.b16 %v6030
    %v6063 = vunpack.c.l.b16 %v6031
    %v6064 = vunpack.c.l.b16 %v6032
    %v6065 = vunpack.c.l.b16 %v6033
    %v6066 = vunpack.c.l.b16 %v6034
    %v6067 = vunpack.c.l.b16 %v6035
    %v6068 = vunpack.c.l.b16 %v6036
    %v6069 = vunpack.c.l.b16 %v6037
    %v6070 = vunpack.c.l.b16 %v6038
    %v6071 = vunpack.c.l.b16 %v6039
    %v6072 = vunpack.c.l.b16 %v6040
    %v6073 = vpack.c.b16 %v6058, %v6057
    %v6074 = vpack.c.b16 %v6060, %v6059
    %v6075 = vpack.c.b16 %v6062, %v6061
    %v6076 = vpack.c.b16 %v6064, %v6063
    %v6077 = vpack.c.b16 %v6066, %v6065
    %v6078 = vpack.c.b16 %v6068, %v6067
    %v6079 = vpack.c.b16 %v6070, %v6069
    %v6080 = vpack.c.b16 %v6072, %v6071
    %6089 = vmatprep.subr.bf16.mxu0 0
    %6090 = vmatpush1.bf16.msra.mxu0 %v6080
    %6091 = vmatprep.subr.bf16.mxu0 0
    %6092 = vmatpush1.bf16.msra.mxu0 %v6079
    %6093 = vmatprep.subr.bf16.mxu0 0
    %6094 = vmatpush1.bf16.msra.mxu0 %v6078
    %6095 = vmatprep.subr.bf16.mxu0 0
    %6096 = vmatpush1.bf16.msra.mxu0 %v6077
    %6097 = vmatprep.subr.bf16.mxu0 0
    %6098 = vmatpush1.bf16.msra.mxu0 %v6076
    %6099 = vmatprep.subr.bf16.mxu0 0
    %6100 = vmatpush1.bf16.msra.mxu0 %v6075
    %6101 = vmatprep.subr.bf16.mxu0 0
    %6102 = vmatpush1.bf16.msra.mxu0 %v6074
    %6103 = vmatprep.subr.bf16.mxu0 0
    %6104 = vmatpush1.bf16.msra.mxu0 %v6073
    %6105 = vmatprep.subr.bf16.mxu0 0
    %6106 = vmatpush2.bf16.msra.mxu0 0
    %6107 = vmatprep.subr.bf16.mxu0 0
    %6108 = vmatpush2.bf16.msra.mxu0 0
    %6109 = vmatprep.subr.bf16.mxu0 0
    %6110 = vmatpush2.bf16.msra.mxu0 0
    %6111 = vmatprep.subr.bf16.mxu0 0
    %6112 = vmatpush2.bf16.msra.mxu0 0
    %6113 = vmatprep.subr.bf16.mxu0 0
    %6114 = vmatpush2.bf16.msra.mxu0 0
    %6115 = vmatprep.subr.bf16.mxu0 0
    %6116 = vmatpush2.bf16.msra.mxu0 0
    %6117 = vmatprep.subr.bf16.mxu0 0
    %6118 = vmatpush2.bf16.msra.mxu0 0
    %6119 = vmatprep.subr.bf16.mxu0 0
    %6120 = vmatpush2.bf16.msra.mxu0 0
    %6121 = vmatprep.mubr.bf16.mxu0 0
    %6122 = vmatmul.mubr.bf16.gmra.mxu0 %v5910
    %v6123 = vpop.f32.mrf.mxu0
    %v6124 = vadd.f32 0.0, %v6123
    %v6125 = vpop.f32.mrf.mxu0
    %v6126 = vpop.f32.mrf.mxu0
    %v6127 = vadd.f32 0.0, %v6126
    %v6128 = vpop.f32.mrf.mxu0
    %6129 = vdwg.mxu0
    %v6130 = vunpack.c.l.bf16 %v5882
    %v6131 = vunpack.c.l.bf16 %v5884
    %v6132 = vadd.f32 %v6130, %v6124
    %v6133 = vadd.f32 %v6131, %v6127
    %v6134 = vxor.u32 %v6132, 2147483648
    %v6135 = vxor.u32 %v6133, 2147483648
    %v6136 = vmul.f32 %v6134, 1.442695
    %v6137 = vpow.pop %v6136
    %v6138 = vmul.f32 %v6135, 1.442695
    %v6139 = vpow.pop %v6138
    %v6140 = vadd.f32 %v6137, 1.0
    %v6141 = vadd.f32 %v6139, 1.0
    %v6142 = vrcp.pop %v6140
    %v6143 = vmul.f32 1.0, %v6142
    %v6144 = vrcp.pop %v6141
    %v6145 = vmul.f32 1.0, %v6144
    %v6146 = vld [vmem:[#allocation2 + $0x8] sm:$0xf]
    %v6147 = vld [vmem:[#allocation2 + $0x18] sm:$0xf]
    %v6148 = vld [vmem:[#allocation2 + $0x28] sm:$0xf]
    %v6149 = vld [vmem:[#allocation2 + $0x38] sm:$0xf]
    %v6150 = vld [vmem:[#allocation2 + $0x48] sm:$0xf]
    %v6151 = vld [vmem:[#allocation2 + $0x58] sm:$0xf]
    %v6152 = vld [vmem:[#allocation2 + $0x68] sm:$0xf]
    %v6153 = vld [vmem:[#allocation2 + $0x78] sm:$0xf]
    %v6154 = vld [vmem:[#allocation2 + $0x88] sm:$0xf]
    %v6155 = vld [vmem:[#allocation2 + $0x98] sm:$0xf]
    %v6156 = vld [vmem:[#allocation2 + $0xa8] sm:$0xf]
    %v6157 = vld [vmem:[#allocation2 + $0xb8] sm:$0xf]
    %v6158 = vld [vmem:[#allocation2 + $0xc8] sm:$0xf]
    %v6159 = vld [vmem:[#allocation2 + $0xd8] sm:$0xf]
    %v6160 = vld [vmem:[#allocation2 + $0xe8] sm:$0xf]
    %v6161 = vld [vmem:[#allocation2 + $0xf8] sm:$0xf]
    %v6178 = vunpack.c.l.b16 %v6146
    %v6179 = vunpack.c.l.b16 %v6147
    %v6180 = vunpack.c.l.b16 %v6148
    %v6181 = vunpack.c.l.b16 %v6149
    %v6182 = vunpack.c.l.b16 %v6150
    %v6183 = vunpack.c.l.b16 %v6151
    %v6184 = vunpack.c.l.b16 %v6152
    %v6185 = vunpack.c.l.b16 %v6153
    %v6186 = vunpack.c.l.b16 %v6154
    %v6187 = vunpack.c.l.b16 %v6155
    %v6188 = vunpack.c.l.b16 %v6156
    %v6189 = vunpack.c.l.b16 %v6157
    %v6190 = vunpack.c.l.b16 %v6158
    %v6191 = vunpack.c.l.b16 %v6159
    %v6192 = vunpack.c.l.b16 %v6160
    %v6193 = vunpack.c.l.b16 %v6161
    %v6194 = vpack.c.b16 %v6179, %v6178
    %v6195 = vpack.c.b16 %v6181, %v6180
    %v6196 = vpack.c.b16 %v6183, %v6182
    %v6197 = vpack.c.b16 %v6185, %v6184
    %v6198 = vpack.c.b16 %v6187, %v6186
    %v6199 = vpack.c.b16 %v6189, %v6188
    %v6200 = vpack.c.b16 %v6191, %v6190
    %v6201 = vpack.c.b16 %v6193, %v6192
    %6210 = vmatprep.subr.bf16.mxu0 0
    %6211 = vmatpush1.bf16.msra.mxu0 %v6201
    %6212 = vmatprep.subr.bf16.mxu0 0
    %6213 = vmatpush1.bf16.msra.mxu0 %v6200
    %6214 = vmatprep.subr.bf16.mxu0 0
    %6215 = vmatpush1.bf16.msra.mxu0 %v6199
    %6216 = vmatprep.subr.bf16.mxu0 0
    %6217 = vmatpush1.bf16.msra.mxu0 %v6198
    %6218 = vmatprep.subr.bf16.mxu0 0
    %6219 = vmatpush1.bf16.msra.mxu0 %v6197
    %6220 = vmatprep.subr.bf16.mxu0 0
    %6221 = vmatpush1.bf16.msra.mxu0 %v6196
    %6222 = vmatprep.subr.bf16.mxu0 0
    %6223 = vmatpush1.bf16.msra.mxu0 %v6195
    %6224 = vmatprep.subr.bf16.mxu0 0
    %6225 = vmatpush1.bf16.msra.mxu0 %v6194
    %6226 = vmatprep.subr.bf16.mxu0 0
    %6227 = vmatpush2.bf16.msra.mxu0 0
    %6228 = vmatprep.subr.bf16.mxu0 0
    %6229 = vmatpush2.bf16.msra.mxu0 0
    %6230 = vmatprep.subr.bf16.mxu0 0
    %6231 = vmatpush2.bf16.msra.mxu0 0
    %6232 = vmatprep.subr.bf16.mxu0 0
    %6233 = vmatpush2.bf16.msra.mxu0 0
    %6234 = vmatprep.subr.bf16.mxu0 0
    %6235 = vmatpush2.bf16.msra.mxu0 0
    %6236 = vmatprep.subr.bf16.mxu0 0
    %6237 = vmatpush2.bf16.msra.mxu0 0
    %6238 = vmatprep.subr.bf16.mxu0 0
    %6239 = vmatpush2.bf16.msra.mxu0 0
    %6240 = vmatprep.subr.bf16.mxu0 0
    %6241 = vmatpush2.bf16.msra.mxu0 0
    %6242 = vmatprep.mubr.bf16.mxu0 0
    %6243 = vmatmul.mubr.bf16.gmra.mxu0 %v5910
    %v6244 = vpop.f32.mrf.mxu0
    %v6245 = vadd.f32 0.0, %v6244
    %v6246 = vpop.f32.mrf.mxu0
    %v6247 = vpop.f32.mrf.mxu0
    %v6248 = vadd.f32 0.0, %v6247
    %v6249 = vpop.f32.mrf.mxu0
    %6250 = vdwg.mxu0
    %v6251 = vunpack.c.l.bf16 %v5883
    %v6252 = vunpack.c.l.bf16 %v5885
    %v6253 = vadd.f32 %v6251, %v6245
    %v6254 = vadd.f32 %v6252, %v6248
    %v6255 = vtanh.pop %v6253
    %v6256 = vtanh.pop %v6254
    %v6257 = vmul.f32 %v6143, %v6255
    %v6258 = vmul.f32 %v6145, %v6256
    %v6259 = vadd.f32 %v6023, %v6257
    %v6260 = vadd.f32 %v6024, %v6258
    %v6261 = vld [vmem:[#allocation2 + $0xc] sm:$0xf]
    %v6262 = vld [vmem:[#allocation2 + $0x1c] sm:$0xf]
    %v6263 = vld [vmem:[#allocation2 + $0x2c] sm:$0xf]
    %v6264 = vld [vmem:[#allocation2 + $0x3c] sm:$0xf]
    %v6265 = vld [vmem:[#allocation2 + $0x4c] sm:$0xf]
    %v6266 = vld [vmem:[#allocation2 + $0x5c] sm:$0xf]
    %v6267 = vld [vmem:[#allocation2 + $0x6c] sm:$0xf]
    %v6268 = vld [vmem:[#allocation2 + $0x7c] sm:$0xf]
    %v6269 = vld [vmem:[#allocation2 + $0x8c] sm:$0xf]
    %v6270 = vld [vmem:[#allocation2 + $0x9c] sm:$0xf]
    %v6271 = vld [vmem:[#allocation2 + $0xac] sm:$0xf]
    %v6272 = vld [vmem:[#allocation2 + $0xbc] sm:$0xf]
    %v6273 = vld [vmem:[#allocation2 + $0xcc] sm:$0xf]
    %v6274 = vld [vmem:[#allocation2 + $0xdc] sm:$0xf]
    %v6275 = vld [vmem:[#allocation2 + $0xec] sm:$0xf]
    %v6276 = vld [vmem:[#allocation2 + $0xfc] sm:$0xf]
    %v6293 = vunpack.c.l.b16 %v6261
    %v6294 = vunpack.c.l.b16 %v6262
    %v6295 = vunpack.c.l.b16 %v6263
    %v6296 = vunpack.c.l.b16 %v6264
    %v6297 = vunpack.c.l.b16 %v6265
    %v6298 = vunpack.c.l.b16 %v6266
    %v6299 = vunpack.c.l.b16 %v6267
    %v6300 = vunpack.c.l.b16 %v6268
    %v6301 = vunpack.c.l.b16 %v6269
    %v6302 = vunpack.c.l.b16 %v6270
    %v6303 = vunpack.c.l.b16 %v6271
    %v6304 = vunpack.c.l.b16 %v6272
    %v6305 = vunpack.c.l.b16 %v6273
    %v6306 = vunpack.c.l.b16 %v6274
    %v6307 = vunpack.c.l.b16 %v6275
    %v6308 = vunpack.c.l.b16 %v6276
    %v6309 = vpack.c.b16 %v6294, %v6293
    %v6310 = vpack.c.b16 %v6296, %v6295
    %v6311 = vpack.c.b16 %v6298, %v6297
    %v6312 = vpack.c.b16 %v6300, %v6299
    %v6313 = vpack.c.b16 %v6302, %v6301
    %v6314 = vpack.c.b16 %v6304, %v6303
    %v6315 = vpack.c.b16 %v6306, %v6305
    %v6316 = vpack.c.b16 %v6308, %v6307
    %6325 = vmatprep.subr.bf16.mxu0 0
    %6326 = vmatpush1.bf16.msra.mxu0 %v6316
    %6327 = vmatprep.subr.bf16.mxu0 0
    %6328 = vmatpush1.bf16.msra.mxu0 %v6315
    %6329 = vmatprep.subr.bf16.mxu0 0
    %6330 = vmatpush1.bf16.msra.mxu0 %v6314
    %6331 = vmatprep.subr.bf16.mxu0 0
    %6332 = vmatpush1.bf16.msra.mxu0 %v6313
    %6333 = vmatprep.subr.bf16.mxu0 0
    %6334 = vmatpush1.bf16.msra.mxu0 %v6312
    %6335 = vmatprep.subr.bf16.mxu0 0
    %6336 = vmatpush1.bf16.msra.mxu0 %v6311
    %6337 = vmatprep.subr.bf16.mxu0 0
    %6338 = vmatpush1.bf16.msra.mxu0 %v6310
    %6339 = vmatprep.subr.bf16.mxu0 0
    %6340 = vmatpush1.bf16.msra.mxu0 %v6309
    %6341 = vmatprep.subr.bf16.mxu0 0
    %6342 = vmatpush2.bf16.msra.mxu0 0
    %6343 = vmatprep.subr.bf16.mxu0 0
    %6344 = vmatpush2.bf16.msra.mxu0 0
    %6345 = vmatprep.subr.bf16.mxu0 0
    %6346 = vmatpush2.bf16.msra.mxu0 0
    %6347 = vmatprep.subr.bf16.mxu0 0
    %6348 = vmatpush2.bf16.msra.mxu0 0
    %6349 = vmatprep.subr.bf16.mxu0 0
    %6350 = vmatpush2.bf16.msra.mxu0 0
    %6351 = vmatprep.subr.bf16.mxu0 0
    %6352 = vmatpush2.bf16.msra.mxu0 0
    %6353 = vmatprep.subr.bf16.mxu0 0
    %6354 = vmatpush2.bf16.msra.mxu0 0
    %6355 = vmatprep.subr.bf16.mxu0 0
    %6356 = vmatpush2.bf16.msra.mxu0 0
    %6357 = vmatprep.mubr.bf16.mxu0 0
    %6358 = vmatmul.mubr.bf16.gmra.mxu0 %v5910
    %v6359 = vpop.f32.mrf.mxu0
    %v6360 = vadd.f32 0.0, %v6359
    %v6361 = vpop.f32.mrf.mxu0
    %v6362 = vpop.f32.mrf.mxu0
    %v6363 = vadd.f32 0.0, %v6362
    %v6364 = vpop.f32.mrf.mxu0
    %6365 = vdwg.mxu0
    %v6368 = vrot.slane %v5883, 4
    %v6369 = vrot.slane %v5885, 4
    %v6372 = vunpack.c.l.bf16 %v6368
    %v6373 = vunpack.c.l.bf16 %v6369
    %v6374 = vadd.f32 %v6372, %v6360
    %v6375 = vadd.f32 %v6373, %v6363
    %v6376 = vxor.u32 %v6374, 2147483648
    %v6377 = vxor.u32 %v6375, 2147483648
    %v6378 = vmul.f32 %v6376, 1.442695
    %v6379 = vpow.pop %v6378
    %v6380 = vmul.f32 %v6377, 1.442695
    %v6381 = vpow.pop %v6380
    %v6382 = vadd.f32 %v6379, 1.0
    %v6383 = vadd.f32 %v6381, 1.0
    %v6384 = vrcp.pop %v6382
    %v6385 = vmul.f32 1.0, %v6384
    %v6386 = vrcp.pop %v6383
    %v6387 = vmul.f32 1.0, %v6386
    %v6388 = vtanh.pop %v6259
    %v6389 = vtanh.pop %v6260
    %v6390 = vmul.f32 %v6385, %v6388
    %v6391 = vmul.f32 %v6387, %v6389
    %v6392 = vpack.c.bf16 %v6391, %v6390
    %v6394 = vunpack.c.l.b16 %v6392
    %v6395 = vunpack.c.h.b16 %v6392
    %v6396 = vpack.c.b16 %v6394, %v6394
    %v6397 = vpack.c.b16 %v6395, %v6395
    %6400 = vst [vmem:[#allocation3] sm:$0xf] %v6396
    %6401 = vst [vmem:[#allocation3 + $0x4] sm:$0xf] %v6397
    %6402 = vst [vmem:[#allocation4] sm:$0xff] %v6259
    %6403 = vst [vmem:[#allocation4 + $0x8] sm:$0xff] %v6260
    %s6404 = scalar_lea.vmem [#allocation12], 176
    %6405 = vst [vmem:[%s6404] sm:$0xff] %v6390
    %6406 = vst [vmem:[%s6404 + $0x8] sm:$0xff] %v6391
    %s6407 = scalar_lea.vmem [#allocation6], 384
    %v6408 = vld [vmem:[%s6407] sm:$0xff]
    %v6409 = vld [vmem:[%s6407 + $0x8] sm:$0xff]
    %v6410 = vld [vmem:[%s6407 + $0x10] sm:$0xff]
    %v6411 = vld [vmem:[%s6407 + $0x18] sm:$0xff]
    %v6412 = vld [vmem:[#allocation3] sm:$0xf]
    %v6413 = vld [vmem:[#allocation3 + $0x4] sm:$0xf]
    %v6414 = vld [vmem:[#allocation4] sm:$0xff]
    %v6415 = vld [vmem:[#allocation4 + $0x8] sm:$0xff]
    %v6416 = vld [vmem:[#allocation2 + $0x4] sm:$0xf]
    %v6417 = vld [vmem:[#allocation2 + $0x14] sm:$0xf]
    %v6418 = vld [vmem:[#allocation2 + $0x24] sm:$0xf]
    %v6419 = vld [vmem:[#allocation2 + $0x34] sm:$0xf]
    %v6420 = vld [vmem:[#allocation2 + $0x44] sm:$0xf]
    %v6421 = vld [vmem:[#allocation2 + $0x54] sm:$0xf]
    %v6422 = vld [vmem:[#allocation2 + $0x64] sm:$0xf]
    %v6423 = vld [vmem:[#allocation2 + $0x74] sm:$0xf]
    %v6424 = vld [vmem:[#allocation2 + $0x84] sm:$0xf]
    %v6425 = vld [vmem:[#allocation2 + $0x94] sm:$0xf]
    %v6426 = vld [vmem:[#allocation2 + $0xa4] sm:$0xf]
    %v6427 = vld [vmem:[#allocation2 + $0xb4] sm:$0xf]
    %v6428 = vld [vmem:[#allocation2 + $0xc4] sm:$0xf]
    %v6429 = vld [vmem:[#allocation2 + $0xd4] sm:$0xf]
    %v6430 = vld [vmem:[#allocation2 + $0xe4] sm:$0xf]
    %v6431 = vld [vmem:[#allocation2 + $0xf4] sm:$0xf]
    %v6434 = vunpack.c.l.b16 %v6412
    %v6435 = vunpack.c.l.b16 %v6413
    %v6436 = vpack.c.b16 %v6435, %v6434
    %v6454 = vunpack.c.l.b16 %v6416
    %v6455 = vunpack.c.l.b16 %v6417
    %v6456 = vunpack.c.l.b16 %v6418
    %v6457 = vunpack.c.l.b16 %v6419
    %v6458 = vunpack.c.l.b16 %v6420
    %v6459 = vunpack.c.l.b16 %v6421
    %v6460 = vunpack.c.l.b16 %v6422
    %v6461 = vunpack.c.l.b16 %v6423
    %v6462 = vunpack.c.l.b16 %v6424
    %v6463 = vunpack.c.l.b16 %v6425
    %v6464 = vunpack.c.l.b16 %v6426
    %v6465 = vunpack.c.l.b16 %v6427
    %v6466 = vunpack.c.l.b16 %v6428
    %v6467 = vunpack.c.l.b16 %v6429
    %v6468 = vunpack.c.l.b16 %v6430
    %v6469 = vunpack.c.l.b16 %v6431
    %v6470 = vpack.c.b16 %v6455, %v6454
    %v6471 = vpack.c.b16 %v6457, %v6456
    %v6472 = vpack.c.b16 %v6459, %v6458
    %v6473 = vpack.c.b16 %v6461, %v6460
    %v6474 = vpack.c.b16 %v6463, %v6462
    %v6475 = vpack.c.b16 %v6465, %v6464
    %v6476 = vpack.c.b16 %v6467, %v6466
    %v6477 = vpack.c.b16 %v6469, %v6468
    %6486 = vmatprep.subr.bf16.mxu0 0
    %6487 = vmatpush1.bf16.msra.mxu0 %v6477
    %6488 = vmatprep.subr.bf16.mxu0 0
    %6489 = vmatpush1.bf16.msra.mxu0 %v6476
    %6490 = vmatprep.subr.bf16.mxu0 0
    %6491 = vmatpush1.bf16.msra.mxu0 %v6475
    %6492 = vmatprep.subr.bf16.mxu0 0
    %6493 = vmatpush1.bf16.msra.mxu0 %v6474
    %6494 = vmatprep.subr.bf16.mxu0 0
    %6495 = vmatpush1.bf16.msra.mxu0 %v6473
    %6496 = vmatprep.subr.bf16.mxu0 0
    %6497 = vmatpush1.bf16.msra.mxu0 %v6472
    %6498 = vmatprep.subr.bf16.mxu0 0
    %6499 = vmatpush1.bf16.msra.mxu0 %v6471
    %6500 = vmatprep.subr.bf16.mxu0 0
    %6501 = vmatpush1.bf16.msra.mxu0 %v6470
    %6502 = vmatprep.subr.bf16.mxu0 0
    %6503 = vmatpush2.bf16.msra.mxu0 0
    %6504 = vmatprep.subr.bf16.mxu0 0
    %6505 = vmatpush2.bf16.msra.mxu0 0
    %6506 = vmatprep.subr.bf16.mxu0 0
    %6507 = vmatpush2.bf16.msra.mxu0 0
    %6508 = vmatprep.subr.bf16.mxu0 0
    %6509 = vmatpush2.bf16.msra.mxu0 0
    %6510 = vmatprep.subr.bf16.mxu0 0
    %6511 = vmatpush2.bf16.msra.mxu0 0
    %6512 = vmatprep.subr.bf16.mxu0 0
    %6513 = vmatpush2.bf16.msra.mxu0 0
    %6514 = vmatprep.subr.bf16.mxu0 0
    %6515 = vmatpush2.bf16.msra.mxu0 0
    %6516 = vmatprep.subr.bf16.mxu0 0
    %6517 = vmatpush2.bf16.msra.mxu0 0
    %6518 = vmatprep.mubr.bf16.mxu0 0
    %6519 = vmatmul.mubr.bf16.gmra.mxu0 %v6436
    %v6520 = vpop.f32.mrf.mxu0
    %v6521 = vadd.f32 0.0, %v6520
    %v6522 = vpop.f32.mrf.mxu0
    %v6523 = vpop.f32.mrf.mxu0
    %v6524 = vadd.f32 0.0, %v6523
    %v6525 = vpop.f32.mrf.mxu0
    %6526 = vdwg.mxu0
    %v6529 = vrot.slane %v6408, 4
    %v6530 = vrot.slane %v6410, 4
    %v6533 = vunpack.c.l.bf16 %v6529
    %v6534 = vunpack.c.l.bf16 %v6530
    %v6535 = vadd.f32 %v6533, %v6521
    %v6536 = vadd.f32 %v6534, %v6524
    %v6537 = vxor.u32 %v6535, 2147483648
    %v6538 = vxor.u32 %v6536, 2147483648
    %v6539 = vmul.f32 %v6537, 1.442695
    %v6540 = vpow.pop %v6539
    %v6541 = vmul.f32 %v6538, 1.442695
    %v6542 = vpow.pop %v6541
    %v6543 = vadd.f32 %v6540, 1.0
    %v6544 = vadd.f32 %v6542, 1.0
    %v6545 = vrcp.pop %v6543
    %v6546 = vmul.f32 1.0, %v6545
    %v6547 = vrcp.pop %v6544
    %v6548 = vmul.f32 1.0, %v6547
    %v6549 = vmul.f32 %v6546, %v6414
    %v6550 = vmul.f32 %v6548, %v6415
    %v6551 = vld [vmem:[#allocation2] sm:$0xf]
    %v6552 = vld [vmem:[#allocation2 + $0x10] sm:$0xf]
    %v6553 = vld [vmem:[#allocation2 + $0x20] sm:$0xf]
    %v6554 = vld [vmem:[#allocation2 + $0x30] sm:$0xf]
    %v6555 = vld [vmem:[#allocation2 + $0x40] sm:$0xf]
    %v6556 = vld [vmem:[#allocation2 + $0x50] sm:$0xf]
    %v6557 = vld [vmem:[#allocation2 + $0x60] sm:$0xf]
    %v6558 = vld [vmem:[#allocation2 + $0x70] sm:$0xf]
    %v6559 = vld [vmem:[#allocation2 + $0x80] sm:$0xf]
    %v6560 = vld [vmem:[#allocation2 + $0x90] sm:$0xf]
    %v6561 = vld [vmem:[#allocation2 + $0xa0] sm:$0xf]
    %v6562 = vld [vmem:[#allocation2 + $0xb0] sm:$0xf]
    %v6563 = vld [vmem:[#allocation2 + $0xc0] sm:$0xf]
    %v6564 = vld [vmem:[#allocation2 + $0xd0] sm:$0xf]
    %v6565 = vld [vmem:[#allocation2 + $0xe0] sm:$0xf]
    %v6566 = vld [vmem:[#allocation2 + $0xf0] sm:$0xf]
    %v6583 = vunpack.c.l.b16 %v6551
    %v6584 = vunpack.c.l.b16 %v6552
    %v6585 = vunpack.c.l.b16 %v6553
    %v6586 = vunpack.c.l.b16 %v6554
    %v6587 = vunpack.c.l.b16 %v6555
    %v6588 = vunpack.c.l.b16 %v6556
    %v6589 = vunpack.c.l.b16 %v6557
    %v6590 = vunpack.c.l.b16 %v6558
    %v6591 = vunpack.c.l.b16 %v6559
    %v6592 = vunpack.c.l.b16 %v6560
    %v6593 = vunpack.c.l.b16 %v6561
    %v6594 = vunpack.c.l.b16 %v6562
    %v6595 = vunpack.c.l.b16 %v6563
    %v6596 = vunpack.c.l.b16 %v6564
    %v6597 = vunpack.c.l.b16 %v6565
    %v6598 = vunpack.c.l.b16 %v6566
    %v6599 = vpack.c.b16 %v6584, %v6583
    %v6600 = vpack.c.b16 %v6586, %v6585
    %v6601 = vpack.c.b16 %v6588, %v6587
    %v6602 = vpack.c.b16 %v6590, %v6589
    %v6603 = vpack.c.b16 %v6592, %v6591
    %v6604 = vpack.c.b16 %v6594, %v6593
    %v6605 = vpack.c.b16 %v6596, %v6595
    %v6606 = vpack.c.b16 %v6598, %v6597
    %6615 = vmatprep.subr.bf16.mxu0 0
    %6616 = vmatpush1.bf16.msra.mxu0 %v6606
    %6617 = vmatprep.subr.bf16.mxu0 0
    %6618 = vmatpush1.bf16.msra.mxu0 %v6605
    %6619 = vmatprep.subr.bf16.mxu0 0
    %6620 = vmatpush1.bf16.msra.mxu0 %v6604
    %6621 = vmatprep.subr.bf16.mxu0 0
    %6622 = vmatpush1.bf16.msra.mxu0 %v6603
    %6623 = vmatprep.subr.bf16.mxu0 0
    %6624 = vmatpush1.bf16.msra.mxu0 %v6602
    %6625 = vmatprep.subr.bf16.mxu0 0
    %6626 = vmatpush1.bf16.msra.mxu0 %v6601
    %6627 = vmatprep.subr.bf16.mxu0 0
    %6628 = vmatpush1.bf16.msra.mxu0 %v6600
    %6629 = vmatprep.subr.bf16.mxu0 0
    %6630 = vmatpush1.bf16.msra.mxu0 %v6599
    %6631 = vmatprep.subr.bf16.mxu0 0
    %6632 = vmatpush2.bf16.msra.mxu0 0
    %6633 = vmatprep.subr.bf16.mxu0 0
    %6634 = vmatpush2.bf16.msra.mxu0 0
    %6635 = vmatprep.subr.bf16.mxu0 0
    %6636 = vmatpush2.bf16.msra.mxu0 0
    %6637 = vmatprep.subr.bf16.mxu0 0
    %6638 = vmatpush2.bf16.msra.mxu0 0
    %6639 = vmatprep.subr.bf16.mxu0 0
    %6640 = vmatpush2.bf16.msra.mxu0 0
    %6641 = vmatprep.subr.bf16.mxu0 0
    %6642 = vmatpush2.bf16.msra.mxu0 0
    %6643 = vmatprep.subr.bf16.mxu0 0
    %6644 = vmatpush2.bf16.msra.mxu0 0
    %6645 = vmatprep.subr.bf16.mxu0 0
    %6646 = vmatpush2.bf16.msra.mxu0 0
    %6647 = vmatprep.mubr.bf16.mxu0 0
    %6648 = vmatmul.mubr.bf16.gmra.mxu0 %v6436
    %v6649 = vpop.f32.mrf.mxu0
    %v6650 = vadd.f32 0.0, %v6649
    %v6651 = vpop.f32.mrf.mxu0
    %v6652 = vpop.f32.mrf.mxu0
    %v6653 = vadd.f32 0.0, %v6652
    %v6654 = vpop.f32.mrf.mxu0
    %6655 = vdwg.mxu0
    %v6656 = vunpack.c.l.bf16 %v6408
    %v6657 = vunpack.c.l.bf16 %v6410
    %v6658 = vadd.f32 %v6656, %v6650
    %v6659 = vadd.f32 %v6657, %v6653
    %v6660 = vxor.u32 %v6658, 2147483648
    %v6661 = vxor.u32 %v6659, 2147483648
    %v6662 = vmul.f32 %v6660, 1.442695
    %v6663 = vpow.pop %v6662
    %v6664 = vmul.f32 %v6661, 1.442695
    %v6665 = vpow.pop %v6664
    %v6666 = vadd.f32 %v6663, 1.0
    %v6667 = vadd.f32 %v6665, 1.0
    %v6668 = vrcp.pop %v6666
    %v6669 = vmul.f32 1.0, %v6668
    %v6670 = vrcp.pop %v6667
    %v6671 = vmul.f32 1.0, %v6670
    %v6672 = vld [vmem:[#allocation2 + $0x8] sm:$0xf]
    %v6673 = vld [vmem:[#allocation2 + $0x18] sm:$0xf]
    %v6674 = vld [vmem:[#allocation2 + $0x28] sm:$0xf]
    %v6675 = vld [vmem:[#allocation2 + $0x38] sm:$0xf]
    %v6676 = vld [vmem:[#allocation2 + $0x48] sm:$0xf]
    %v6677 = vld [vmem:[#allocation2 + $0x58] sm:$0xf]
    %v6678 = vld [vmem:[#allocation2 + $0x68] sm:$0xf]
    %v6679 = vld [vmem:[#allocation2 + $0x78] sm:$0xf]
    %v6680 = vld [vmem:[#allocation2 + $0x88] sm:$0xf]
    %v6681 = vld [vmem:[#allocation2 + $0x98] sm:$0xf]
    %v6682 = vld [vmem:[#allocation2 + $0xa8] sm:$0xf]
    %v6683 = vld [vmem:[#allocation2 + $0xb8] sm:$0xf]
    %v6684 = vld [vmem:[#allocation2 + $0xc8] sm:$0xf]
    %v6685 = vld [vmem:[#allocation2 + $0xd8] sm:$0xf]
    %v6686 = vld [vmem:[#allocation2 + $0xe8] sm:$0xf]
    %v6687 = vld [vmem:[#allocation2 + $0xf8] sm:$0xf]
    %v6704 = vunpack.c.l.b16 %v6672
    %v6705 = vunpack.c.l.b16 %v6673
    %v6706 = vunpack.c.l.b16 %v6674
    %v6707 = vunpack.c.l.b16 %v6675
    %v6708 = vunpack.c.l.b16 %v6676
    %v6709 = vunpack.c.l.b16 %v6677
    %v6710 = vunpack.c.l.b16 %v6678
    %v6711 = vunpack.c.l.b16 %v6679
    %v6712 = vunpack.c.l.b16 %v6680
    %v6713 = vunpack.c.l.b16 %v6681
    %v6714 = vunpack.c.l.b16 %v6682
    %v6715 = vunpack.c.l.b16 %v6683
    %v6716 = vunpack.c.l.b16 %v6684
    %v6717 = vunpack.c.l.b16 %v6685
    %v6718 = vunpack.c.l.b16 %v6686
    %v6719 = vunpack.c.l.b16 %v6687
    %v6720 = vpack.c.b16 %v6705, %v6704
    %v6721 = vpack.c.b16 %v6707, %v6706
    %v6722 = vpack.c.b16 %v6709, %v6708
    %v6723 = vpack.c.b16 %v6711, %v6710
    %v6724 = vpack.c.b16 %v6713, %v6712
    %v6725 = vpack.c.b16 %v6715, %v6714
    %v6726 = vpack.c.b16 %v6717, %v6716
    %v6727 = vpack.c.b16 %v6719, %v6718
    %6736 = vmatprep.subr.bf16.mxu0 0
    %6737 = vmatpush1.bf16.msra.mxu0 %v6727
    %6738 = vmatprep.subr.bf16.mxu0 0
    %6739 = vmatpush1.bf16.msra.mxu0 %v6726
    %6740 = vmatprep.subr.bf16.mxu0 0
    %6741 = vmatpush1.bf16.msra.mxu0 %v6725
    %6742 = vmatprep.subr.bf16.mxu0 0
    %6743 = vmatpush1.bf16.msra.mxu0 %v6724
    %6744 = vmatprep.subr.bf16.mxu0 0
    %6745 = vmatpush1.bf16.msra.mxu0 %v6723
    %6746 = vmatprep.subr.bf16.mxu0 0
    %6747 = vmatpush1.bf16.msra.mxu0 %v6722
    %6748 = vmatprep.subr.bf16.mxu0 0
    %6749 = vmatpush1.bf16.msra.mxu0 %v6721
    %6750 = vmatprep.subr.bf16.mxu0 0
    %6751 = vmatpush1.bf16.msra.mxu0 %v6720
    %6752 = vmatprep.subr.bf16.mxu0 0
    %6753 = vmatpush2.bf16.msra.mxu0 0
    %6754 = vmatprep.subr.bf16.mxu0 0
    %6755 = vmatpush2.bf16.msra.mxu0 0
    %6756 = vmatprep.subr.bf16.mxu0 0
    %6757 = vmatpush2.bf16.msra.mxu0 0
    %6758 = vmatprep.subr.bf16.mxu0 0
    %6759 = vmatpush2.bf16.msra.mxu0 0
    %6760 = vmatprep.subr.bf16.mxu0 0
    %6761 = vmatpush2.bf16.msra.mxu0 0
    %6762 = vmatprep.subr.bf16.mxu0 0
    %6763 = vmatpush2.bf16.msra.mxu0 0
    %6764 = vmatprep.subr.bf16.mxu0 0
    %6765 = vmatpush2.bf16.msra.mxu0 0
    %6766 = vmatprep.subr.bf16.mxu0 0
    %6767 = vmatpush2.bf16.msra.mxu0 0
    %6768 = vmatprep.mubr.bf16.mxu0 0
    %6769 = vmatmul.mubr.bf16.gmra.mxu0 %v6436
    %v6770 = vpop.f32.mrf.mxu0
    %v6771 = vadd.f32 0.0, %v6770
    %v6772 = vpop.f32.mrf.mxu0
    %v6773 = vpop.f32.mrf.mxu0
    %v6774 = vadd.f32 0.0, %v6773
    %v6775 = vpop.f32.mrf.mxu0
    %6776 = vdwg.mxu0
    %v6777 = vunpack.c.l.bf16 %v6409
    %v6778 = vunpack.c.l.bf16 %v6411
    %v6779 = vadd.f32 %v6777, %v6771
    %v6780 = vadd.f32 %v6778, %v6774
    %v6781 = vtanh.pop %v6779
    %v6782 = vtanh.pop %v6780
    %v6783 = vmul.f32 %v6669, %v6781
    %v6784 = vmul.f32 %v6671, %v6782
    %v6785 = vadd.f32 %v6549, %v6783
    %v6786 = vadd.f32 %v6550, %v6784
    %v6787 = vld [vmem:[#allocation2 + $0xc] sm:$0xf]
    %v6788 = vld [vmem:[#allocation2 + $0x1c] sm:$0xf]
    %v6789 = vld [vmem:[#allocation2 + $0x2c] sm:$0xf]
    %v6790 = vld [vmem:[#allocation2 + $0x3c] sm:$0xf]
    %v6791 = vld [vmem:[#allocation2 + $0x4c] sm:$0xf]
    %v6792 = vld [vmem:[#allocation2 + $0x5c] sm:$0xf]
    %v6793 = vld [vmem:[#allocation2 + $0x6c] sm:$0xf]
    %v6794 = vld [vmem:[#allocation2 + $0x7c] sm:$0xf]
    %v6795 = vld [vmem:[#allocation2 + $0x8c] sm:$0xf]
    %v6796 = vld [vmem:[#allocation2 + $0x9c] sm:$0xf]
    %v6797 = vld [vmem:[#allocation2 + $0xac] sm:$0xf]
    %v6798 = vld [vmem:[#allocation2 + $0xbc] sm:$0xf]
    %v6799 = vld [vmem:[#allocation2 + $0xcc] sm:$0xf]
    %v6800 = vld [vmem:[#allocation2 + $0xdc] sm:$0xf]
    %v6801 = vld [vmem:[#allocation2 + $0xec] sm:$0xf]
    %v6802 = vld [vmem:[#allocation2 + $0xfc] sm:$0xf]
    %v6819 = vunpack.c.l.b16 %v6787
    %v6820 = vunpack.c.l.b16 %v6788
    %v6821 = vunpack.c.l.b16 %v6789
    %v6822 = vunpack.c.l.b16 %v6790
    %v6823 = vunpack.c.l.b16 %v6791
    %v6824 = vunpack.c.l.b16 %v6792
    %v6825 = vunpack.c.l.b16 %v6793
    %v6826 = vunpack.c.l.b16 %v6794
    %v6827 = vunpack.c.l.b16 %v6795
    %v6828 = vunpack.c.l.b16 %v6796
    %v6829 = vunpack.c.l.b16 %v6797
    %v6830 = vunpack.c.l.b16 %v6798
    %v6831 = vunpack.c.l.b16 %v6799
    %v6832 = vunpack.c.l.b16 %v6800
    %v6833 = vunpack.c.l.b16 %v6801
    %v6834 = vunpack.c.l.b16 %v6802
    %v6835 = vpack.c.b16 %v6820, %v6819
    %v6836 = vpack.c.b16 %v6822, %v6821
    %v6837 = vpack.c.b16 %v6824, %v6823
    %v6838 = vpack.c.b16 %v6826, %v6825
    %v6839 = vpack.c.b16 %v6828, %v6827
    %v6840 = vpack.c.b16 %v6830, %v6829
    %v6841 = vpack.c.b16 %v6832, %v6831
    %v6842 = vpack.c.b16 %v6834, %v6833
    %6851 = vmatprep.subr.bf16.mxu0 0
    %6852 = vmatpush1.bf16.msra.mxu0 %v6842
    %6853 = vmatprep.subr.bf16.mxu0 0
    %6854 = vmatpush1.bf16.msra.mxu0 %v6841
    %6855 = vmatprep.subr.bf16.mxu0 0
    %6856 = vmatpush1.bf16.msra.mxu0 %v6840
    %6857 = vmatprep.subr.bf16.mxu0 0
    %6858 = vmatpush1.bf16.msra.mxu0 %v6839
    %6859 = vmatprep.subr.bf16.mxu0 0
    %6860 = vmatpush1.bf16.msra.mxu0 %v6838
    %6861 = vmatprep.subr.bf16.mxu0 0
    %6862 = vmatpush1.bf16.msra.mxu0 %v6837
    %6863 = vmatprep.subr.bf16.mxu0 0
    %6864 = vmatpush1.bf16.msra.mxu0 %v6836
    %6865 = vmatprep.subr.bf16.mxu0 0
    %6866 = vmatpush1.bf16.msra.mxu0 %v6835
    %6867 = vmatprep.subr.bf16.mxu0 0
    %6868 = vmatpush2.bf16.msra.mxu0 0
    %6869 = vmatprep.subr.bf16.mxu0 0
    %6870 = vmatpush2.bf16.msra.mxu0 0
    %6871 = vmatprep.subr.bf16.mxu0 0
    %6872 = vmatpush2.bf16.msra.mxu0 0
    %6873 = vmatprep.subr.bf16.mxu0 0
    %6874 = vmatpush2.bf16.msra.mxu0 0
    %6875 = vmatprep.subr.bf16.mxu0 0
    %6876 = vmatpush2.bf16.msra.mxu0 0
    %6877 = vmatprep.subr.bf16.mxu0 0
    %6878 = vmatpush2.bf16.msra.mxu0 0
    %6879 = vmatprep.subr.bf16.mxu0 0
    %6880 = vmatpush2.bf16.msra.mxu0 0
    %6881 = vmatprep.subr.bf16.mxu0 0
    %6882 = vmatpush2.bf16.msra.mxu0 0
    %6883 = vmatprep.mubr.bf16.mxu0 0
    %6884 = vmatmul.mubr.bf16.gmra.mxu0 %v6436
    %v6885 = vpop.f32.mrf.mxu0
    %v6886 = vadd.f32 0.0, %v6885
    %v6887 = vpop.f32.mrf.mxu0
    %v6888 = vpop.f32.mrf.mxu0
    %v6889 = vadd.f32 0.0, %v6888
    %v6890 = vpop.f32.mrf.mxu0
    %6891 = vdwg.mxu0
    %v6894 = vrot.slane %v6409, 4
    %v6895 = vrot.slane %v6411, 4
    %v6898 = vunpack.c.l.bf16 %v6894
    %v6899 = vunpack.c.l.bf16 %v6895
    %v6900 = vadd.f32 %v6898, %v6886
    %v6901 = vadd.f32 %v6899, %v6889
    %v6902 = vxor.u32 %v6900, 2147483648
    %v6903 = vxor.u32 %v6901, 2147483648
    %v6904 = vmul.f32 %v6902, 1.442695
    %v6905 = vpow.pop %v6904
    %v6906 = vmul.f32 %v6903, 1.442695
    %v6907 = vpow.pop %v6906
    %v6908 = vadd.f32 %v6905, 1.0
    %v6909 = vadd.f32 %v6907, 1.0
    %v6910 = vrcp.pop %v6908
    %v6911 = vmul.f32 1.0, %v6910
    %v6912 = vrcp.pop %v6909
    %v6913 = vmul.f32 1.0, %v6912
    %v6914 = vtanh.pop %v6785
    %v6915 = vtanh.pop %v6786
    %v6916 = vmul.f32 %v6911, %v6914
    %v6917 = vmul.f32 %v6913, %v6915
    %v6918 = vpack.c.bf16 %v6917, %v6916
    %v6920 = vunpack.c.l.b16 %v6918
    %v6921 = vunpack.c.h.b16 %v6918
    %v6922 = vpack.c.b16 %v6920, %v6920
    %v6923 = vpack.c.b16 %v6921, %v6921
    %6926 = vst [vmem:[#allocation3] sm:$0xf] %v6922
    %6927 = vst [vmem:[#allocation3 + $0x4] sm:$0xf] %v6923
    %6928 = vst [vmem:[#allocation4] sm:$0xff] %v6785
    %6929 = vst [vmem:[#allocation4 + $0x8] sm:$0xff] %v6786
    %s6930 = scalar_lea.vmem [#allocation12], 192
    %6931 = vst [vmem:[%s6930] sm:$0xff] %v6916
    %6932 = vst [vmem:[%s6930 + $0x8] sm:$0xff] %v6917
    %s6933 = scalar_lea.vmem [#allocation6], 416
    %v6934 = vld [vmem:[%s6933] sm:$0xff]
    %v6935 = vld [vmem:[%s6933 + $0x8] sm:$0xff]
    %v6936 = vld [vmem:[%s6933 + $0x10] sm:$0xff]
    %v6937 = vld [vmem:[%s6933 + $0x18] sm:$0xff]
    %v6938 = vld [vmem:[#allocation3] sm:$0xf]
    %v6939 = vld [vmem:[#allocation3 + $0x4] sm:$0xf]
    %v6940 = vld [vmem:[#allocation4] sm:$0xff]
    %v6941 = vld [vmem:[#allocation4 + $0x8] sm:$0xff]
    %v6942 = vld [vmem:[#allocation2 + $0x4] sm:$0xf]
    %v6943 = vld [vmem:[#allocation2 + $0x14] sm:$0xf]
    %v6944 = vld [vmem:[#allocation2 + $0x24] sm:$0xf]
    %v6945 = vld [vmem:[#allocation2 + $0x34] sm:$0xf]
    %v6946 = vld [vmem:[#allocation2 + $0x44] sm:$0xf]
    %v6947 = vld [vmem:[#allocation2 + $0x54] sm:$0xf]
    %v6948 = vld [vmem:[#allocation2 + $0x64] sm:$0xf]
    %v6949 = vld [vmem:[#allocation2 + $0x74] sm:$0xf]
    %v6950 = vld [vmem:[#allocation2 + $0x84] sm:$0xf]
    %v6951 = vld [vmem:[#allocation2 + $0x94] sm:$0xf]
    %v6952 = vld [vmem:[#allocation2 + $0xa4] sm:$0xf]
    %v6953 = vld [vmem:[#allocation2 + $0xb4] sm:$0xf]
    %v6954 = vld [vmem:[#allocation2 + $0xc4] sm:$0xf]
    %v6955 = vld [vmem:[#allocation2 + $0xd4] sm:$0xf]
    %v6956 = vld [vmem:[#allocation2 + $0xe4] sm:$0xf]
    %v6957 = vld [vmem:[#allocation2 + $0xf4] sm:$0xf]
    %v6960 = vunpack.c.l.b16 %v6938
    %v6961 = vunpack.c.l.b16 %v6939
    %v6962 = vpack.c.b16 %v6961, %v6960
    %v6980 = vunpack.c.l.b16 %v6942
    %v6981 = vunpack.c.l.b16 %v6943
    %v6982 = vunpack.c.l.b16 %v6944
    %v6983 = vunpack.c.l.b16 %v6945
    %v6984 = vunpack.c.l.b16 %v6946
    %v6985 = vunpack.c.l.b16 %v6947
    %v6986 = vunpack.c.l.b16 %v6948
    %v6987 = vunpack.c.l.b16 %v6949
    %v6988 = vunpack.c.l.b16 %v6950
    %v6989 = vunpack.c.l.b16 %v6951
    %v6990 = vunpack.c.l.b16 %v6952
    %v6991 = vunpack.c.l.b16 %v6953
    %v6992 = vunpack.c.l.b16 %v6954
    %v6993 = vunpack.c.l.b16 %v6955
    %v6994 = vunpack.c.l.b16 %v6956
    %v6995 = vunpack.c.l.b16 %v6957
    %v6996 = vpack.c.b16 %v6981, %v6980
    %v6997 = vpack.c.b16 %v6983, %v6982
    %v6998 = vpack.c.b16 %v6985, %v6984
    %v6999 = vpack.c.b16 %v6987, %v6986
    %v7000 = vpack.c.b16 %v6989, %v6988
    %v7001 = vpack.c.b16 %v6991, %v6990
    %v7002 = vpack.c.b16 %v6993, %v6992
    %v7003 = vpack.c.b16 %v6995, %v6994
    %7012 = vmatprep.subr.bf16.mxu0 0
    %7013 = vmatpush1.bf16.msra.mxu0 %v7003
    %7014 = vmatprep.subr.bf16.mxu0 0
    %7015 = vmatpush1.bf16.msra.mxu0 %v7002
    %7016 = vmatprep.subr.bf16.mxu0 0
    %7017 = vmatpush1.bf16.msra.mxu0 %v7001
    %7018 = vmatprep.subr.bf16.mxu0 0
    %7019 = vmatpush1.bf16.msra.mxu0 %v7000
    %7020 = vmatprep.subr.bf16.mxu0 0
    %7021 = vmatpush1.bf16.msra.mxu0 %v6999
    %7022 = vmatprep.subr.bf16.mxu0 0
    %7023 = vmatpush1.bf16.msra.mxu0 %v6998
    %7024 = vmatprep.subr.bf16.mxu0 0
    %7025 = vmatpush1.bf16.msra.mxu0 %v6997
    %7026 = vmatprep.subr.bf16.mxu0 0
    %7027 = vmatpush1.bf16.msra.mxu0 %v6996
    %7028 = vmatprep.subr.bf16.mxu0 0
    %7029 = vmatpush2.bf16.msra.mxu0 0
    %7030 = vmatprep.subr.bf16.mxu0 0
    %7031 = vmatpush2.bf16.msra.mxu0 0
    %7032 = vmatprep.subr.bf16.mxu0 0
    %7033 = vmatpush2.bf16.msra.mxu0 0
    %7034 = vmatprep.subr.bf16.mxu0 0
    %7035 = vmatpush2.bf16.msra.mxu0 0
    %7036 = vmatprep.subr.bf16.mxu0 0
    %7037 = vmatpush2.bf16.msra.mxu0 0
    %7038 = vmatprep.subr.bf16.mxu0 0
    %7039 = vmatpush2.bf16.msra.mxu0 0
    %7040 = vmatprep.subr.bf16.mxu0 0
    %7041 = vmatpush2.bf16.msra.mxu0 0
    %7042 = vmatprep.subr.bf16.mxu0 0
    %7043 = vmatpush2.bf16.msra.mxu0 0
    %7044 = vmatprep.mubr.bf16.mxu0 0
    %7045 = vmatmul.mubr.bf16.gmra.mxu0 %v6962
    %v7046 = vpop.f32.mrf.mxu0
    %v7047 = vadd.f32 0.0, %v7046
    %v7048 = vpop.f32.mrf.mxu0
    %v7049 = vpop.f32.mrf.mxu0
    %v7050 = vadd.f32 0.0, %v7049
    %v7051 = vpop.f32.mrf.mxu0
    %7052 = vdwg.mxu0
    %v7055 = vrot.slane %v6934, 4
    %v7056 = vrot.slane %v6936, 4
    %v7059 = vunpack.c.l.bf16 %v7055
    %v7060 = vunpack.c.l.bf16 %v7056
    %v7061 = vadd.f32 %v7059, %v7047
    %v7062 = vadd.f32 %v7060, %v7050
    %v7063 = vxor.u32 %v7061, 2147483648
    %v7064 = vxor.u32 %v7062, 2147483648
    %v7065 = vmul.f32 %v7063, 1.442695
    %v7066 = vpow.pop %v7065
    %v7067 = vmul.f32 %v7064, 1.442695
    %v7068 = vpow.pop %v7067
    %v7069 = vadd.f32 %v7066, 1.0
    %v7070 = vadd.f32 %v7068, 1.0
    %v7071 = vrcp.pop %v7069
    %v7072 = vmul.f32 1.0, %v7071
    %v7073 = vrcp.pop %v7070
    %v7074 = vmul.f32 1.0, %v7073
    %v7075 = vmul.f32 %v7072, %v6940
    %v7076 = vmul.f32 %v7074, %v6941
    %v7077 = vld [vmem:[#allocation2] sm:$0xf]
    %v7078 = vld [vmem:[#allocation2 + $0x10] sm:$0xf]
    %v7079 = vld [vmem:[#allocation2 + $0x20] sm:$0xf]
    %v7080 = vld [vmem:[#allocation2 + $0x30] sm:$0xf]
    %v7081 = vld [vmem:[#allocation2 + $0x40] sm:$0xf]
    %v7082 = vld [vmem:[#allocation2 + $0x50] sm:$0xf]
    %v7083 = vld [vmem:[#allocation2 + $0x60] sm:$0xf]
    %v7084 = vld [vmem:[#allocation2 + $0x70] sm:$0xf]
    %v7085 = vld [vmem:[#allocation2 + $0x80] sm:$0xf]
    %v7086 = vld [vmem:[#allocation2 + $0x90] sm:$0xf]
    %v7087 = vld [vmem:[#allocation2 + $0xa0] sm:$0xf]
    %v7088 = vld [vmem:[#allocation2 + $0xb0] sm:$0xf]
    %v7089 = vld [vmem:[#allocation2 + $0xc0] sm:$0xf]
    %v7090 = vld [vmem:[#allocation2 + $0xd0] sm:$0xf]
    %v7091 = vld [vmem:[#allocation2 + $0xe0] sm:$0xf]
    %v7092 = vld [vmem:[#allocation2 + $0xf0] sm:$0xf]
    %v7109 = vunpack.c.l.b16 %v7077
    %v7110 = vunpack.c.l.b16 %v7078
    %v7111 = vunpack.c.l.b16 %v7079
    %v7112 = vunpack.c.l.b16 %v7080
    %v7113 = vunpack.c.l.b16 %v7081
    %v7114 = vunpack.c.l.b16 %v7082
    %v7115 = vunpack.c.l.b16 %v7083
    %v7116 = vunpack.c.l.b16 %v7084
    %v7117 = vunpack.c.l.b16 %v7085
    %v7118 = vunpack.c.l.b16 %v7086
    %v7119 = vunpack.c.l.b16 %v7087
    %v7120 = vunpack.c.l.b16 %v7088
    %v7121 = vunpack.c.l.b16 %v7089
    %v7122 = vunpack.c.l.b16 %v7090
    %v7123 = vunpack.c.l.b16 %v7091
    %v7124 = vunpack.c.l.b16 %v7092
    %v7125 = vpack.c.b16 %v7110, %v7109
    %v7126 = vpack.c.b16 %v7112, %v7111
    %v7127 = vpack.c.b16 %v7114, %v7113
    %v7128 = vpack.c.b16 %v7116, %v7115
    %v7129 = vpack.c.b16 %v7118, %v7117
    %v7130 = vpack.c.b16 %v7120, %v7119
    %v7131 = vpack.c.b16 %v7122, %v7121
    %v7132 = vpack.c.b16 %v7124, %v7123
    %7141 = vmatprep.subr.bf16.mxu0 0
    %7142 = vmatpush1.bf16.msra.mxu0 %v7132
    %7143 = vmatprep.subr.bf16.mxu0 0
    %7144 = vmatpush1.bf16.msra.mxu0 %v7131
    %7145 = vmatprep.subr.bf16.mxu0 0
    %7146 = vmatpush1.bf16.msra.mxu0 %v7130
    %7147 = vmatprep.subr.bf16.mxu0 0
    %7148 = vmatpush1.bf16.msra.mxu0 %v7129
    %7149 = vmatprep.subr.bf16.mxu0 0
    %7150 = vmatpush1.bf16.msra.mxu0 %v7128
    %7151 = vmatprep.subr.bf16.mxu0 0
    %7152 = vmatpush1.bf16.msra.mxu0 %v7127
    %7153 = vmatprep.subr.bf16.mxu0 0
    %7154 = vmatpush1.bf16.msra.mxu0 %v7126
    %7155 = vmatprep.subr.bf16.mxu0 0
    %7156 = vmatpush1.bf16.msra.mxu0 %v7125
    %7157 = vmatprep.subr.bf16.mxu0 0
    %7158 = vmatpush2.bf16.msra.mxu0 0
    %7159 = vmatprep.subr.bf16.mxu0 0
    %7160 = vmatpush2.bf16.msra.mxu0 0
    %7161 = vmatprep.subr.bf16.mxu0 0
    %7162 = vmatpush2.bf16.msra.mxu0 0
    %7163 = vmatprep.subr.bf16.mxu0 0
    %7164 = vmatpush2.bf16.msra.mxu0 0
    %7165 = vmatprep.subr.bf16.mxu0 0
    %7166 = vmatpush2.bf16.msra.mxu0 0
    %7167 = vmatprep.subr.bf16.mxu0 0
    %7168 = vmatpush2.bf16.msra.mxu0 0
    %7169 = vmatprep.subr.bf16.mxu0 0
    %7170 = vmatpush2.bf16.msra.mxu0 0
    %7171 = vmatprep.subr.bf16.mxu0 0
    %7172 = vmatpush2.bf16.msra.mxu0 0
    %7173 = vmatprep.mubr.bf16.mxu0 0
    %7174 = vmatmul.mubr.bf16.gmra.mxu0 %v6962
    %v7175 = vpop.f32.mrf.mxu0
    %v7176 = vadd.f32 0.0, %v7175
    %v7177 = vpop.f32.mrf.mxu0
    %v7178 = vpop.f32.mrf.mxu0
    %v7179 = vadd.f32 0.0, %v7178
    %v7180 = vpop.f32.mrf.mxu0
    %7181 = vdwg.mxu0
    %v7182 = vunpack.c.l.bf16 %v6934
    %v7183 = vunpack.c.l.bf16 %v6936
    %v7184 = vadd.f32 %v7182, %v7176
    %v7185 = vadd.f32 %v7183, %v7179
    %v7186 = vxor.u32 %v7184, 2147483648
    %v7187 = vxor.u32 %v7185, 2147483648
    %v7188 = vmul.f32 %v7186, 1.442695
    %v7189 = vpow.pop %v7188
    %v7190 = vmul.f32 %v7187, 1.442695
    %v7191 = vpow.pop %v7190
    %v7192 = vadd.f32 %v7189, 1.0
    %v7193 = vadd.f32 %v7191, 1.0
    %v7194 = vrcp.pop %v7192
    %v7195 = vmul.f32 1.0, %v7194
    %v7196 = vrcp.pop %v7193
    %v7197 = vmul.f32 1.0, %v7196
    %v7198 = vld [vmem:[#allocation2 + $0x8] sm:$0xf]
    %v7199 = vld [vmem:[#allocation2 + $0x18] sm:$0xf]
    %v7200 = vld [vmem:[#allocation2 + $0x28] sm:$0xf]
    %v7201 = vld [vmem:[#allocation2 + $0x38] sm:$0xf]
    %v7202 = vld [vmem:[#allocation2 + $0x48] sm:$0xf]
    %v7203 = vld [vmem:[#allocation2 + $0x58] sm:$0xf]
    %v7204 = vld [vmem:[#allocation2 + $0x68] sm:$0xf]
    %v7205 = vld [vmem:[#allocation2 + $0x78] sm:$0xf]
    %v7206 = vld [vmem:[#allocation2 + $0x88] sm:$0xf]
    %v7207 = vld [vmem:[#allocation2 + $0x98] sm:$0xf]
    %v7208 = vld [vmem:[#allocation2 + $0xa8] sm:$0xf]
    %v7209 = vld [vmem:[#allocation2 + $0xb8] sm:$0xf]
    %v7210 = vld [vmem:[#allocation2 + $0xc8] sm:$0xf]
    %v7211 = vld [vmem:[#allocation2 + $0xd8] sm:$0xf]
    %v7212 = vld [vmem:[#allocation2 + $0xe8] sm:$0xf]
    %v7213 = vld [vmem:[#allocation2 + $0xf8] sm:$0xf]
    %v7230 = vunpack.c.l.b16 %v7198
    %v7231 = vunpack.c.l.b16 %v7199
    %v7232 = vunpack.c.l.b16 %v7200
    %v7233 = vunpack.c.l.b16 %v7201
    %v7234 = vunpack.c.l.b16 %v7202
    %v7235 = vunpack.c.l.b16 %v7203
    %v7236 = vunpack.c.l.b16 %v7204
    %v7237 = vunpack.c.l.b16 %v7205
    %v7238 = vunpack.c.l.b16 %v7206
    %v7239 = vunpack.c.l.b16 %v7207
    %v7240 = vunpack.c.l.b16 %v7208
    %v7241 = vunpack.c.l.b16 %v7209
    %v7242 = vunpack.c.l.b16 %v7210
    %v7243 = vunpack.c.l.b16 %v7211
    %v7244 = vunpack.c.l.b16 %v7212
    %v7245 = vunpack.c.l.b16 %v7213
    %v7246 = vpack.c.b16 %v7231, %v7230
    %v7247 = vpack.c.b16 %v7233, %v7232
    %v7248 = vpack.c.b16 %v7235, %v7234
    %v7249 = vpack.c.b16 %v7237, %v7236
    %v7250 = vpack.c.b16 %v7239, %v7238
    %v7251 = vpack.c.b16 %v7241, %v7240
    %v7252 = vpack.c.b16 %v7243, %v7242
    %v7253 = vpack.c.b16 %v7245, %v7244
    %7262 = vmatprep.subr.bf16.mxu0 0
    %7263 = vmatpush1.bf16.msra.mxu0 %v7253
    %7264 = vmatprep.subr.bf16.mxu0 0
    %7265 = vmatpush1.bf16.msra.mxu0 %v7252
    %7266 = vmatprep.subr.bf16.mxu0 0
    %7267 = vmatpush1.bf16.msra.mxu0 %v7251
    %7268 = vmatprep.subr.bf16.mxu0 0
    %7269 = vmatpush1.bf16.msra.mxu0 %v7250
    %7270 = vmatprep.subr.bf16.mxu0 0
    %7271 = vmatpush1.bf16.msra.mxu0 %v7249
    %7272 = vmatprep.subr.bf16.mxu0 0
    %7273 = vmatpush1.bf16.msra.mxu0 %v7248
    %7274 = vmatprep.subr.bf16.mxu0 0
    %7275 = vmatpush1.bf16.msra.mxu0 %v7247
    %7276 = vmatprep.subr.bf16.mxu0 0
    %7277 = vmatpush1.bf16.msra.mxu0 %v7246
    %7278 = vmatprep.subr.bf16.mxu0 0
    %7279 = vmatpush2.bf16.msra.mxu0 0
    %7280 = vmatprep.subr.bf16.mxu0 0
    %7281 = vmatpush2.bf16.msra.mxu0 0
    %7282 = vmatprep.subr.bf16.mxu0 0
    %7283 = vmatpush2.bf16.msra.mxu0 0
    %7284 = vmatprep.subr.bf16.mxu0 0
    %7285 = vmatpush2.bf16.msra.mxu0 0
    %7286 = vmatprep.subr.bf16.mxu0 0
    %7287 = vmatpush2.bf16.msra.mxu0 0
    %7288 = vmatprep.subr.bf16.mxu0 0
    %7289 = vmatpush2.bf16.msra.mxu0 0
    %7290 = vmatprep.subr.bf16.mxu0 0
    %7291 = vmatpush2.bf16.msra.mxu0 0
    %7292 = vmatprep.subr.bf16.mxu0 0
    %7293 = vmatpush2.bf16.msra.mxu0 0
    %7294 = vmatprep.mubr.bf16.mxu0 0
    %7295 = vmatmul.mubr.bf16.gmra.mxu0 %v6962
    %v7296 = vpop.f32.mrf.mxu0
    %v7297 = vadd.f32 0.0, %v7296
    %v7298 = vpop.f32.mrf.mxu0
    %v7299 = vpop.f32.mrf.mxu0
    %v7300 = vadd.f32 0.0, %v7299
    %v7301 = vpop.f32.mrf.mxu0
    %7302 = vdwg.mxu0
    %v7303 = vunpack.c.l.bf16 %v6935
    %v7304 = vunpack.c.l.bf16 %v6937
    %v7305 = vadd.f32 %v7303, %v7297
    %v7306 = vadd.f32 %v7304, %v7300
    %v7307 = vtanh.pop %v7305
    %v7308 = vtanh.pop %v7306
    %v7309 = vmul.f32 %v7195, %v7307
    %v7310 = vmul.f32 %v7197, %v7308
    %v7311 = vadd.f32 %v7075, %v7309
    %v7312 = vadd.f32 %v7076, %v7310
    %v7313 = vld [vmem:[#allocation2 + $0xc] sm:$0xf]
    %v7314 = vld [vmem:[#allocation2 + $0x1c] sm:$0xf]
    %v7315 = vld [vmem:[#allocation2 + $0x2c] sm:$0xf]
    %v7316 = vld [vmem:[#allocation2 + $0x3c] sm:$0xf]
    %v7317 = vld [vmem:[#allocation2 + $0x4c] sm:$0xf]
    %v7318 = vld [vmem:[#allocation2 + $0x5c] sm:$0xf]
    %v7319 = vld [vmem:[#allocation2 + $0x6c] sm:$0xf]
    %v7320 = vld [vmem:[#allocation2 + $0x7c] sm:$0xf]
    %v7321 = vld [vmem:[#allocation2 + $0x8c] sm:$0xf]
    %v7322 = vld [vmem:[#allocation2 + $0x9c] sm:$0xf]
    %v7323 = vld [vmem:[#allocation2 + $0xac] sm:$0xf]
    %v7324 = vld [vmem:[#allocation2 + $0xbc] sm:$0xf]
    %v7325 = vld [vmem:[#allocation2 + $0xcc] sm:$0xf]
    %v7326 = vld [vmem:[#allocation2 + $0xdc] sm:$0xf]
    %v7327 = vld [vmem:[#allocation2 + $0xec] sm:$0xf]
    %v7328 = vld [vmem:[#allocation2 + $0xfc] sm:$0xf]
    %v7345 = vunpack.c.l.b16 %v7313
    %v7346 = vunpack.c.l.b16 %v7314
    %v7347 = vunpack.c.l.b16 %v7315
    %v7348 = vunpack.c.l.b16 %v7316
    %v7349 = vunpack.c.l.b16 %v7317
    %v7350 = vunpack.c.l.b16 %v7318
    %v7351 = vunpack.c.l.b16 %v7319
    %v7352 = vunpack.c.l.b16 %v7320
    %v7353 = vunpack.c.l.b16 %v7321
    %v7354 = vunpack.c.l.b16 %v7322
    %v7355 = vunpack.c.l.b16 %v7323
    %v7356 = vunpack.c.l.b16 %v7324
    %v7357 = vunpack.c.l.b16 %v7325
    %v7358 = vunpack.c.l.b16 %v7326
    %v7359 = vunpack.c.l.b16 %v7327
    %v7360 = vunpack.c.l.b16 %v7328
    %v7361 = vpack.c.b16 %v7346, %v7345
    %v7362 = vpack.c.b16 %v7348, %v7347
    %v7363 = vpack.c.b16 %v7350, %v7349
    %v7364 = vpack.c.b16 %v7352, %v7351
    %v7365 = vpack.c.b16 %v7354, %v7353
    %v7366 = vpack.c.b16 %v7356, %v7355
    %v7367 = vpack.c.b16 %v7358, %v7357
    %v7368 = vpack.c.b16 %v7360, %v7359
    %7377 = vmatprep.subr.bf16.mxu0 0
    %7378 = vmatpush1.bf16.msra.mxu0 %v7368
    %7379 = vmatprep.subr.bf16.mxu0 0
    %7380 = vmatpush1.bf16.msra.mxu0 %v7367
    %7381 = vmatprep.subr.bf16.mxu0 0
    %7382 = vmatpush1.bf16.msra.mxu0 %v7366
    %7383 = vmatprep.subr.bf16.mxu0 0
    %7384 = vmatpush1.bf16.msra.mxu0 %v7365
    %7385 = vmatprep.subr.bf16.mxu0 0
    %7386 = vmatpush1.bf16.msra.mxu0 %v7364
    %7387 = vmatprep.subr.bf16.mxu0 0
    %7388 = vmatpush1.bf16.msra.mxu0 %v7363
    %7389 = vmatprep.subr.bf16.mxu0 0
    %7390 = vmatpush1.bf16.msra.mxu0 %v7362
    %7391 = vmatprep.subr.bf16.mxu0 0
    %7392 = vmatpush1.bf16.msra.mxu0 %v7361
    %7393 = vmatprep.subr.bf16.mxu0 0
    %7394 = vmatpush2.bf16.msra.mxu0 0
    %7395 = vmatprep.subr.bf16.mxu0 0
    %7396 = vmatpush2.bf16.msra.mxu0 0
    %7397 = vmatprep.subr.bf16.mxu0 0
    %7398 = vmatpush2.bf16.msra.mxu0 0
    %7399 = vmatprep.subr.bf16.mxu0 0
    %7400 = vmatpush2.bf16.msra.mxu0 0
    %7401 = vmatprep.subr.bf16.mxu0 0
    %7402 = vmatpush2.bf16.msra.mxu0 0
    %7403 = vmatprep.subr.bf16.mxu0 0
    %7404 = vmatpush2.bf16.msra.mxu0 0
    %7405 = vmatprep.subr.bf16.mxu0 0
    %7406 = vmatpush2.bf16.msra.mxu0 0
    %7407 = vmatprep.subr.bf16.mxu0 0
    %7408 = vmatpush2.bf16.msra.mxu0 0
    %7409 = vmatprep.mubr.bf16.mxu0 0
    %7410 = vmatmul.mubr.bf16.gmra.mxu0 %v6962
    %v7411 = vpop.f32.mrf.mxu0
    %v7412 = vadd.f32 0.0, %v7411
    %v7413 = vpop.f32.mrf.mxu0
    %v7414 = vpop.f32.mrf.mxu0
    %v7415 = vadd.f32 0.0, %v7414
    %v7416 = vpop.f32.mrf.mxu0
    %7417 = vdwg.mxu0
    %v7420 = vrot.slane %v6935, 4
    %v7421 = vrot.slane %v6937, 4
    %v7424 = vunpack.c.l.bf16 %v7420
    %v7425 = vunpack.c.l.bf16 %v7421
    %v7426 = vadd.f32 %v7424, %v7412
    %v7427 = vadd.f32 %v7425, %v7415
    %v7428 = vxor.u32 %v7426, 2147483648
    %v7429 = vxor.u32 %v7427, 2147483648
    %v7430 = vmul.f32 %v7428, 1.442695
    %v7431 = vpow.pop %v7430
    %v7432 = vmul.f32 %v7429, 1.442695
    %v7433 = vpow.pop %v7432
    %v7434 = vadd.f32 %v7431, 1.0
    %v7435 = vadd.f32 %v7433, 1.0
    %v7436 = vrcp.pop %v7434
    %v7437 = vmul.f32 1.0, %v7436
    %v7438 = vrcp.pop %v7435
    %v7439 = vmul.f32 1.0, %v7438
    %v7440 = vtanh.pop %v7311
    %v7441 = vtanh.pop %v7312
    %v7442 = vmul.f32 %v7437, %v7440
    %v7443 = vmul.f32 %v7439, %v7441
    %v7444 = vpack.c.bf16 %v7443, %v7442
    %v7446 = vunpack.c.l.b16 %v7444
    %v7447 = vunpack.c.h.b16 %v7444
    %v7448 = vpack.c.b16 %v7446, %v7446
    %v7449 = vpack.c.b16 %v7447, %v7447
    %7452 = vst [vmem:[#allocation3] sm:$0xf] %v7448
    %7453 = vst [vmem:[#allocation3 + $0x4] sm:$0xf] %v7449
    %7454 = vst [vmem:[#allocation4] sm:$0xff] %v7311
    %7455 = vst [vmem:[#allocation4 + $0x8] sm:$0xff] %v7312
    %s7456 = scalar_lea.vmem [#allocation12], 208
    %7457 = vst [vmem:[%s7456] sm:$0xff] %v7442
    %7458 = vst [vmem:[%s7456 + $0x8] sm:$0xff] %v7443
    %s7459 = scalar_lea.vmem [#allocation6], 448
    %v7460 = vld [vmem:[%s7459] sm:$0xff]
    %v7461 = vld [vmem:[%s7459 + $0x8] sm:$0xff]
    %v7462 = vld [vmem:[%s7459 + $0x10] sm:$0xff]
    %v7463 = vld [vmem:[%s7459 + $0x18] sm:$0xff]
    %v7464 = vld [vmem:[#allocation3] sm:$0xf]
    %v7465 = vld [vmem:[#allocation3 + $0x4] sm:$0xf]
    %v7466 = vld [vmem:[#allocation4] sm:$0xff]
    %v7467 = vld [vmem:[#allocation4 + $0x8] sm:$0xff]
    %v7468 = vld [vmem:[#allocation2 + $0x4] sm:$0xf]
    %v7469 = vld [vmem:[#allocation2 + $0x14] sm:$0xf]
    %v7470 = vld [vmem:[#allocation2 + $0x24] sm:$0xf]
    %v7471 = vld [vmem:[#allocation2 + $0x34] sm:$0xf]
    %v7472 = vld [vmem:[#allocation2 + $0x44] sm:$0xf]
    %v7473 = vld [vmem:[#allocation2 + $0x54] sm:$0xf]
    %v7474 = vld [vmem:[#allocation2 + $0x64] sm:$0xf]
    %v7475 = vld [vmem:[#allocation2 + $0x74] sm:$0xf]
    %v7476 = vld [vmem:[#allocation2 + $0x84] sm:$0xf]
    %v7477 = vld [vmem:[#allocation2 + $0x94] sm:$0xf]
    %v7478 = vld [vmem:[#allocation2 + $0xa4] sm:$0xf]
    %v7479 = vld [vmem:[#allocation2 + $0xb4] sm:$0xf]
    %v7480 = vld [vmem:[#allocation2 + $0xc4] sm:$0xf]
    %v7481 = vld [vmem:[#allocation2 + $0xd4] sm:$0xf]
    %v7482 = vld [vmem:[#allocation2 + $0xe4] sm:$0xf]
    %v7483 = vld [vmem:[#allocation2 + $0xf4] sm:$0xf]
    %v7486 = vunpack.c.l.b16 %v7464
    %v7487 = vunpack.c.l.b16 %v7465
    %v7488 = vpack.c.b16 %v7487, %v7486
    %v7506 = vunpack.c.l.b16 %v7468
    %v7507 = vunpack.c.l.b16 %v7469
    %v7508 = vunpack.c.l.b16 %v7470
    %v7509 = vunpack.c.l.b16 %v7471
    %v7510 = vunpack.c.l.b16 %v7472
    %v7511 = vunpack.c.l.b16 %v7473
    %v7512 = vunpack.c.l.b16 %v7474
    %v7513 = vunpack.c.l.b16 %v7475
    %v7514 = vunpack.c.l.b16 %v7476
    %v7515 = vunpack.c.l.b16 %v7477
    %v7516 = vunpack.c.l.b16 %v7478
    %v7517 = vunpack.c.l.b16 %v7479
    %v7518 = vunpack.c.l.b16 %v7480
    %v7519 = vunpack.c.l.b16 %v7481
    %v7520 = vunpack.c.l.b16 %v7482
    %v7521 = vunpack.c.l.b16 %v7483
    %v7522 = vpack.c.b16 %v7507, %v7506
    %v7523 = vpack.c.b16 %v7509, %v7508
    %v7524 = vpack.c.b16 %v7511, %v7510
    %v7525 = vpack.c.b16 %v7513, %v7512
    %v7526 = vpack.c.b16 %v7515, %v7514
    %v7527 = vpack.c.b16 %v7517, %v7516
    %v7528 = vpack.c.b16 %v7519, %v7518
    %v7529 = vpack.c.b16 %v7521, %v7520
    %7538 = vmatprep.subr.bf16.mxu0 0
    %7539 = vmatpush1.bf16.msra.mxu0 %v7529
    %7540 = vmatprep.subr.bf16.mxu0 0
    %7541 = vmatpush1.bf16.msra.mxu0 %v7528
    %7542 = vmatprep.subr.bf16.mxu0 0
    %7543 = vmatpush1.bf16.msra.mxu0 %v7527
    %7544 = vmatprep.subr.bf16.mxu0 0
    %7545 = vmatpush1.bf16.msra.mxu0 %v7526
    %7546 = vmatprep.subr.bf16.mxu0 0
    %7547 = vmatpush1.bf16.msra.mxu0 %v7525
    %7548 = vmatprep.subr.bf16.mxu0 0
    %7549 = vmatpush1.bf16.msra.mxu0 %v7524
    %7550 = vmatprep.subr.bf16.mxu0 0
    %7551 = vmatpush1.bf16.msra.mxu0 %v7523
    %7552 = vmatprep.subr.bf16.mxu0 0
    %7553 = vmatpush1.bf16.msra.mxu0 %v7522
    %7554 = vmatprep.subr.bf16.mxu0 0
    %7555 = vmatpush2.bf16.msra.mxu0 0
    %7556 = vmatprep.subr.bf16.mxu0 0
    %7557 = vmatpush2.bf16.msra.mxu0 0
    %7558 = vmatprep.subr.bf16.mxu0 0
    %7559 = vmatpush2.bf16.msra.mxu0 0
    %7560 = vmatprep.subr.bf16.mxu0 0
    %7561 = vmatpush2.bf16.msra.mxu0 0
    %7562 = vmatprep.subr.bf16.mxu0 0
    %7563 = vmatpush2.bf16.msra.mxu0 0
    %7564 = vmatprep.subr.bf16.mxu0 0
    %7565 = vmatpush2.bf16.msra.mxu0 0
    %7566 = vmatprep.subr.bf16.mxu0 0
    %7567 = vmatpush2.bf16.msra.mxu0 0
    %7568 = vmatprep.subr.bf16.mxu0 0
    %7569 = vmatpush2.bf16.msra.mxu0 0
    %7570 = vmatprep.mubr.bf16.mxu0 0
    %7571 = vmatmul.mubr.bf16.gmra.mxu0 %v7488
    %v7572 = vpop.f32.mrf.mxu0
    %v7573 = vadd.f32 0.0, %v7572
    %v7574 = vpop.f32.mrf.mxu0
    %v7575 = vpop.f32.mrf.mxu0
    %v7576 = vadd.f32 0.0, %v7575
    %v7577 = vpop.f32.mrf.mxu0
    %7578 = vdwg.mxu0
    %v7581 = vrot.slane %v7460, 4
    %v7582 = vrot.slane %v7462, 4
    %v7585 = vunpack.c.l.bf16 %v7581
    %v7586 = vunpack.c.l.bf16 %v7582
    %v7587 = vadd.f32 %v7585, %v7573
    %v7588 = vadd.f32 %v7586, %v7576
    %v7589 = vxor.u32 %v7587, 2147483648
    %v7590 = vxor.u32 %v7588, 2147483648
    %v7591 = vmul.f32 %v7589, 1.442695
    %v7592 = vpow.pop %v7591
    %v7593 = vmul.f32 %v7590, 1.442695
    %v7594 = vpow.pop %v7593
    %v7595 = vadd.f32 %v7592, 1.0
    %v7596 = vadd.f32 %v7594, 1.0
    %v7597 = vrcp.pop %v7595
    %v7598 = vmul.f32 1.0, %v7597
    %v7599 = vrcp.pop %v7596
    %v7600 = vmul.f32 1.0, %v7599
    %v7601 = vmul.f32 %v7598, %v7466
    %v7602 = vmul.f32 %v7600, %v7467
    %v7603 = vld [vmem:[#allocation2] sm:$0xf]
    %v7604 = vld [vmem:[#allocation2 + $0x10] sm:$0xf]
    %v7605 = vld [vmem:[#allocation2 + $0x20] sm:$0xf]
    %v7606 = vld [vmem:[#allocation2 + $0x30] sm:$0xf]
    %v7607 = vld [vmem:[#allocation2 + $0x40] sm:$0xf]
    %v7608 = vld [vmem:[#allocation2 + $0x50] sm:$0xf]
    %v7609 = vld [vmem:[#allocation2 + $0x60] sm:$0xf]
    %v7610 = vld [vmem:[#allocation2 + $0x70] sm:$0xf]
    %v7611 = vld [vmem:[#allocation2 + $0x80] sm:$0xf]
    %v7612 = vld [vmem:[#allocation2 + $0x90] sm:$0xf]
    %v7613 = vld [vmem:[#allocation2 + $0xa0] sm:$0xf]
    %v7614 = vld [vmem:[#allocation2 + $0xb0] sm:$0xf]
    %v7615 = vld [vmem:[#allocation2 + $0xc0] sm:$0xf]
    %v7616 = vld [vmem:[#allocation2 + $0xd0] sm:$0xf]
    %v7617 = vld [vmem:[#allocation2 + $0xe0] sm:$0xf]
    %v7618 = vld [vmem:[#allocation2 + $0xf0] sm:$0xf]
    %v7635 = vunpack.c.l.b16 %v7603
    %v7636 = vunpack.c.l.b16 %v7604
    %v7637 = vunpack.c.l.b16 %v7605
    %v7638 = vunpack.c.l.b16 %v7606
    %v7639 = vunpack.c.l.b16 %v7607
    %v7640 = vunpack.c.l.b16 %v7608
    %v7641 = vunpack.c.l.b16 %v7609
    %v7642 = vunpack.c.l.b16 %v7610
    %v7643 = vunpack.c.l.b16 %v7611
    %v7644 = vunpack.c.l.b16 %v7612
    %v7645 = vunpack.c.l.b16 %v7613
    %v7646 = vunpack.c.l.b16 %v7614
    %v7647 = vunpack.c.l.b16 %v7615
    %v7648 = vunpack.c.l.b16 %v7616
    %v7649 = vunpack.c.l.b16 %v7617
    %v7650 = vunpack.c.l.b16 %v7618
    %v7651 = vpack.c.b16 %v7636, %v7635
    %v7652 = vpack.c.b16 %v7638, %v7637
    %v7653 = vpack.c.b16 %v7640, %v7639
    %v7654 = vpack.c.b16 %v7642, %v7641
    %v7655 = vpack.c.b16 %v7644, %v7643
    %v7656 = vpack.c.b16 %v7646, %v7645
    %v7657 = vpack.c.b16 %v7648, %v7647
    %v7658 = vpack.c.b16 %v7650, %v7649
    %7667 = vmatprep.subr.bf16.mxu0 0
    %7668 = vmatpush1.bf16.msra.mxu0 %v7658
    %7669 = vmatprep.subr.bf16.mxu0 0
    %7670 = vmatpush1.bf16.msra.mxu0 %v7657
    %7671 = vmatprep.subr.bf16.mxu0 0
    %7672 = vmatpush1.bf16.msra.mxu0 %v7656
    %7673 = vmatprep.subr.bf16.mxu0 0
    %7674 = vmatpush1.bf16.msra.mxu0 %v7655
    %7675 = vmatprep.subr.bf16.mxu0 0
    %7676 = vmatpush1.bf16.msra.mxu0 %v7654
    %7677 = vmatprep.subr.bf16.mxu0 0
    %7678 = vmatpush1.bf16.msra.mxu0 %v7653
    %7679 = vmatprep.subr.bf16.mxu0 0
    %7680 = vmatpush1.bf16.msra.mxu0 %v7652
    %7681 = vmatprep.subr.bf16.mxu0 0
    %7682 = vmatpush1.bf16.msra.mxu0 %v7651
    %7683 = vmatprep.subr.bf16.mxu0 0
    %7684 = vmatpush2.bf16.msra.mxu0 0
    %7685 = vmatprep.subr.bf16.mxu0 0
    %7686 = vmatpush2.bf16.msra.mxu0 0
    %7687 = vmatprep.subr.bf16.mxu0 0
    %7688 = vmatpush2.bf16.msra.mxu0 0
    %7689 = vmatprep.subr.bf16.mxu0 0
    %7690 = vmatpush2.bf16.msra.mxu0 0
    %7691 = vmatprep.subr.bf16.mxu0 0
    %7692 = vmatpush2.bf16.msra.mxu0 0
    %7693 = vmatprep.subr.bf16.mxu0 0
    %7694 = vmatpush2.bf16.msra.mxu0 0
    %7695 = vmatprep.subr.bf16.mxu0 0
    %7696 = vmatpush2.bf16.msra.mxu0 0
    %7697 = vmatprep.subr.bf16.mxu0 0
    %7698 = vmatpush2.bf16.msra.mxu0 0
    %7699 = vmatprep.mubr.bf16.mxu0 0
    %7700 = vmatmul.mubr.bf16.gmra.mxu0 %v7488
    %v7701 = vpop.f32.mrf.mxu0
    %v7702 = vadd.f32 0.0, %v7701
    %v7703 = vpop.f32.mrf.mxu0
    %v7704 = vpop.f32.mrf.mxu0
    %v7705 = vadd.f32 0.0, %v7704
    %v7706 = vpop.f32.mrf.mxu0
    %7707 = vdwg.mxu0
    %v7708 = vunpack.c.l.bf16 %v7460
    %v7709 = vunpack.c.l.bf16 %v7462
    %v7710 = vadd.f32 %v7708, %v7702
    %v7711 = vadd.f32 %v7709, %v7705
    %v7712 = vxor.u32 %v7710, 2147483648
    %v7713 = vxor.u32 %v7711, 2147483648
    %v7714 = vmul.f32 %v7712, 1.442695
    %v7715 = vpow.pop %v7714
    %v7716 = vmul.f32 %v7713, 1.442695
    %v7717 = vpow.pop %v7716
    %v7718 = vadd.f32 %v7715, 1.0
    %v7719 = vadd.f32 %v7717, 1.0
    %v7720 = vrcp.pop %v7718
    %v7721 = vmul.f32 1.0, %v7720
    %v7722 = vrcp.pop %v7719
    %v7723 = vmul.f32 1.0, %v7722
    %v7724 = vld [vmem:[#allocation2 + $0x8] sm:$0xf]
    %v7725 = vld [vmem:[#allocation2 + $0x18] sm:$0xf]
    %v7726 = vld [vmem:[#allocation2 + $0x28] sm:$0xf]
    %v7727 = vld [vmem:[#allocation2 + $0x38] sm:$0xf]
    %v7728 = vld [vmem:[#allocation2 + $0x48] sm:$0xf]
    %v7729 = vld [vmem:[#allocation2 + $0x58] sm:$0xf]
    %v7730 = vld [vmem:[#allocation2 + $0x68] sm:$0xf]
    %v7731 = vld [vmem:[#allocation2 + $0x78] sm:$0xf]
    %v7732 = vld [vmem:[#allocation2 + $0x88] sm:$0xf]
    %v7733 = vld [vmem:[#allocation2 + $0x98] sm:$0xf]
    %v7734 = vld [vmem:[#allocation2 + $0xa8] sm:$0xf]
    %v7735 = vld [vmem:[#allocation2 + $0xb8] sm:$0xf]
    %v7736 = vld [vmem:[#allocation2 + $0xc8] sm:$0xf]
    %v7737 = vld [vmem:[#allocation2 + $0xd8] sm:$0xf]
    %v7738 = vld [vmem:[#allocation2 + $0xe8] sm:$0xf]
    %v7739 = vld [vmem:[#allocation2 + $0xf8] sm:$0xf]
    %v7756 = vunpack.c.l.b16 %v7724
    %v7757 = vunpack.c.l.b16 %v7725
    %v7758 = vunpack.c.l.b16 %v7726
    %v7759 = vunpack.c.l.b16 %v7727
    %v7760 = vunpack.c.l.b16 %v7728
    %v7761 = vunpack.c.l.b16 %v7729
    %v7762 = vunpack.c.l.b16 %v7730
    %v7763 = vunpack.c.l.b16 %v7731
    %v7764 = vunpack.c.l.b16 %v7732
    %v7765 = vunpack.c.l.b16 %v7733
    %v7766 = vunpack.c.l.b16 %v7734
    %v7767 = vunpack.c.l.b16 %v7735
    %v7768 = vunpack.c.l.b16 %v7736
    %v7769 = vunpack.c.l.b16 %v7737
    %v7770 = vunpack.c.l.b16 %v7738
    %v7771 = vunpack.c.l.b16 %v7739
    %v7772 = vpack.c.b16 %v7757, %v7756
    %v7773 = vpack.c.b16 %v7759, %v7758
    %v7774 = vpack.c.b16 %v7761, %v7760
    %v7775 = vpack.c.b16 %v7763, %v7762
    %v7776 = vpack.c.b16 %v7765, %v7764
    %v7777 = vpack.c.b16 %v7767, %v7766
    %v7778 = vpack.c.b16 %v7769, %v7768
    %v7779 = vpack.c.b16 %v7771, %v7770
    %7788 = vmatprep.subr.bf16.mxu0 0
    %7789 = vmatpush1.bf16.msra.mxu0 %v7779
    %7790 = vmatprep.subr.bf16.mxu0 0
    %7791 = vmatpush1.bf16.msra.mxu0 %v7778
    %7792 = vmatprep.subr.bf16.mxu0 0
    %7793 = vmatpush1.bf16.msra.mxu0 %v7777
    %7794 = vmatprep.subr.bf16.mxu0 0
    %7795 = vmatpush1.bf16.msra.mxu0 %v7776
    %7796 = vmatprep.subr.bf16.mxu0 0
    %7797 = vmatpush1.bf16.msra.mxu0 %v7775
    %7798 = vmatprep.subr.bf16.mxu0 0
    %7799 = vmatpush1.bf16.msra.mxu0 %v7774
    %7800 = vmatprep.subr.bf16.mxu0 0
    %7801 = vmatpush1.bf16.msra.mxu0 %v7773
    %7802 = vmatprep.subr.bf16.mxu0 0
    %7803 = vmatpush1.bf16.msra.mxu0 %v7772
    %7804 = vmatprep.subr.bf16.mxu0 0
    %7805 = vmatpush2.bf16.msra.mxu0 0
    %7806 = vmatprep.subr.bf16.mxu0 0
    %7807 = vmatpush2.bf16.msra.mxu0 0
    %7808 = vmatprep.subr.bf16.mxu0 0
    %7809 = vmatpush2.bf16.msra.mxu0 0
    %7810 = vmatprep.subr.bf16.mxu0 0
    %7811 = vmatpush2.bf16.msra.mxu0 0
    %7812 = vmatprep.subr.bf16.mxu0 0
    %7813 = vmatpush2.bf16.msra.mxu0 0
    %7814 = vmatprep.subr.bf16.mxu0 0
    %7815 = vmatpush2.bf16.msra.mxu0 0
    %7816 = vmatprep.subr.bf16.mxu0 0
    %7817 = vmatpush2.bf16.msra.mxu0 0
    %7818 = vmatprep.subr.bf16.mxu0 0
    %7819 = vmatpush2.bf16.msra.mxu0 0
    %7820 = vmatprep.mubr.bf16.mxu0 0
    %7821 = vmatmul.mubr.bf16.gmra.mxu0 %v7488
    %v7822 = vpop.f32.mrf.mxu0
    %v7823 = vadd.f32 0.0, %v7822
    %v7824 = vpop.f32.mrf.mxu0
    %v7825 = vpop.f32.mrf.mxu0
    %v7826 = vadd.f32 0.0, %v7825
    %v7827 = vpop.f32.mrf.mxu0
    %7828 = vdwg.mxu0
    %v7829 = vunpack.c.l.bf16 %v7461
    %v7830 = vunpack.c.l.bf16 %v7463
    %v7831 = vadd.f32 %v7829, %v7823
    %v7832 = vadd.f32 %v7830, %v7826
    %v7833 = vtanh.pop %v7831
    %v7834 = vtanh.pop %v7832
    %v7835 = vmul.f32 %v7721, %v7833
    %v7836 = vmul.f32 %v7723, %v7834
    %v7837 = vadd.f32 %v7601, %v7835
    %v7838 = vadd.f32 %v7602, %v7836
    %v7839 = vld [vmem:[#allocation2 + $0xc] sm:$0xf]
    %v7840 = vld [vmem:[#allocation2 + $0x1c] sm:$0xf]
    %v7841 = vld [vmem:[#allocation2 + $0x2c] sm:$0xf]
    %v7842 = vld [vmem:[#allocation2 + $0x3c] sm:$0xf]
    %v7843 = vld [vmem:[#allocation2 + $0x4c] sm:$0xf]
    %v7844 = vld [vmem:[#allocation2 + $0x5c] sm:$0xf]
    %v7845 = vld [vmem:[#allocation2 + $0x6c] sm:$0xf]
    %v7846 = vld [vmem:[#allocation2 + $0x7c] sm:$0xf]
    %v7847 = vld [vmem:[#allocation2 + $0x8c] sm:$0xf]
    %v7848 = vld [vmem:[#allocation2 + $0x9c] sm:$0xf]
    %v7849 = vld [vmem:[#allocation2 + $0xac] sm:$0xf]
    %v7850 = vld [vmem:[#allocation2 + $0xbc] sm:$0xf]
    %v7851 = vld [vmem:[#allocation2 + $0xcc] sm:$0xf]
    %v7852 = vld [vmem:[#allocation2 + $0xdc] sm:$0xf]
    %v7853 = vld [vmem:[#allocation2 + $0xec] sm:$0xf]
    %v7854 = vld [vmem:[#allocation2 + $0xfc] sm:$0xf]
    %v7871 = vunpack.c.l.b16 %v7839
    %v7872 = vunpack.c.l.b16 %v7840
    %v7873 = vunpack.c.l.b16 %v7841
    %v7874 = vunpack.c.l.b16 %v7842
    %v7875 = vunpack.c.l.b16 %v7843
    %v7876 = vunpack.c.l.b16 %v7844
    %v7877 = vunpack.c.l.b16 %v7845
    %v7878 = vunpack.c.l.b16 %v7846
    %v7879 = vunpack.c.l.b16 %v7847
    %v7880 = vunpack.c.l.b16 %v7848
    %v7881 = vunpack.c.l.b16 %v7849
    %v7882 = vunpack.c.l.b16 %v7850
    %v7883 = vunpack.c.l.b16 %v7851
    %v7884 = vunpack.c.l.b16 %v7852
    %v7885 = vunpack.c.l.b16 %v7853
    %v7886 = vunpack.c.l.b16 %v7854
    %v7887 = vpack.c.b16 %v7872, %v7871
    %v7888 = vpack.c.b16 %v7874, %v7873
    %v7889 = vpack.c.b16 %v7876, %v7875
    %v7890 = vpack.c.b16 %v7878, %v7877
    %v7891 = vpack.c.b16 %v7880, %v7879
    %v7892 = vpack.c.b16 %v7882, %v7881
    %v7893 = vpack.c.b16 %v7884, %v7883
    %v7894 = vpack.c.b16 %v7886, %v7885
    %7903 = vmatprep.subr.bf16.mxu0 0
    %7904 = vmatpush1.bf16.msra.mxu0 %v7894
    %7905 = vmatprep.subr.bf16.mxu0 0
    %7906 = vmatpush1.bf16.msra.mxu0 %v7893
    %7907 = vmatprep.subr.bf16.mxu0 0
    %7908 = vmatpush1.bf16.msra.mxu0 %v7892
    %7909 = vmatprep.subr.bf16.mxu0 0
    %7910 = vmatpush1.bf16.msra.mxu0 %v7891
    %7911 = vmatprep.subr.bf16.mxu0 0
    %7912 = vmatpush1.bf16.msra.mxu0 %v7890
    %7913 = vmatprep.subr.bf16.mxu0 0
    %7914 = vmatpush1.bf16.msra.mxu0 %v7889
    %7915 = vmatprep.subr.bf16.mxu0 0
    %7916 = vmatpush1.bf16.msra.mxu0 %v7888
    %7917 = vmatprep.subr.bf16.mxu0 0
    %7918 = vmatpush1.bf16.msra.mxu0 %v7887
    %7919 = vmatprep.subr.bf16.mxu0 0
    %7920 = vmatpush2.bf16.msra.mxu0 0
    %7921 = vmatprep.subr.bf16.mxu0 0
    %7922 = vmatpush2.bf16.msra.mxu0 0
    %7923 = vmatprep.subr.bf16.mxu0 0
    %7924 = vmatpush2.bf16.msra.mxu0 0
    %7925 = vmatprep.subr.bf16.mxu0 0
    %7926 = vmatpush2.bf16.msra.mxu0 0
    %7927 = vmatprep.subr.bf16.mxu0 0
    %7928 = vmatpush2.bf16.msra.mxu0 0
    %7929 = vmatprep.subr.bf16.mxu0 0
    %7930 = vmatpush2.bf16.msra.mxu0 0
    %7931 = vmatprep.subr.bf16.mxu0 0
    %7932 = vmatpush2.bf16.msra.mxu0 0
    %7933 = vmatprep.subr.bf16.mxu0 0
    %7934 = vmatpush2.bf16.msra.mxu0 0
    %7935 = vmatprep.mubr.bf16.mxu0 0
    %7936 = vmatmul.mubr.bf16.gmra.mxu0 %v7488
    %v7937 = vpop.f32.mrf.mxu0
    %v7938 = vadd.f32 0.0, %v7937
    %v7939 = vpop.f32.mrf.mxu0
    %v7940 = vpop.f32.mrf.mxu0
    %v7941 = vadd.f32 0.0, %v7940
    %v7942 = vpop.f32.mrf.mxu0
    %7943 = vdwg.mxu0
    %v7946 = vrot.slane %v7461, 4
    %v7947 = vrot.slane %v7463, 4
    %v7950 = vunpack.c.l.bf16 %v7946
    %v7951 = vunpack.c.l.bf16 %v7947
    %v7952 = vadd.f32 %v7950, %v7938
    %v7953 = vadd.f32 %v7951, %v7941
    %v7954 = vxor.u32 %v7952, 2147483648
    %v7955 = vxor.u32 %v7953, 2147483648
    %v7956 = vmul.f32 %v7954, 1.442695
    %v7957 = vpow.pop %v7956
    %v7958 = vmul.f32 %v7955, 1.442695
    %v7959 = vpow.pop %v7958
    %v7960 = vadd.f32 %v7957, 1.0
    %v7961 = vadd.f32 %v7959, 1.0
    %v7962 = vrcp.pop %v7960
    %v7963 = vmul.f32 1.0, %v7962
    %v7964 = vrcp.pop %v7961
    %v7965 = vmul.f32 1.0, %v7964
    %v7966 = vtanh.pop %v7837
    %v7967 = vtanh.pop %v7838
    %v7968 = vmul.f32 %v7963, %v7966
    %v7969 = vmul.f32 %v7965, %v7967
    %v7970 = vpack.c.bf16 %v7969, %v7968
    %v7972 = vunpack.c.l.b16 %v7970
    %v7973 = vunpack.c.h.b16 %v7970
    %v7974 = vpack.c.b16 %v7972, %v7972
    %v7975 = vpack.c.b16 %v7973, %v7973
    %7978 = vst [vmem:[#allocation3] sm:$0xf] %v7974
    %7979 = vst [vmem:[#allocation3 + $0x4] sm:$0xf] %v7975
    %7980 = vst [vmem:[#allocation4] sm:$0xff] %v7837
    %7981 = vst [vmem:[#allocation4 + $0x8] sm:$0xff] %v7838
    %s7982 = scalar_lea.vmem [#allocation12], 224
    %7983 = vst [vmem:[%s7982] sm:$0xff] %v7968
    %7984 = vst [vmem:[%s7982 + $0x8] sm:$0xff] %v7969
    %s7985 = scalar_lea.vmem [#allocation6], 480
    %v7986 = vld [vmem:[%s7985] sm:$0xff]
    %v7987 = vld [vmem:[%s7985 + $0x8] sm:$0xff]
    %v7988 = vld [vmem:[%s7985 + $0x10] sm:$0xff]
    %v7989 = vld [vmem:[%s7985 + $0x18] sm:$0xff]
    %v7990 = vld [vmem:[#allocation3] sm:$0xf]
    %v7991 = vld [vmem:[#allocation3 + $0x4] sm:$0xf]
    %v7992 = vld [vmem:[#allocation4] sm:$0xff]
    %v7993 = vld [vmem:[#allocation4 + $0x8] sm:$0xff]
    %v7994 = vld [vmem:[#allocation2 + $0x4] sm:$0xf]
    %v7995 = vld [vmem:[#allocation2 + $0x14] sm:$0xf]
    %v7996 = vld [vmem:[#allocation2 + $0x24] sm:$0xf]
    %v7997 = vld [vmem:[#allocation2 + $0x34] sm:$0xf]
    %v7998 = vld [vmem:[#allocation2 + $0x44] sm:$0xf]
    %v7999 = vld [vmem:[#allocation2 + $0x54] sm:$0xf]
    %v8000 = vld [vmem:[#allocation2 + $0x64] sm:$0xf]
    %v8001 = vld [vmem:[#allocation2 + $0x74] sm:$0xf]
    %v8002 = vld [vmem:[#allocation2 + $0x84] sm:$0xf]
    %v8003 = vld [vmem:[#allocation2 + $0x94] sm:$0xf]
    %v8004 = vld [vmem:[#allocation2 + $0xa4] sm:$0xf]
    %v8005 = vld [vmem:[#allocation2 + $0xb4] sm:$0xf]
    %v8006 = vld [vmem:[#allocation2 + $0xc4] sm:$0xf]
    %v8007 = vld [vmem:[#allocation2 + $0xd4] sm:$0xf]
    %v8008 = vld [vmem:[#allocation2 + $0xe4] sm:$0xf]
    %v8009 = vld [vmem:[#allocation2 + $0xf4] sm:$0xf]
    %v8012 = vunpack.c.l.b16 %v7990
    %v8013 = vunpack.c.l.b16 %v7991
    %v8014 = vpack.c.b16 %v8013, %v8012
    %v8032 = vunpack.c.l.b16 %v7994
    %v8033 = vunpack.c.l.b16 %v7995
    %v8034 = vunpack.c.l.b16 %v7996
    %v8035 = vunpack.c.l.b16 %v7997
    %v8036 = vunpack.c.l.b16 %v7998
    %v8037 = vunpack.c.l.b16 %v7999
    %v8038 = vunpack.c.l.b16 %v8000
    %v8039 = vunpack.c.l.b16 %v8001
    %v8040 = vunpack.c.l.b16 %v8002
    %v8041 = vunpack.c.l.b16 %v8003
    %v8042 = vunpack.c.l.b16 %v8004
    %v8043 = vunpack.c.l.b16 %v8005
    %v8044 = vunpack.c.l.b16 %v8006
    %v8045 = vunpack.c.l.b16 %v8007
    %v8046 = vunpack.c.l.b16 %v8008
    %v8047 = vunpack.c.l.b16 %v8009
    %v8048 = vpack.c.b16 %v8033, %v8032
    %v8049 = vpack.c.b16 %v8035, %v8034
    %v8050 = vpack.c.b16 %v8037, %v8036
    %v8051 = vpack.c.b16 %v8039, %v8038
    %v8052 = vpack.c.b16 %v8041, %v8040
    %v8053 = vpack.c.b16 %v8043, %v8042
    %v8054 = vpack.c.b16 %v8045, %v8044
    %v8055 = vpack.c.b16 %v8047, %v8046
    %8064 = vmatprep.subr.bf16.mxu0 0
    %8065 = vmatpush1.bf16.msra.mxu0 %v8055
    %8066 = vmatprep.subr.bf16.mxu0 0
    %8067 = vmatpush1.bf16.msra.mxu0 %v8054
    %8068 = vmatprep.subr.bf16.mxu0 0
    %8069 = vmatpush1.bf16.msra.mxu0 %v8053
    %8070 = vmatprep.subr.bf16.mxu0 0
    %8071 = vmatpush1.bf16.msra.mxu0 %v8052
    %8072 = vmatprep.subr.bf16.mxu0 0
    %8073 = vmatpush1.bf16.msra.mxu0 %v8051
    %8074 = vmatprep.subr.bf16.mxu0 0
    %8075 = vmatpush1.bf16.msra.mxu0 %v8050
    %8076 = vmatprep.subr.bf16.mxu0 0
    %8077 = vmatpush1.bf16.msra.mxu0 %v8049
    %8078 = vmatprep.subr.bf16.mxu0 0
    %8079 = vmatpush1.bf16.msra.mxu0 %v8048
    %8080 = vmatprep.subr.bf16.mxu0 0
    %8081 = vmatpush2.bf16.msra.mxu0 0
    %8082 = vmatprep.subr.bf16.mxu0 0
    %8083 = vmatpush2.bf16.msra.mxu0 0
    %8084 = vmatprep.subr.bf16.mxu0 0
    %8085 = vmatpush2.bf16.msra.mxu0 0
    %8086 = vmatprep.subr.bf16.mxu0 0
    %8087 = vmatpush2.bf16.msra.mxu0 0
    %8088 = vmatprep.subr.bf16.mxu0 0
    %8089 = vmatpush2.bf16.msra.mxu0 0
    %8090 = vmatprep.subr.bf16.mxu0 0
    %8091 = vmatpush2.bf16.msra.mxu0 0
    %8092 = vmatprep.subr.bf16.mxu0 0
    %8093 = vmatpush2.bf16.msra.mxu0 0
    %8094 = vmatprep.subr.bf16.mxu0 0
    %8095 = vmatpush2.bf16.msra.mxu0 0
    %8096 = vmatprep.mubr.bf16.mxu0 0
    %8097 = vmatmul.mubr.bf16.gmra.mxu0 %v8014
    %v8098 = vpop.f32.mrf.mxu0
    %v8099 = vadd.f32 0.0, %v8098
    %v8100 = vpop.f32.mrf.mxu0
    %v8101 = vpop.f32.mrf.mxu0
    %v8102 = vadd.f32 0.0, %v8101
    %v8103 = vpop.f32.mrf.mxu0
    %8104 = vdwg.mxu0
    %v8107 = vrot.slane %v7986, 4
    %v8108 = vrot.slane %v7988, 4
    %v8111 = vunpack.c.l.bf16 %v8107
    %v8112 = vunpack.c.l.bf16 %v8108
    %v8113 = vadd.f32 %v8111, %v8099
    %v8114 = vadd.f32 %v8112, %v8102
    %v8115 = vxor.u32 %v8113, 2147483648
    %v8116 = vxor.u32 %v8114, 2147483648
    %v8117 = vmul.f32 %v8115, 1.442695
    %v8118 = vpow.pop %v8117
    %v8119 = vmul.f32 %v8116, 1.442695
    %v8120 = vpow.pop %v8119
    %v8121 = vadd.f32 %v8118, 1.0
    %v8122 = vadd.f32 %v8120, 1.0
    %v8123 = vrcp.pop %v8121
    %v8124 = vmul.f32 1.0, %v8123
    %v8125 = vrcp.pop %v8122
    %v8126 = vmul.f32 1.0, %v8125
    %v8127 = vmul.f32 %v8124, %v7992
    %v8128 = vmul.f32 %v8126, %v7993
    %v8129 = vld [vmem:[#allocation2] sm:$0xf]
    %v8130 = vld [vmem:[#allocation2 + $0x10] sm:$0xf]
    %v8131 = vld [vmem:[#allocation2 + $0x20] sm:$0xf]
    %v8132 = vld [vmem:[#allocation2 + $0x30] sm:$0xf]
    %v8133 = vld [vmem:[#allocation2 + $0x40] sm:$0xf]
    %v8134 = vld [vmem:[#allocation2 + $0x50] sm:$0xf]
    %v8135 = vld [vmem:[#allocation2 + $0x60] sm:$0xf]
    %v8136 = vld [vmem:[#allocation2 + $0x70] sm:$0xf]
    %v8137 = vld [vmem:[#allocation2 + $0x80] sm:$0xf]
    %v8138 = vld [vmem:[#allocation2 + $0x90] sm:$0xf]
    %v8139 = vld [vmem:[#allocation2 + $0xa0] sm:$0xf]
    %v8140 = vld [vmem:[#allocation2 + $0xb0] sm:$0xf]
    %v8141 = vld [vmem:[#allocation2 + $0xc0] sm:$0xf]
    %v8142 = vld [vmem:[#allocation2 + $0xd0] sm:$0xf]
    %v8143 = vld [vmem:[#allocation2 + $0xe0] sm:$0xf]
    %v8144 = vld [vmem:[#allocation2 + $0xf0] sm:$0xf]
    %v8161 = vunpack.c.l.b16 %v8129
    %v8162 = vunpack.c.l.b16 %v8130
    %v8163 = vunpack.c.l.b16 %v8131
    %v8164 = vunpack.c.l.b16 %v8132
    %v8165 = vunpack.c.l.b16 %v8133
    %v8166 = vunpack.c.l.b16 %v8134
    %v8167 = vunpack.c.l.b16 %v8135
    %v8168 = vunpack.c.l.b16 %v8136
    %v8169 = vunpack.c.l.b16 %v8137
    %v8170 = vunpack.c.l.b16 %v8138
    %v8171 = vunpack.c.l.b16 %v8139
    %v8172 = vunpack.c.l.b16 %v8140
    %v8173 = vunpack.c.l.b16 %v8141
    %v8174 = vunpack.c.l.b16 %v8142
    %v8175 = vunpack.c.l.b16 %v8143
    %v8176 = vunpack.c.l.b16 %v8144
    %v8177 = vpack.c.b16 %v8162, %v8161
    %v8178 = vpack.c.b16 %v8164, %v8163
    %v8179 = vpack.c.b16 %v8166, %v8165
    %v8180 = vpack.c.b16 %v8168, %v8167
    %v8181 = vpack.c.b16 %v8170, %v8169
    %v8182 = vpack.c.b16 %v8172, %v8171
    %v8183 = vpack.c.b16 %v8174, %v8173
    %v8184 = vpack.c.b16 %v8176, %v8175
    %8193 = vmatprep.subr.bf16.mxu0 0
    %8194 = vmatpush1.bf16.msra.mxu0 %v8184
    %8195 = vmatprep.subr.bf16.mxu0 0
    %8196 = vmatpush1.bf16.msra.mxu0 %v8183
    %8197 = vmatprep.subr.bf16.mxu0 0
    %8198 = vmatpush1.bf16.msra.mxu0 %v8182
    %8199 = vmatprep.subr.bf16.mxu0 0
    %8200 = vmatpush1.bf16.msra.mxu0 %v8181
    %8201 = vmatprep.subr.bf16.mxu0 0
    %8202 = vmatpush1.bf16.msra.mxu0 %v8180
    %8203 = vmatprep.subr.bf16.mxu0 0
    %8204 = vmatpush1.bf16.msra.mxu0 %v8179
    %8205 = vmatprep.subr.bf16.mxu0 0
    %8206 = vmatpush1.bf16.msra.mxu0 %v8178
    %8207 = vmatprep.subr.bf16.mxu0 0
    %8208 = vmatpush1.bf16.msra.mxu0 %v8177
    %8209 = vmatprep.subr.bf16.mxu0 0
    %8210 = vmatpush2.bf16.msra.mxu0 0
    %8211 = vmatprep.subr.bf16.mxu0 0
    %8212 = vmatpush2.bf16.msra.mxu0 0
    %8213 = vmatprep.subr.bf16.mxu0 0
    %8214 = vmatpush2.bf16.msra.mxu0 0
    %8215 = vmatprep.subr.bf16.mxu0 0
    %8216 = vmatpush2.bf16.msra.mxu0 0
    %8217 = vmatprep.subr.bf16.mxu0 0
    %8218 = vmatpush2.bf16.msra.mxu0 0
    %8219 = vmatprep.subr.bf16.mxu0 0
    %8220 = vmatpush2.bf16.msra.mxu0 0
    %8221 = vmatprep.subr.bf16.mxu0 0
    %8222 = vmatpush2.bf16.msra.mxu0 0
    %8223 = vmatprep.subr.bf16.mxu0 0
    %8224 = vmatpush2.bf16.msra.mxu0 0
    %8225 = vmatprep.mubr.bf16.mxu0 0
    %8226 = vmatmul.mubr.bf16.gmra.mxu0 %v8014
    %v8227 = vpop.f32.mrf.mxu0
    %v8228 = vadd.f32 0.0, %v8227
    %v8229 = vpop.f32.mrf.mxu0
    %v8230 = vpop.f32.mrf.mxu0
    %v8231 = vadd.f32 0.0, %v8230
    %v8232 = vpop.f32.mrf.mxu0
    %8233 = vdwg.mxu0
    %v8234 = vunpack.c.l.bf16 %v7986
    %v8235 = vunpack.c.l.bf16 %v7988
    %v8236 = vadd.f32 %v8234, %v8228
    %v8237 = vadd.f32 %v8235, %v8231
    %v8238 = vxor.u32 %v8236, 2147483648
    %v8239 = vxor.u32 %v8237, 2147483648
    %v8240 = vmul.f32 %v8238, 1.442695
    %v8241 = vpow.pop %v8240
    %v8242 = vmul.f32 %v8239, 1.442695
    %v8243 = vpow.pop %v8242
    %v8244 = vadd.f32 %v8241, 1.0
    %v8245 = vadd.f32 %v8243, 1.0
    %v8246 = vrcp.pop %v8244
    %v8247 = vmul.f32 1.0, %v8246
    %v8248 = vrcp.pop %v8245
    %v8249 = vmul.f32 1.0, %v8248
    %v8250 = vld [vmem:[#allocation2 + $0x8] sm:$0xf]
    %v8251 = vld [vmem:[#allocation2 + $0x18] sm:$0xf]
    %v8252 = vld [vmem:[#allocation2 + $0x28] sm:$0xf]
    %v8253 = vld [vmem:[#allocation2 + $0x38] sm:$0xf]
    %v8254 = vld [vmem:[#allocation2 + $0x48] sm:$0xf]
    %v8255 = vld [vmem:[#allocation2 + $0x58] sm:$0xf]
    %v8256 = vld [vmem:[#allocation2 + $0x68] sm:$0xf]
    %v8257 = vld [vmem:[#allocation2 + $0x78] sm:$0xf]
    %v8258 = vld [vmem:[#allocation2 + $0x88] sm:$0xf]
    %v8259 = vld [vmem:[#allocation2 + $0x98] sm:$0xf]
    %v8260 = vld [vmem:[#allocation2 + $0xa8] sm:$0xf]
    %v8261 = vld [vmem:[#allocation2 + $0xb8] sm:$0xf]
    %v8262 = vld [vmem:[#allocation2 + $0xc8] sm:$0xf]
    %v8263 = vld [vmem:[#allocation2 + $0xd8] sm:$0xf]
    %v8264 = vld [vmem:[#allocation2 + $0xe8] sm:$0xf]
    %v8265 = vld [vmem:[#allocation2 + $0xf8] sm:$0xf]
    %v8282 = vunpack.c.l.b16 %v8250
    %v8283 = vunpack.c.l.b16 %v8251
    %v8284 = vunpack.c.l.b16 %v8252
    %v8285 = vunpack.c.l.b16 %v8253
    %v8286 = vunpack.c.l.b16 %v8254
    %v8287 = vunpack.c.l.b16 %v8255
    %v8288 = vunpack.c.l.b16 %v8256
    %v8289 = vunpack.c.l.b16 %v8257
    %v8290 = vunpack.c.l.b16 %v8258
    %v8291 = vunpack.c.l.b16 %v8259
    %v8292 = vunpack.c.l.b16 %v8260
    %v8293 = vunpack.c.l.b16 %v8261
    %v8294 = vunpack.c.l.b16 %v8262
    %v8295 = vunpack.c.l.b16 %v8263
    %v8296 = vunpack.c.l.b16 %v8264
    %v8297 = vunpack.c.l.b16 %v8265
    %v8298 = vpack.c.b16 %v8283, %v8282
    %v8299 = vpack.c.b16 %v8285, %v8284
    %v8300 = vpack.c.b16 %v8287, %v8286
    %v8301 = vpack.c.b16 %v8289, %v8288
    %v8302 = vpack.c.b16 %v8291, %v8290
    %v8303 = vpack.c.b16 %v8293, %v8292
    %v8304 = vpack.c.b16 %v8295, %v8294
    %v8305 = vpack.c.b16 %v8297, %v8296
    %8314 = vmatprep.subr.bf16.mxu0 0
    %8315 = vmatpush1.bf16.msra.mxu0 %v8305
    %8316 = vmatprep.subr.bf16.mxu0 0
    %8317 = vmatpush1.bf16.msra.mxu0 %v8304
    %8318 = vmatprep.subr.bf16.mxu0 0
    %8319 = vmatpush1.bf16.msra.mxu0 %v8303
    %8320 = vmatprep.subr.bf16.mxu0 0
    %8321 = vmatpush1.bf16.msra.mxu0 %v8302
    %8322 = vmatprep.subr.bf16.mxu0 0
    %8323 = vmatpush1.bf16.msra.mxu0 %v8301
    %8324 = vmatprep.subr.bf16.mxu0 0
    %8325 = vmatpush1.bf16.msra.mxu0 %v8300
    %8326 = vmatprep.subr.bf16.mxu0 0
    %8327 = vmatpush1.bf16.msra.mxu0 %v8299
    %8328 = vmatprep.subr.bf16.mxu0 0
    %8329 = vmatpush1.bf16.msra.mxu0 %v8298
    %8330 = vmatprep.subr.bf16.mxu0 0
    %8331 = vmatpush2.bf16.msra.mxu0 0
    %8332 = vmatprep.subr.bf16.mxu0 0
    %8333 = vmatpush2.bf16.msra.mxu0 0
    %8334 = vmatprep.subr.bf16.mxu0 0
    %8335 = vmatpush2.bf16.msra.mxu0 0
    %8336 = vmatprep.subr.bf16.mxu0 0
    %8337 = vmatpush2.bf16.msra.mxu0 0
    %8338 = vmatprep.subr.bf16.mxu0 0
    %8339 = vmatpush2.bf16.msra.mxu0 0
    %8340 = vmatprep.subr.bf16.mxu0 0
    %8341 = vmatpush2.bf16.msra.mxu0 0
    %8342 = vmatprep.subr.bf16.mxu0 0
    %8343 = vmatpush2.bf16.msra.mxu0 0
    %8344 = vmatprep.subr.bf16.mxu0 0
    %8345 = vmatpush2.bf16.msra.mxu0 0
    %8346 = vmatprep.mubr.bf16.mxu0 0
    %8347 = vmatmul.mubr.bf16.gmra.mxu0 %v8014
    %v8348 = vpop.f32.mrf.mxu0
    %v8349 = vadd.f32 0.0, %v8348
    %v8350 = vpop.f32.mrf.mxu0
    %v8351 = vpop.f32.mrf.mxu0
    %v8352 = vadd.f32 0.0, %v8351
    %v8353 = vpop.f32.mrf.mxu0
    %8354 = vdwg.mxu0
    %v8355 = vunpack.c.l.bf16 %v7987
    %v8356 = vunpack.c.l.bf16 %v7989
    %v8357 = vadd.f32 %v8355, %v8349
    %v8358 = vadd.f32 %v8356, %v8352
    %v8359 = vtanh.pop %v8357
    %v8360 = vtanh.pop %v8358
    %v8361 = vmul.f32 %v8247, %v8359
    %v8362 = vmul.f32 %v8249, %v8360
    %v8363 = vadd.f32 %v8127, %v8361
    %v8364 = vadd.f32 %v8128, %v8362
    %v8365 = vld [vmem:[#allocation2 + $0xc] sm:$0xf]
    %v8366 = vld [vmem:[#allocation2 + $0x1c] sm:$0xf]
    %v8367 = vld [vmem:[#allocation2 + $0x2c] sm:$0xf]
    %v8368 = vld [vmem:[#allocation2 + $0x3c] sm:$0xf]
    %v8369 = vld [vmem:[#allocation2 + $0x4c] sm:$0xf]
    %v8370 = vld [vmem:[#allocation2 + $0x5c] sm:$0xf]
    %v8371 = vld [vmem:[#allocation2 + $0x6c] sm:$0xf]
    %v8372 = vld [vmem:[#allocation2 + $0x7c] sm:$0xf]
    %v8373 = vld [vmem:[#allocation2 + $0x8c] sm:$0xf]
    %v8374 = vld [vmem:[#allocation2 + $0x9c] sm:$0xf]
    %v8375 = vld [vmem:[#allocation2 + $0xac] sm:$0xf]
    %v8376 = vld [vmem:[#allocation2 + $0xbc] sm:$0xf]
    %v8377 = vld [vmem:[#allocation2 + $0xcc] sm:$0xf]
    %v8378 = vld [vmem:[#allocation2 + $0xdc] sm:$0xf]
    %v8379 = vld [vmem:[#allocation2 + $0xec] sm:$0xf]
    %v8380 = vld [vmem:[#allocation2 + $0xfc] sm:$0xf]
    %v8397 = vunpack.c.l.b16 %v8365
    %v8398 = vunpack.c.l.b16 %v8366
    %v8399 = vunpack.c.l.b16 %v8367
    %v8400 = vunpack.c.l.b16 %v8368
    %v8401 = vunpack.c.l.b16 %v8369
    %v8402 = vunpack.c.l.b16 %v8370
    %v8403 = vunpack.c.l.b16 %v8371
    %v8404 = vunpack.c.l.b16 %v8372
    %v8405 = vunpack.c.l.b16 %v8373
    %v8406 = vunpack.c.l.b16 %v8374
    %v8407 = vunpack.c.l.b16 %v8375
    %v8408 = vunpack.c.l.b16 %v8376
    %v8409 = vunpack.c.l.b16 %v8377
    %v8410 = vunpack.c.l.b16 %v8378
    %v8411 = vunpack.c.l.b16 %v8379
    %v8412 = vunpack.c.l.b16 %v8380
    %v8413 = vpack.c.b16 %v8398, %v8397
    %v8414 = vpack.c.b16 %v8400, %v8399
    %v8415 = vpack.c.b16 %v8402, %v8401
    %v8416 = vpack.c.b16 %v8404, %v8403
    %v8417 = vpack.c.b16 %v8406, %v8405
    %v8418 = vpack.c.b16 %v8408, %v8407
    %v8419 = vpack.c.b16 %v8410, %v8409
    %v8420 = vpack.c.b16 %v8412, %v8411
    %8429 = vmatprep.subr.bf16.mxu0 0
    %8430 = vmatpush1.bf16.msra.mxu0 %v8420
    %8431 = vmatprep.subr.bf16.mxu0 0
    %8432 = vmatpush1.bf16.msra.mxu0 %v8419
    %8433 = vmatprep.subr.bf16.mxu0 0
    %8434 = vmatpush1.bf16.msra.mxu0 %v8418
    %8435 = vmatprep.subr.bf16.mxu0 0
    %8436 = vmatpush1.bf16.msra.mxu0 %v8417
    %8437 = vmatprep.subr.bf16.mxu0 0
    %8438 = vmatpush1.bf16.msra.mxu0 %v8416
    %8439 = vmatprep.subr.bf16.mxu0 0
    %8440 = vmatpush1.bf16.msra.mxu0 %v8415
    %8441 = vmatprep.subr.bf16.mxu0 0
    %8442 = vmatpush1.bf16.msra.mxu0 %v8414
    %8443 = vmatprep.subr.bf16.mxu0 0
    %8444 = vmatpush1.bf16.msra.mxu0 %v8413
    %8445 = vmatprep.subr.bf16.mxu0 0
    %8446 = vmatpush2.bf16.msra.mxu0 0
    %8447 = vmatprep.subr.bf16.mxu0 0
    %8448 = vmatpush2.bf16.msra.mxu0 0
    %8449 = vmatprep.subr.bf16.mxu0 0
    %8450 = vmatpush2.bf16.msra.mxu0 0
    %8451 = vmatprep.subr.bf16.mxu0 0
    %8452 = vmatpush2.bf16.msra.mxu0 0
    %8453 = vmatprep.subr.bf16.mxu0 0
    %8454 = vmatpush2.bf16.msra.mxu0 0
    %8455 = vmatprep.subr.bf16.mxu0 0
    %8456 = vmatpush2.bf16.msra.mxu0 0
    %8457 = vmatprep.subr.bf16.mxu0 0
    %8458 = vmatpush2.bf16.msra.mxu0 0
    %8459 = vmatprep.subr.bf16.mxu0 0
    %8460 = vmatpush2.bf16.msra.mxu0 0
    %8461 = vmatprep.mubr.bf16.mxu0 0
    %8462 = vmatmul.mubr.bf16.gmra.mxu0 %v8014
    %v8463 = vpop.f32.mrf.mxu0
    %v8464 = vadd.f32 0.0, %v8463
    %v8465 = vpop.f32.mrf.mxu0
    %v8466 = vpop.f32.mrf.mxu0
    %v8467 = vadd.f32 0.0, %v8466
    %v8468 = vpop.f32.mrf.mxu0
    %8469 = vdwg.mxu0
    %v8472 = vrot.slane %v7987, 4
    %v8473 = vrot.slane %v7989, 4
    %v8476 = vunpack.c.l.bf16 %v8472
    %v8477 = vunpack.c.l.bf16 %v8473
    %v8478 = vadd.f32 %v8476, %v8464
    %v8479 = vadd.f32 %v8477, %v8467
    %v8480 = vxor.u32 %v8478, 2147483648
    %v8481 = vxor.u32 %v8479, 2147483648
    %v8482 = vmul.f32 %v8480, 1.442695
    %v8483 = vpow.pop %v8482
    %v8484 = vmul.f32 %v8481, 1.442695
    %v8485 = vpow.pop %v8484
    %v8486 = vadd.f32 %v8483, 1.0
    %v8487 = vadd.f32 %v8485, 1.0
    %v8488 = vrcp.pop %v8486
    %v8489 = vmul.f32 1.0, %v8488
    %v8490 = vrcp.pop %v8487
    %v8491 = vmul.f32 1.0, %v8490
    %v8492 = vtanh.pop %v8363
    %v8493 = vtanh.pop %v8364
    %v8494 = vmul.f32 %v8489, %v8492
    %v8495 = vmul.f32 %v8491, %v8493
    %v8496 = vpack.c.bf16 %v8495, %v8494
    %v8498 = vunpack.c.l.b16 %v8496
    %v8499 = vunpack.c.h.b16 %v8496
    %v8500 = vpack.c.b16 %v8498, %v8498
    %v8501 = vpack.c.b16 %v8499, %v8499
    %8504 = vst [vmem:[#allocation3] sm:$0xf] %v8500
    %8505 = vst [vmem:[#allocation3 + $0x4] sm:$0xf] %v8501
    %8506 = vst [vmem:[#allocation4] sm:$0xff] %v8363
    %8507 = vst [vmem:[#allocation4 + $0x8] sm:$0xff] %v8364
    %s8508 = scalar_lea.vmem [#allocation12], 240
    %8509 = vst [vmem:[%s8508] sm:$0xff] %v8494
    %8510 = vst [vmem:[%s8508 + $0x8] sm:$0xff] %v8495
    // Predicated region
    $region34: #{tpu_custom_call.1} parent=1 // pred_check
      %p8511 = pneg %p62
    $region35: #{tpu_custom_call.1} parent=1 // pred_check_branch
      %8513 = sbr.rel (%p8511) target = $region37
    $region36: #{tpu_custom_call.1} parent=1 // pred_region
      %v8514 = vld [vmem:[#allocation3] sm:$0xf]
      %v8515 = vld [vmem:[#allocation3 + $0x4] sm:$0xf]
      %v8516 = vunpack.c.l.bf16 %v8514
      %v8517 = vunpack.c.l.bf16 %v8515
      %8518 = vst [vmem:[#allocation13] sm:$0xff] %v8516
      %8519 = vst [vmem:[#allocation13 + $0x8] sm:$0xff] %v8517
      %v8520 = vld [vmem:[#allocation4] sm:$0xff]
      %v8521 = vld [vmem:[#allocation4 + $0x8] sm:$0xff]
      %8522 = vst [vmem:[#allocation15] sm:$0xff] %v8520
      %8523 = vst [vmem:[#allocation15 + $0x8] sm:$0xff] %v8521
    $region37: #{tpu_custom_call.1} parent=1 // pred_fallthru
      _
    // Predicated region
    $region38: #{tpu_custom_call.1} parent=1 // pred_check
      _
    $region39: #{tpu_custom_call.1} parent=1 // pred_check_branch
      %8525 = sbr.rel (0) target = $region41
    $region40: #{tpu_custom_call.1} parent=1 // pred_region
      %s8527 = ssub.s32 4096, 4096
      %8528 = vsyncadd [#allocation8], %s8527
      %s8529 = sshll.u32 [#allocation12], 4
      %s8530 = int_to_ptr.vmem [resolvable:$true] %s8529
      %8535 = dma.vmem_to_hbm [thread:$0]  %s8530, 4096, %s4, [#allocation8], 128, 128, 8
    $region41: #{tpu_custom_call.1} parent=1 // pred_fallthru
      _
    // Predicated region
    $region42: #{tpu_custom_call.1} parent=1 // pred_check
      _
    $region43: #{tpu_custom_call.1} parent=1 // pred_check_branch
      %8537 = sbr.rel (0) target = $region45
    $region44: #{tpu_custom_call.1} parent=1 // pred_region
      %s8539 = ssub.s32 256, 256
      %8540 = vsyncadd [#allocation14], %s8539
      %s8541 = sshll.u32 [#allocation13], 4
      %s8542 = int_to_ptr.vmem [resolvable:$true] %s8541
      %8547 = dma.vmem_to_hbm [thread:$0]  %s8542, 256, %s5, [#allocation14], 128, 128, 8
    $region45: #{tpu_custom_call.1} parent=1 // pred_fallthru
      _
    // Predicated region
    $region46: #{tpu_custom_call.1} parent=1 // pred_check
      _
    $region47: #{tpu_custom_call.1} parent=1 // pred_check_branch
      %8549 = sbr.rel (0) target = $region49
    $region48: #{tpu_custom_call.1} parent=1 // pred_region
      %s8551 = ssub.s32 256, 256
      %8552 = vsyncadd [#allocation14], %s8551
      %s8553 = sshll.u32 [#allocation15], 4
      %s8554 = int_to_ptr.vmem [resolvable:$true] %s8553
      %8559 = dma.vmem_to_hbm [thread:$0]  %s8554, 256, %s6, [#allocation14], 128, 128, 8
    $region49: #{tpu_custom_call.1} parent=1 // pred_fallthru
      _
    // Predicated region
    $region50: #{tpu_custom_call.1} parent=1 // pred_check
      _
    $region51: #{tpu_custom_call.1} parent=1 // pred_check_branch
      %8561 = sbr.rel (0) target = $region53
    $region52: #{tpu_custom_call.1} parent=1 // pred_region
      %8562 = dma.done [#allocation8], 4096
    $region53: #{tpu_custom_call.1} parent=1 // pred_fallthru
      _
    // Predicated region
    $region54: #{tpu_custom_call.1} parent=1 // pred_check
      _
    $region55: #{tpu_custom_call.1} parent=1 // pred_check_branch
      %8564 = sbr.rel (0) target = $region57
    $region56: #{tpu_custom_call.1} parent=1 // pred_region
      %8565 = dma.done [#allocation14], 256
    $region57: #{tpu_custom_call.1} parent=1 // pred_fallthru
      _
    // Predicated region
    $region58: #{tpu_custom_call.1} parent=1 // pred_check
      _
    $region59: #{tpu_custom_call.1} parent=1 // pred_check_branch
      %8567 = sbr.rel (0) target = $region61
    $region60: #{tpu_custom_call.1} parent=1 // pred_region
      %8568 = dma.done [#allocation14], 256
    $region61: #{tpu_custom_call.1} parent=1 // pred_fallthru
      _
    %8569 = vsyncpa [#allocation7], 1
    %8570 = vsyncpa [#allocation10], 1
    %8571 = vsyncpa [#allocation8], 1
    %8572 = vsyncpa [#allocation14], 1
  %8573 = vsyncmov [#allocation5]
  %s8574 = vpop.sfrf %8573
  %p8575 = scmp.eq.s32.totalorder %s8574, 0
  %p8576 = pneg %p8575
  %8578 = shalt.err (%p8576)

</llo_original>
